<compile_context>
chip_gen: v6e
topology: v6e:2x2x1
jax: 0.10.0
libtpu: 0.0.40
codegen_flags: <defaults>
</compile_context>

<pallas_src>
import jax
import jax.numpy as jnp
from jax.experimental import pallas as pl
from jax.experimental.pallas import tpu as pltpu


def _upsample_matrix(in_size: int) -> jnp.ndarray:
    """(2*in_size, in_size) matrix implementing torch bilinear upsample
    (scale_factor=2, align_corners=False) along one spatial axis."""
    out_size = 2 * in_size
    i = jnp.arange(out_size, dtype=jnp.float32)
    src = jnp.maximum((i + 0.5) * 0.5 - 0.5, 0.0)   # torch clamps negative src to 0
    i0 = jnp.clip(jnp.floor(src).astype(jnp.int32), 0, in_size - 1)
    i1 = jnp.clip(i0 + 1, 0, in_size - 1)
    frac = src - i0.astype(jnp.float32)
    rows = jnp.arange(out_size)
    m = jnp.zeros((out_size, in_size), jnp.float32)
    m = m.at[rows, i0].add(1.0 - frac)
    m = m.at[rows, i1].add(frac)
    return m


def _vmem_capacity_bytes() -> int:
    try:
        info = pltpu.get_tpu_info()
        cap = getattr(info, "vmem_capacity_bytes", None)
        if cap:
            return int(cap)
    except Exception:
        pass
    return 64 * 1024 * 1024   # conservative default (v7x per-core VMEM)


def _step_vmem_bytes(cin, cout, hp, w, tr, ow) -> int:
    """Rough per-grid-step VMEM footprint (pipeline buffers + live temporaries)."""
    hb, ht, trp, owp = tr // 2, tr // 2 + 2, tr + 2, ow + 2
    bf, f32 = 2, 4
    x_blk = cin * hp * w * bf
    uwpt = w * owp * bf
    wconv = 9 * cout * cin * bf
    bias = cout * f32
    out_blk = cout * tr * ow * f32
    pipelined = 2 * (x_blk + uwpt + wconv + bias + out_blk)   # double-buffered
    t_val = cin * ht * owp * f32                              # stage-1 result
    u_val = 2 * cin * (hb + 1) * owp * f32 + cin * trp * owp * (f32 + bf)
    tap = cin * tr * ow * bf
    acc = 2 * cout * tr * ow * f32
    return pipelined + t_val + u_val + tap + acc


def _pick_num_row_tiles(n, cin, cout, h, w, budget) -> int:
    """Fewest row tiles (largest blocks) fitting the VMEM budget, >=2 tiles when
    batch==1 (megacore), and a lane-dense / BlockSpec-legal output tile
    (TR*OW % 128 == 0, or a single full-height tile)."""
    oh, ow = 2 * h, 2 * w
    want_min = 2 if n < 2 else 1
    cands = []
    for nr in range(1, h + 1):
        if h % nr:                       # need an integer number of input rows per tile
            continue
        tr = oh // nr
        if nr != 1 and (tr * ow) % 128:  # keep output stores unmasked / block legal
            continue
        cands.append(nr)

    def fits(nr):
        return _step_vmem_bytes(cin, cout, h + 2, w, oh // nr, ow) <= budget

    for nr in cands:                     # smallest nr = largest tiles first
        if nr >= want_min and fits(nr):
            return nr
    for nr in cands:
        if fits(nr):
            return nr
    return cands[-1]                     # nothing fits: most-tiled legal option
    # TODO(synk): add column (OW) tiling with a dx halo for very large images.


def _upsample_conv_kernel(x_ref, uwpt_ref, w_ref, b_ref, o_ref):
    # x_ref:    (1, Cin, H+2, W)  bf16  image, H edge-replicate padded by 1 row/side
    # uwpt_ref: (W, OW+2)         bf16  W-upsample matrix^T, conv zero-pad cols folded in
    # w_ref:    (9, Cout, Cin)    bf16  conv weights per tap, k = dy*3 + dx
    # b_ref:    (Cout, 1)         f32   bias
    # o_ref:    (1, Cout, TR*OW)        lane-dense output row tile
    cin = x_ref.shape[1]
    w_in = x_ref.shape[3]
    owp = uwpt_ref.shape[1]
    ow = owp - 2
    cout = w_ref.shape[1]
    tr = o_ref.shape[2] // ow
    hb = tr // 2            # input rows covered by this tile
    ht = hb + 2             # padded-input rows this tile reads
    trp = tr + 2            # upsampled rows incl. conv halo

    r = pl.program_id(1)
    nr = pl.num_programs(1)

    # ---- Stage 1: W-axis bilinear upsample (+ conv zero-pad columns), only on
    # the HT padded input rows this row tile needs. One MXU matmul, f32 acc.
    align = hb & -hb
    start = r * hb
    if align > 1:
        start = pl.multiple_of(start, align)
    xw = x_ref[0, :, pl.ds(start, ht), :]                     # (Cin, HT, W) bf16
    t = jnp.dot(xw.reshape(cin * ht, w_in), uwpt_ref[...],
                preferred_element_type=jnp.float32)           # (Cin*HT, OW+2) f32
    t = t.reshape(cin, ht, owp)

    # ---- Stage 2: H-axis bilinear upsample as a 2-tap VPU combine.
    # With the edge-replicate pad every tile uses the same static taps:
    #   upsampled padded row 2q   = 0.75*t[q] + 0.25*t[q+1]
    #   upsampled padded row 2q+1 = 0.25*t[q] + 0.75*t[q+1]
    t0 = t[:, 0:hb + 1, :]
    t1 = t[:, 1:hb + 2, :]
    u_ev = 0.75 * t0 + 0.25 * t1                              # padded rows 0,2,...,TR
    u_od = 0.25 * t0 + 0.75 * t1                              # padded rows 1,3,...,TR+1
    u = jnp.stack([u_ev, u_od], axis=2).reshape(cin, trp, owp)

    # Conv's zero padding along H: zero the halo rows at the image borders.
    row = jax.lax.broadcasted_iota(jnp.int32, (1, trp, 1), 1)
    keep = jnp.logical_and(jnp.logical_or(row > 0, r > 0),
                           jnp.logical_or(row < trp - 1, r < nr - 1))
    u = jnp.where(keep, u, 0.0).astype(jnp.bfloat16)          # (Cin, TRp, OW+2)

    # ---- Stage 3: 3x3 conv accumulated over its 9 taps (no im2col concat).
    acc = jnp.zeros((cout, tr * ow), jnp.float32)
    for dy in range(3):
        for dx in range(3):
            tap = u[:, dy:dy + tr, dx:dx + ow].reshape(cin, tr * ow)
            acc = acc + jnp.dot(w_ref[dy * 3 + dx], tap,
                                preferred_element_type=jnp.float32)
    o_ref[0] = (acc + b_ref[...]).astype(o_ref.dtype)         # lane-dense store


def upsample_module_forward(x_nchw, conv_weight_oihw, conv_bias, *, out_dtype=None):
    """Equivalent of UpSample(in_ch, out_ch).forward(x), x in NCHW."""
    n, cin, h, w = x_nchw.shape
    cout = conv_weight_oihw.shape[0]
    oh, ow = 2 * h, 2 * w
    owp = ow + 2
    out_dtype = out_dtype or x_nchw.dtype

    vmem_cap = _vmem_capacity_bytes()
    num_r = _pick_num_row_tiles(n, cin, cout, h, w, int(0.7 * vmem_cap))
    tr = oh // num_r
    ht = tr // 2 + 2

    # Edge-replicate pad by 1 row on each side along H: makes the in-kernel 2-tap
    # H-upsample uniform for every row tile (equivalent to torch's clamping).
    xp = jnp.pad(x_nchw, ((0, 0), (0, 0), (1, 1), (0, 0)), mode="edge")
    xp = xp.astype(jnp.bfloat16)

    # W interpolation matrix (exact torch formula), transposed, with the conv's
    # zero-pad columns folded in.
    uw = _upsample_matrix(w)                                  # (OW, W)
    zw = jnp.zeros((1, w), jnp.float32)
    uwp_t = jnp.concatenate([zw, uw, zw], axis=0).T.astype(jnp.bfloat16)  # (W, OW+2)

    # Conv weights per tap: (9, Cout, Cin), k = dy*3 + dx.
    w9 = jnp.transpose(conv_weight_oihw, (2, 3, 0, 1)).reshape(9, cout, cin)
    w9 = w9.astype(jnp.bfloat16)
    bias = conv_bias.reshape(cout, 1).astype(jnp.float32)

    vmem_est = _step_vmem_bytes(cin, cout, h + 2, w, tr, ow)
    vmem_limit = int(min(vmem_cap,
                         max(32 * 1024 * 1024, int(1.5 * vmem_est) + (4 << 20))))

    out_bytes = n * cout * oh * ow * jnp.dtype(out_dtype).itemsize
    cost = pl.CostEstimate(
        flops=int(2 * n * num_r * cin * ht * w * owp
                  + 2 * n * 9 * cin * cout * oh * ow),
        transcendentals=0,
        bytes_accessed=int(xp.size * 2 + uwp_t.size * 2 + w9.size * 2
                           + bias.size * 4 + out_bytes),
    )

    out_flat = pl.pallas_call(
        _upsample_conv_kernel,
        out_shape=jax.ShapeDtypeStruct((n, cout, oh * ow), out_dtype),
        grid_spec=pltpu.PrefetchScalarGridSpec(
            num_scalar_prefetch=0,
            grid=(n, num_r),
            in_specs=[
                # full padded image: resident and invariant across the row-tile axis
                pl.BlockSpec((1, cin, h + 2, w), lambda i, r: (i, 0, 0, 0)),
                pl.BlockSpec((w, owp), lambda i, r: (0, 0)),
                pl.BlockSpec((9, cout, cin), lambda i, r: (0, 0, 0)),
                pl.BlockSpec((cout, 1), lambda i, r: (0, 0)),
            ],
            out_specs=pl.BlockSpec((1, cout, tr * ow), lambda i, r: (i, 0, r)),
        ),
        compiler_params=pltpu.CompilerParams(
            dimension_semantics=("parallel", "parallel"),
            vmem_limit_bytes=vmem_limit),
        cost_estimate=cost,
    )(xp, uwp_t, w9, bias)

    # Metadata-only reshape back to NCHW spatial layout.
    return out_flat.reshape(n, cout, oh, ow)


def _reference_forward(x_nchw, conv_weight_oihw, conv_bias):
    """Plain-JAX f32 reference (same math) for a correctness smoke test."""
    _, _, h, w = x_nchw.shape
    uh = _upsample_matrix(h)
    uw = _upsample_matrix(w)
    up = jnp.einsum('ph,nchw->ncpw', uh, x_nchw)
    up = jnp.einsum('qw,ncpw->ncpq', uw, up)
    out = jax.lax.conv_general_dilated(
        up, conv_weight_oihw, window_strides=(1, 1), padding=((1, 1), (1, 1)),
        dimension_numbers=('NCHW', 'OIHW', 'NCHW'))
    return out + conv_bias.reshape(1, -1, 1, 1)


if __name__ == "__main__":
    key = jax.random.PRNGKey(0)
    kx, kw, kb = jax.random.split(key, 3)

    N, CIN, COUT, H, W = 2, 4, 8, 16, 16
    x = jax.random.normal(kx, (N, CIN, H, W), jnp.float32)            # NCHW input
    conv_weight = jax.random.normal(kw, (COUT, CIN, 3, 3), jnp.float32) * 0.1
    conv_bias = jax.random.normal(kb, (COUT,), jnp.float32) * 0.1

    out = jax.block_until_ready(upsample_module_forward(x, conv_weight, conv_bias))

    assert out.shape == (N, COUT, 2 * H, 2 * W), out.shape
    ref = _reference_forward(x, conv_weight, conv_bias)
    max_err = float(jnp.max(jnp.abs(out - ref)))
    assert jnp.allclose(out, ref, atol=2e-2, rtol=2e-2), f"max_err={max_err}"

    print("KERNEL_OK")
</pallas_src>

<mosaic_0001>
module attributes {stable_mosaic.version = 11 : i64} {
  func.func @_upsample_conv_kernel(%arg0: i32, %arg1: i32, %arg2: memref<1x4x18x16xbf16, #tpu.memory_space<vmem>>, %arg3: memref<16x34xbf16, #tpu.memory_space<vmem>>, %arg4: memref<9x8x4xbf16, #tpu.memory_space<vmem>>, %arg5: memref<8x1xf32, #tpu.memory_space<vmem>>, %arg6: memref<1x8x1024xf32, #tpu.memory_space<vmem>>) attributes {dimension_semantics = [#tpu.dimension_semantics<parallel>, #tpu.dimension_semantics<parallel>], iteration_bounds = array<i64: 2, 1>, scalar_prefetch = 0 : i64, scratch_operands = 0 : i64, tpu.core_type = #tpu.core_type<tc>, window_params = [{transform_indices = @transform_0, window_bounds = array<i64: 1, 4, 18, 16>}, {pipeline_mode = #tpu.pipeline_mode<synchronous>, transform_indices = @transform_1, window_bounds = array<i64: 16, 34>}, {pipeline_mode = #tpu.pipeline_mode<synchronous>, transform_indices = @transform_2, window_bounds = array<i64: 9, 8, 4>}, {pipeline_mode = #tpu.pipeline_mode<synchronous>, transform_indices = @transform_3, window_bounds = array<i64: 8, 1>}, {transform_indices = @transform_4, window_bounds = array<i64: 1, 8, 1024>}]} {
    %c16_i32 = arith.constant 16 : i32
    %0 = arith.muli %arg1, %c16_i32 : i32
    %1 = tpu.assume_multiple %0, 16 : i32
    %c0 = arith.constant 0 : index
    %c0_0 = arith.constant 0 : index
    %2 = arith.index_cast %1 : i32 to index
    %c0_1 = arith.constant 0 : index
    %3 = vector.load %arg2[%c0, %c0_0, %2, %c0_1] : memref<1x4x18x16xbf16, #tpu.memory_space<vmem>>, vector<1x4x18x16xbf16>
    %4 = vector.shape_cast %3 : vector<1x4x18x16xbf16> to vector<4x18x16xbf16>
    %5 = vector.shape_cast %4 : vector<4x18x16xbf16> to vector<72x16xbf16>
    %c0_2 = arith.constant 0 : index
    %c0_3 = arith.constant 0 : index
    %6 = vector.load %arg3[%c0_2, %c0_3] : memref<16x34xbf16, #tpu.memory_space<vmem>>, vector<16x34xbf16>
    %cst = arith.constant dense<0.000000e+00> : vector<72x34xf32>
    %7 = tpu.matmul %5, %6, %cst {dimension_numbers = #tpu.dot_dimension_numbers<[1], [0], [0], [1], [0, 0, 1, 1], [], []>} : vector<72x16xbf16>, vector<16x34xbf16>, vector<72x34xf32> -> vector<72x34xf32>
    %8 = vector.shape_cast %7 : vector<72x34xf32> to vector<4x18x34xf32>
    %9 = vector.extract_strided_slice %8 {offsets = [0, 0, 0], sizes = [4, 17, 34], strides = [1, 1, 1]} : vector<4x18x34xf32> to vector<4x17x34xf32>
    %10 = vector.extract_strided_slice %8 {offsets = [0, 1, 0], sizes = [4, 17, 34], strides = [1, 1, 1]} : vector<4x18x34xf32> to vector<4x17x34xf32>
    %cst_4 = arith.constant 7.500000e-01 : f32
    %11 = vector.broadcast %cst_4 : f32 to vector<4x17x34xf32>
    %12 = arith.mulf %11, %9 : vector<4x17x34xf32>
    %cst_5 = arith.constant 2.500000e-01 : f32
    %13 = vector.broadcast %cst_5 : f32 to vector<4x17x34xf32>
    %14 = arith.mulf %13, %10 : vector<4x17x34xf32>
    %15 = arith.addf %12, %14 : vector<4x17x34xf32>
    %cst_6 = arith.constant 2.500000e-01 : f32
    %16 = vector.broadcast %cst_6 : f32 to vector<4x17x34xf32>
    %17 = arith.mulf %16, %9 : vector<4x17x34xf32>
    %cst_7 = arith.constant 7.500000e-01 : f32
    %18 = vector.broadcast %cst_7 : f32 to vector<4x17x34xf32>
    %19 = arith.mulf %18, %10 : vector<4x17x34xf32>
    %20 = arith.addf %17, %19 : vector<4x17x34xf32>
    %21 = vector.shape_cast %15 : vector<4x17x34xf32> to vector<4x17x1x34xf32>
    %22 = vector.shape_cast %20 : vector<4x17x34xf32> to vector<4x17x1x34xf32>
    %23 = tpu.concatenate %21, %22 in 2 : vector<4x17x1x34xf32>, vector<4x17x1x34xf32> -> vector<4x17x2x34xf32>
    %24 = vector.shape_cast %23 : vector<4x17x2x34xf32> to vector<4x34x34xf32>
    %25 = tpu.iota {dimensions = array<i32: 1>} : vector<1x34x1xi32>
    %c0_i32 = arith.constant 0 : i32
    %26 = vector.broadcast %c0_i32 : i32 to vector<1x34x1xi32>
    %27 = arith.cmpi sgt, %25, %26 : vector<1x34x1xi32>
    %c0_i32_8 = arith.constant 0 : i32
    %28 = arith.cmpi sgt, %arg1, %c0_i32_8 : i32
    %29 = vector.broadcast %28 : i1 to vector<1x34x1xi1>
    %30 = arith.ori %27, %29 : vector<1x34x1xi1>
    %c33_i32 = arith.constant 33 : i32
    %31 = vector.broadcast %c33_i32 : i32 to vector<1x34x1xi32>
    %32 = arith.cmpi slt, %25, %31 : vector<1x34x1xi32>
    %c0_i32_9 = arith.constant 0 : i32
    %33 = arith.cmpi slt, %arg1, %c0_i32_9 : i32
    %34 = vector.broadcast %33 : i1 to vector<1x34x1xi1>
    %35 = arith.ori %32, %34 : vector<1x34x1xi1>
    %36 = arith.andi %30, %35 : vector<1x34x1xi1>
    %cst_10 = arith.constant 0.000000e+00 : f32
    %37 = vector.shape_cast %36 : vector<1x34x1xi1> to vector<1x34x1xi1>
    %38 = vector.broadcast %37 : vector<1x34x1xi1> to vector<4x34x34xi1>
    %39 = vector.broadcast %cst_10 : f32 to vector<4x34x34xf32>
    %40 = arith.select %38, %24, %39 : vector<4x34x34xi1>, vector<4x34x34xf32>
    %41 = arith.truncf %40 : vector<4x34x34xf32> to vector<4x34x34xbf16>
    %cst_11 = arith.constant 0.000000e+00 : f32
    %42 = vector.broadcast %cst_11 : f32 to vector<8x1024xf32>
    %43 = vector.extract_strided_slice %41 {offsets = [0, 0, 0], sizes = [4, 32, 32], strides = [1, 1, 1]} : vector<4x34x34xbf16> to vector<4x32x32xbf16>
    %44 = vector.shape_cast %43 : vector<4x32x32xbf16> to vector<4x1024xbf16>
    %c0_12 = arith.constant 0 : index
    %c0_13 = arith.constant 0 : index
    %c0_14 = arith.constant 0 : index
    %45 = vector.load %arg4[%c0_12, %c0_13, %c0_14] : memref<9x8x4xbf16, #tpu.memory_space<vmem>>, vector<1x8x4xbf16>
    %46 = vector.shape_cast %45 : vector<1x8x4xbf16> to vector<8x4xbf16>
    %cst_15 = arith.constant dense<0.000000e+00> : vector<8x1024xf32>
    %47 = tpu.matmul %46, %44, %cst_15 {dimension_numbers = #tpu.dot_dimension_numbers<[1], [0], [0], [1], [0, 0, 1, 1], [], []>} : vector<8x4xbf16>, vector<4x1024xbf16>, vector<8x1024xf32> -> vector<8x1024xf32>
    %48 = arith.addf %42, %47 : vector<8x1024xf32>
    %49 = vector.extract_strided_slice %41 {offsets = [0, 0, 1], sizes = [4, 32, 32], strides = [1, 1, 1]} : vector<4x34x34xbf16> to vector<4x32x32xbf16>
    %50 = vector.shape_cast %49 : vector<4x32x32xbf16> to vector<4x1024xbf16>
    %c1 = arith.constant 1 : index
    %c0_16 = arith.constant 0 : index
    %c0_17 = arith.constant 0 : index
    %51 = vector.load %arg4[%c1, %c0_16, %c0_17] : memref<9x8x4xbf16, #tpu.memory_space<vmem>>, vector<1x8x4xbf16>
    %52 = vector.shape_cast %51 : vector<1x8x4xbf16> to vector<8x4xbf16>
    %cst_18 = arith.constant dense<0.000000e+00> : vector<8x1024xf32>
    %53 = tpu.matmul %52, %50, %cst_18 {dimension_numbers = #tpu.dot_dimension_numbers<[1], [0], [0], [1], [0, 0, 1, 1], [], []>} : vector<8x4xbf16>, vector<4x1024xbf16>, vector<8x1024xf32> -> vector<8x1024xf32>
    %54 = arith.addf %48, %53 : vector<8x1024xf32>
    %55 = vector.extract_strided_slice %41 {offsets = [0, 0, 2], sizes = [4, 32, 32], strides = [1, 1, 1]} : vector<4x34x34xbf16> to vector<4x32x32xbf16>
    %56 = vector.shape_cast %55 : vector<4x32x32xbf16> to vector<4x1024xbf16>
    %c2 = arith.constant 2 : index
    %c0_19 = arith.constant 0 : index
    %c0_20 = arith.constant 0 : index
    %57 = vector.load %arg4[%c2, %c0_19, %c0_20] : memref<9x8x4xbf16, #tpu.memory_space<vmem>>, vector<1x8x4xbf16>
    %58 = vector.shape_cast %57 : vector<1x8x4xbf16> to vector<8x4xbf16>
    %cst_21 = arith.constant dense<0.000000e+00> : vector<8x1024xf32>
    %59 = tpu.matmul %58, %56, %cst_21 {dimension_numbers = #tpu.dot_dimension_numbers<[1], [0], [0], [1], [0, 0, 1, 1], [], []>} : vector<8x4xbf16>, vector<4x1024xbf16>, vector<8x1024xf32> -> vector<8x1024xf32>
    %60 = arith.addf %54, %59 : vector<8x1024xf32>
    %61 = vector.extract_strided_slice %41 {offsets = [0, 1, 0], sizes = [4, 32, 32], strides = [1, 1, 1]} : vector<4x34x34xbf16> to vector<4x32x32xbf16>
    %62 = vector.shape_cast %61 : vector<4x32x32xbf16> to vector<4x1024xbf16>
    %c3 = arith.constant 3 : index
    %c0_22 = arith.constant 0 : index
    %c0_23 = arith.constant 0 : index
    %63 = vector.load %arg4[%c3, %c0_22, %c0_23] : memref<9x8x4xbf16, #tpu.memory_space<vmem>>, vector<1x8x4xbf16>
    %64 = vector.shape_cast %63 : vector<1x8x4xbf16> to vector<8x4xbf16>
    %cst_24 = arith.constant dense<0.000000e+00> : vector<8x1024xf32>
    %65 = tpu.matmul %64, %62, %cst_24 {dimension_numbers = #tpu.dot_dimension_numbers<[1], [0], [0], [1], [0, 0, 1, 1], [], []>} : vector<8x4xbf16>, vector<4x1024xbf16>, vector<8x1024xf32> -> vector<8x1024xf32>
    %66 = arith.addf %60, %65 : vector<8x1024xf32>
    %67 = vector.extract_strided_slice %41 {offsets = [0, 1, 1], sizes = [4, 32, 32], strides = [1, 1, 1]} : vector<4x34x34xbf16> to vector<4x32x32xbf16>
    %68 = vector.shape_cast %67 : vector<4x32x32xbf16> to vector<4x1024xbf16>
    %c4 = arith.constant 4 : index
    %c0_25 = arith.constant 0 : index
    %c0_26 = arith.constant 0 : index
    %69 = vector.load %arg4[%c4, %c0_25, %c0_26] : memref<9x8x4xbf16, #tpu.memory_space<vmem>>, vector<1x8x4xbf16>
    %70 = vector.shape_cast %69 : vector<1x8x4xbf16> to vector<8x4xbf16>
    %cst_27 = arith.constant dense<0.000000e+00> : vector<8x1024xf32>
    %71 = tpu.matmul %70, %68, %cst_27 {dimension_numbers = #tpu.dot_dimension_numbers<[1], [0], [0], [1], [0, 0, 1, 1], [], []>} : vector<8x4xbf16>, vector<4x1024xbf16>, vector<8x1024xf32> -> vector<8x1024xf32>
    %72 = arith.addf %66, %71 : vector<8x1024xf32>
    %73 = vector.extract_strided_slice %41 {offsets = [0, 1, 2], sizes = [4, 32, 32], strides = [1, 1, 1]} : vector<4x34x34xbf16> to vector<4x32x32xbf16>
    %74 = vector.shape_cast %73 : vector<4x32x32xbf16> to vector<4x1024xbf16>
    %c5 = arith.constant 5 : index
    %c0_28 = arith.constant 0 : index
    %c0_29 = arith.constant 0 : index
    %75 = vector.load %arg4[%c5, %c0_28, %c0_29] : memref<9x8x4xbf16, #tpu.memory_space<vmem>>, vector<1x8x4xbf16>
    %76 = vector.shape_cast %75 : vector<1x8x4xbf16> to vector<8x4xbf16>
    %cst_30 = arith.constant dense<0.000000e+00> : vector<8x1024xf32>
    %77 = tpu.matmul %76, %74, %cst_30 {dimension_numbers = #tpu.dot_dimension_numbers<[1], [0], [0], [1], [0, 0, 1, 1], [], []>} : vector<8x4xbf16>, vector<4x1024xbf16>, vector<8x1024xf32> -> vector<8x1024xf32>
    %78 = arith.addf %72, %77 : vector<8x1024xf32>
    %79 = vector.extract_strided_slice %41 {offsets = [0, 2, 0], sizes = [4, 32, 32], strides = [1, 1, 1]} : vector<4x34x34xbf16> to vector<4x32x32xbf16>
    %80 = vector.shape_cast %79 : vector<4x32x32xbf16> to vector<4x1024xbf16>
    %c6 = arith.constant 6 : index
    %c0_31 = arith.constant 0 : index
    %c0_32 = arith.constant 0 : index
    %81 = vector.load %arg4[%c6, %c0_31, %c0_32] : memref<9x8x4xbf16, #tpu.memory_space<vmem>>, vector<1x8x4xbf16>
    %82 = vector.shape_cast %81 : vector<1x8x4xbf16> to vector<8x4xbf16>
    %cst_33 = arith.constant dense<0.000000e+00> : vector<8x1024xf32>
    %83 = tpu.matmul %82, %80, %cst_33 {dimension_numbers = #tpu.dot_dimension_numbers<[1], [0], [0], [1], [0, 0, 1, 1], [], []>} : vector<8x4xbf16>, vector<4x1024xbf16>, vector<8x1024xf32> -> vector<8x1024xf32>
    %84 = arith.addf %78, %83 : vector<8x1024xf32>
    %85 = vector.extract_strided_slice %41 {offsets = [0, 2, 1], sizes = [4, 32, 32], strides = [1, 1, 1]} : vector<4x34x34xbf16> to vector<4x32x32xbf16>
    %86 = vector.shape_cast %85 : vector<4x32x32xbf16> to vector<4x1024xbf16>
    %c7 = arith.constant 7 : index
    %c0_34 = arith.constant 0 : index
    %c0_35 = arith.constant 0 : index
    %87 = vector.load %arg4[%c7, %c0_34, %c0_35] : memref<9x8x4xbf16, #tpu.memory_space<vmem>>, vector<1x8x4xbf16>
    %88 = vector.shape_cast %87 : vector<1x8x4xbf16> to vector<8x4xbf16>
    %cst_36 = arith.constant dense<0.000000e+00> : vector<8x1024xf32>
    %89 = tpu.matmul %88, %86, %cst_36 {dimension_numbers = #tpu.dot_dimension_numbers<[1], [0], [0], [1], [0, 0, 1, 1], [], []>} : vector<8x4xbf16>, vector<4x1024xbf16>, vector<8x1024xf32> -> vector<8x1024xf32>
    %90 = arith.addf %84, %89 : vector<8x1024xf32>
    %91 = vector.extract_strided_slice %41 {offsets = [0, 2, 2], sizes = [4, 32, 32], strides = [1, 1, 1]} : vector<4x34x34xbf16> to vector<4x32x32xbf16>
    %92 = vector.shape_cast %91 : vector<4x32x32xbf16> to vector<4x1024xbf16>
    %c8 = arith.constant 8 : index
    %c0_37 = arith.constant 0 : index
    %c0_38 = arith.constant 0 : index
    %93 = vector.load %arg4[%c8, %c0_37, %c0_38] : memref<9x8x4xbf16, #tpu.memory_space<vmem>>, vector<1x8x4xbf16>
    %94 = vector.shape_cast %93 : vector<1x8x4xbf16> to vector<8x4xbf16>
    %cst_39 = arith.constant dense<0.000000e+00> : vector<8x1024xf32>
    %95 = tpu.matmul %94, %92, %cst_39 {dimension_numbers = #tpu.dot_dimension_numbers<[1], [0], [0], [1], [0, 0, 1, 1], [], []>} : vector<8x4xbf16>, vector<4x1024xbf16>, vector<8x1024xf32> -> vector<8x1024xf32>
    %96 = arith.addf %90, %95 : vector<8x1024xf32>
    %c0_40 = arith.constant 0 : index
    %c0_41 = arith.constant 0 : index
    %97 = vector.load %arg5[%c0_40, %c0_41] : memref<8x1xf32, #tpu.memory_space<vmem>>, vector<8x1xf32>
    %98 = vector.broadcast %97 : vector<8x1xf32> to vector<8x1024xf32>
    %99 = arith.addf %96, %98 : vector<8x1024xf32>
    %c0_42 = arith.constant 0 : index
    %c0_43 = arith.constant 0 : index
    %c0_44 = arith.constant 0 : index
    %100 = vector.load %arg6[%c0_42, %c0_43, %c0_44] : memref<1x8x1024xf32, #tpu.memory_space<vmem>>, vector<1x8x1024xf32>
    %101 = vector.shape_cast %100 : vector<1x8x1024xf32> to vector<8x1024xf32>
    %102 = vector.shape_cast %99 : vector<8x1024xf32> to vector<1x8x1024xf32>
    tpu.vector_store %arg6[%c0_42, %c0_43, %c0_44], %102 {strides = array<i32>} : memref<1x8x1024xf32, #tpu.memory_space<vmem>>, vector<1x8x1024xf32>,
    return
  }
  func.func @transform_0(%arg0: i32, %arg1: i32) -> (i32, i32, i32, i32) {
    %c0_i32 = arith.constant 0 : i32
    %c0_i32_0 = arith.constant 0 : i32
    %c0_i32_1 = arith.constant 0 : i32
    %c0_i32_2 = arith.constant 0 : i32
    return %arg0, %c0_i32, %c0_i32_0, %c0_i32_1 : i32, i32, i32, i32
  }
  func.func @transform_1(%arg0: i32, %arg1: i32) -> (i32, i32) {
    %c0_i32 = arith.constant 0 : i32
    %c0_i32_0 = arith.constant 0 : i32
    %c0_i32_1 = arith.constant 0 : i32
    return %c0_i32, %c0_i32_0 : i32, i32
  }
  func.func @transform_2(%arg0: i32, %arg1: i32) -> (i32, i32, i32) {
    %c0_i32 = arith.constant 0 : i32
    %c0_i32_0 = arith.constant 0 : i32
    %c0_i32_1 = arith.constant 0 : i32
    %c0_i32_2 = arith.constant 0 : i32
    return %c0_i32, %c0_i32_0, %c0_i32_1 : i32, i32, i32
  }
  func.func @transform_3(%arg0: i32, %arg1: i32) -> (i32, i32) {
    %c0_i32 = arith.constant 0 : i32
    %c0_i32_0 = arith.constant 0 : i32
    %c0_i32_1 = arith.constant 0 : i32
    return %c0_i32, %c0_i32_0 : i32, i32
  }
  func.func @transform_4(%arg0: i32, %arg1: i32) -> (i32, i32, i32) {
    %c0_i32 = arith.constant 0 : i32
    %c0_i32_0 = arith.constant 0 : i32
    return %arg0, %c0_i32, %arg1 : i32, i32, i32
  }
}

</mosaic_0001>

<llo_original>
// kernel: tpu_custom_call.1
$region0: #{tpu_custom_call.1}
  #allocation0 [shape = 'u32[]', space=smem, size = 0x4, offset = 0x4, fixed_abs, tag = 'smem constant byte address 0x4 - core index']
  #allocation1 [shape = 'u32[144,128]{1,0:T(1,128)}', space=vmem, size = 0x12000, scoped, tag = 'internal scratch']
  %s0 = inlined_call_operand.vmem [shape: bf16[2,4,18,16], index: 0, kind: input, shape index: {}]
  %s1 = inlined_call_operand.vmem [shape: bf16[16,34], index: 1, kind: input, shape index: {}]
  %s2 = inlined_call_operand.vmem [shape: bf16[9,8,4], index: 2, kind: input, shape index: {}]
  %s3 = inlined_call_operand.vmem [shape: f32[8,1], index: 3, kind: input, shape index: {}]
  %s4 = inlined_call_operand.hbm [shape: f32[2,8,1024], index: 4, kind: output, shape index: {}]
  %s5 = sld [smem:[#allocation0]]
  $region49: #{tpu_custom_call.1} parent=0
    _
  %s7 = ssub.s32 1, %s5
  %s8 = scalar_select 0, %s7, %s5
  $region1: #{tpu_custom_call.1} parent=0
    #allocation2 [shape = 'u8[65536]{0}', space=vmem, size = 0x10000, scoped, tag = 'output window, operand 0']
    #allocation3 [shape = 's32[2]{0}', space=sflag, size = 0x8, scoped, tag = 'scoped memory for tpu_custom_call.1']
    %9 = vsyncpa [#allocation3], 0
    %s10 = scalar_lea.sflag [#allocation3], 1
    %11 = vsyncpa %s10, 0
    loop: start=0, step=1, limit=4
    $region2: #{tpu_custom_call.1} parent=1 // loop_pre_header
      _
    $region3: #{tpu_custom_call.1} parent=1 // loop_header
      %s13 = sphi 0, %s17
      %p14 = scmp.ge.s32.totalorder %s13, 4
      %s20 = sphi 0, %s32
      %s21 = sphi 0, %s28
      %s22 = sphi 0, %s20
      %s23 = sphi 0, %s21
      %s24 = sphi 0, %s22
      %s25 = sphi 0, %s23
      %s35 = sphi 0, %s37
      %s38 = sphi 0, %s35
      %s39 = sphi 0, %s38
      %s55 = sphi 0, %s39
      %s59 = sphi 0, %s59
      %s61 = sphi 0, %s59
      %s62 = sphi 0, %s61
      %s76 = sphi 0, %s62
      %s80 = sphi 0, %s80
      %s82 = sphi 0, %s80
      %s83 = sphi 0, %s82
      %s97 = sphi 0, %s83
      %s101 = sphi 0, %s101
      %s103 = sphi 0, %s101
      %s104 = sphi 0, %s103
      %s118 = sphi 0, %s104
      %s126 = sphi 0, %s128
      %s129 = sphi 0, %s126
      %s130 = sphi 0, %s129
      %s146 = sphi 0, %s130
    $region4: #{tpu_custom_call.1} parent=1 // loop_header_branch
      %16 = sbr.rel (%p14) target = $region8
    $region5: #{tpu_custom_call.1} parent=1 // loop_body
      %s18 = ssub.s32 %s13, 1
      %s19 = ssub.s32 %s13, 2
      %s26 = sadd.s32 1, %s21
      %p27 = scmp.ge.s32.totalorder %s26, 1
      %s28 = scalar_select %p27, 0, %s26
      %s29 = sadd.s32 1, %s20
      %s30 = scalar_select %p27, %s29, %s20
      %p31 = scmp.ge.s32.totalorder %s30, 2
      %s32 = scalar_select %p31, 0, %s30
      %s33 = ssub.s32 %s20, %s32
      %p34 = scmp.eq.s32.totalorder %s33, 0
      %s36 = sadd.s32 %s35, 1
      %s37 = scalar_select %p34, %s35, %s36
      %p40 = pneg %p34
      %p41 = scmp.eq.s32.totalorder %s13, 1
      %p42 = por %p40, %p41
      %p43 = scmp.ne.s32.totalorder %s35, %s38
      %p44 = scmp.eq.s32.totalorder %s13, 0
      %p45 = por %p43, %p44
      %p46 = scmp.ne.s32.totalorder %s35, %s38
      %p47 = scmp.eq.s32.totalorder %s18, 1
      %p48 = por %p46, %p47
      %p49 = scmp.ne.s32.totalorder %s38, %s39
      %p50 = scmp.eq.s32.totalorder %s18, 0
      %p51 = por %p49, %p50
      %p52 = scmp.ne.s32.totalorder %s38, %s39
      %p53 = scmp.eq.s32.totalorder %s19, 1
      %p54 = por %p52, %p53
      %p56 = scmp.ne.s32.totalorder %s39, %s55
      %p57 = scmp.eq.s32.totalorder %s19, 0
      %p58 = por %p56, %p57
      %s60 = sadd.s32 %s59, 1
      %p63 = scmp.eq.s32.totalorder %s13, 1
      %p64 = scmp.ne.s32.totalorder %s59, %s61
      %p65 = scmp.eq.s32.totalorder %s13, 0
      %p66 = por %p64, %p65
      %p67 = scmp.ne.s32.totalorder %s59, %s61
      %p68 = scmp.eq.s32.totalorder %s18, 1
      %p69 = por %p67, %p68
      %p70 = scmp.ne.s32.totalorder %s61, %s62
      %p71 = scmp.eq.s32.totalorder %s18, 0
      %p72 = por %p70, %p71
      %p73 = scmp.ne.s32.totalorder %s61, %s62
      %p74 = scmp.eq.s32.totalorder %s19, 1
      %p75 = por %p73, %p74
      %p77 = scmp.ne.s32.totalorder %s62, %s76
      %p78 = scmp.eq.s32.totalorder %s19, 0
      %p79 = por %p77, %p78
      %s81 = sadd.s32 %s80, 1
      %p84 = scmp.eq.s32.totalorder %s13, 1
      %p85 = scmp.ne.s32.totalorder %s80, %s82
      %p86 = scmp.eq.s32.totalorder %s13, 0
      %p87 = por %p85, %p86
      %p88 = scmp.ne.s32.totalorder %s80, %s82
      %p89 = scmp.eq.s32.totalorder %s18, 1
      %p90 = por %p88, %p89
      %p91 = scmp.ne.s32.totalorder %s82, %s83
      %p92 = scmp.eq.s32.totalorder %s18, 0
      %p93 = por %p91, %p92
      %p94 = scmp.ne.s32.totalorder %s82, %s83
      %p95 = scmp.eq.s32.totalorder %s19, 1
      %p96 = por %p94, %p95
      %p98 = scmp.ne.s32.totalorder %s83, %s97
      %p99 = scmp.eq.s32.totalorder %s19, 0
      %p100 = por %p98, %p99
      %s102 = sadd.s32 %s101, 1
      %p105 = scmp.eq.s32.totalorder %s13, 1
      %p106 = scmp.ne.s32.totalorder %s101, %s103
      %p107 = scmp.eq.s32.totalorder %s13, 0
      %p108 = por %p106, %p107
      %p109 = scmp.ne.s32.totalorder %s101, %s103
      %p110 = scmp.eq.s32.totalorder %s18, 1
      %p111 = por %p109, %p110
      %p112 = scmp.ne.s32.totalorder %s103, %s104
      %p113 = scmp.eq.s32.totalorder %s18, 0
      %p114 = por %p112, %p113
      %p115 = scmp.ne.s32.totalorder %s103, %s104
      %p116 = scmp.eq.s32.totalorder %s19, 1
      %p117 = por %p115, %p116
      %p119 = scmp.ne.s32.totalorder %s104, %s118
      %p120 = scmp.eq.s32.totalorder %s19, 0
      %p121 = por %p119, %p120
      %s122 = ssub.s32 %s20, %s32
      %s123 = ssub.s32 %s21, %s28
      %s124 = sor.u32 %s122, %s123
      %p125 = scmp.eq.s32.totalorder %s124, 0
      %s127 = sadd.s32 %s126, 1
      %s128 = scalar_select %p125, %s126, %s127
      %p131 = pneg %p125
      %p132 = scmp.eq.s32.totalorder %s13, 1
      %p133 = por %p131, %p132
      %p134 = scmp.ne.s32.totalorder %s126, %s129
      %p135 = scmp.eq.s32.totalorder %s13, 0
      %p136 = por %p134, %p135
      %p137 = scmp.ne.s32.totalorder %s126, %s129
      %p138 = scmp.eq.s32.totalorder %s18, 1
      %p139 = por %p137, %p138
      %p140 = scmp.ne.s32.totalorder %s129, %s130
      %p141 = scmp.eq.s32.totalorder %s18, 0
      %p142 = por %p140, %p141
      %p143 = scmp.ne.s32.totalorder %s129, %s130
      %p144 = scmp.eq.s32.totalorder %s19, 1
      %p145 = por %p143, %p144
      %p147 = scmp.ne.s32.totalorder %s130, %s146
      %p148 = scmp.eq.s32.totalorder %s19, 0
      %p149 = por %p147, %p148
      %p150 = scmp.le.s32.totalorder 1, %s13
      %p151 = scmp.lt.s32.totalorder %s13, 3
      %p152 = pnand %p150, %p151
      %p153 = pneg %p152
      // Predicated region
      $region9: #{tpu_custom_call.1} parent=5 // pred_check
        _
      $region10: #{tpu_custom_call.1} parent=5 // pred_check_branch
        %155 = sbr.rel (%p152) target = $region12
      $region11: #{tpu_custom_call.1} parent=5 // pred_region
        %s156 = ssub.s32 %s13, 1
        // Predicated region
        $region13: #{tpu_custom_call.1} parent=11 // pred_check
          %p157 = pneg %p72
        $region14: #{tpu_custom_call.1} parent=11 // pred_check_branch
          %159 = sbr.rel (%p157) target = $region16
        $region15: #{tpu_custom_call.1} parent=11 // pred_region
          _
        $region16: #{tpu_custom_call.1} parent=11 // pred_fallthru
          _
        // Predicated region
        $region17: #{tpu_custom_call.1} parent=11 // pred_check
          %p160 = pneg %p93
        $region18: #{tpu_custom_call.1} parent=11 // pred_check_branch
          %162 = sbr.rel (%p160) target = $region20
        $region19: #{tpu_custom_call.1} parent=11 // pred_region
          _
        $region20: #{tpu_custom_call.1} parent=11 // pred_fallthru
          _
        // Predicated region
        $region21: #{tpu_custom_call.1} parent=11 // pred_check
          %p163 = pneg %p114
        $region22: #{tpu_custom_call.1} parent=11 // pred_check_branch
          %165 = sbr.rel (%p163) target = $region24
        $region23: #{tpu_custom_call.1} parent=11 // pred_region
          _
        $region24: #{tpu_custom_call.1} parent=11 // pred_fallthru
          _
      $region12: #{tpu_custom_call.1} parent=5 // pred_fallthru
        _
      %p166 = scmp.lt.s32.totalorder %s13, 2
      // Predicated region
      $region25: #{tpu_custom_call.1} parent=5 // pred_check
        %p167 = pneg %p166
      $region26: #{tpu_custom_call.1} parent=5 // pred_check_branch
        %169 = sbr.rel (%p167) target = $region28
      $region27: #{tpu_custom_call.1} parent=5 // pred_region
        // Predicated region
        $region29: #{tpu_custom_call.1} parent=27 // pred_check
          %p170 = pneg %p45
        $region30: #{tpu_custom_call.1} parent=27 // pred_check_branch
          %172 = sbr.rel (%p170) target = $region32
        $region31: #{tpu_custom_call.1} parent=27 // pred_region
          %p173 = scmp.lt.s32.totalorder %s20, 1
          %s174 = scalar_select %p173, %s20, 1
          %s175 = smul.addr %s174, 12
          %s176 = smul.addr %s175, 4
          %s177 = scalar_lea.vmem %s0, %s176
        $region32: #{tpu_custom_call.1} parent=27 // pred_fallthru
          _
      $region28: #{tpu_custom_call.1} parent=5 // pred_fallthru
        _
      %p178 = scmp.le.s32.totalorder 1, %s13
      %p179 = scmp.lt.s32.totalorder %s13, 3
      %p180 = pnand %p178, %p179
      %p181 = pneg %p180
      // Predicated region
      $region33: #{tpu_custom_call.1} parent=5 // pred_check
        _
      $region34: #{tpu_custom_call.1} parent=5 // pred_check_branch
        %183 = sbr.rel (%p180) target = $region36
      $region35: #{tpu_custom_call.1} parent=5 // pred_region
        %s184 = ssub.s32 %s13, 1
        %p185 = scmp.lt.s32.totalorder %s22, 1
        %s186 = scalar_select %p185, %s22, 1
        %s187 = smul.addr %s186, 12
        %s188 = smul.addr %s187, 4
        %s189 = scalar_lea.vmem %s0, %s188
        %p190 = pneg %p51
        %p191 = pneg %p48
        %p192 = pneg %p72
        %p193 = pneg %p69
        %p194 = pneg %p93
        %p195 = pneg %p90
        %p196 = pneg %p114
        %p197 = pneg %p111
        %p198 = pneg %p142
        %p199 = pneg %p139
        %s200 = sand.u32 %s129, 1
        %s201 = scalar_lea.sflag [#allocation3], %s200
        %s202 = sand.u32 %s129, 1
        %s203 = smul.addr %s202, 64
        %s204 = scalar_lea.vmem [#allocation2], %s203
        %p205 = scmp.lt.s32.totalorder %s22, 1
        %s206 = scalar_select %p205, %s22, 1
        %s207 = smul.addr %s206, 12
        %s208 = smul.addr %s207, 4
        %s209 = scalar_lea.vmem %s0, %s208
        %s210 = smul.u32 8, %s23
        %s212 = smul.u32 %s23, 16
        %s213 = sshra.s32 %s212, 3
        %s214 = sand.u32 %s212, 7
        %s215 = smul.addr %s213, 4
        %s216 = scalar_lea.vmem %s209, %s215
        %v217 = vld [vmem:[%s216] sm:$0xf]
        %v218 = vld [vmem:[%s216 + $0x4] sm:$0xf]
        %v219 = vld [vmem:[%s216 + $0x8] sm:$0x1]
        %v220 = vld [vmem:[%s216 + $0xc] sm:$0xf]
        %v221 = vld [vmem:[%s216 + $0x10] sm:$0xf]
        %v222 = vld [vmem:[%s216 + $0x14] sm:$0x1]
        %v223 = vld [vmem:[%s216 + $0x18] sm:$0xf]
        %v224 = vld [vmem:[%s216 + $0x1c] sm:$0xf]
        %v225 = vld [vmem:[%s216 + $0x20] sm:$0x1]
        %v226 = vld [vmem:[%s216 + $0x24] sm:$0xf]
        %v227 = vld [vmem:[%s216 + $0x28] sm:$0xf]
        %v228 = vld [vmem:[%s216 + $0x2c] sm:$0x1]
        %v242 = vunpack.c.l.s4 1966171168
        %v243 = vunpack.c.0.s8 %v242
        %v244 = vlaneseq
        %v245 = vshrl.u32 %v244, 7
        %v246 = vsub.s32 %v243, %v245
        %v247 = vrot.slane %v217, %v246
        %v248 = vcombine.high %v247, %v247
        %v250 = vunpack.c.l.s4 1966171168
        %v251 = vunpack.c.0.s8 %v250
        %v252 = vlaneseq
        %v253 = vshrl.u32 %v252, 7
        %v254 = vsub.s32 %v251, %v253
        %v255 = vrot.slane %v247, %v254
        %v257 = vunpack.c.l.s4 1966171168
        %v258 = vunpack.c.0.s8 %v257
        %v259 = vlaneseq
        %v260 = vshrl.u32 %v259, 7
        %v261 = vsub.s32 %v258, %v260
        %v262 = vrot.slane %v248, %v261
        %v263 = vcombine.high %v255, %v255
        %v264 = vcombine.high %v262, %v262
        %v266 = vunpack.c.l.s4 1966171168
        %v267 = vunpack.c.0.s8 %v266
        %v268 = vlaneseq
        %v269 = vshrl.u32 %v268, 7
        %v270 = vsub.s32 %v267, %v269
        %v271 = vrot.slane %v218, %v270
        %v272 = vcombine.high %v271, %v271
        %v274 = vunpack.c.l.s4 1966171168
        %v275 = vunpack.c.0.s8 %v274
        %v276 = vlaneseq
        %v277 = vshrl.u32 %v276, 7
        %v278 = vsub.s32 %v275, %v277
        %v279 = vrot.slane %v271, %v278
        %v281 = vunpack.c.l.s4 1966171168
        %v282 = vunpack.c.0.s8 %v281
        %v283 = vlaneseq
        %v284 = vshrl.u32 %v283, 7
        %v285 = vsub.s32 %v282, %v284
        %v286 = vrot.slane %v272, %v285
        %v287 = vcombine.high %v279, %v279
        %v288 = vcombine.high %v286, %v286
        %v290 = vunpack.c.l.s4 1966171168
        %v291 = vunpack.c.0.s8 %v290
        %v292 = vlaneseq
        %v293 = vshrl.u32 %v292, 7
        %v294 = vsub.s32 %v291, %v293
        %v295 = vrot.slane %v219, %v294
        %v297 = vunpack.c.l.s4 1966171168
        %v298 = vunpack.c.0.s8 %v297
        %v299 = vlaneseq
        %v300 = vshrl.u32 %v299, 7
        %v301 = vsub.s32 %v298, %v300
        %v302 = vrot.slane %v295, %v301
        %v304 = vunpack.c.l.s4 1966171168
        %v305 = vunpack.c.0.s8 %v304
        %v306 = vlaneseq
        %v307 = vshrl.u32 %v306, 7
        %v308 = vsub.s32 %v305, %v307
        %v309 = vrot.slane %v220, %v308
        %v310 = vcombine.high %v309, %v309
        %v312 = vunpack.c.l.s4 1966171168
        %v313 = vunpack.c.0.s8 %v312
        %v314 = vlaneseq
        %v315 = vshrl.u32 %v314, 7
        %v316 = vsub.s32 %v313, %v315
        %v317 = vrot.slane %v309, %v316
        %v319 = vunpack.c.l.s4 1966171168
        %v320 = vunpack.c.0.s8 %v319
        %v321 = vlaneseq
        %v322 = vshrl.u32 %v321, 7
        %v323 = vsub.s32 %v320, %v322
        %v324 = vrot.slane %v310, %v323
        %v325 = vcombine.high %v317, %v317
        %v326 = vcombine.high %v324, %v324
        %v328 = vunpack.c.l.s4 1966171168
        %v329 = vunpack.c.0.s8 %v328
        %v330 = vlaneseq
        %v331 = vshrl.u32 %v330, 7
        %v332 = vsub.s32 %v329, %v331
        %v333 = vrot.slane %v221, %v332
        %v334 = vcombine.high %v333, %v333
        %v336 = vunpack.c.l.s4 1966171168
        %v337 = vunpack.c.0.s8 %v336
        %v338 = vlaneseq
        %v339 = vshrl.u32 %v338, 7
        %v340 = vsub.s32 %v337, %v339
        %v341 = vrot.slane %v333, %v340
        %v343 = vunpack.c.l.s4 1966171168
        %v344 = vunpack.c.0.s8 %v343
        %v345 = vlaneseq
        %v346 = vshrl.u32 %v345, 7
        %v347 = vsub.s32 %v344, %v346
        %v348 = vrot.slane %v334, %v347
        %v349 = vcombine.high %v341, %v341
        %v350 = vcombine.high %v348, %v348
        %v352 = vunpack.c.l.s4 1966171168
        %v353 = vunpack.c.0.s8 %v352
        %v354 = vlaneseq
        %v355 = vshrl.u32 %v354, 7
        %v356 = vsub.s32 %v353, %v355
        %v357 = vrot.slane %v222, %v356
        %v359 = vunpack.c.l.s4 1966171168
        %v360 = vunpack.c.0.s8 %v359
        %v361 = vlaneseq
        %v362 = vshrl.u32 %v361, 7
        %v363 = vsub.s32 %v360, %v362
        %v364 = vrot.slane %v357, %v363
        %v366 = vunpack.c.l.s4 1966171168
        %v367 = vunpack.c.0.s8 %v366
        %v368 = vlaneseq
        %v369 = vshrl.u32 %v368, 7
        %v370 = vsub.s32 %v367, %v369
        %v371 = vrot.slane %v223, %v370
        %v372 = vcombine.high %v371, %v371
        %v374 = vunpack.c.l.s4 1966171168
        %v375 = vunpack.c.0.s8 %v374
        %v376 = vlaneseq
        %v377 = vshrl.u32 %v376, 7
        %v378 = vsub.s32 %v375, %v377
        %v379 = vrot.slane %v371, %v378
        %v381 = vunpack.c.l.s4 1966171168
        %v382 = vunpack.c.0.s8 %v381
        %v383 = vlaneseq
        %v384 = vshrl.u32 %v383, 7
        %v385 = vsub.s32 %v382, %v384
        %v386 = vrot.slane %v372, %v385
        %v387 = vcombine.high %v379, %v379
        %v388 = vcombine.high %v386, %v386
        %v390 = vunpack.c.l.s4 1966171168
        %v391 = vunpack.c.0.s8 %v390
        %v392 = vlaneseq
        %v393 = vshrl.u32 %v392, 7
        %v394 = vsub.s32 %v391, %v393
        %v395 = vrot.slane %v224, %v394
        %v396 = vcombine.high %v395, %v395
        %v398 = vunpack.c.l.s4 1966171168
        %v399 = vunpack.c.0.s8 %v398
        %v400 = vlaneseq
        %v401 = vshrl.u32 %v400, 7
        %v402 = vsub.s32 %v399, %v401
        %v403 = vrot.slane %v395, %v402
        %v405 = vunpack.c.l.s4 1966171168
        %v406 = vunpack.c.0.s8 %v405
        %v407 = vlaneseq
        %v408 = vshrl.u32 %v407, 7
        %v409 = vsub.s32 %v406, %v408
        %v410 = vrot.slane %v396, %v409
        %v411 = vcombine.high %v403, %v403
        %v412 = vcombine.high %v410, %v410
        %v414 = vunpack.c.l.s4 1966171168
        %v415 = vunpack.c.0.s8 %v414
        %v416 = vlaneseq
        %v417 = vshrl.u32 %v416, 7
        %v418 = vsub.s32 %v415, %v417
        %v419 = vrot.slane %v225, %v418
        %v421 = vunpack.c.l.s4 1966171168
        %v422 = vunpack.c.0.s8 %v421
        %v423 = vlaneseq
        %v424 = vshrl.u32 %v423, 7
        %v425 = vsub.s32 %v422, %v424
        %v426 = vrot.slane %v419, %v425
        %v428 = vunpack.c.l.s4 1966171168
        %v429 = vunpack.c.0.s8 %v428
        %v430 = vlaneseq
        %v431 = vshrl.u32 %v430, 7
        %v432 = vsub.s32 %v429, %v431
        %v433 = vrot.slane %v226, %v432
        %v434 = vcombine.high %v433, %v433
        %v436 = vunpack.c.l.s4 1966171168
        %v437 = vunpack.c.0.s8 %v436
        %v438 = vlaneseq
        %v439 = vshrl.u32 %v438, 7
        %v440 = vsub.s32 %v437, %v439
        %v441 = vrot.slane %v433, %v440
        %v443 = vunpack.c.l.s4 1966171168
        %v444 = vunpack.c.0.s8 %v443
        %v445 = vlaneseq
        %v446 = vshrl.u32 %v445, 7
        %v447 = vsub.s32 %v444, %v446
        %v448 = vrot.slane %v434, %v447
        %v449 = vcombine.high %v441, %v441
        %v450 = vcombine.high %v448, %v448
        %v452 = vunpack.c.l.s4 1966171168
        %v453 = vunpack.c.0.s8 %v452
        %v454 = vlaneseq
        %v455 = vshrl.u32 %v454, 7
        %v456 = vsub.s32 %v453, %v455
        %v457 = vrot.slane %v227, %v456
        %v458 = vcombine.high %v457, %v457
        %v460 = vunpack.c.l.s4 1966171168
        %v461 = vunpack.c.0.s8 %v460
        %v462 = vlaneseq
        %v463 = vshrl.u32 %v462, 7
        %v464 = vsub.s32 %v461, %v463
        %v465 = vrot.slane %v457, %v464
        %v467 = vunpack.c.l.s4 1966171168
        %v468 = vunpack.c.0.s8 %v467
        %v469 = vlaneseq
        %v470 = vshrl.u32 %v469, 7
        %v471 = vsub.s32 %v468, %v470
        %v472 = vrot.slane %v458, %v471
        %v473 = vcombine.high %v465, %v465
        %v474 = vcombine.high %v472, %v472
        %v476 = vunpack.c.l.s4 1966171168
        %v477 = vunpack.c.0.s8 %v476
        %v478 = vlaneseq
        %v479 = vshrl.u32 %v478, 7
        %v480 = vsub.s32 %v477, %v479
        %v481 = vrot.slane %v228, %v480
        %v483 = vunpack.c.l.s4 1966171168
        %v484 = vunpack.c.0.s8 %v483
        %v485 = vlaneseq
        %v486 = vshrl.u32 %v485, 7
        %v487 = vsub.s32 %v484, %v486
        %v488 = vrot.slane %v481, %v487
        %v489 = vld [vmem:[%s1] sm:$0xf]
        %v490 = vld [vmem:[%s1 + $0x4] sm:$0xf]
        %v491 = vcombine.low %v255, %v262
        %v492 = vcombine.low %v263, %v264
        %v493 = vcombine.low %v279, %v286
        %v494 = vcombine.low %v287, %v288
        %v496 = vunpack.c.l.s4 1966171168
        %v497 = vunpack.c.0.s8 %v496
        %v498 = vlaneseq
        %v499 = vshrl.u32 %v498, 7
        %v500 = vsub.s32 %v497, %v499
        %v501 = vrot.slane %v491, %v500
        %v503 = vunpack.c.l.s4 1966171168
        %v504 = vunpack.c.0.s8 %v503
        %v505 = vlaneseq
        %v506 = vshrl.u32 %v505, 7
        %v507 = vsub.s32 %v504, %v506
        %v508 = vrot.slane %v492, %v507
        %v510 = vunpack.c.l.s4 1966171168
        %v511 = vunpack.c.0.s8 %v510
        %v512 = vlaneseq
        %v513 = vshrl.u32 %v512, 7
        %v514 = vsub.s32 %v511, %v513
        %v515 = vrot.slane %v493, %v514
        %v517 = vunpack.c.l.s4 1966171168
        %v518 = vunpack.c.0.s8 %v517
        %v519 = vlaneseq
        %v520 = vshrl.u32 %v519, 7
        %v521 = vsub.s32 %v518, %v520
        %v522 = vrot.slane %v494, %v521
        %v523 = vcombine.low %v501, %v508
        %v524 = vcombine.low %v515, %v522
        %v526 = vunpack.c.l.s4 1966171168
        %v527 = vunpack.c.0.s8 %v526
        %v528 = vlaneseq
        %v529 = vshrl.u32 %v528, 7
        %v530 = vsub.s32 %v527, %v529
        %v531 = vrot.slane %v523, %v530
        %v533 = vunpack.c.l.s4 1966171168
        %v534 = vunpack.c.0.s8 %v533
        %v535 = vlaneseq
        %v536 = vshrl.u32 %v535, 7
        %v537 = vsub.s32 %v534, %v536
        %v538 = vrot.slane %v524, %v537
        %v539 = vcombine.low %v531, %v538
        %v540 = vcombine.low %v302, %v317
        %v541 = vcombine.low %v324, %v325
        %v542 = vcombine.low %v326, %v341
        %v543 = vcombine.low %v348, %v349
        %v545 = vunpack.c.l.s4 1966171168
        %v546 = vunpack.c.0.s8 %v545
        %v547 = vlaneseq
        %v548 = vshrl.u32 %v547, 7
        %v549 = vsub.s32 %v546, %v548
        %v550 = vrot.slane %v540, %v549
        %v552 = vunpack.c.l.s4 1966171168
        %v553 = vunpack.c.0.s8 %v552
        %v554 = vlaneseq
        %v555 = vshrl.u32 %v554, 7
        %v556 = vsub.s32 %v553, %v555
        %v557 = vrot.slane %v541, %v556
        %v559 = vunpack.c.l.s4 1966171168
        %v560 = vunpack.c.0.s8 %v559
        %v561 = vlaneseq
        %v562 = vshrl.u32 %v561, 7
        %v563 = vsub.s32 %v560, %v562
        %v564 = vrot.slane %v542, %v563
        %v566 = vunpack.c.l.s4 1966171168
        %v567 = vunpack.c.0.s8 %v566
        %v568 = vlaneseq
        %v569 = vshrl.u32 %v568, 7
        %v570 = vsub.s32 %v567, %v569
        %v571 = vrot.slane %v543, %v570
        %v572 = vcombine.low %v550, %v557
        %v573 = vcombine.low %v564, %v571
        %v575 = vunpack.c.l.s4 1966171168
        %v576 = vunpack.c.0.s8 %v575
        %v577 = vlaneseq
        %v578 = vshrl.u32 %v577, 7
        %v579 = vsub.s32 %v576, %v578
        %v580 = vrot.slane %v572, %v579
        %v582 = vunpack.c.l.s4 1966171168
        %v583 = vunpack.c.0.s8 %v582
        %v584 = vlaneseq
        %v585 = vshrl.u32 %v584, 7
        %v586 = vsub.s32 %v583, %v585
        %v587 = vrot.slane %v573, %v586
        %v588 = vcombine.low %v580, %v587
        %v589 = vcombine.low %v350, %v364
        %v590 = vcombine.low %v379, %v386
        %v591 = vcombine.low %v387, %v388
        %v592 = vcombine.low %v403, %v410
        %v594 = vunpack.c.l.s4 1966171168
        %v595 = vunpack.c.0.s8 %v594
        %v596 = vlaneseq
        %v597 = vshrl.u32 %v596, 7
        %v598 = vsub.s32 %v595, %v597
        %v599 = vrot.slane %v589, %v598
        %v601 = vunpack.c.l.s4 1966171168
        %v602 = vunpack.c.0.s8 %v601
        %v603 = vlaneseq
        %v604 = vshrl.u32 %v603, 7
        %v605 = vsub.s32 %v602, %v604
        %v606 = vrot.slane %v590, %v605
        %v608 = vunpack.c.l.s4 1966171168
        %v609 = vunpack.c.0.s8 %v608
        %v610 = vlaneseq
        %v611 = vshrl.u32 %v610, 7
        %v612 = vsub.s32 %v609, %v611
        %v613 = vrot.slane %v591, %v612
        %v615 = vunpack.c.l.s4 1966171168
        %v616 = vunpack.c.0.s8 %v615
        %v617 = vlaneseq
        %v618 = vshrl.u32 %v617, 7
        %v619 = vsub.s32 %v616, %v618
        %v620 = vrot.slane %v592, %v619
        %v621 = vcombine.low %v599, %v606
        %v622 = vcombine.low %v613, %v620
        %v624 = vunpack.c.l.s4 1966171168
        %v625 = vunpack.c.0.s8 %v624
        %v626 = vlaneseq
        %v627 = vshrl.u32 %v626, 7
        %v628 = vsub.s32 %v625, %v627
        %v629 = vrot.slane %v621, %v628
        %v631 = vunpack.c.l.s4 1966171168
        %v632 = vunpack.c.0.s8 %v631
        %v633 = vlaneseq
        %v634 = vshrl.u32 %v633, 7
        %v635 = vsub.s32 %v632, %v634
        %v636 = vrot.slane %v622, %v635
        %v637 = vcombine.low %v629, %v636
        %v638 = vcombine.low %v411, %v412
        %v639 = vcombine.low %v426, %v441
        %v640 = vcombine.low %v448, %v449
        %v641 = vcombine.low %v450, %v465
        %v643 = vunpack.c.l.s4 1966171168
        %v644 = vunpack.c.0.s8 %v643
        %v645 = vlaneseq
        %v646 = vshrl.u32 %v645, 7
        %v647 = vsub.s32 %v644, %v646
        %v648 = vrot.slane %v638, %v647
        %v650 = vunpack.c.l.s4 1966171168
        %v651 = vunpack.c.0.s8 %v650
        %v652 = vlaneseq
        %v653 = vshrl.u32 %v652, 7
        %v654 = vsub.s32 %v651, %v653
        %v655 = vrot.slane %v639, %v654
        %v657 = vunpack.c.l.s4 1966171168
        %v658 = vunpack.c.0.s8 %v657
        %v659 = vlaneseq
        %v660 = vshrl.u32 %v659, 7
        %v661 = vsub.s32 %v658, %v660
        %v662 = vrot.slane %v640, %v661
        %v664 = vunpack.c.l.s4 1966171168
        %v665 = vunpack.c.0.s8 %v664
        %v666 = vlaneseq
        %v667 = vshrl.u32 %v666, 7
        %v668 = vsub.s32 %v665, %v667
        %v669 = vrot.slane %v641, %v668
        %v670 = vcombine.low %v648, %v655
        %v671 = vcombine.low %v662, %v669
        %v673 = vunpack.c.l.s4 1966171168
        %v674 = vunpack.c.0.s8 %v673
        %v675 = vlaneseq
        %v676 = vshrl.u32 %v675, 7
        %v677 = vsub.s32 %v674, %v676
        %v678 = vrot.slane %v670, %v677
        %v680 = vunpack.c.l.s4 1966171168
        %v681 = vunpack.c.0.s8 %v680
        %v682 = vlaneseq
        %v683 = vshrl.u32 %v682, 7
        %v684 = vsub.s32 %v681, %v683
        %v685 = vrot.slane %v671, %v684
        %v686 = vcombine.low %v678, %v685
        %v687 = vcombine.low %v472, %v473
        %v688 = vcombine.low %v474, %v488
        %v690 = vunpack.c.l.s4 1966171168
        %v691 = vunpack.c.0.s8 %v690
        %v692 = vlaneseq
        %v693 = vshrl.u32 %v692, 7
        %v694 = vsub.s32 %v691, %v693
        %v695 = vrot.slane %v687, %v694
        %v697 = vunpack.c.l.s4 1966171168
        %v698 = vunpack.c.0.s8 %v697
        %v699 = vlaneseq
        %v700 = vshrl.u32 %v699, 7
        %v701 = vsub.s32 %v698, %v700
        %v702 = vrot.slane %v688, %v701
        %v703 = vcombine.low %v695, %v702
        %v705 = vunpack.c.l.s4 1966171168
        %v706 = vunpack.c.0.s8 %v705
        %v707 = vlaneseq
        %v708 = vshrl.u32 %v707, 7
        %v709 = vsub.s32 %v706, %v708
        %v710 = vrot.slane %v703, %v709
        %v713 = vunpack.c.l.b16 %v489
        %v714 = vunpack.c.l.b16 %v490
        %v715 = vpack.c.b16 %v714, %v713
        %vm717 = vcmask 130048
        %v719 = vsel %vm717, %v539, 0
        %v722 = vsel %vm717, %v588, 0
        %v725 = vsel %vm717, %v637, 0
        %v728 = vsel %vm717, %v686, 0
        %v731 = vsel %vm717, %v710, 0
        %733 = vmatprep.subr.bf16.mxu0 0
        %734 = vmatpush1.bf16.msra.mxu0 0
        %735 = vmatprep.subr.bf16.mxu0 0
        %736 = vmatpush1.bf16.msra.mxu0 0
        %737 = vmatprep.subr.bf16.mxu0 0
        %738 = vmatpush1.bf16.msra.mxu0 0
        %739 = vmatprep.subr.bf16.mxu0 0
        %740 = vmatpush1.bf16.msra.mxu0 0
        %741 = vmatprep.subr.bf16.mxu0 0
        %742 = vmatpush1.bf16.msra.mxu0 0
        %743 = vmatprep.subr.bf16.mxu0 0
        %744 = vmatpush1.bf16.msra.mxu0 0
        %745 = vmatprep.subr.bf16.mxu0 0
        %746 = vmatpush1.bf16.msra.mxu0 0
        %747 = vmatprep.subr.bf16.mxu0 0
        %748 = vmatpush1.bf16.msra.mxu0 %v715
        %749 = vmatprep.subr.bf16.mxu0 0
        %750 = vmatpush2.bf16.msra.mxu0 0
        %751 = vmatprep.subr.bf16.mxu0 0
        %752 = vmatpush2.bf16.msra.mxu0 0
        %753 = vmatprep.subr.bf16.mxu0 0
        %754 = vmatpush2.bf16.msra.mxu0 0
        %755 = vmatprep.subr.bf16.mxu0 0
        %756 = vmatpush2.bf16.msra.mxu0 0
        %757 = vmatprep.subr.bf16.mxu0 0
        %758 = vmatpush2.bf16.msra.mxu0 0
        %759 = vmatprep.subr.bf16.mxu0 0
        %760 = vmatpush2.bf16.msra.mxu0 0
        %761 = vmatprep.subr.bf16.mxu0 0
        %762 = vmatpush2.bf16.msra.mxu0 0
        %763 = vmatprep.subr.bf16.mxu0 0
        %764 = vmatpush2.bf16.msra.mxu0 0
        %765 = vmatprep.mubr.bf16.mxu0 0
        %766 = vmatmul.mubr.bf16.gmra.mxu0 %v719
        %v767 = vpop.f32.mrf.mxu0
        %v768 = vadd.f32 0.0, %v767
        %v769 = vpop.f32.mrf.mxu0
        %v770 = vpop.f32.mrf.mxu0
        %v771 = vadd.f32 0.0, %v770
        %v772 = vpop.f32.mrf.mxu0
        %773 = vmatprep.mubr.bf16.mxu0 0
        %774 = vmatmul.mubr.bf16.gmra.mxu0 %v722
        %v775 = vpop.f32.mrf.mxu0
        %v776 = vadd.f32 0.0, %v775
        %v777 = vpop.f32.mrf.mxu0
        %v778 = vpop.f32.mrf.mxu0
        %v779 = vadd.f32 0.0, %v778
        %v780 = vpop.f32.mrf.mxu0
        %781 = vmatprep.mubr.bf16.mxu0 0
        %782 = vmatmul.mubr.bf16.gmra.mxu0 %v725
        %v783 = vpop.f32.mrf.mxu0
        %v784 = vadd.f32 0.0, %v783
        %v785 = vpop.f32.mrf.mxu0
        %v786 = vpop.f32.mrf.mxu0
        %v787 = vadd.f32 0.0, %v786
        %v788 = vpop.f32.mrf.mxu0
        %789 = vmatprep.mubr.bf16.mxu0 0
        %790 = vmatmul.mubr.bf16.gmra.mxu0 %v728
        %v791 = vpop.f32.mrf.mxu0
        %v792 = vadd.f32 0.0, %v791
        %v793 = vpop.f32.mrf.mxu0
        %v794 = vpop.f32.mrf.mxu0
        %v795 = vadd.f32 0.0, %v794
        %v796 = vpop.f32.mrf.mxu0
        %797 = vmatprep.mubr.bf16.mxu0 0
        %798 = vmatmul.mubr.bf16.gmra.mxu0 %v731
        %v799 = vpop.f32.mrf.mxu0
        %v800 = vadd.f32 0.0, %v799
        %v801 = vpop.f32.mrf.mxu0
        %v802 = vpop.f32.mrf.mxu0
        %v803 = vpop.f32.mrf.mxu0
        %804 = vdwg.mxu0
        %v814 = vcombine.high %v768, %v768
        %v816 = vunpack.c.l.s4 1983009808
        %v817 = vunpack.c.0.s8 %v816
        %v818 = vlaneseq
        %v819 = vshrl.u32 %v818, 7
        %v820 = vsub.s32 %v817, %v819
        %v821 = vrot.slane %v768, %v820
        %v823 = vunpack.c.l.s4 1983009808
        %v824 = vunpack.c.0.s8 %v823
        %v825 = vlaneseq
        %v826 = vshrl.u32 %v825, 7
        %v827 = vsub.s32 %v824, %v826
        %v828 = vrot.slane %v814, %v827
        %v829 = vcombine.high %v821, %v821
        %v830 = vcombine.high %v828, %v828
        %v831 = vcombine.high %v771, %v771
        %v833 = vunpack.c.l.s4 1983009808
        %v834 = vunpack.c.0.s8 %v833
        %v835 = vlaneseq
        %v836 = vshrl.u32 %v835, 7
        %v837 = vsub.s32 %v834, %v836
        %v838 = vrot.slane %v771, %v837
        %v840 = vunpack.c.l.s4 1983009808
        %v841 = vunpack.c.0.s8 %v840
        %v842 = vlaneseq
        %v843 = vshrl.u32 %v842, 7
        %v844 = vsub.s32 %v841, %v843
        %v845 = vrot.slane %v831, %v844
        %v846 = vcombine.high %v838, %v838
        %v847 = vcombine.high %v845, %v845
        %v848 = vcombine.high %v776, %v776
        %v850 = vunpack.c.l.s4 1983009808
        %v851 = vunpack.c.0.s8 %v850
        %v852 = vlaneseq
        %v853 = vshrl.u32 %v852, 7
        %v854 = vsub.s32 %v851, %v853
        %v855 = vrot.slane %v776, %v854
        %v857 = vunpack.c.l.s4 1983009808
        %v858 = vunpack.c.0.s8 %v857
        %v859 = vlaneseq
        %v860 = vshrl.u32 %v859, 7
        %v861 = vsub.s32 %v858, %v860
        %v862 = vrot.slane %v848, %v861
        %v863 = vcombine.high %v855, %v855
        %v864 = vcombine.high %v862, %v862
        %v865 = vcombine.high %v779, %v779
        %v867 = vunpack.c.l.s4 1983009808
        %v868 = vunpack.c.0.s8 %v867
        %v869 = vlaneseq
        %v870 = vshrl.u32 %v869, 7
        %v871 = vsub.s32 %v868, %v870
        %v872 = vrot.slane %v779, %v871
        %v874 = vunpack.c.l.s4 1983009808
        %v875 = vunpack.c.0.s8 %v874
        %v876 = vlaneseq
        %v877 = vshrl.u32 %v876, 7
        %v878 = vsub.s32 %v875, %v877
        %v879 = vrot.slane %v865, %v878
        %v880 = vcombine.high %v872, %v872
        %v881 = vcombine.high %v879, %v879
        %v882 = vcombine.high %v784, %v784
        %v884 = vunpack.c.l.s4 1983009808
        %v885 = vunpack.c.0.s8 %v884
        %v886 = vlaneseq
        %v887 = vshrl.u32 %v886, 7
        %v888 = vsub.s32 %v885, %v887
        %v889 = vrot.slane %v784, %v888
        %v891 = vunpack.c.l.s4 1983009808
        %v892 = vunpack.c.0.s8 %v891
        %v893 = vlaneseq
        %v894 = vshrl.u32 %v893, 7
        %v895 = vsub.s32 %v892, %v894
        %v896 = vrot.slane %v882, %v895
        %v897 = vcombine.high %v889, %v889
        %v898 = vcombine.high %v896, %v896
        %v899 = vcombine.high %v787, %v787
        %v901 = vunpack.c.l.s4 1983009808
        %v902 = vunpack.c.0.s8 %v901
        %v903 = vlaneseq
        %v904 = vshrl.u32 %v903, 7
        %v905 = vsub.s32 %v902, %v904
        %v906 = vrot.slane %v787, %v905
        %v908 = vunpack.c.l.s4 1983009808
        %v909 = vunpack.c.0.s8 %v908
        %v910 = vlaneseq
        %v911 = vshrl.u32 %v910, 7
        %v912 = vsub.s32 %v909, %v911
        %v913 = vrot.slane %v899, %v912
        %v914 = vcombine.high %v906, %v906
        %v915 = vcombine.high %v913, %v913
        %v916 = vcombine.high %v792, %v792
        %v918 = vunpack.c.l.s4 1983009808
        %v919 = vunpack.c.0.s8 %v918
        %v920 = vlaneseq
        %v921 = vshrl.u32 %v920, 7
        %v922 = vsub.s32 %v919, %v921
        %v923 = vrot.slane %v792, %v922
        %v925 = vunpack.c.l.s4 1983009808
        %v926 = vunpack.c.0.s8 %v925
        %v927 = vlaneseq
        %v928 = vshrl.u32 %v927, 7
        %v929 = vsub.s32 %v926, %v928
        %v930 = vrot.slane %v916, %v929
        %v931 = vcombine.high %v923, %v923
        %v932 = vcombine.high %v930, %v930
        %v933 = vcombine.high %v795, %v795
        %v935 = vunpack.c.l.s4 1983009808
        %v936 = vunpack.c.0.s8 %v935
        %v937 = vlaneseq
        %v938 = vshrl.u32 %v937, 7
        %v939 = vsub.s32 %v936, %v938
        %v940 = vrot.slane %v795, %v939
        %v942 = vunpack.c.l.s4 1983009808
        %v943 = vunpack.c.0.s8 %v942
        %v944 = vlaneseq
        %v945 = vshrl.u32 %v944, 7
        %v946 = vsub.s32 %v943, %v945
        %v947 = vrot.slane %v933, %v946
        %v948 = vcombine.high %v940, %v940
        %v949 = vcombine.high %v947, %v947
        %v950 = vcombine.high %v800, %v800
        %v952 = vunpack.c.l.s4 1983009808
        %v953 = vunpack.c.0.s8 %v952
        %v954 = vlaneseq
        %v955 = vshrl.u32 %v954, 7
        %v956 = vsub.s32 %v953, %v955
        %v957 = vrot.slane %v800, %v956
        %v959 = vunpack.c.l.s4 1983009808
        %v960 = vunpack.c.0.s8 %v959
        %v961 = vlaneseq
        %v962 = vshrl.u32 %v961, 7
        %v963 = vsub.s32 %v960, %v962
        %v964 = vrot.slane %v950, %v963
        %v965 = vcombine.high %v957, %v957
        %v966 = vcombine.high %v964, %v964
        %v1003 = vmul.f32 %v821, 0.75
        %v1004 = vmul.f32 %v829, 0.75
        %v1005 = vmul.f32 %v828, 0.75
        %v1006 = vmul.f32 %v830, 0.75
        %v1007 = vmul.f32 %v838, 0.75
        %v1008 = vmul.f32 %v846, 0.75
        %v1009 = vmul.f32 %v845, 0.75
        %v1010 = vmul.f32 %v847, 0.75
        %v1011 = vmul.f32 %v855, 0.75
        %v1012 = vmul.f32 %v863, 0.75
        %v1013 = vmul.f32 %v862, 0.75
        %v1014 = vmul.f32 %v864, 0.75
        %v1015 = vmul.f32 %v872, 0.75
        %v1016 = vmul.f32 %v880, 0.75
        %v1017 = vmul.f32 %v879, 0.75
        %v1018 = vmul.f32 %v881, 0.75
        %v1019 = vmul.f32 %v889, 0.75
        %v1020 = vmul.f32 %v897, 0.75
        %v1021 = vmul.f32 %v896, 0.75
        %v1022 = vmul.f32 %v898, 0.75
        %v1023 = vmul.f32 %v906, 0.75
        %v1024 = vmul.f32 %v914, 0.75
        %v1025 = vmul.f32 %v913, 0.75
        %v1026 = vmul.f32 %v915, 0.75
        %v1027 = vmul.f32 %v923, 0.75
        %v1028 = vmul.f32 %v931, 0.75
        %v1029 = vmul.f32 %v930, 0.75
        %v1030 = vmul.f32 %v932, 0.75
        %v1031 = vmul.f32 %v940, 0.75
        %v1032 = vmul.f32 %v948, 0.75
        %v1033 = vmul.f32 %v947, 0.75
        %v1034 = vmul.f32 %v949, 0.75
        %v1035 = vmul.f32 %v957, 0.75
        %v1036 = vmul.f32 %v965, 0.75
        %v1037 = vmul.f32 %v964, 0.75
        %v1038 = vmul.f32 %v966, 0.75
        %v1039 = vmul.f32 %v821, 0.25
        %v1040 = vmul.f32 %v829, 0.25
        %v1041 = vmul.f32 %v828, 0.25
        %v1042 = vmul.f32 %v830, 0.25
        %v1043 = vmul.f32 %v838, 0.25
        %v1044 = vmul.f32 %v846, 0.25
        %v1045 = vmul.f32 %v845, 0.25
        %v1046 = vmul.f32 %v847, 0.25
        %v1047 = vmul.f32 %v855, 0.25
        %v1048 = vmul.f32 %v863, 0.25
        %v1049 = vmul.f32 %v862, 0.25
        %v1050 = vmul.f32 %v864, 0.25
        %v1051 = vmul.f32 %v872, 0.25
        %v1052 = vmul.f32 %v880, 0.25
        %v1053 = vmul.f32 %v879, 0.25
        %v1054 = vmul.f32 %v881, 0.25
        %v1055 = vmul.f32 %v889, 0.25
        %v1056 = vmul.f32 %v897, 0.25
        %v1057 = vmul.f32 %v896, 0.25
        %v1058 = vmul.f32 %v898, 0.25
        %v1059 = vmul.f32 %v906, 0.25
        %v1060 = vmul.f32 %v914, 0.25
        %v1061 = vmul.f32 %v913, 0.25
        %v1062 = vmul.f32 %v915, 0.25
        %v1063 = vmul.f32 %v923, 0.25
        %v1064 = vmul.f32 %v931, 0.25
        %v1065 = vmul.f32 %v930, 0.25
        %v1066 = vmul.f32 %v932, 0.25
        %v1067 = vmul.f32 %v940, 0.25
        %v1068 = vmul.f32 %v948, 0.25
        %v1069 = vmul.f32 %v947, 0.25
        %v1070 = vmul.f32 %v949, 0.25
        %v1071 = vmul.f32 %v957, 0.25
        %v1072 = vmul.f32 %v965, 0.25
        %v1073 = vmul.f32 %v964, 0.25
        %v1074 = vmul.f32 %v966, 0.25
        %vm1111 = vcmask 1040384
        %vm1112 = vcmask 1042434
        %vm1113 = vmor %vm1111, %vm1112
        %vm1114 = vcmask 1044484
        %vm1115 = vmor %vm1113, %vm1114
        %vm1116 = vcmask 1046534
        %vm1117 = vmor %vm1115, %vm1116
        %v1118 = vrot.slane %v1039, 7
        %v1119 = vrot.slane %v1118, 2
        %v1120 = vrot.slane %v1040, 7
        %v1121 = vsel %vm1117, %v1119, %v1120
        %v1122 = vrot.slane %v1120, 2
        %v1123 = vrot.slane %v1041, 7
        %v1124 = vsel %vm1117, %v1122, %v1123
        %v1125 = vrot.slane %v1123, 2
        %v1126 = vrot.slane %v1042, 7
        %v1127 = vsel %vm1117, %v1125, %v1126
        %v1128 = vrot.slane %v1126, 2
        %v1129 = vrot.slane %v1043, 7
        %v1130 = vsel %vm1117, %v1128, %v1129
        %v1131 = vrot.slane %v1129, 2
        %v1132 = vrot.slane %v1044, 7
        %v1133 = vsel %vm1117, %v1131, %v1132
        %v1134 = vrot.slane %v1132, 2
        %v1135 = vrot.slane %v1045, 7
        %v1136 = vsel %vm1117, %v1134, %v1135
        %v1137 = vrot.slane %v1135, 2
        %v1138 = vrot.slane %v1046, 7
        %v1139 = vsel %vm1117, %v1137, %v1138
        %v1140 = vrot.slane %v1138, 2
        %v1141 = vrot.slane %v1047, 7
        %v1142 = vsel %vm1117, %v1140, %v1141
        %v1143 = vrot.slane %v1141, 2
        %v1144 = vrot.slane %v1048, 7
        %v1145 = vrot.slane %v1144, 2
        %v1146 = vrot.slane %v1049, 7
        %v1147 = vsel %vm1117, %v1145, %v1146
        %v1148 = vrot.slane %v1146, 2
        %v1149 = vrot.slane %v1050, 7
        %v1150 = vsel %vm1117, %v1148, %v1149
        %v1151 = vrot.slane %v1149, 2
        %v1152 = vrot.slane %v1051, 7
        %v1153 = vsel %vm1117, %v1151, %v1152
        %v1154 = vrot.slane %v1152, 2
        %v1155 = vrot.slane %v1052, 7
        %v1156 = vsel %vm1117, %v1154, %v1155
        %v1157 = vrot.slane %v1155, 2
        %v1158 = vrot.slane %v1053, 7
        %v1159 = vsel %vm1117, %v1157, %v1158
        %v1160 = vrot.slane %v1158, 2
        %v1161 = vrot.slane %v1054, 7
        %v1162 = vsel %vm1117, %v1160, %v1161
        %v1163 = vrot.slane %v1161, 2
        %v1164 = vrot.slane %v1055, 7
        %v1165 = vsel %vm1117, %v1163, %v1164
        %v1166 = vrot.slane %v1164, 2
        %v1167 = vrot.slane %v1056, 7
        %v1168 = vsel %vm1117, %v1166, %v1167
        %v1169 = vrot.slane %v1167, 2
        %v1170 = vrot.slane %v1057, 7
        %v1171 = vrot.slane %v1170, 2
        %v1172 = vrot.slane %v1058, 7
        %v1173 = vsel %vm1117, %v1171, %v1172
        %v1174 = vrot.slane %v1172, 2
        %v1175 = vrot.slane %v1059, 7
        %v1176 = vsel %vm1117, %v1174, %v1175
        %v1177 = vrot.slane %v1175, 2
        %v1178 = vrot.slane %v1060, 7
        %v1179 = vsel %vm1117, %v1177, %v1178
        %v1180 = vrot.slane %v1178, 2
        %v1181 = vrot.slane %v1061, 7
        %v1182 = vsel %vm1117, %v1180, %v1181
        %v1183 = vrot.slane %v1181, 2
        %v1184 = vrot.slane %v1062, 7
        %v1185 = vsel %vm1117, %v1183, %v1184
        %v1186 = vrot.slane %v1184, 2
        %v1187 = vrot.slane %v1063, 7
        %v1188 = vsel %vm1117, %v1186, %v1187
        %v1189 = vrot.slane %v1187, 2
        %v1190 = vrot.slane %v1064, 7
        %v1191 = vsel %vm1117, %v1189, %v1190
        %v1192 = vrot.slane %v1190, 2
        %v1193 = vrot.slane %v1065, 7
        %v1194 = vsel %vm1117, %v1192, %v1193
        %v1195 = vrot.slane %v1193, 2
        %v1196 = vrot.slane %v1066, 7
        %v1197 = vrot.slane %v1196, 2
        %v1198 = vrot.slane %v1067, 7
        %v1199 = vsel %vm1117, %v1197, %v1198
        %v1200 = vrot.slane %v1198, 2
        %v1201 = vrot.slane %v1068, 7
        %v1202 = vsel %vm1117, %v1200, %v1201
        %v1203 = vrot.slane %v1201, 2
        %v1204 = vrot.slane %v1069, 7
        %v1205 = vsel %vm1117, %v1203, %v1204
        %v1206 = vrot.slane %v1204, 2
        %v1207 = vrot.slane %v1070, 7
        %v1208 = vsel %vm1117, %v1206, %v1207
        %v1209 = vrot.slane %v1207, 2
        %v1210 = vrot.slane %v1071, 7
        %v1211 = vsel %vm1117, %v1209, %v1210
        %v1212 = vrot.slane %v1210, 2
        %v1213 = vrot.slane %v1072, 7
        %v1214 = vsel %vm1117, %v1212, %v1213
        %v1215 = vrot.slane %v1213, 2
        %v1216 = vrot.slane %v1073, 7
        %v1217 = vsel %vm1117, %v1215, %v1216
        %v1218 = vrot.slane %v1216, 2
        %v1219 = vrot.slane %v1074, 7
        %v1220 = vsel %vm1117, %v1218, %v1219
        %v1221 = vrot.slane %v1219, 2
        %v1258 = vadd.f32 %v1003, %v1121
        %v1259 = vadd.f32 %v1004, %v1124
        %v1260 = vadd.f32 %v1005, %v1127
        %v1261 = vadd.f32 %v1006, %v1130
        %v1262 = vadd.f32 %v1007, %v1133
        %v1263 = vadd.f32 %v1008, %v1136
        %v1264 = vadd.f32 %v1009, %v1139
        %v1265 = vadd.f32 %v1010, %v1142
        %v1266 = vadd.f32 %v1011, %v1143
        %v1267 = vadd.f32 %v1012, %v1147
        %v1268 = vadd.f32 %v1013, %v1150
        %v1269 = vadd.f32 %v1014, %v1153
        %v1270 = vadd.f32 %v1015, %v1156
        %v1271 = vadd.f32 %v1016, %v1159
        %v1272 = vadd.f32 %v1017, %v1162
        %v1273 = vadd.f32 %v1018, %v1165
        %v1274 = vadd.f32 %v1019, %v1168
        %v1275 = vadd.f32 %v1020, %v1169
        %v1276 = vadd.f32 %v1021, %v1173
        %v1277 = vadd.f32 %v1022, %v1176
        %v1278 = vadd.f32 %v1023, %v1179
        %v1279 = vadd.f32 %v1024, %v1182
        %v1280 = vadd.f32 %v1025, %v1185
        %v1281 = vadd.f32 %v1026, %v1188
        %v1282 = vadd.f32 %v1027, %v1191
        %v1283 = vadd.f32 %v1028, %v1194
        %v1284 = vadd.f32 %v1029, %v1195
        %v1285 = vadd.f32 %v1030, %v1199
        %v1286 = vadd.f32 %v1031, %v1202
        %v1287 = vadd.f32 %v1032, %v1205
        %v1288 = vadd.f32 %v1033, %v1208
        %v1289 = vadd.f32 %v1034, %v1211
        %v1290 = vadd.f32 %v1035, %v1214
        %v1291 = vadd.f32 %v1036, %v1217
        %v1292 = vadd.f32 %v1037, %v1220
        %v1293 = vadd.f32 %v1038, %v1221
        %v1330 = vrot.slane %v1003, 7
        %v1331 = vrot.slane %v1330, 2
        %v1332 = vrot.slane %v1004, 7
        %v1333 = vsel %vm1117, %v1331, %v1332
        %v1334 = vrot.slane %v1332, 2
        %v1335 = vrot.slane %v1005, 7
        %v1336 = vsel %vm1117, %v1334, %v1335
        %v1337 = vrot.slane %v1335, 2
        %v1338 = vrot.slane %v1006, 7
        %v1339 = vsel %vm1117, %v1337, %v1338
        %v1340 = vrot.slane %v1338, 2
        %v1341 = vrot.slane %v1007, 7
        %v1342 = vsel %vm1117, %v1340, %v1341
        %v1343 = vrot.slane %v1341, 2
        %v1344 = vrot.slane %v1008, 7
        %v1345 = vsel %vm1117, %v1343, %v1344
        %v1346 = vrot.slane %v1344, 2
        %v1347 = vrot.slane %v1009, 7
        %v1348 = vsel %vm1117, %v1346, %v1347
        %v1349 = vrot.slane %v1347, 2
        %v1350 = vrot.slane %v1010, 7
        %v1351 = vsel %vm1117, %v1349, %v1350
        %v1352 = vrot.slane %v1350, 2
        %v1353 = vrot.slane %v1011, 7
        %v1354 = vsel %vm1117, %v1352, %v1353
        %v1355 = vrot.slane %v1353, 2
        %v1356 = vrot.slane %v1012, 7
        %v1357 = vrot.slane %v1356, 2
        %v1358 = vrot.slane %v1013, 7
        %v1359 = vsel %vm1117, %v1357, %v1358
        %v1360 = vrot.slane %v1358, 2
        %v1361 = vrot.slane %v1014, 7
        %v1362 = vsel %vm1117, %v1360, %v1361
        %v1363 = vrot.slane %v1361, 2
        %v1364 = vrot.slane %v1015, 7
        %v1365 = vsel %vm1117, %v1363, %v1364
        %v1366 = vrot.slane %v1364, 2
        %v1367 = vrot.slane %v1016, 7
        %v1368 = vsel %vm1117, %v1366, %v1367
        %v1369 = vrot.slane %v1367, 2
        %v1370 = vrot.slane %v1017, 7
        %v1371 = vsel %vm1117, %v1369, %v1370
        %v1372 = vrot.slane %v1370, 2
        %v1373 = vrot.slane %v1018, 7
        %v1374 = vsel %vm1117, %v1372, %v1373
        %v1375 = vrot.slane %v1373, 2
        %v1376 = vrot.slane %v1019, 7
        %v1377 = vsel %vm1117, %v1375, %v1376
        %v1378 = vrot.slane %v1376, 2
        %v1379 = vrot.slane %v1020, 7
        %v1380 = vsel %vm1117, %v1378, %v1379
        %v1381 = vrot.slane %v1379, 2
        %v1382 = vrot.slane %v1021, 7
        %v1383 = vrot.slane %v1382, 2
        %v1384 = vrot.slane %v1022, 7
        %v1385 = vsel %vm1117, %v1383, %v1384
        %v1386 = vrot.slane %v1384, 2
        %v1387 = vrot.slane %v1023, 7
        %v1388 = vsel %vm1117, %v1386, %v1387
        %v1389 = vrot.slane %v1387, 2
        %v1390 = vrot.slane %v1024, 7
        %v1391 = vsel %vm1117, %v1389, %v1390
        %v1392 = vrot.slane %v1390, 2
        %v1393 = vrot.slane %v1025, 7
        %v1394 = vsel %vm1117, %v1392, %v1393
        %v1395 = vrot.slane %v1393, 2
        %v1396 = vrot.slane %v1026, 7
        %v1397 = vsel %vm1117, %v1395, %v1396
        %v1398 = vrot.slane %v1396, 2
        %v1399 = vrot.slane %v1027, 7
        %v1400 = vsel %vm1117, %v1398, %v1399
        %v1401 = vrot.slane %v1399, 2
        %v1402 = vrot.slane %v1028, 7
        %v1403 = vsel %vm1117, %v1401, %v1402
        %v1404 = vrot.slane %v1402, 2
        %v1405 = vrot.slane %v1029, 7
        %v1406 = vsel %vm1117, %v1404, %v1405
        %v1407 = vrot.slane %v1405, 2
        %v1408 = vrot.slane %v1030, 7
        %v1409 = vrot.slane %v1408, 2
        %v1410 = vrot.slane %v1031, 7
        %v1411 = vsel %vm1117, %v1409, %v1410
        %v1412 = vrot.slane %v1410, 2
        %v1413 = vrot.slane %v1032, 7
        %v1414 = vsel %vm1117, %v1412, %v1413
        %v1415 = vrot.slane %v1413, 2
        %v1416 = vrot.slane %v1033, 7
        %v1417 = vsel %vm1117, %v1415, %v1416
        %v1418 = vrot.slane %v1416, 2
        %v1419 = vrot.slane %v1034, 7
        %v1420 = vsel %vm1117, %v1418, %v1419
        %v1421 = vrot.slane %v1419, 2
        %v1422 = vrot.slane %v1035, 7
        %v1423 = vsel %vm1117, %v1421, %v1422
        %v1424 = vrot.slane %v1422, 2
        %v1425 = vrot.slane %v1036, 7
        %v1426 = vsel %vm1117, %v1424, %v1425
        %v1427 = vrot.slane %v1425, 2
        %v1428 = vrot.slane %v1037, 7
        %v1429 = vsel %vm1117, %v1427, %v1428
        %v1430 = vrot.slane %v1428, 2
        %v1431 = vrot.slane %v1038, 7
        %v1432 = vsel %vm1117, %v1430, %v1431
        %v1433 = vrot.slane %v1431, 2
        %v1470 = vadd.f32 %v1039, %v1333
        %v1471 = vadd.f32 %v1040, %v1336
        %v1472 = vadd.f32 %v1041, %v1339
        %v1473 = vadd.f32 %v1042, %v1342
        %v1474 = vadd.f32 %v1043, %v1345
        %v1475 = vadd.f32 %v1044, %v1348
        %v1476 = vadd.f32 %v1045, %v1351
        %v1477 = vadd.f32 %v1046, %v1354
        %v1478 = vadd.f32 %v1047, %v1355
        %v1479 = vadd.f32 %v1048, %v1359
        %v1480 = vadd.f32 %v1049, %v1362
        %v1481 = vadd.f32 %v1050, %v1365
        %v1482 = vadd.f32 %v1051, %v1368
        %v1483 = vadd.f32 %v1052, %v1371
        %v1484 = vadd.f32 %v1053, %v1374
        %v1485 = vadd.f32 %v1054, %v1377
        %v1486 = vadd.f32 %v1055, %v1380
        %v1487 = vadd.f32 %v1056, %v1381
        %v1488 = vadd.f32 %v1057, %v1385
        %v1489 = vadd.f32 %v1058, %v1388
        %v1490 = vadd.f32 %v1059, %v1391
        %v1491 = vadd.f32 %v1060, %v1394
        %v1492 = vadd.f32 %v1061, %v1397
        %v1493 = vadd.f32 %v1062, %v1400
        %v1494 = vadd.f32 %v1063, %v1403
        %v1495 = vadd.f32 %v1064, %v1406
        %v1496 = vadd.f32 %v1065, %v1407
        %v1497 = vadd.f32 %v1066, %v1411
        %v1498 = vadd.f32 %v1067, %v1414
        %v1499 = vadd.f32 %v1068, %v1417
        %v1500 = vadd.f32 %v1069, %v1420
        %v1501 = vadd.f32 %v1070, %v1423
        %v1502 = vadd.f32 %v1071, %v1426
        %v1503 = vadd.f32 %v1072, %v1429
        %v1504 = vadd.f32 %v1073, %v1432
        %v1505 = vadd.f32 %v1074, %v1433
        %v1543 = vunpack.c.l.s4 1966171168
        %v1544 = vunpack.c.0.s8 %v1543
        %v1545 = vlaneseq
        %v1546 = vshrl.u32 %v1545, 7
        %v1547 = vsub.s32 %v1544, %v1546
        %v1548 = vrot.slane %v1258, %v1547
        %v1549 = vcombine.high %v1548, %v1548
        %v1551 = vunpack.c.l.s4 1966171168
        %v1552 = vunpack.c.0.s8 %v1551
        %v1553 = vlaneseq
        %v1554 = vshrl.u32 %v1553, 7
        %v1555 = vsub.s32 %v1552, %v1554
        %v1556 = vrot.slane %v1259, %v1555
        %v1557 = vcombine.high %v1556, %v1556
        %v1559 = vunpack.c.l.s4 1966171168
        %v1560 = vunpack.c.0.s8 %v1559
        %v1561 = vlaneseq
        %v1562 = vshrl.u32 %v1561, 7
        %v1563 = vsub.s32 %v1560, %v1562
        %v1564 = vrot.slane %v1260, %v1563
        %v1565 = vcombine.high %v1564, %v1564
        %v1567 = vunpack.c.l.s4 1966171168
        %v1568 = vunpack.c.0.s8 %v1567
        %v1569 = vlaneseq
        %v1570 = vshrl.u32 %v1569, 7
        %v1571 = vsub.s32 %v1568, %v1570
        %v1572 = vrot.slane %v1261, %v1571
        %v1573 = vcombine.high %v1572, %v1572
        %v1575 = vunpack.c.l.s4 1966171168
        %v1576 = vunpack.c.0.s8 %v1575
        %v1577 = vlaneseq
        %v1578 = vshrl.u32 %v1577, 7
        %v1579 = vsub.s32 %v1576, %v1578
        %v1580 = vrot.slane %v1262, %v1579
        %v1581 = vcombine.high %v1580, %v1580
        %v1583 = vunpack.c.l.s4 1966171168
        %v1584 = vunpack.c.0.s8 %v1583
        %v1585 = vlaneseq
        %v1586 = vshrl.u32 %v1585, 7
        %v1587 = vsub.s32 %v1584, %v1586
        %v1588 = vrot.slane %v1263, %v1587
        %v1589 = vcombine.high %v1588, %v1588
        %v1591 = vunpack.c.l.s4 1966171168
        %v1592 = vunpack.c.0.s8 %v1591
        %v1593 = vlaneseq
        %v1594 = vshrl.u32 %v1593, 7
        %v1595 = vsub.s32 %v1592, %v1594
        %v1596 = vrot.slane %v1264, %v1595
        %v1597 = vcombine.high %v1596, %v1596
        %v1599 = vunpack.c.l.s4 1966171168
        %v1600 = vunpack.c.0.s8 %v1599
        %v1601 = vlaneseq
        %v1602 = vshrl.u32 %v1601, 7
        %v1603 = vsub.s32 %v1600, %v1602
        %v1604 = vrot.slane %v1265, %v1603
        %v1605 = vcombine.high %v1604, %v1604
        %v1607 = vunpack.c.l.s4 1966171168
        %v1608 = vunpack.c.0.s8 %v1607
        %v1609 = vlaneseq
        %v1610 = vshrl.u32 %v1609, 7
        %v1611 = vsub.s32 %v1608, %v1610
        %v1612 = vrot.slane %v1266, %v1611
        %v1614 = vunpack.c.l.s4 1966171168
        %v1615 = vunpack.c.0.s8 %v1614
        %v1616 = vlaneseq
        %v1617 = vshrl.u32 %v1616, 7
        %v1618 = vsub.s32 %v1615, %v1617
        %v1619 = vrot.slane %v1267, %v1618
        %v1620 = vcombine.high %v1619, %v1619
        %v1622 = vunpack.c.l.s4 1966171168
        %v1623 = vunpack.c.0.s8 %v1622
        %v1624 = vlaneseq
        %v1625 = vshrl.u32 %v1624, 7
        %v1626 = vsub.s32 %v1623, %v1625
        %v1627 = vrot.slane %v1268, %v1626
        %v1628 = vcombine.high %v1627, %v1627
        %v1630 = vunpack.c.l.s4 1966171168
        %v1631 = vunpack.c.0.s8 %v1630
        %v1632 = vlaneseq
        %v1633 = vshrl.u32 %v1632, 7
        %v1634 = vsub.s32 %v1631, %v1633
        %v1635 = vrot.slane %v1269, %v1634
        %v1636 = vcombine.high %v1635, %v1635
        %v1638 = vunpack.c.l.s4 1966171168
        %v1639 = vunpack.c.0.s8 %v1638
        %v1640 = vlaneseq
        %v1641 = vshrl.u32 %v1640, 7
        %v1642 = vsub.s32 %v1639, %v1641
        %v1643 = vrot.slane %v1270, %v1642
        %v1644 = vcombine.high %v1643, %v1643
        %v1646 = vunpack.c.l.s4 1966171168
        %v1647 = vunpack.c.0.s8 %v1646
        %v1648 = vlaneseq
        %v1649 = vshrl.u32 %v1648, 7
        %v1650 = vsub.s32 %v1647, %v1649
        %v1651 = vrot.slane %v1271, %v1650
        %v1652 = vcombine.high %v1651, %v1651
        %v1654 = vunpack.c.l.s4 1966171168
        %v1655 = vunpack.c.0.s8 %v1654
        %v1656 = vlaneseq
        %v1657 = vshrl.u32 %v1656, 7
        %v1658 = vsub.s32 %v1655, %v1657
        %v1659 = vrot.slane %v1272, %v1658
        %v1660 = vcombine.high %v1659, %v1659
        %v1662 = vunpack.c.l.s4 1966171168
        %v1663 = vunpack.c.0.s8 %v1662
        %v1664 = vlaneseq
        %v1665 = vshrl.u32 %v1664, 7
        %v1666 = vsub.s32 %v1663, %v1665
        %v1667 = vrot.slane %v1273, %v1666
        %v1668 = vcombine.high %v1667, %v1667
        %v1670 = vunpack.c.l.s4 1966171168
        %v1671 = vunpack.c.0.s8 %v1670
        %v1672 = vlaneseq
        %v1673 = vshrl.u32 %v1672, 7
        %v1674 = vsub.s32 %v1671, %v1673
        %v1675 = vrot.slane %v1274, %v1674
        %v1676 = vcombine.high %v1675, %v1675
        %v1678 = vunpack.c.l.s4 1966171168
        %v1679 = vunpack.c.0.s8 %v1678
        %v1680 = vlaneseq
        %v1681 = vshrl.u32 %v1680, 7
        %v1682 = vsub.s32 %v1679, %v1681
        %v1683 = vrot.slane %v1275, %v1682
        %v1685 = vunpack.c.l.s4 1966171168
        %v1686 = vunpack.c.0.s8 %v1685
        %v1687 = vlaneseq
        %v1688 = vshrl.u32 %v1687, 7
        %v1689 = vsub.s32 %v1686, %v1688
        %v1690 = vrot.slane %v1276, %v1689
        %v1691 = vcombine.high %v1690, %v1690
        %v1693 = vunpack.c.l.s4 1966171168
        %v1694 = vunpack.c.0.s8 %v1693
        %v1695 = vlaneseq
        %v1696 = vshrl.u32 %v1695, 7
        %v1697 = vsub.s32 %v1694, %v1696
        %v1698 = vrot.slane %v1277, %v1697
        %v1699 = vcombine.high %v1698, %v1698
        %v1701 = vunpack.c.l.s4 1966171168
        %v1702 = vunpack.c.0.s8 %v1701
        %v1703 = vlaneseq
        %v1704 = vshrl.u32 %v1703, 7
        %v1705 = vsub.s32 %v1702, %v1704
        %v1706 = vrot.slane %v1278, %v1705
        %v1707 = vcombine.high %v1706, %v1706
        %v1709 = vunpack.c.l.s4 1966171168
        %v1710 = vunpack.c.0.s8 %v1709
        %v1711 = vlaneseq
        %v1712 = vshrl.u32 %v1711, 7
        %v1713 = vsub.s32 %v1710, %v1712
        %v1714 = vrot.slane %v1279, %v1713
        %v1715 = vcombine.high %v1714, %v1714
        %v1717 = vunpack.c.l.s4 1966171168
        %v1718 = vunpack.c.0.s8 %v1717
        %v1719 = vlaneseq
        %v1720 = vshrl.u32 %v1719, 7
        %v1721 = vsub.s32 %v1718, %v1720
        %v1722 = vrot.slane %v1280, %v1721
        %v1723 = vcombine.high %v1722, %v1722
        %v1725 = vunpack.c.l.s4 1966171168
        %v1726 = vunpack.c.0.s8 %v1725
        %v1727 = vlaneseq
        %v1728 = vshrl.u32 %v1727, 7
        %v1729 = vsub.s32 %v1726, %v1728
        %v1730 = vrot.slane %v1281, %v1729
        %v1731 = vcombine.high %v1730, %v1730
        %v1733 = vunpack.c.l.s4 1966171168
        %v1734 = vunpack.c.0.s8 %v1733
        %v1735 = vlaneseq
        %v1736 = vshrl.u32 %v1735, 7
        %v1737 = vsub.s32 %v1734, %v1736
        %v1738 = vrot.slane %v1282, %v1737
        %v1739 = vcombine.high %v1738, %v1738
        %v1741 = vunpack.c.l.s4 1966171168
        %v1742 = vunpack.c.0.s8 %v1741
        %v1743 = vlaneseq
        %v1744 = vshrl.u32 %v1743, 7
        %v1745 = vsub.s32 %v1742, %v1744
        %v1746 = vrot.slane %v1283, %v1745
        %v1747 = vcombine.high %v1746, %v1746
        %v1749 = vunpack.c.l.s4 1966171168
        %v1750 = vunpack.c.0.s8 %v1749
        %v1751 = vlaneseq
        %v1752 = vshrl.u32 %v1751, 7
        %v1753 = vsub.s32 %v1750, %v1752
        %v1754 = vrot.slane %v1284, %v1753
        %v1756 = vunpack.c.l.s4 1966171168
        %v1757 = vunpack.c.0.s8 %v1756
        %v1758 = vlaneseq
        %v1759 = vshrl.u32 %v1758, 7
        %v1760 = vsub.s32 %v1757, %v1759
        %v1761 = vrot.slane %v1285, %v1760
        %v1762 = vcombine.high %v1761, %v1761
        %v1764 = vunpack.c.l.s4 1966171168
        %v1765 = vunpack.c.0.s8 %v1764
        %v1766 = vlaneseq
        %v1767 = vshrl.u32 %v1766, 7
        %v1768 = vsub.s32 %v1765, %v1767
        %v1769 = vrot.slane %v1286, %v1768
        %v1770 = vcombine.high %v1769, %v1769
        %v1772 = vunpack.c.l.s4 1966171168
        %v1773 = vunpack.c.0.s8 %v1772
        %v1774 = vlaneseq
        %v1775 = vshrl.u32 %v1774, 7
        %v1776 = vsub.s32 %v1773, %v1775
        %v1777 = vrot.slane %v1287, %v1776
        %v1778 = vcombine.high %v1777, %v1777
        %v1780 = vunpack.c.l.s4 1966171168
        %v1781 = vunpack.c.0.s8 %v1780
        %v1782 = vlaneseq
        %v1783 = vshrl.u32 %v1782, 7
        %v1784 = vsub.s32 %v1781, %v1783
        %v1785 = vrot.slane %v1288, %v1784
        %v1786 = vcombine.high %v1785, %v1785
        %v1788 = vunpack.c.l.s4 1966171168
        %v1789 = vunpack.c.0.s8 %v1788
        %v1790 = vlaneseq
        %v1791 = vshrl.u32 %v1790, 7
        %v1792 = vsub.s32 %v1789, %v1791
        %v1793 = vrot.slane %v1289, %v1792
        %v1794 = vcombine.high %v1793, %v1793
        %v1796 = vunpack.c.l.s4 1966171168
        %v1797 = vunpack.c.0.s8 %v1796
        %v1798 = vlaneseq
        %v1799 = vshrl.u32 %v1798, 7
        %v1800 = vsub.s32 %v1797, %v1799
        %v1801 = vrot.slane %v1290, %v1800
        %v1802 = vcombine.high %v1801, %v1801
        %v1804 = vunpack.c.l.s4 1966171168
        %v1805 = vunpack.c.0.s8 %v1804
        %v1806 = vlaneseq
        %v1807 = vshrl.u32 %v1806, 7
        %v1808 = vsub.s32 %v1805, %v1807
        %v1809 = vrot.slane %v1291, %v1808
        %v1810 = vcombine.high %v1809, %v1809
        %v1812 = vunpack.c.l.s4 1966171168
        %v1813 = vunpack.c.0.s8 %v1812
        %v1814 = vlaneseq
        %v1815 = vshrl.u32 %v1814, 7
        %v1816 = vsub.s32 %v1813, %v1815
        %v1817 = vrot.slane %v1292, %v1816
        %v1818 = vcombine.high %v1817, %v1817
        %v1820 = vunpack.c.l.s4 1966171168
        %v1821 = vunpack.c.0.s8 %v1820
        %v1822 = vlaneseq
        %v1823 = vshrl.u32 %v1822, 7
        %v1824 = vsub.s32 %v1821, %v1823
        %v1825 = vrot.slane %v1293, %v1824
        %v1931 = vunpack.c.l.s4 1966171168
        %v1932 = vunpack.c.0.s8 %v1931
        %v1933 = vlaneseq
        %v1934 = vshrl.u32 %v1933, 7
        %v1935 = vsub.s32 %v1932, %v1934
        %v1936 = vrot.slane %v1470, %v1935
        %v1937 = vcombine.high %v1936, %v1936
        %v1939 = vunpack.c.l.s4 1966171168
        %v1940 = vunpack.c.0.s8 %v1939
        %v1941 = vlaneseq
        %v1942 = vshrl.u32 %v1941, 7
        %v1943 = vsub.s32 %v1940, %v1942
        %v1944 = vrot.slane %v1471, %v1943
        %v1945 = vcombine.high %v1944, %v1944
        %v1947 = vunpack.c.l.s4 1966171168
        %v1948 = vunpack.c.0.s8 %v1947
        %v1949 = vlaneseq
        %v1950 = vshrl.u32 %v1949, 7
        %v1951 = vsub.s32 %v1948, %v1950
        %v1952 = vrot.slane %v1472, %v1951
        %v1953 = vcombine.high %v1952, %v1952
        %v1955 = vunpack.c.l.s4 1966171168
        %v1956 = vunpack.c.0.s8 %v1955
        %v1957 = vlaneseq
        %v1958 = vshrl.u32 %v1957, 7
        %v1959 = vsub.s32 %v1956, %v1958
        %v1960 = vrot.slane %v1473, %v1959
        %v1961 = vcombine.high %v1960, %v1960
        %v1963 = vunpack.c.l.s4 1966171168
        %v1964 = vunpack.c.0.s8 %v1963
        %v1965 = vlaneseq
        %v1966 = vshrl.u32 %v1965, 7
        %v1967 = vsub.s32 %v1964, %v1966
        %v1968 = vrot.slane %v1474, %v1967
        %v1969 = vcombine.high %v1968, %v1968
        %v1971 = vunpack.c.l.s4 1966171168
        %v1972 = vunpack.c.0.s8 %v1971
        %v1973 = vlaneseq
        %v1974 = vshrl.u32 %v1973, 7
        %v1975 = vsub.s32 %v1972, %v1974
        %v1976 = vrot.slane %v1475, %v1975
        %v1977 = vcombine.high %v1976, %v1976
        %v1979 = vunpack.c.l.s4 1966171168
        %v1980 = vunpack.c.0.s8 %v1979
        %v1981 = vlaneseq
        %v1982 = vshrl.u32 %v1981, 7
        %v1983 = vsub.s32 %v1980, %v1982
        %v1984 = vrot.slane %v1476, %v1983
        %v1985 = vcombine.high %v1984, %v1984
        %v1987 = vunpack.c.l.s4 1966171168
        %v1988 = vunpack.c.0.s8 %v1987
        %v1989 = vlaneseq
        %v1990 = vshrl.u32 %v1989, 7
        %v1991 = vsub.s32 %v1988, %v1990
        %v1992 = vrot.slane %v1477, %v1991
        %v1993 = vcombine.high %v1992, %v1992
        %v1995 = vunpack.c.l.s4 1966171168
        %v1996 = vunpack.c.0.s8 %v1995
        %v1997 = vlaneseq
        %v1998 = vshrl.u32 %v1997, 7
        %v1999 = vsub.s32 %v1996, %v1998
        %v2000 = vrot.slane %v1478, %v1999
        %v2002 = vunpack.c.l.s4 1966171168
        %v2003 = vunpack.c.0.s8 %v2002
        %v2004 = vlaneseq
        %v2005 = vshrl.u32 %v2004, 7
        %v2006 = vsub.s32 %v2003, %v2005
        %v2007 = vrot.slane %v1479, %v2006
        %v2008 = vcombine.high %v2007, %v2007
        %v2010 = vunpack.c.l.s4 1966171168
        %v2011 = vunpack.c.0.s8 %v2010
        %v2012 = vlaneseq
        %v2013 = vshrl.u32 %v2012, 7
        %v2014 = vsub.s32 %v2011, %v2013
        %v2015 = vrot.slane %v1480, %v2014
        %v2016 = vcombine.high %v2015, %v2015
        %v2018 = vunpack.c.l.s4 1966171168
        %v2019 = vunpack.c.0.s8 %v2018
        %v2020 = vlaneseq
        %v2021 = vshrl.u32 %v2020, 7
        %v2022 = vsub.s32 %v2019, %v2021
        %v2023 = vrot.slane %v1481, %v2022
        %v2024 = vcombine.high %v2023, %v2023
        %v2026 = vunpack.c.l.s4 1966171168
        %v2027 = vunpack.c.0.s8 %v2026
        %v2028 = vlaneseq
        %v2029 = vshrl.u32 %v2028, 7
        %v2030 = vsub.s32 %v2027, %v2029
        %v2031 = vrot.slane %v1482, %v2030
        %v2032 = vcombine.high %v2031, %v2031
        %v2034 = vunpack.c.l.s4 1966171168
        %v2035 = vunpack.c.0.s8 %v2034
        %v2036 = vlaneseq
        %v2037 = vshrl.u32 %v2036, 7
        %v2038 = vsub.s32 %v2035, %v2037
        %v2039 = vrot.slane %v1483, %v2038
        %v2040 = vcombine.high %v2039, %v2039
        %v2042 = vunpack.c.l.s4 1966171168
        %v2043 = vunpack.c.0.s8 %v2042
        %v2044 = vlaneseq
        %v2045 = vshrl.u32 %v2044, 7
        %v2046 = vsub.s32 %v2043, %v2045
        %v2047 = vrot.slane %v1484, %v2046
        %v2048 = vcombine.high %v2047, %v2047
        %v2050 = vunpack.c.l.s4 1966171168
        %v2051 = vunpack.c.0.s8 %v2050
        %v2052 = vlaneseq
        %v2053 = vshrl.u32 %v2052, 7
        %v2054 = vsub.s32 %v2051, %v2053
        %v2055 = vrot.slane %v1485, %v2054
        %v2056 = vcombine.high %v2055, %v2055
        %v2058 = vunpack.c.l.s4 1966171168
        %v2059 = vunpack.c.0.s8 %v2058
        %v2060 = vlaneseq
        %v2061 = vshrl.u32 %v2060, 7
        %v2062 = vsub.s32 %v2059, %v2061
        %v2063 = vrot.slane %v1486, %v2062
        %v2064 = vcombine.high %v2063, %v2063
        %v2066 = vunpack.c.l.s4 1966171168
        %v2067 = vunpack.c.0.s8 %v2066
        %v2068 = vlaneseq
        %v2069 = vshrl.u32 %v2068, 7
        %v2070 = vsub.s32 %v2067, %v2069
        %v2071 = vrot.slane %v1487, %v2070
        %v2073 = vunpack.c.l.s4 1966171168
        %v2074 = vunpack.c.0.s8 %v2073
        %v2075 = vlaneseq
        %v2076 = vshrl.u32 %v2075, 7
        %v2077 = vsub.s32 %v2074, %v2076
        %v2078 = vrot.slane %v1488, %v2077
        %v2079 = vcombine.high %v2078, %v2078
        %v2081 = vunpack.c.l.s4 1966171168
        %v2082 = vunpack.c.0.s8 %v2081
        %v2083 = vlaneseq
        %v2084 = vshrl.u32 %v2083, 7
        %v2085 = vsub.s32 %v2082, %v2084
        %v2086 = vrot.slane %v1489, %v2085
        %v2087 = vcombine.high %v2086, %v2086
        %v2089 = vunpack.c.l.s4 1966171168
        %v2090 = vunpack.c.0.s8 %v2089
        %v2091 = vlaneseq
        %v2092 = vshrl.u32 %v2091, 7
        %v2093 = vsub.s32 %v2090, %v2092
        %v2094 = vrot.slane %v1490, %v2093
        %v2095 = vcombine.high %v2094, %v2094
        %v2097 = vunpack.c.l.s4 1966171168
        %v2098 = vunpack.c.0.s8 %v2097
        %v2099 = vlaneseq
        %v2100 = vshrl.u32 %v2099, 7
        %v2101 = vsub.s32 %v2098, %v2100
        %v2102 = vrot.slane %v1491, %v2101
        %v2103 = vcombine.high %v2102, %v2102
        %v2105 = vunpack.c.l.s4 1966171168
        %v2106 = vunpack.c.0.s8 %v2105
        %v2107 = vlaneseq
        %v2108 = vshrl.u32 %v2107, 7
        %v2109 = vsub.s32 %v2106, %v2108
        %v2110 = vrot.slane %v1492, %v2109
        %v2111 = vcombine.high %v2110, %v2110
        %v2113 = vunpack.c.l.s4 1966171168
        %v2114 = vunpack.c.0.s8 %v2113
        %v2115 = vlaneseq
        %v2116 = vshrl.u32 %v2115, 7
        %v2117 = vsub.s32 %v2114, %v2116
        %v2118 = vrot.slane %v1493, %v2117
        %v2119 = vcombine.high %v2118, %v2118
        %v2121 = vunpack.c.l.s4 1966171168
        %v2122 = vunpack.c.0.s8 %v2121
        %v2123 = vlaneseq
        %v2124 = vshrl.u32 %v2123, 7
        %v2125 = vsub.s32 %v2122, %v2124
        %v2126 = vrot.slane %v1494, %v2125
        %v2127 = vcombine.high %v2126, %v2126
        %v2129 = vunpack.c.l.s4 1966171168
        %v2130 = vunpack.c.0.s8 %v2129
        %v2131 = vlaneseq
        %v2132 = vshrl.u32 %v2131, 7
        %v2133 = vsub.s32 %v2130, %v2132
        %v2134 = vrot.slane %v1495, %v2133
        %v2135 = vcombine.high %v2134, %v2134
        %v2137 = vunpack.c.l.s4 1966171168
        %v2138 = vunpack.c.0.s8 %v2137
        %v2139 = vlaneseq
        %v2140 = vshrl.u32 %v2139, 7
        %v2141 = vsub.s32 %v2138, %v2140
        %v2142 = vrot.slane %v1496, %v2141
        %v2144 = vunpack.c.l.s4 1966171168
        %v2145 = vunpack.c.0.s8 %v2144
        %v2146 = vlaneseq
        %v2147 = vshrl.u32 %v2146, 7
        %v2148 = vsub.s32 %v2145, %v2147
        %v2149 = vrot.slane %v1497, %v2148
        %v2150 = vcombine.high %v2149, %v2149
        %v2152 = vunpack.c.l.s4 1966171168
        %v2153 = vunpack.c.0.s8 %v2152
        %v2154 = vlaneseq
        %v2155 = vshrl.u32 %v2154, 7
        %v2156 = vsub.s32 %v2153, %v2155
        %v2157 = vrot.slane %v1498, %v2156
        %v2158 = vcombine.high %v2157, %v2157
        %v2160 = vunpack.c.l.s4 1966171168
        %v2161 = vunpack.c.0.s8 %v2160
        %v2162 = vlaneseq
        %v2163 = vshrl.u32 %v2162, 7
        %v2164 = vsub.s32 %v2161, %v2163
        %v2165 = vrot.slane %v1499, %v2164
        %v2166 = vcombine.high %v2165, %v2165
        %v2168 = vunpack.c.l.s4 1966171168
        %v2169 = vunpack.c.0.s8 %v2168
        %v2170 = vlaneseq
        %v2171 = vshrl.u32 %v2170, 7
        %v2172 = vsub.s32 %v2169, %v2171
        %v2173 = vrot.slane %v1500, %v2172
        %v2174 = vcombine.high %v2173, %v2173
        %v2176 = vunpack.c.l.s4 1966171168
        %v2177 = vunpack.c.0.s8 %v2176
        %v2178 = vlaneseq
        %v2179 = vshrl.u32 %v2178, 7
        %v2180 = vsub.s32 %v2177, %v2179
        %v2181 = vrot.slane %v1501, %v2180
        %v2182 = vcombine.high %v2181, %v2181
        %v2184 = vunpack.c.l.s4 1966171168
        %v2185 = vunpack.c.0.s8 %v2184
        %v2186 = vlaneseq
        %v2187 = vshrl.u32 %v2186, 7
        %v2188 = vsub.s32 %v2185, %v2187
        %v2189 = vrot.slane %v1502, %v2188
        %v2190 = vcombine.high %v2189, %v2189
        %v2192 = vunpack.c.l.s4 1966171168
        %v2193 = vunpack.c.0.s8 %v2192
        %v2194 = vlaneseq
        %v2195 = vshrl.u32 %v2194, 7
        %v2196 = vsub.s32 %v2193, %v2195
        %v2197 = vrot.slane %v1503, %v2196
        %v2198 = vcombine.high %v2197, %v2197
        %v2200 = vunpack.c.l.s4 1966171168
        %v2201 = vunpack.c.0.s8 %v2200
        %v2202 = vlaneseq
        %v2203 = vshrl.u32 %v2202, 7
        %v2204 = vsub.s32 %v2201, %v2203
        %v2205 = vrot.slane %v1504, %v2204
        %v2206 = vcombine.high %v2205, %v2205
        %v2208 = vunpack.c.l.s4 1966171168
        %v2209 = vunpack.c.0.s8 %v2208
        %v2210 = vlaneseq
        %v2211 = vshrl.u32 %v2210, 7
        %v2212 = vsub.s32 %v2209, %v2211
        %v2213 = vrot.slane %v1505, %v2212
        %v2214 = vlaneseq
        %v2215 = vshrl.u32 %v2214, 7
        %v2216 = vsub.s32 0, %v2215
        %v2217 = vrot.slane %v1936, %v2216
        %v2218 = vlaneseq
        %v2219 = vshrl.u32 %v2218, 7
        %v2220 = vsub.s32 0, %v2219
        %v2221 = vrot.slane %v1937, %v2220
        %v2222 = vlaneseq
        %v2223 = vshrl.u32 %v2222, 7
        %v2224 = vsub.s32 0, %v2223
        %v2225 = vrot.slane %v1944, %v2224
        %v2226 = vlaneseq
        %v2227 = vshrl.u32 %v2226, 7
        %v2228 = vsub.s32 0, %v2227
        %v2229 = vrot.slane %v1945, %v2228
        %v2230 = vlaneseq
        %v2231 = vshrl.u32 %v2230, 7
        %v2232 = vsub.s32 0, %v2231
        %v2233 = vrot.slane %v1952, %v2232
        %v2234 = vlaneseq
        %v2235 = vshrl.u32 %v2234, 7
        %v2236 = vsub.s32 0, %v2235
        %v2237 = vrot.slane %v1953, %v2236
        %v2238 = vlaneseq
        %v2239 = vshrl.u32 %v2238, 7
        %v2240 = vsub.s32 0, %v2239
        %v2241 = vrot.slane %v1960, %v2240
        %v2242 = vlaneseq
        %v2243 = vshrl.u32 %v2242, 7
        %v2244 = vsub.s32 0, %v2243
        %v2245 = vrot.slane %v1961, %v2244
        %v2246 = vlaneseq
        %v2247 = vshrl.u32 %v2246, 7
        %v2248 = vsub.s32 0, %v2247
        %v2249 = vrot.slane %v1968, %v2248
        %v2250 = vlaneseq
        %v2251 = vshrl.u32 %v2250, 7
        %v2252 = vsub.s32 0, %v2251
        %v2253 = vrot.slane %v1969, %v2252
        %v2254 = vlaneseq
        %v2255 = vshrl.u32 %v2254, 7
        %v2256 = vsub.s32 0, %v2255
        %v2257 = vrot.slane %v1976, %v2256
        %v2258 = vlaneseq
        %v2259 = vshrl.u32 %v2258, 7
        %v2260 = vsub.s32 0, %v2259
        %v2261 = vrot.slane %v1977, %v2260
        %v2262 = vlaneseq
        %v2263 = vshrl.u32 %v2262, 7
        %v2264 = vsub.s32 0, %v2263
        %v2265 = vrot.slane %v1984, %v2264
        %v2266 = vlaneseq
        %v2267 = vshrl.u32 %v2266, 7
        %v2268 = vsub.s32 0, %v2267
        %v2269 = vrot.slane %v1985, %v2268
        %v2270 = vlaneseq
        %v2271 = vshrl.u32 %v2270, 7
        %v2272 = vsub.s32 0, %v2271
        %v2273 = vrot.slane %v1992, %v2272
        %v2274 = vlaneseq
        %v2275 = vshrl.u32 %v2274, 7
        %v2276 = vsub.s32 0, %v2275
        %v2277 = vrot.slane %v1993, %v2276
        %v2278 = vlaneseq
        %v2279 = vshrl.u32 %v2278, 7
        %v2280 = vsub.s32 0, %v2279
        %v2281 = vrot.slane %v2000, %v2280
        %v2282 = vlaneseq
        %v2283 = vshrl.u32 %v2282, 7
        %v2284 = vsub.s32 0, %v2283
        %v2285 = vrot.slane %v2007, %v2284
        %v2286 = vlaneseq
        %v2287 = vshrl.u32 %v2286, 7
        %v2288 = vsub.s32 0, %v2287
        %v2289 = vrot.slane %v2008, %v2288
        %v2290 = vlaneseq
        %v2291 = vshrl.u32 %v2290, 7
        %v2292 = vsub.s32 0, %v2291
        %v2293 = vrot.slane %v2015, %v2292
        %v2294 = vlaneseq
        %v2295 = vshrl.u32 %v2294, 7
        %v2296 = vsub.s32 0, %v2295
        %v2297 = vrot.slane %v2016, %v2296
        %v2298 = vlaneseq
        %v2299 = vshrl.u32 %v2298, 7
        %v2300 = vsub.s32 0, %v2299
        %v2301 = vrot.slane %v2023, %v2300
        %v2302 = vlaneseq
        %v2303 = vshrl.u32 %v2302, 7
        %v2304 = vsub.s32 0, %v2303
        %v2305 = vrot.slane %v2024, %v2304
        %v2306 = vlaneseq
        %v2307 = vshrl.u32 %v2306, 7
        %v2308 = vsub.s32 0, %v2307
        %v2309 = vrot.slane %v2031, %v2308
        %v2310 = vlaneseq
        %v2311 = vshrl.u32 %v2310, 7
        %v2312 = vsub.s32 0, %v2311
        %v2313 = vrot.slane %v2032, %v2312
        %v2314 = vlaneseq
        %v2315 = vshrl.u32 %v2314, 7
        %v2316 = vsub.s32 0, %v2315
        %v2317 = vrot.slane %v2039, %v2316
        %v2318 = vlaneseq
        %v2319 = vshrl.u32 %v2318, 7
        %v2320 = vsub.s32 0, %v2319
        %v2321 = vrot.slane %v2040, %v2320
        %v2322 = vlaneseq
        %v2323 = vshrl.u32 %v2322, 7
        %v2324 = vsub.s32 0, %v2323
        %v2325 = vrot.slane %v2047, %v2324
        %v2326 = vlaneseq
        %v2327 = vshrl.u32 %v2326, 7
        %v2328 = vsub.s32 0, %v2327
        %v2329 = vrot.slane %v2048, %v2328
        %v2330 = vlaneseq
        %v2331 = vshrl.u32 %v2330, 7
        %v2332 = vsub.s32 0, %v2331
        %v2333 = vrot.slane %v2055, %v2332
        %v2334 = vlaneseq
        %v2335 = vshrl.u32 %v2334, 7
        %v2336 = vsub.s32 0, %v2335
        %v2337 = vrot.slane %v2056, %v2336
        %v2338 = vlaneseq
        %v2339 = vshrl.u32 %v2338, 7
        %v2340 = vsub.s32 0, %v2339
        %v2341 = vrot.slane %v2063, %v2340
        %v2342 = vlaneseq
        %v2343 = vshrl.u32 %v2342, 7
        %v2344 = vsub.s32 0, %v2343
        %v2345 = vrot.slane %v2064, %v2344
        %v2346 = vlaneseq
        %v2347 = vshrl.u32 %v2346, 7
        %v2348 = vsub.s32 0, %v2347
        %v2349 = vrot.slane %v2071, %v2348
        %v2350 = vlaneseq
        %v2351 = vshrl.u32 %v2350, 7
        %v2352 = vsub.s32 0, %v2351
        %v2353 = vrot.slane %v2078, %v2352
        %v2354 = vlaneseq
        %v2355 = vshrl.u32 %v2354, 7
        %v2356 = vsub.s32 0, %v2355
        %v2357 = vrot.slane %v2079, %v2356
        %v2358 = vlaneseq
        %v2359 = vshrl.u32 %v2358, 7
        %v2360 = vsub.s32 0, %v2359
        %v2361 = vrot.slane %v2086, %v2360
        %v2362 = vlaneseq
        %v2363 = vshrl.u32 %v2362, 7
        %v2364 = vsub.s32 0, %v2363
        %v2365 = vrot.slane %v2087, %v2364
        %v2366 = vlaneseq
        %v2367 = vshrl.u32 %v2366, 7
        %v2368 = vsub.s32 0, %v2367
        %v2369 = vrot.slane %v2094, %v2368
        %v2370 = vlaneseq
        %v2371 = vshrl.u32 %v2370, 7
        %v2372 = vsub.s32 0, %v2371
        %v2373 = vrot.slane %v2095, %v2372
        %v2374 = vlaneseq
        %v2375 = vshrl.u32 %v2374, 7
        %v2376 = vsub.s32 0, %v2375
        %v2377 = vrot.slane %v2102, %v2376
        %v2378 = vlaneseq
        %v2379 = vshrl.u32 %v2378, 7
        %v2380 = vsub.s32 0, %v2379
        %v2381 = vrot.slane %v2103, %v2380
        %v2382 = vlaneseq
        %v2383 = vshrl.u32 %v2382, 7
        %v2384 = vsub.s32 0, %v2383
        %v2385 = vrot.slane %v2110, %v2384
        %v2386 = vlaneseq
        %v2387 = vshrl.u32 %v2386, 7
        %v2388 = vsub.s32 0, %v2387
        %v2389 = vrot.slane %v2111, %v2388
        %v2390 = vlaneseq
        %v2391 = vshrl.u32 %v2390, 7
        %v2392 = vsub.s32 0, %v2391
        %v2393 = vrot.slane %v2118, %v2392
        %v2394 = vlaneseq
        %v2395 = vshrl.u32 %v2394, 7
        %v2396 = vsub.s32 0, %v2395
        %v2397 = vrot.slane %v2119, %v2396
        %v2398 = vlaneseq
        %v2399 = vshrl.u32 %v2398, 7
        %v2400 = vsub.s32 0, %v2399
        %v2401 = vrot.slane %v2126, %v2400
        %v2402 = vlaneseq
        %v2403 = vshrl.u32 %v2402, 7
        %v2404 = vsub.s32 0, %v2403
        %v2405 = vrot.slane %v2127, %v2404
        %v2406 = vlaneseq
        %v2407 = vshrl.u32 %v2406, 7
        %v2408 = vsub.s32 0, %v2407
        %v2409 = vrot.slane %v2134, %v2408
        %v2410 = vlaneseq
        %v2411 = vshrl.u32 %v2410, 7
        %v2412 = vsub.s32 0, %v2411
        %v2413 = vrot.slane %v2135, %v2412
        %v2414 = vlaneseq
        %v2415 = vshrl.u32 %v2414, 7
        %v2416 = vsub.s32 0, %v2415
        %v2417 = vrot.slane %v2142, %v2416
        %v2418 = vlaneseq
        %v2419 = vshrl.u32 %v2418, 7
        %v2420 = vsub.s32 0, %v2419
        %v2421 = vrot.slane %v2149, %v2420
        %v2422 = vlaneseq
        %v2423 = vshrl.u32 %v2422, 7
        %v2424 = vsub.s32 0, %v2423
        %v2425 = vrot.slane %v2150, %v2424
        %v2426 = vlaneseq
        %v2427 = vshrl.u32 %v2426, 7
        %v2428 = vsub.s32 0, %v2427
        %v2429 = vrot.slane %v2157, %v2428
        %v2430 = vlaneseq
        %v2431 = vshrl.u32 %v2430, 7
        %v2432 = vsub.s32 0, %v2431
        %v2433 = vrot.slane %v2158, %v2432
        %v2434 = vlaneseq
        %v2435 = vshrl.u32 %v2434, 7
        %v2436 = vsub.s32 0, %v2435
        %v2437 = vrot.slane %v2165, %v2436
        %v2438 = vlaneseq
        %v2439 = vshrl.u32 %v2438, 7
        %v2440 = vsub.s32 0, %v2439
        %v2441 = vrot.slane %v2166, %v2440
        %v2442 = vlaneseq
        %v2443 = vshrl.u32 %v2442, 7
        %v2444 = vsub.s32 0, %v2443
        %v2445 = vrot.slane %v2173, %v2444
        %v2446 = vlaneseq
        %v2447 = vshrl.u32 %v2446, 7
        %v2448 = vsub.s32 0, %v2447
        %v2449 = vrot.slane %v2174, %v2448
        %v2450 = vlaneseq
        %v2451 = vshrl.u32 %v2450, 7
        %v2452 = vsub.s32 0, %v2451
        %v2453 = vrot.slane %v2181, %v2452
        %v2454 = vlaneseq
        %v2455 = vshrl.u32 %v2454, 7
        %v2456 = vsub.s32 0, %v2455
        %v2457 = vrot.slane %v2182, %v2456
        %v2458 = vlaneseq
        %v2459 = vshrl.u32 %v2458, 7
        %v2460 = vsub.s32 0, %v2459
        %v2461 = vrot.slane %v2189, %v2460
        %v2462 = vlaneseq
        %v2463 = vshrl.u32 %v2462, 7
        %v2464 = vsub.s32 0, %v2463
        %v2465 = vrot.slane %v2190, %v2464
        %v2466 = vlaneseq
        %v2467 = vshrl.u32 %v2466, 7
        %v2468 = vsub.s32 0, %v2467
        %v2469 = vrot.slane %v2197, %v2468
        %v2470 = vlaneseq
        %v2471 = vshrl.u32 %v2470, 7
        %v2472 = vsub.s32 0, %v2471
        %v2473 = vrot.slane %v2198, %v2472
        %v2474 = vlaneseq
        %v2475 = vshrl.u32 %v2474, 7
        %v2476 = vsub.s32 0, %v2475
        %v2477 = vrot.slane %v2205, %v2476
        %v2478 = vlaneseq
        %v2479 = vshrl.u32 %v2478, 7
        %v2480 = vsub.s32 0, %v2479
        %v2481 = vrot.slane %v2206, %v2480
        %v2482 = vlaneseq
        %v2483 = vshrl.u32 %v2482, 7
        %v2484 = vsub.s32 0, %v2483
        %v2485 = vrot.slane %v2213, %v2484
        %v2554 = vsel %vm1111, %v1548, %v2217
        %v2555 = vsel %vm1111, %v1549, %v2221
        %v2556 = vsel %vm1111, %v1556, %v2225
        %v2557 = vsel %vm1111, %v1557, %v2229
        %v2558 = vsel %vm1111, %v1564, %v2233
        %v2559 = vsel %vm1111, %v1565, %v2237
        %v2560 = vsel %vm1111, %v1572, %v2241
        %v2561 = vsel %vm1111, %v1573, %v2245
        %v2562 = vsel %vm1111, %v1580, %v2249
        %v2563 = vsel %vm1111, %v1581, %v2253
        %v2564 = vsel %vm1111, %v1588, %v2257
        %v2565 = vsel %vm1111, %v1589, %v2261
        %v2566 = vsel %vm1111, %v1596, %v2265
        %v2567 = vsel %vm1111, %v1597, %v2269
        %v2568 = vsel %vm1111, %v1604, %v2273
        %v2569 = vsel %vm1111, %v1605, %v2277
        %v2570 = vsel %vm1111, %v1612, %v2281
        %v2571 = vsel %vm1111, %v1619, %v2285
        %v2572 = vsel %vm1111, %v1620, %v2289
        %v2573 = vsel %vm1111, %v1627, %v2293
        %v2574 = vsel %vm1111, %v1628, %v2297
        %v2575 = vsel %vm1111, %v1635, %v2301
        %v2576 = vsel %vm1111, %v1636, %v2305
        %v2577 = vsel %vm1111, %v1643, %v2309
        %v2578 = vsel %vm1111, %v1644, %v2313
        %v2579 = vsel %vm1111, %v1651, %v2317
        %v2580 = vsel %vm1111, %v1652, %v2321
        %v2581 = vsel %vm1111, %v1659, %v2325
        %v2582 = vsel %vm1111, %v1660, %v2329
        %v2583 = vsel %vm1111, %v1667, %v2333
        %v2584 = vsel %vm1111, %v1668, %v2337
        %v2585 = vsel %vm1111, %v1675, %v2341
        %v2586 = vsel %vm1111, %v1676, %v2345
        %v2587 = vsel %vm1111, %v1683, %v2349
        %v2588 = vsel %vm1111, %v1690, %v2353
        %v2589 = vsel %vm1111, %v1691, %v2357
        %v2590 = vsel %vm1111, %v1698, %v2361
        %v2591 = vsel %vm1111, %v1699, %v2365
        %v2592 = vsel %vm1111, %v1706, %v2369
        %v2593 = vsel %vm1111, %v1707, %v2373
        %v2594 = vsel %vm1111, %v1714, %v2377
        %v2595 = vsel %vm1111, %v1715, %v2381
        %v2596 = vsel %vm1111, %v1722, %v2385
        %v2597 = vsel %vm1111, %v1723, %v2389
        %v2598 = vsel %vm1111, %v1730, %v2393
        %v2599 = vsel %vm1111, %v1731, %v2397
        %v2600 = vsel %vm1111, %v1738, %v2401
        %v2601 = vsel %vm1111, %v1739, %v2405
        %v2602 = vsel %vm1111, %v1746, %v2409
        %v2603 = vsel %vm1111, %v1747, %v2413
        %v2604 = vsel %vm1111, %v1754, %v2417
        %v2605 = vsel %vm1111, %v1761, %v2421
        %v2606 = vsel %vm1111, %v1762, %v2425
        %v2607 = vsel %vm1111, %v1769, %v2429
        %v2608 = vsel %vm1111, %v1770, %v2433
        %v2609 = vsel %vm1111, %v1777, %v2437
        %v2610 = vsel %vm1111, %v1778, %v2441
        %v2611 = vsel %vm1111, %v1785, %v2445
        %v2612 = vsel %vm1111, %v1786, %v2449
        %v2613 = vsel %vm1111, %v1793, %v2453
        %v2614 = vsel %vm1111, %v1794, %v2457
        %v2615 = vsel %vm1111, %v1801, %v2461
        %v2616 = vsel %vm1111, %v1802, %v2465
        %v2617 = vsel %vm1111, %v1809, %v2469
        %v2618 = vsel %vm1111, %v1810, %v2473
        %v2619 = vsel %vm1111, %v1817, %v2477
        %v2620 = vsel %vm1111, %v1818, %v2481
        %v2621 = vsel %vm1111, %v1825, %v2485
        %v2622 = vlaneseq
        %v2623 = vshrl.u32 %v2622, 7
        %v2624 = vadd.s32 %v2623, 8
        %v2625 = vadd.s32 %v2623, 16
        %v2626 = vadd.s32 %v2623, 24
        %v2627 = vadd.s32 %v2623, 32
        %vm2628 = vcmp.gt.s32.totalorder %v2623, 0
        %vm2629 = vcmp.gt.s32.totalorder %v2624, 0
        %vm2630 = vcmp.gt.s32.totalorder %v2625, 0
        %vm2631 = vcmp.gt.s32.totalorder %v2626, 0
        %vm2632 = vcmp.gt.s32.totalorder %v2627, 0
        %p2633 = scmp.gt.s32.totalorder %s23, 0
        %s2634 = scalar_select %p2633, 1, 0
        %v2635 = vstv %s2634
        %vm2636 = vcmp.eq.s32.totalorder %v2635, 1
        %vm2637 = vmor %vm2628, %vm2636
        %vm2638 = vmor %vm2629, %vm2636
        %vm2639 = vmor %vm2630, %vm2636
        %vm2640 = vmor %vm2631, %vm2636
        %vm2641 = vmor %vm2632, %vm2636
        %vm2642 = vcmp.lt.s32.totalorder %v2623, 33
        %vm2643 = vcmp.lt.s32.totalorder %v2624, 33
        %vm2644 = vcmp.lt.s32.totalorder %v2625, 33
        %vm2645 = vcmp.lt.s32.totalorder %v2626, 33
        %vm2646 = vcmp.lt.s32.totalorder %v2627, 33
        %p2647 = scmp.lt.s32.totalorder %s23, 0
        %s2648 = scalar_select %p2647, 1, 0
        %v2649 = vstv %s2648
        %vm2650 = vcmp.eq.s32.totalorder %v2649, 1
        %vm2651 = vmor %vm2642, %vm2650
        %vm2652 = vmor %vm2643, %vm2650
        %vm2653 = vmor %vm2644, %vm2650
        %vm2654 = vmor %vm2645, %vm2650
        %vm2655 = vmor %vm2646, %vm2650
        %vm2656 = vmand %vm2637, %vm2651
        %vm2657 = vmand %vm2638, %vm2652
        %vm2658 = vmand %vm2639, %vm2653
        %vm2659 = vmand %vm2640, %vm2654
        %vm2660 = vmand %vm2641, %vm2655
        %v2661 = vsel %vm2656, 1, 0
        %v2662 = vsel %vm2657, 1, 0
        %v2663 = vsel %vm2658, 1, 0
        %v2664 = vsel %vm2659, 1, 0
        %v2665 = vsel %vm2660, 1, 0
        %vm2666 = vcmp.eq.s32.totalorder %v2661, 1
        %vm2667 = vcmp.eq.s32.totalorder %v2662, 1
        %vm2668 = vcmp.eq.s32.totalorder %v2663, 1
        %vm2669 = vcmp.eq.s32.totalorder %v2664, 1
        %vm2670 = vcmp.eq.s32.totalorder %v2665, 1
        %v2739 = vcombine.low %v2554, %v2555
        %v2740 = vcombine.low %v2556, %v2557
        %v2742 = vunpack.c.l.s4 1983009808
        %v2743 = vunpack.c.0.s8 %v2742
        %v2744 = vlaneseq
        %v2745 = vshrl.u32 %v2744, 7
        %v2746 = vsub.s32 %v2743, %v2745
        %v2747 = vrot.slane %v2739, %v2746
        %v2749 = vunpack.c.l.s4 1983009808
        %v2750 = vunpack.c.0.s8 %v2749
        %v2751 = vlaneseq
        %v2752 = vshrl.u32 %v2751, 7
        %v2753 = vsub.s32 %v2750, %v2752
        %v2754 = vrot.slane %v2740, %v2753
        %v2755 = vcombine.low %v2747, %v2754
        %v2756 = vcombine.low %v2558, %v2559
        %v2757 = vcombine.low %v2560, %v2561
        %v2759 = vunpack.c.l.s4 1983009808
        %v2760 = vunpack.c.0.s8 %v2759
        %v2761 = vlaneseq
        %v2762 = vshrl.u32 %v2761, 7
        %v2763 = vsub.s32 %v2760, %v2762
        %v2764 = vrot.slane %v2756, %v2763
        %v2766 = vunpack.c.l.s4 1983009808
        %v2767 = vunpack.c.0.s8 %v2766
        %v2768 = vlaneseq
        %v2769 = vshrl.u32 %v2768, 7
        %v2770 = vsub.s32 %v2767, %v2769
        %v2771 = vrot.slane %v2757, %v2770
        %v2772 = vcombine.low %v2764, %v2771
        %v2773 = vcombine.low %v2562, %v2563
        %v2774 = vcombine.low %v2564, %v2565
        %v2776 = vunpack.c.l.s4 1983009808
        %v2777 = vunpack.c.0.s8 %v2776
        %v2778 = vlaneseq
        %v2779 = vshrl.u32 %v2778, 7
        %v2780 = vsub.s32 %v2777, %v2779
        %v2781 = vrot.slane %v2773, %v2780
        %v2783 = vunpack.c.l.s4 1983009808
        %v2784 = vunpack.c.0.s8 %v2783
        %v2785 = vlaneseq
        %v2786 = vshrl.u32 %v2785, 7
        %v2787 = vsub.s32 %v2784, %v2786
        %v2788 = vrot.slane %v2774, %v2787
        %v2789 = vcombine.low %v2781, %v2788
        %v2790 = vcombine.low %v2566, %v2567
        %v2791 = vcombine.low %v2568, %v2569
        %v2793 = vunpack.c.l.s4 1983009808
        %v2794 = vunpack.c.0.s8 %v2793
        %v2795 = vlaneseq
        %v2796 = vshrl.u32 %v2795, 7
        %v2797 = vsub.s32 %v2794, %v2796
        %v2798 = vrot.slane %v2790, %v2797
        %v2800 = vunpack.c.l.s4 1983009808
        %v2801 = vunpack.c.0.s8 %v2800
        %v2802 = vlaneseq
        %v2803 = vshrl.u32 %v2802, 7
        %v2804 = vsub.s32 %v2801, %v2803
        %v2805 = vrot.slane %v2791, %v2804
        %v2806 = vcombine.low %v2798, %v2805
        %v2808 = vunpack.c.l.s4 1983009808
        %v2809 = vunpack.c.0.s8 %v2808
        %v2810 = vlaneseq
        %v2811 = vshrl.u32 %v2810, 7
        %v2812 = vsub.s32 %v2809, %v2811
        %v2813 = vrot.slane %v2570, %v2812
        %v2814 = vcombine.low %v2571, %v2572
        %v2815 = vcombine.low %v2573, %v2574
        %v2817 = vunpack.c.l.s4 1983009808
        %v2818 = vunpack.c.0.s8 %v2817
        %v2819 = vlaneseq
        %v2820 = vshrl.u32 %v2819, 7
        %v2821 = vsub.s32 %v2818, %v2820
        %v2822 = vrot.slane %v2814, %v2821
        %v2824 = vunpack.c.l.s4 1983009808
        %v2825 = vunpack.c.0.s8 %v2824
        %v2826 = vlaneseq
        %v2827 = vshrl.u32 %v2826, 7
        %v2828 = vsub.s32 %v2825, %v2827
        %v2829 = vrot.slane %v2815, %v2828
        %v2830 = vcombine.low %v2822, %v2829
        %v2831 = vcombine.low %v2575, %v2576
        %v2832 = vcombine.low %v2577, %v2578
        %v2834 = vunpack.c.l.s4 1983009808
        %v2835 = vunpack.c.0.s8 %v2834
        %v2836 = vlaneseq
        %v2837 = vshrl.u32 %v2836, 7
        %v2838 = vsub.s32 %v2835, %v2837
        %v2839 = vrot.slane %v2831, %v2838
        %v2841 = vunpack.c.l.s4 1983009808
        %v2842 = vunpack.c.0.s8 %v2841
        %v2843 = vlaneseq
        %v2844 = vshrl.u32 %v2843, 7
        %v2845 = vsub.s32 %v2842, %v2844
        %v2846 = vrot.slane %v2832, %v2845
        %v2847 = vcombine.low %v2839, %v2846
        %v2848 = vcombine.low %v2579, %v2580
        %v2849 = vcombine.low %v2581, %v2582
        %v2851 = vunpack.c.l.s4 1983009808
        %v2852 = vunpack.c.0.s8 %v2851
        %v2853 = vlaneseq
        %v2854 = vshrl.u32 %v2853, 7
        %v2855 = vsub.s32 %v2852, %v2854
        %v2856 = vrot.slane %v2848, %v2855
        %v2858 = vunpack.c.l.s4 1983009808
        %v2859 = vunpack.c.0.s8 %v2858
        %v2860 = vlaneseq
        %v2861 = vshrl.u32 %v2860, 7
        %v2862 = vsub.s32 %v2859, %v2861
        %v2863 = vrot.slane %v2849, %v2862
        %v2864 = vcombine.low %v2856, %v2863
        %v2865 = vcombine.low %v2583, %v2584
        %v2866 = vcombine.low %v2585, %v2586
        %v2868 = vunpack.c.l.s4 1983009808
        %v2869 = vunpack.c.0.s8 %v2868
        %v2870 = vlaneseq
        %v2871 = vshrl.u32 %v2870, 7
        %v2872 = vsub.s32 %v2869, %v2871
        %v2873 = vrot.slane %v2865, %v2872
        %v2875 = vunpack.c.l.s4 1983009808
        %v2876 = vunpack.c.0.s8 %v2875
        %v2877 = vlaneseq
        %v2878 = vshrl.u32 %v2877, 7
        %v2879 = vsub.s32 %v2876, %v2878
        %v2880 = vrot.slane %v2866, %v2879
        %v2881 = vcombine.low %v2873, %v2880
        %v2883 = vunpack.c.l.s4 1983009808
        %v2884 = vunpack.c.0.s8 %v2883
        %v2885 = vlaneseq
        %v2886 = vshrl.u32 %v2885, 7
        %v2887 = vsub.s32 %v2884, %v2886
        %v2888 = vrot.slane %v2587, %v2887
        %v2889 = vcombine.low %v2588, %v2589
        %v2890 = vcombine.low %v2590, %v2591
        %v2892 = vunpack.c.l.s4 1983009808
        %v2893 = vunpack.c.0.s8 %v2892
        %v2894 = vlaneseq
        %v2895 = vshrl.u32 %v2894, 7
        %v2896 = vsub.s32 %v2893, %v2895
        %v2897 = vrot.slane %v2889, %v2896
        %v2899 = vunpack.c.l.s4 1983009808
        %v2900 = vunpack.c.0.s8 %v2899
        %v2901 = vlaneseq
        %v2902 = vshrl.u32 %v2901, 7
        %v2903 = vsub.s32 %v2900, %v2902
        %v2904 = vrot.slane %v2890, %v2903
        %v2905 = vcombine.low %v2897, %v2904
        %v2906 = vcombine.low %v2592, %v2593
        %v2907 = vcombine.low %v2594, %v2595
        %v2909 = vunpack.c.l.s4 1983009808
        %v2910 = vunpack.c.0.s8 %v2909
        %v2911 = vlaneseq
        %v2912 = vshrl.u32 %v2911, 7
        %v2913 = vsub.s32 %v2910, %v2912
        %v2914 = vrot.slane %v2906, %v2913
        %v2916 = vunpack.c.l.s4 1983009808
        %v2917 = vunpack.c.0.s8 %v2916
        %v2918 = vlaneseq
        %v2919 = vshrl.u32 %v2918, 7
        %v2920 = vsub.s32 %v2917, %v2919
        %v2921 = vrot.slane %v2907, %v2920
        %v2922 = vcombine.low %v2914, %v2921
        %v2923 = vcombine.low %v2596, %v2597
        %v2924 = vcombine.low %v2598, %v2599
        %v2926 = vunpack.c.l.s4 1983009808
        %v2927 = vunpack.c.0.s8 %v2926
        %v2928 = vlaneseq
        %v2929 = vshrl.u32 %v2928, 7
        %v2930 = vsub.s32 %v2927, %v2929
        %v2931 = vrot.slane %v2923, %v2930
        %v2933 = vunpack.c.l.s4 1983009808
        %v2934 = vunpack.c.0.s8 %v2933
        %v2935 = vlaneseq
        %v2936 = vshrl.u32 %v2935, 7
        %v2937 = vsub.s32 %v2934, %v2936
        %v2938 = vrot.slane %v2924, %v2937
        %v2939 = vcombine.low %v2931, %v2938
        %v2940 = vcombine.low %v2600, %v2601
        %v2941 = vcombine.low %v2602, %v2603
        %v2943 = vunpack.c.l.s4 1983009808
        %v2944 = vunpack.c.0.s8 %v2943
        %v2945 = vlaneseq
        %v2946 = vshrl.u32 %v2945, 7
        %v2947 = vsub.s32 %v2944, %v2946
        %v2948 = vrot.slane %v2940, %v2947
        %v2950 = vunpack.c.l.s4 1983009808
        %v2951 = vunpack.c.0.s8 %v2950
        %v2952 = vlaneseq
        %v2953 = vshrl.u32 %v2952, 7
        %v2954 = vsub.s32 %v2951, %v2953
        %v2955 = vrot.slane %v2941, %v2954
        %v2956 = vcombine.low %v2948, %v2955
        %v2958 = vunpack.c.l.s4 1983009808
        %v2959 = vunpack.c.0.s8 %v2958
        %v2960 = vlaneseq
        %v2961 = vshrl.u32 %v2960, 7
        %v2962 = vsub.s32 %v2959, %v2961
        %v2963 = vrot.slane %v2604, %v2962
        %v2964 = vcombine.low %v2605, %v2606
        %v2965 = vcombine.low %v2607, %v2608
        %v2967 = vunpack.c.l.s4 1983009808
        %v2968 = vunpack.c.0.s8 %v2967
        %v2969 = vlaneseq
        %v2970 = vshrl.u32 %v2969, 7
        %v2971 = vsub.s32 %v2968, %v2970
        %v2972 = vrot.slane %v2964, %v2971
        %v2974 = vunpack.c.l.s4 1983009808
        %v2975 = vunpack.c.0.s8 %v2974
        %v2976 = vlaneseq
        %v2977 = vshrl.u32 %v2976, 7
        %v2978 = vsub.s32 %v2975, %v2977
        %v2979 = vrot.slane %v2965, %v2978
        %v2980 = vcombine.low %v2972, %v2979
        %v2981 = vcombine.low %v2609, %v2610
        %v2982 = vcombine.low %v2611, %v2612
        %v2984 = vunpack.c.l.s4 1983009808
        %v2985 = vunpack.c.0.s8 %v2984
        %v2986 = vlaneseq
        %v2987 = vshrl.u32 %v2986, 7
        %v2988 = vsub.s32 %v2985, %v2987
        %v2989 = vrot.slane %v2981, %v2988
        %v2991 = vunpack.c.l.s4 1983009808
        %v2992 = vunpack.c.0.s8 %v2991
        %v2993 = vlaneseq
        %v2994 = vshrl.u32 %v2993, 7
        %v2995 = vsub.s32 %v2992, %v2994
        %v2996 = vrot.slane %v2982, %v2995
        %v2997 = vcombine.low %v2989, %v2996
        %v2998 = vcombine.low %v2613, %v2614
        %v2999 = vcombine.low %v2615, %v2616
        %v3001 = vunpack.c.l.s4 1983009808
        %v3002 = vunpack.c.0.s8 %v3001
        %v3003 = vlaneseq
        %v3004 = vshrl.u32 %v3003, 7
        %v3005 = vsub.s32 %v3002, %v3004
        %v3006 = vrot.slane %v2998, %v3005
        %v3008 = vunpack.c.l.s4 1983009808
        %v3009 = vunpack.c.0.s8 %v3008
        %v3010 = vlaneseq
        %v3011 = vshrl.u32 %v3010, 7
        %v3012 = vsub.s32 %v3009, %v3011
        %v3013 = vrot.slane %v2999, %v3012
        %v3014 = vcombine.low %v3006, %v3013
        %v3015 = vcombine.low %v2617, %v2618
        %v3016 = vcombine.low %v2619, %v2620
        %v3018 = vunpack.c.l.s4 1983009808
        %v3019 = vunpack.c.0.s8 %v3018
        %v3020 = vlaneseq
        %v3021 = vshrl.u32 %v3020, 7
        %v3022 = vsub.s32 %v3019, %v3021
        %v3023 = vrot.slane %v3015, %v3022
        %v3025 = vunpack.c.l.s4 1983009808
        %v3026 = vunpack.c.0.s8 %v3025
        %v3027 = vlaneseq
        %v3028 = vshrl.u32 %v3027, 7
        %v3029 = vsub.s32 %v3026, %v3028
        %v3030 = vrot.slane %v3016, %v3029
        %v3031 = vcombine.low %v3023, %v3030
        %v3033 = vunpack.c.l.s4 1983009808
        %v3034 = vunpack.c.0.s8 %v3033
        %v3035 = vlaneseq
        %v3036 = vshrl.u32 %v3035, 7
        %v3037 = vsub.s32 %v3034, %v3036
        %v3038 = vrot.slane %v2621, %v3037
        %v3059 = vsel %vm2666, %v2755, 0.0
        %v3060 = vsel %vm2667, %v2772, 0.0
        %v3061 = vsel %vm2668, %v2789, 0.0
        %v3062 = vsel %vm2669, %v2806, 0.0
        %v3063 = vsel %vm2670, %v2813, 0.0
        %v3064 = vsel %vm2666, %v2830, 0.0
        %v3065 = vsel %vm2667, %v2847, 0.0
        %v3066 = vsel %vm2668, %v2864, 0.0
        %v3067 = vsel %vm2669, %v2881, 0.0
        %v3068 = vsel %vm2670, %v2888, 0.0
        %v3069 = vsel %vm2666, %v2905, 0.0
        %v3070 = vsel %vm2667, %v2922, 0.0
        %v3071 = vsel %vm2668, %v2939, 0.0
        %v3072 = vsel %vm2669, %v2956, 0.0
        %v3073 = vsel %vm2670, %v2963, 0.0
        %v3074 = vsel %vm2666, %v2980, 0.0
        %v3075 = vsel %vm2667, %v2997, 0.0
        %v3076 = vsel %vm2668, %v3014, 0.0
        %v3077 = vsel %vm2669, %v3031, 0.0
        %v3078 = vsel %vm2670, %v3038, 0.0
        %v3079 = vpack.c.bf16 %v3060, %v3059
        %v3080 = vpack.c.bf16 %v3062, %v3061
        %v3081 = vpack.c.bf16 %v3063, %v3063
        %v3082 = vpack.c.bf16 %v3065, %v3064
        %v3083 = vpack.c.bf16 %v3067, %v3066
        %v3084 = vpack.c.bf16 %v3068, %v3068
        %v3085 = vpack.c.bf16 %v3070, %v3069
        %v3086 = vpack.c.bf16 %v3072, %v3071
        %v3087 = vpack.c.bf16 %v3073, %v3073
        %v3088 = vpack.c.bf16 %v3075, %v3074
        %v3089 = vpack.c.bf16 %v3077, %v3076
        %v3090 = vpack.c.bf16 %v3078, %v3078
        %v3093 = vpack.i.b16 %v3082, %v3079
        %v3095 = vshrl.u32 %v3079, 16
        %v3096 = vshrl.u32 %v3082, 16
        %v3097 = vpack.i.b16 %v3096, %v3095
        %v3101 = vpack.i.b16 %v3088, %v3085
        %v3103 = vshrl.u32 %v3085, 16
        %v3104 = vshrl.u32 %v3088, 16
        %v3105 = vpack.i.b16 %v3104, %v3103
        %v3108 = vpack.i.b16 0, 0
        %v3110 = vshrl.u32 0, 16
        %v3111 = vpack.i.b16 %v3110, %v3110
        %v3115 = vpack.i.b16 %v3083, %v3080
        %v3117 = vshrl.u32 %v3080, 16
        %v3118 = vshrl.u32 %v3083, 16
        %v3119 = vpack.i.b16 %v3118, %v3117
        %v3123 = vpack.i.b16 %v3089, %v3086
        %v3125 = vshrl.u32 %v3086, 16
        %v3126 = vshrl.u32 %v3089, 16
        %v3127 = vpack.i.b16 %v3126, %v3125
        %v3129 = vcombine.high %v3093, %v3108
        %v3131 = vunpack.c.l.s4 1983009808
        %v3132 = vunpack.c.0.s8 %v3131
        %v3133 = vlaneseq
        %v3134 = vshrl.u32 %v3133, 7
        %v3135 = vsub.s32 %v3132, %v3134
        %v3136 = vrot.slane %v3093, %v3135
        %v3138 = vunpack.c.l.s4 1983009808
        %v3139 = vunpack.c.0.s8 %v3138
        %v3140 = vlaneseq
        %v3141 = vshrl.u32 %v3140, 7
        %v3142 = vsub.s32 %v3139, %v3141
        %v3143 = vrot.slane %v3129, %v3142
        %v3144 = vcombine.high %v3101, %v3108
        %v3146 = vunpack.c.l.s4 1983009808
        %v3147 = vunpack.c.0.s8 %v3146
        %v3148 = vlaneseq
        %v3149 = vshrl.u32 %v3148, 7
        %v3150 = vsub.s32 %v3147, %v3149
        %v3151 = vrot.slane %v3101, %v3150
        %v3153 = vunpack.c.l.s4 1983009808
        %v3154 = vunpack.c.0.s8 %v3153
        %v3155 = vlaneseq
        %v3156 = vshrl.u32 %v3155, 7
        %v3157 = vsub.s32 %v3154, %v3156
        %v3158 = vrot.slane %v3144, %v3157
        %v3159 = vcombine.low %v3136, %v3151
        %v3160 = vcombine.high %v3136, %v3151
        %v3162 = vunpack.c.l.s4 1934713408
        %v3163 = vunpack.c.0.s8 %v3162
        %v3164 = vlaneseq
        %v3165 = vshrl.u32 %v3164, 7
        %v3166 = vsub.s32 %v3163, %v3165
        %v3167 = vrot.slane %v3159, %v3166
        %v3169 = vunpack.c.l.s4 1934713408
        %v3170 = vunpack.c.0.s8 %v3169
        %v3171 = vlaneseq
        %v3172 = vshrl.u32 %v3171, 7
        %v3173 = vsub.s32 %v3170, %v3172
        %v3174 = vrot.slane %v3160, %v3173
        %v3175 = vcombine.low %v3143, %v3158
        %v3176 = vcombine.high %v3143, %v3158
        %v3178 = vunpack.c.l.s4 1934713408
        %v3179 = vunpack.c.0.s8 %v3178
        %v3180 = vlaneseq
        %v3181 = vshrl.u32 %v3180, 7
        %v3182 = vsub.s32 %v3179, %v3181
        %v3183 = vrot.slane %v3175, %v3182
        %v3185 = vunpack.c.l.s4 1934713408
        %v3186 = vunpack.c.0.s8 %v3185
        %v3187 = vlaneseq
        %v3188 = vshrl.u32 %v3187, 7
        %v3189 = vsub.s32 %v3186, %v3188
        %v3190 = vrot.slane %v3176, %v3189
        %v3191 = vcombine.high %v3167, 0
        %v3192 = vcombine.high %v3174, 0
        %v3193 = vcombine.high %v3183, 0
        %v3194 = vcombine.high %v3190, 0
        %v3195 = vcombine.high %v3097, %v3111
        %v3197 = vunpack.c.l.s4 1983009808
        %v3198 = vunpack.c.0.s8 %v3197
        %v3199 = vlaneseq
        %v3200 = vshrl.u32 %v3199, 7
        %v3201 = vsub.s32 %v3198, %v3200
        %v3202 = vrot.slane %v3097, %v3201
        %v3204 = vunpack.c.l.s4 1983009808
        %v3205 = vunpack.c.0.s8 %v3204
        %v3206 = vlaneseq
        %v3207 = vshrl.u32 %v3206, 7
        %v3208 = vsub.s32 %v3205, %v3207
        %v3209 = vrot.slane %v3195, %v3208
        %v3210 = vcombine.high %v3105, %v3111
        %v3212 = vunpack.c.l.s4 1983009808
        %v3213 = vunpack.c.0.s8 %v3212
        %v3214 = vlaneseq
        %v3215 = vshrl.u32 %v3214, 7
        %v3216 = vsub.s32 %v3213, %v3215
        %v3217 = vrot.slane %v3105, %v3216
        %v3219 = vunpack.c.l.s4 1983009808
        %v3220 = vunpack.c.0.s8 %v3219
        %v3221 = vlaneseq
        %v3222 = vshrl.u32 %v3221, 7
        %v3223 = vsub.s32 %v3220, %v3222
        %v3224 = vrot.slane %v3210, %v3223
        %v3225 = vcombine.low %v3202, %v3217
        %v3226 = vcombine.high %v3202, %v3217
        %v3228 = vunpack.c.l.s4 1934713408
        %v3229 = vunpack.c.0.s8 %v3228
        %v3230 = vlaneseq
        %v3231 = vshrl.u32 %v3230, 7
        %v3232 = vsub.s32 %v3229, %v3231
        %v3233 = vrot.slane %v3225, %v3232
        %v3235 = vunpack.c.l.s4 1934713408
        %v3236 = vunpack.c.0.s8 %v3235
        %v3237 = vlaneseq
        %v3238 = vshrl.u32 %v3237, 7
        %v3239 = vsub.s32 %v3236, %v3238
        %v3240 = vrot.slane %v3226, %v3239
        %v3241 = vcombine.low %v3209, %v3224
        %v3242 = vcombine.high %v3209, %v3224
        %v3244 = vunpack.c.l.s4 1934713408
        %v3245 = vunpack.c.0.s8 %v3244
        %v3246 = vlaneseq
        %v3247 = vshrl.u32 %v3246, 7
        %v3248 = vsub.s32 %v3245, %v3247
        %v3249 = vrot.slane %v3241, %v3248
        %v3251 = vunpack.c.l.s4 1934713408
        %v3252 = vunpack.c.0.s8 %v3251
        %v3253 = vlaneseq
        %v3254 = vshrl.u32 %v3253, 7
        %v3255 = vsub.s32 %v3252, %v3254
        %v3256 = vrot.slane %v3242, %v3255
        %v3257 = vcombine.high %v3233, 0
        %v3258 = vcombine.high %v3240, 0
        %v3259 = vcombine.high %v3249, 0
        %v3260 = vcombine.high %v3256, 0
        %v3261 = vcombine.high %v3115, %v3108
        %v3263 = vunpack.c.l.s4 1983009808
        %v3264 = vunpack.c.0.s8 %v3263
        %v3265 = vlaneseq
        %v3266 = vshrl.u32 %v3265, 7
        %v3267 = vsub.s32 %v3264, %v3266
        %v3268 = vrot.slane %v3115, %v3267
        %v3270 = vunpack.c.l.s4 1983009808
        %v3271 = vunpack.c.0.s8 %v3270
        %v3272 = vlaneseq
        %v3273 = vshrl.u32 %v3272, 7
        %v3274 = vsub.s32 %v3271, %v3273
        %v3275 = vrot.slane %v3261, %v3274
        %v3276 = vcombine.high %v3123, %v3108
        %v3278 = vunpack.c.l.s4 1983009808
        %v3279 = vunpack.c.0.s8 %v3278
        %v3280 = vlaneseq
        %v3281 = vshrl.u32 %v3280, 7
        %v3282 = vsub.s32 %v3279, %v3281
        %v3283 = vrot.slane %v3123, %v3282
        %v3285 = vunpack.c.l.s4 1983009808
        %v3286 = vunpack.c.0.s8 %v3285
        %v3287 = vlaneseq
        %v3288 = vshrl.u32 %v3287, 7
        %v3289 = vsub.s32 %v3286, %v3288
        %v3290 = vrot.slane %v3276, %v3289
        %v3291 = vcombine.low %v3268, %v3283
        %v3292 = vcombine.high %v3268, %v3283
        %v3294 = vunpack.c.l.s4 1934713408
        %v3295 = vunpack.c.0.s8 %v3294
        %v3296 = vlaneseq
        %v3297 = vshrl.u32 %v3296, 7
        %v3298 = vsub.s32 %v3295, %v3297
        %v3299 = vrot.slane %v3291, %v3298
        %v3301 = vunpack.c.l.s4 1934713408
        %v3302 = vunpack.c.0.s8 %v3301
        %v3303 = vlaneseq
        %v3304 = vshrl.u32 %v3303, 7
        %v3305 = vsub.s32 %v3302, %v3304
        %v3306 = vrot.slane %v3292, %v3305
        %v3307 = vcombine.low %v3275, %v3290
        %v3308 = vcombine.high %v3275, %v3290
        %v3310 = vunpack.c.l.s4 1934713408
        %v3311 = vunpack.c.0.s8 %v3310
        %v3312 = vlaneseq
        %v3313 = vshrl.u32 %v3312, 7
        %v3314 = vsub.s32 %v3311, %v3313
        %v3315 = vrot.slane %v3307, %v3314
        %v3317 = vunpack.c.l.s4 1934713408
        %v3318 = vunpack.c.0.s8 %v3317
        %v3319 = vlaneseq
        %v3320 = vshrl.u32 %v3319, 7
        %v3321 = vsub.s32 %v3318, %v3320
        %v3322 = vrot.slane %v3308, %v3321
        %v3323 = vcombine.high %v3299, 0
        %v3324 = vcombine.high %v3306, 0
        %v3325 = vcombine.high %v3315, 0
        %v3326 = vcombine.high %v3322, 0
        %v3327 = vcombine.high %v3119, %v3111
        %v3329 = vunpack.c.l.s4 1983009808
        %v3330 = vunpack.c.0.s8 %v3329
        %v3331 = vlaneseq
        %v3332 = vshrl.u32 %v3331, 7
        %v3333 = vsub.s32 %v3330, %v3332
        %v3334 = vrot.slane %v3119, %v3333
        %v3336 = vunpack.c.l.s4 1983009808
        %v3337 = vunpack.c.0.s8 %v3336
        %v3338 = vlaneseq
        %v3339 = vshrl.u32 %v3338, 7
        %v3340 = vsub.s32 %v3337, %v3339
        %v3341 = vrot.slane %v3327, %v3340
        %v3342 = vcombine.high %v3127, %v3111
        %v3344 = vunpack.c.l.s4 1983009808
        %v3345 = vunpack.c.0.s8 %v3344
        %v3346 = vlaneseq
        %v3347 = vshrl.u32 %v3346, 7
        %v3348 = vsub.s32 %v3345, %v3347
        %v3349 = vrot.slane %v3127, %v3348
        %v3351 = vunpack.c.l.s4 1983009808
        %v3352 = vunpack.c.0.s8 %v3351
        %v3353 = vlaneseq
        %v3354 = vshrl.u32 %v3353, 7
        %v3355 = vsub.s32 %v3352, %v3354
        %v3356 = vrot.slane %v3342, %v3355
        %v3357 = vcombine.low %v3334, %v3349
        %v3358 = vcombine.high %v3334, %v3349
        %v3360 = vunpack.c.l.s4 1934713408
        %v3361 = vunpack.c.0.s8 %v3360
        %v3362 = vlaneseq
        %v3363 = vshrl.u32 %v3362, 7
        %v3364 = vsub.s32 %v3361, %v3363
        %v3365 = vrot.slane %v3357, %v3364
        %v3367 = vunpack.c.l.s4 1934713408
        %v3368 = vunpack.c.0.s8 %v3367
        %v3369 = vlaneseq
        %v3370 = vshrl.u32 %v3369, 7
        %v3371 = vsub.s32 %v3368, %v3370
        %v3372 = vrot.slane %v3358, %v3371
        %v3373 = vcombine.low %v3341, %v3356
        %v3374 = vcombine.high %v3341, %v3356
        %v3376 = vunpack.c.l.s4 1934713408
        %v3377 = vunpack.c.0.s8 %v3376
        %v3378 = vlaneseq
        %v3379 = vshrl.u32 %v3378, 7
        %v3380 = vsub.s32 %v3377, %v3379
        %v3381 = vrot.slane %v3373, %v3380
        %v3383 = vunpack.c.l.s4 1934713408
        %v3384 = vunpack.c.0.s8 %v3383
        %v3385 = vlaneseq
        %v3386 = vshrl.u32 %v3385, 7
        %v3387 = vsub.s32 %v3384, %v3386
        %v3388 = vrot.slane %v3374, %v3387
        %v3389 = vcombine.high %v3365, 0
        %v3390 = vcombine.high %v3372, 0
        %v3391 = vcombine.high %v3381, 0
        %v3392 = vcombine.high %v3388, 0
        %3394 = vrot.lane.b32.xlu0 %v3233, 32
        %v3395 = vpop.permute.xlu0 %3394
        %3397 = vrot.lane.b32.xlu0 %v3191, 64
        %v3398 = vpop.permute.xlu0 %3397
        %3400 = vrot.lane.b32.xlu0 %v3257, 96
        %v3401 = vpop.permute.xlu0 %3400
        %3403 = vrot.lane.b32.xlu0 %v3240, 32
        %v3404 = vpop.permute.xlu0 %3403
        %3406 = vrot.lane.b32.xlu0 %v3192, 64
        %v3407 = vpop.permute.xlu0 %3406
        %3409 = vrot.lane.b32.xlu0 %v3258, 96
        %v3410 = vpop.permute.xlu0 %3409
        %3412 = vrot.lane.b32.xlu0 %v3249, 32
        %v3413 = vpop.permute.xlu0 %3412
        %3415 = vrot.lane.b32.xlu0 %v3193, 64
        %v3416 = vpop.permute.xlu0 %3415
        %3418 = vrot.lane.b32.xlu0 %v3259, 96
        %v3419 = vpop.permute.xlu0 %3418
        %3421 = vrot.lane.b32.xlu0 %v3256, 32
        %v3422 = vpop.permute.xlu0 %3421
        %3424 = vrot.lane.b32.xlu0 %v3194, 64
        %v3425 = vpop.permute.xlu0 %3424
        %3427 = vrot.lane.b32.xlu0 %v3260, 96
        %v3428 = vpop.permute.xlu0 %3427
        %3430 = vrot.lane.b32.xlu0 %v3365, 32
        %v3431 = vpop.permute.xlu0 %3430
        %3433 = vrot.lane.b32.xlu0 %v3323, 64
        %v3434 = vpop.permute.xlu0 %3433
        %3436 = vrot.lane.b32.xlu0 %v3389, 96
        %v3437 = vpop.permute.xlu0 %3436
        %3439 = vrot.lane.b32.xlu0 %v3372, 32
        %v3440 = vpop.permute.xlu0 %3439
        %3442 = vrot.lane.b32.xlu0 %v3324, 64
        %v3443 = vpop.permute.xlu0 %3442
        %3445 = vrot.lane.b32.xlu0 %v3390, 96
        %v3446 = vpop.permute.xlu0 %3445
        %3448 = vrot.lane.b32.xlu0 %v3381, 32
        %v3449 = vpop.permute.xlu0 %3448
        %3451 = vrot.lane.b32.xlu0 %v3325, 64
        %v3452 = vpop.permute.xlu0 %3451
        %3454 = vrot.lane.b32.xlu0 %v3391, 96
        %v3455 = vpop.permute.xlu0 %3454
        %3457 = vrot.lane.b32.xlu0 %v3388, 32
        %v3458 = vpop.permute.xlu0 %3457
        %3460 = vrot.lane.b32.xlu0 %v3326, 64
        %v3461 = vpop.permute.xlu0 %3460
        %3463 = vrot.lane.b32.xlu0 %v3392, 96
        %v3464 = vpop.permute.xlu0 %3463
        %vm3465 = vcmask 261120
        %v3468 = vsel %vm3465, %v3167, %v3395
        %vm3469 = vcmask 523264
        %v3471 = vsel %vm3469, %v3468, %v3398
        %vm3472 = vcmask 785408
        %v3474 = vsel %vm3472, %v3471, %v3401
        %v3477 = vsel %vm3465, %v3174, %v3404
        %v3479 = vsel %vm3469, %v3477, %v3407
        %v3481 = vsel %vm3472, %v3479, %v3410
        %v3484 = vsel %vm3465, %v3183, %v3413
        %v3486 = vsel %vm3469, %v3484, %v3416
        %v3488 = vsel %vm3472, %v3486, %v3419
        %v3491 = vsel %vm3465, %v3190, %v3422
        %v3493 = vsel %vm3469, %v3491, %v3425
        %v3495 = vsel %vm3472, %v3493, %v3428
        %v3498 = vsel %vm3465, %v3299, %v3431
        %v3500 = vsel %vm3469, %v3498, %v3434
        %v3502 = vsel %vm3472, %v3500, %v3437
        %v3505 = vsel %vm3465, %v3306, %v3440
        %v3507 = vsel %vm3469, %v3505, %v3443
        %v3509 = vsel %vm3472, %v3507, %v3446
        %v3512 = vsel %vm3465, %v3315, %v3449
        %v3514 = vsel %vm3469, %v3512, %v3452
        %v3516 = vsel %vm3472, %v3514, %v3455
        %v3519 = vsel %vm3465, %v3322, %v3458
        %v3521 = vsel %vm3469, %v3519, %v3461
        %v3523 = vsel %vm3472, %v3521, %v3464
        %v3524 = vld [vmem:[%s2] sm:$0xf]
        %3533 = vrot.lane.b32.xlu0 %v3079, 127
        %v3534 = vpop.permute.xlu0 %3533
        %3535 = vrot.lane.b32.xlu0 %v3080, 127
        %v3536 = vpop.permute.xlu0 %3535
        %3537 = vrot.lane.b32.xlu0 %v3082, 127
        %v3538 = vpop.permute.xlu0 %3537
        %3539 = vrot.lane.b32.xlu0 %v3083, 127
        %v3540 = vpop.permute.xlu0 %3539
        %3541 = vrot.lane.b32.xlu0 %v3085, 127
        %v3542 = vpop.permute.xlu0 %3541
        %3543 = vrot.lane.b32.xlu0 %v3086, 127
        %v3544 = vpop.permute.xlu0 %3543
        %3545 = vrot.lane.b32.xlu0 %v3088, 127
        %v3546 = vpop.permute.xlu0 %3545
        %3547 = vrot.lane.b32.xlu0 %v3089, 127
        %v3548 = vpop.permute.xlu0 %3547
        %v3551 = vpack.i.b16 %v3538, %v3534
        %v3553 = vshrl.u32 %v3534, 16
        %v3554 = vshrl.u32 %v3538, 16
        %v3555 = vpack.i.b16 %v3554, %v3553
        %v3559 = vpack.i.b16 %v3546, %v3542
        %v3561 = vshrl.u32 %v3542, 16
        %v3562 = vshrl.u32 %v3546, 16
        %v3563 = vpack.i.b16 %v3562, %v3561
        %v3567 = vpack.i.b16 %v3540, %v3536
        %v3569 = vshrl.u32 %v3536, 16
        %v3570 = vshrl.u32 %v3540, 16
        %v3571 = vpack.i.b16 %v3570, %v3569
        %v3575 = vpack.i.b16 %v3548, %v3544
        %v3577 = vshrl.u32 %v3544, 16
        %v3578 = vshrl.u32 %v3548, 16
        %v3579 = vpack.i.b16 %v3578, %v3577
        %v3581 = vcombine.high %v3551, %v3108
        %v3583 = vunpack.c.l.s4 1983009808
        %v3584 = vunpack.c.0.s8 %v3583
        %v3585 = vlaneseq
        %v3586 = vshrl.u32 %v3585, 7
        %v3587 = vsub.s32 %v3584, %v3586
        %v3588 = vrot.slane %v3551, %v3587
        %v3590 = vunpack.c.l.s4 1983009808
        %v3591 = vunpack.c.0.s8 %v3590
        %v3592 = vlaneseq
        %v3593 = vshrl.u32 %v3592, 7
        %v3594 = vsub.s32 %v3591, %v3593
        %v3595 = vrot.slane %v3581, %v3594
        %v3596 = vcombine.high %v3559, %v3108
        %v3598 = vunpack.c.l.s4 1983009808
        %v3599 = vunpack.c.0.s8 %v3598
        %v3600 = vlaneseq
        %v3601 = vshrl.u32 %v3600, 7
        %v3602 = vsub.s32 %v3599, %v3601
        %v3603 = vrot.slane %v3559, %v3602
        %v3605 = vunpack.c.l.s4 1983009808
        %v3606 = vunpack.c.0.s8 %v3605
        %v3607 = vlaneseq
        %v3608 = vshrl.u32 %v3607, 7
        %v3609 = vsub.s32 %v3606, %v3608
        %v3610 = vrot.slane %v3596, %v3609
        %v3611 = vcombine.low %v3588, %v3603
        %v3612 = vcombine.high %v3588, %v3603
        %v3614 = vunpack.c.l.s4 1934713408
        %v3615 = vunpack.c.0.s8 %v3614
        %v3616 = vlaneseq
        %v3617 = vshrl.u32 %v3616, 7
        %v3618 = vsub.s32 %v3615, %v3617
        %v3619 = vrot.slane %v3611, %v3618
        %v3621 = vunpack.c.l.s4 1934713408
        %v3622 = vunpack.c.0.s8 %v3621
        %v3623 = vlaneseq
        %v3624 = vshrl.u32 %v3623, 7
        %v3625 = vsub.s32 %v3622, %v3624
        %v3626 = vrot.slane %v3612, %v3625
        %v3627 = vcombine.low %v3595, %v3610
        %v3628 = vcombine.high %v3595, %v3610
        %v3630 = vunpack.c.l.s4 1934713408
        %v3631 = vunpack.c.0.s8 %v3630
        %v3632 = vlaneseq
        %v3633 = vshrl.u32 %v3632, 7
        %v3634 = vsub.s32 %v3631, %v3633
        %v3635 = vrot.slane %v3627, %v3634
        %v3637 = vunpack.c.l.s4 1934713408
        %v3638 = vunpack.c.0.s8 %v3637
        %v3639 = vlaneseq
        %v3640 = vshrl.u32 %v3639, 7
        %v3641 = vsub.s32 %v3638, %v3640
        %v3642 = vrot.slane %v3628, %v3641
        %v3643 = vcombine.high %v3619, 0
        %v3644 = vcombine.high %v3626, 0
        %v3645 = vcombine.high %v3635, 0
        %v3646 = vcombine.high %v3642, 0
        %v3647 = vcombine.high %v3555, %v3111
        %v3649 = vunpack.c.l.s4 1983009808
        %v3650 = vunpack.c.0.s8 %v3649
        %v3651 = vlaneseq
        %v3652 = vshrl.u32 %v3651, 7
        %v3653 = vsub.s32 %v3650, %v3652
        %v3654 = vrot.slane %v3555, %v3653
        %v3656 = vunpack.c.l.s4 1983009808
        %v3657 = vunpack.c.0.s8 %v3656
        %v3658 = vlaneseq
        %v3659 = vshrl.u32 %v3658, 7
        %v3660 = vsub.s32 %v3657, %v3659
        %v3661 = vrot.slane %v3647, %v3660
        %v3662 = vcombine.high %v3563, %v3111
        %v3664 = vunpack.c.l.s4 1983009808
        %v3665 = vunpack.c.0.s8 %v3664
        %v3666 = vlaneseq
        %v3667 = vshrl.u32 %v3666, 7
        %v3668 = vsub.s32 %v3665, %v3667
        %v3669 = vrot.slane %v3563, %v3668
        %v3671 = vunpack.c.l.s4 1983009808
        %v3672 = vunpack.c.0.s8 %v3671
        %v3673 = vlaneseq
        %v3674 = vshrl.u32 %v3673, 7
        %v3675 = vsub.s32 %v3672, %v3674
        %v3676 = vrot.slane %v3662, %v3675
        %v3677 = vcombine.low %v3654, %v3669
        %v3678 = vcombine.high %v3654, %v3669
        %v3680 = vunpack.c.l.s4 1934713408
        %v3681 = vunpack.c.0.s8 %v3680
        %v3682 = vlaneseq
        %v3683 = vshrl.u32 %v3682, 7
        %v3684 = vsub.s32 %v3681, %v3683
        %v3685 = vrot.slane %v3677, %v3684
        %v3687 = vunpack.c.l.s4 1934713408
        %v3688 = vunpack.c.0.s8 %v3687
        %v3689 = vlaneseq
        %v3690 = vshrl.u32 %v3689, 7
        %v3691 = vsub.s32 %v3688, %v3690
        %v3692 = vrot.slane %v3678, %v3691
        %v3693 = vcombine.low %v3661, %v3676
        %v3694 = vcombine.high %v3661, %v3676
        %v3696 = vunpack.c.l.s4 1934713408
        %v3697 = vunpack.c.0.s8 %v3696
        %v3698 = vlaneseq
        %v3699 = vshrl.u32 %v3698, 7
        %v3700 = vsub.s32 %v3697, %v3699
        %v3701 = vrot.slane %v3693, %v3700
        %v3703 = vunpack.c.l.s4 1934713408
        %v3704 = vunpack.c.0.s8 %v3703
        %v3705 = vlaneseq
        %v3706 = vshrl.u32 %v3705, 7
        %v3707 = vsub.s32 %v3704, %v3706
        %v3708 = vrot.slane %v3694, %v3707
        %v3709 = vcombine.high %v3685, 0
        %v3710 = vcombine.high %v3692, 0
        %v3711 = vcombine.high %v3701, 0
        %v3712 = vcombine.high %v3708, 0
        %v3713 = vcombine.high %v3567, %v3108
        %v3715 = vunpack.c.l.s4 1983009808
        %v3716 = vunpack.c.0.s8 %v3715
        %v3717 = vlaneseq
        %v3718 = vshrl.u32 %v3717, 7
        %v3719 = vsub.s32 %v3716, %v3718
        %v3720 = vrot.slane %v3567, %v3719
        %v3722 = vunpack.c.l.s4 1983009808
        %v3723 = vunpack.c.0.s8 %v3722
        %v3724 = vlaneseq
        %v3725 = vshrl.u32 %v3724, 7
        %v3726 = vsub.s32 %v3723, %v3725
        %v3727 = vrot.slane %v3713, %v3726
        %v3728 = vcombine.high %v3575, %v3108
        %v3730 = vunpack.c.l.s4 1983009808
        %v3731 = vunpack.c.0.s8 %v3730
        %v3732 = vlaneseq
        %v3733 = vshrl.u32 %v3732, 7
        %v3734 = vsub.s32 %v3731, %v3733
        %v3735 = vrot.slane %v3575, %v3734
        %v3737 = vunpack.c.l.s4 1983009808
        %v3738 = vunpack.c.0.s8 %v3737
        %v3739 = vlaneseq
        %v3740 = vshrl.u32 %v3739, 7
        %v3741 = vsub.s32 %v3738, %v3740
        %v3742 = vrot.slane %v3728, %v3741
        %v3743 = vcombine.low %v3720, %v3735
        %v3744 = vcombine.high %v3720, %v3735
        %v3746 = vunpack.c.l.s4 1934713408
        %v3747 = vunpack.c.0.s8 %v3746
        %v3748 = vlaneseq
        %v3749 = vshrl.u32 %v3748, 7
        %v3750 = vsub.s32 %v3747, %v3749
        %v3751 = vrot.slane %v3743, %v3750
        %v3753 = vunpack.c.l.s4 1934713408
        %v3754 = vunpack.c.0.s8 %v3753
        %v3755 = vlaneseq
        %v3756 = vshrl.u32 %v3755, 7
        %v3757 = vsub.s32 %v3754, %v3756
        %v3758 = vrot.slane %v3744, %v3757
        %v3759 = vcombine.low %v3727, %v3742
        %v3760 = vcombine.high %v3727, %v3742
        %v3762 = vunpack.c.l.s4 1934713408
        %v3763 = vunpack.c.0.s8 %v3762
        %v3764 = vlaneseq
        %v3765 = vshrl.u32 %v3764, 7
        %v3766 = vsub.s32 %v3763, %v3765
        %v3767 = vrot.slane %v3759, %v3766
        %v3769 = vunpack.c.l.s4 1934713408
        %v3770 = vunpack.c.0.s8 %v3769
        %v3771 = vlaneseq
        %v3772 = vshrl.u32 %v3771, 7
        %v3773 = vsub.s32 %v3770, %v3772
        %v3774 = vrot.slane %v3760, %v3773
        %v3775 = vcombine.high %v3751, 0
        %v3776 = vcombine.high %v3758, 0
        %v3777 = vcombine.high %v3767, 0
        %v3778 = vcombine.high %v3774, 0
        %v3779 = vcombine.high %v3571, %v3111
        %v3781 = vunpack.c.l.s4 1983009808
        %v3782 = vunpack.c.0.s8 %v3781
        %v3783 = vlaneseq
        %v3784 = vshrl.u32 %v3783, 7
        %v3785 = vsub.s32 %v3782, %v3784
        %v3786 = vrot.slane %v3571, %v3785
        %v3788 = vunpack.c.l.s4 1983009808
        %v3789 = vunpack.c.0.s8 %v3788
        %v3790 = vlaneseq
        %v3791 = vshrl.u32 %v3790, 7
        %v3792 = vsub.s32 %v3789, %v3791
        %v3793 = vrot.slane %v3779, %v3792
        %v3794 = vcombine.high %v3579, %v3111
        %v3796 = vunpack.c.l.s4 1983009808
        %v3797 = vunpack.c.0.s8 %v3796
        %v3798 = vlaneseq
        %v3799 = vshrl.u32 %v3798, 7
        %v3800 = vsub.s32 %v3797, %v3799
        %v3801 = vrot.slane %v3579, %v3800
        %v3803 = vunpack.c.l.s4 1983009808
        %v3804 = vunpack.c.0.s8 %v3803
        %v3805 = vlaneseq
        %v3806 = vshrl.u32 %v3805, 7
        %v3807 = vsub.s32 %v3804, %v3806
        %v3808 = vrot.slane %v3794, %v3807
        %v3809 = vcombine.low %v3786, %v3801
        %v3810 = vcombine.high %v3786, %v3801
        %v3812 = vunpack.c.l.s4 1934713408
        %v3813 = vunpack.c.0.s8 %v3812
        %v3814 = vlaneseq
        %v3815 = vshrl.u32 %v3814, 7
        %v3816 = vsub.s32 %v3813, %v3815
        %v3817 = vrot.slane %v3809, %v3816
        %v3819 = vunpack.c.l.s4 1934713408
        %v3820 = vunpack.c.0.s8 %v3819
        %v3821 = vlaneseq
        %v3822 = vshrl.u32 %v3821, 7
        %v3823 = vsub.s32 %v3820, %v3822
        %v3824 = vrot.slane %v3810, %v3823
        %v3825 = vcombine.low %v3793, %v3808
        %v3826 = vcombine.high %v3793, %v3808
        %v3828 = vunpack.c.l.s4 1934713408
        %v3829 = vunpack.c.0.s8 %v3828
        %v3830 = vlaneseq
        %v3831 = vshrl.u32 %v3830, 7
        %v3832 = vsub.s32 %v3829, %v3831
        %v3833 = vrot.slane %v3825, %v3832
        %v3835 = vunpack.c.l.s4 1934713408
        %v3836 = vunpack.c.0.s8 %v3835
        %v3837 = vlaneseq
        %v3838 = vshrl.u32 %v3837, 7
        %v3839 = vsub.s32 %v3836, %v3838
        %v3840 = vrot.slane %v3826, %v3839
        %v3841 = vcombine.high %v3817, 0
        %v3842 = vcombine.high %v3824, 0
        %v3843 = vcombine.high %v3833, 0
        %v3844 = vcombine.high %v3840, 0
        %3846 = vrot.lane.b32.xlu0 %v3685, 32
        %v3847 = vpop.permute.xlu0 %3846
        %3849 = vrot.lane.b32.xlu0 %v3643, 64
        %v3850 = vpop.permute.xlu0 %3849
        %3852 = vrot.lane.b32.xlu0 %v3709, 96
        %v3853 = vpop.permute.xlu0 %3852
        %3855 = vrot.lane.b32.xlu0 %v3692, 32
        %v3856 = vpop.permute.xlu0 %3855
        %3858 = vrot.lane.b32.xlu0 %v3644, 64
        %v3859 = vpop.permute.xlu0 %3858
        %3861 = vrot.lane.b32.xlu0 %v3710, 96
        %v3862 = vpop.permute.xlu0 %3861
        %3864 = vrot.lane.b32.xlu0 %v3701, 32
        %v3865 = vpop.permute.xlu0 %3864
        %3867 = vrot.lane.b32.xlu0 %v3645, 64
        %v3868 = vpop.permute.xlu0 %3867
        %3870 = vrot.lane.b32.xlu0 %v3711, 96
        %v3871 = vpop.permute.xlu0 %3870
        %3873 = vrot.lane.b32.xlu0 %v3708, 32
        %v3874 = vpop.permute.xlu0 %3873
        %3876 = vrot.lane.b32.xlu0 %v3646, 64
        %v3877 = vpop.permute.xlu0 %3876
        %3879 = vrot.lane.b32.xlu0 %v3712, 96
        %v3880 = vpop.permute.xlu0 %3879
        %3882 = vrot.lane.b32.xlu0 %v3817, 32
        %v3883 = vpop.permute.xlu0 %3882
        %3885 = vrot.lane.b32.xlu0 %v3775, 64
        %v3886 = vpop.permute.xlu0 %3885
        %3888 = vrot.lane.b32.xlu0 %v3841, 96
        %v3889 = vpop.permute.xlu0 %3888
        %3891 = vrot.lane.b32.xlu0 %v3824, 32
        %v3892 = vpop.permute.xlu0 %3891
        %3894 = vrot.lane.b32.xlu0 %v3776, 64
        %v3895 = vpop.permute.xlu0 %3894
        %3897 = vrot.lane.b32.xlu0 %v3842, 96
        %v3898 = vpop.permute.xlu0 %3897
        %3900 = vrot.lane.b32.xlu0 %v3833, 32
        %v3901 = vpop.permute.xlu0 %3900
        %3903 = vrot.lane.b32.xlu0 %v3777, 64
        %v3904 = vpop.permute.xlu0 %3903
        %3906 = vrot.lane.b32.xlu0 %v3843, 96
        %v3907 = vpop.permute.xlu0 %3906
        %3909 = vrot.lane.b32.xlu0 %v3840, 32
        %v3910 = vpop.permute.xlu0 %3909
        %3912 = vrot.lane.b32.xlu0 %v3778, 64
        %v3913 = vpop.permute.xlu0 %3912
        %3915 = vrot.lane.b32.xlu0 %v3844, 96
        %v3916 = vpop.permute.xlu0 %3915
        %v3919 = vsel %vm3465, %v3619, %v3847
        %v3921 = vsel %vm3469, %v3919, %v3850
        %v3923 = vsel %vm3472, %v3921, %v3853
        %v3926 = vsel %vm3465, %v3626, %v3856
        %v3928 = vsel %vm3469, %v3926, %v3859
        %v3930 = vsel %vm3472, %v3928, %v3862
        %v3933 = vsel %vm3465, %v3635, %v3865
        %v3935 = vsel %vm3469, %v3933, %v3868
        %v3937 = vsel %vm3472, %v3935, %v3871
        %v3940 = vsel %vm3465, %v3642, %v3874
        %v3942 = vsel %vm3469, %v3940, %v3877
        %v3944 = vsel %vm3472, %v3942, %v3880
        %v3947 = vsel %vm3465, %v3751, %v3883
        %v3949 = vsel %vm3469, %v3947, %v3886
        %v3951 = vsel %vm3472, %v3949, %v3889
        %v3954 = vsel %vm3465, %v3758, %v3892
        %v3956 = vsel %vm3469, %v3954, %v3895
        %v3958 = vsel %vm3472, %v3956, %v3898
        %v3961 = vsel %vm3465, %v3767, %v3901
        %v3963 = vsel %vm3469, %v3961, %v3904
        %v3965 = vsel %vm3472, %v3963, %v3907
        %v3968 = vsel %vm3465, %v3774, %v3910
        %v3970 = vsel %vm3469, %v3968, %v3913
        %v3972 = vsel %vm3472, %v3970, %v3916
        %s3973 = scalar_lea.vmem %s2, 4
        %v3974 = vld [vmem:[%s3973] sm:$0xf]
        %vm3975 = vcmask 31744
        %v3977 = vsel %vm3975, %v3974, 0
        %vm3979 = vcmask 1041408
        %v3980 = vsel %vm3979, %v3923, 0
        %v3982 = vsel %vm3979, %v3930, 0
        %v3984 = vsel %vm3979, %v3937, 0
        %v3986 = vsel %vm3979, %v3944, 0
        %v3988 = vsel %vm3979, %v3951, 0
        %v3990 = vsel %vm3979, %v3958, 0
        %v3992 = vsel %vm3979, %v3965, 0
        %v3994 = vsel %vm3979, %v3972, 0
        %3996 = vmatprep.subr.bf16.mxu0 0
        %3997 = vmatpush1.bf16.msra.mxu0 0
        %3998 = vmatprep.subr.bf16.mxu0 0
        %3999 = vmatpush1.bf16.msra.mxu0 0
        %4000 = vmatprep.subr.bf16.mxu0 0
        %4001 = vmatpush1.bf16.msra.mxu0 0
        %4002 = vmatprep.subr.bf16.mxu0 0
        %4003 = vmatpush1.bf16.msra.mxu0 0
        %4004 = vmatprep.subr.bf16.mxu0 0
        %4005 = vmatpush1.bf16.msra.mxu0 0
        %4006 = vmatprep.subr.bf16.mxu0 0
        %4007 = vmatpush1.bf16.msra.mxu0 0
        %4008 = vmatprep.subr.bf16.mxu0 0
        %4009 = vmatpush1.bf16.msra.mxu0 0
        %4010 = vmatprep.subr.bf16.mxu0 %v3982
        %4011 = vmatpush1.bf16.msra.mxu0 %v3980
        %4012 = vmatprep.subr.bf16.mxu0 0
        %4013 = vmatpush2.bf16.msra.mxu0 0
        %4014 = vmatprep.subr.bf16.mxu0 0
        %4015 = vmatpush2.bf16.msra.mxu0 0
        %4016 = vmatprep.subr.bf16.mxu0 0
        %4017 = vmatpush2.bf16.msra.mxu0 0
        %4018 = vmatprep.subr.bf16.mxu0 0
        %4019 = vmatpush2.bf16.msra.mxu0 0
        %4020 = vmatprep.subr.bf16.mxu0 0
        %4021 = vmatpush2.bf16.msra.mxu0 0
        %4022 = vmatprep.subr.bf16.mxu0 0
        %4023 = vmatpush2.bf16.msra.mxu0 0
        %4024 = vmatprep.subr.bf16.mxu0 0
        %4025 = vmatpush2.bf16.msra.mxu0 0
        %4026 = vmatprep.subr.bf16.mxu0 0
        %4027 = vmatpush2.bf16.msra.mxu0 0
        %4028 = vmatprep.mubr.bf16.mxu0 0
        %4029 = vmatmul.mubr.bf16.gmra.mxu0 %v3977
        %v4030 = vpop.f32.mrf.mxu0
        %v4031 = vadd.f32 0.0, %v4030
        %v4032 = vpop.f32.mrf.mxu0
        %v4033 = vadd.f32 0.0, %v4032
        %v4034 = vpop.f32.mrf.mxu0
        %v4035 = vpop.f32.mrf.mxu0
        %4036 = vdwg.mxu0
        %4037 = vmatprep.subr.bf16.mxu0 0
        %4038 = vmatpush1.bf16.msra.mxu0 0
        %4039 = vmatprep.subr.bf16.mxu0 0
        %4040 = vmatpush1.bf16.msra.mxu0 0
        %4041 = vmatprep.subr.bf16.mxu0 0
        %4042 = vmatpush1.bf16.msra.mxu0 0
        %4043 = vmatprep.subr.bf16.mxu0 0
        %4044 = vmatpush1.bf16.msra.mxu0 0
        %4045 = vmatprep.subr.bf16.mxu0 0
        %4046 = vmatpush1.bf16.msra.mxu0 0
        %4047 = vmatprep.subr.bf16.mxu0 0
        %4048 = vmatpush1.bf16.msra.mxu0 0
        %4049 = vmatprep.subr.bf16.mxu0 0
        %4050 = vmatpush1.bf16.msra.mxu0 0
        %4051 = vmatprep.subr.bf16.mxu0 %v3986
        %4052 = vmatpush1.bf16.msra.mxu0 %v3984
        %4053 = vmatprep.subr.bf16.mxu0 0
        %4054 = vmatpush2.bf16.msra.mxu0 0
        %4055 = vmatprep.subr.bf16.mxu0 0
        %4056 = vmatpush2.bf16.msra.mxu0 0
        %4057 = vmatprep.subr.bf16.mxu0 0
        %4058 = vmatpush2.bf16.msra.mxu0 0
        %4059 = vmatprep.subr.bf16.mxu0 0
        %4060 = vmatpush2.bf16.msra.mxu0 0
        %4061 = vmatprep.subr.bf16.mxu0 0
        %4062 = vmatpush2.bf16.msra.mxu0 0
        %4063 = vmatprep.subr.bf16.mxu0 0
        %4064 = vmatpush2.bf16.msra.mxu0 0
        %4065 = vmatprep.subr.bf16.mxu0 0
        %4066 = vmatpush2.bf16.msra.mxu0 0
        %4067 = vmatprep.subr.bf16.mxu0 0
        %4068 = vmatpush2.bf16.msra.mxu0 0
        %4069 = vmatprep.mubr.bf16.mxu0 0
        %4070 = vmatmul.mubr.bf16.gmra.mxu0 %v3977
        %v4071 = vpop.f32.mrf.mxu0
        %v4072 = vadd.f32 0.0, %v4071
        %v4073 = vpop.f32.mrf.mxu0
        %v4074 = vadd.f32 0.0, %v4073
        %v4075 = vpop.f32.mrf.mxu0
        %v4076 = vpop.f32.mrf.mxu0
        %4077 = vdwg.mxu0
        %4078 = vmatprep.subr.bf16.mxu0 0
        %4079 = vmatpush1.bf16.msra.mxu0 0
        %4080 = vmatprep.subr.bf16.mxu0 0
        %4081 = vmatpush1.bf16.msra.mxu0 0
        %4082 = vmatprep.subr.bf16.mxu0 0
        %4083 = vmatpush1.bf16.msra.mxu0 0
        %4084 = vmatprep.subr.bf16.mxu0 0
        %4085 = vmatpush1.bf16.msra.mxu0 0
        %4086 = vmatprep.subr.bf16.mxu0 0
        %4087 = vmatpush1.bf16.msra.mxu0 0
        %4088 = vmatprep.subr.bf16.mxu0 0
        %4089 = vmatpush1.bf16.msra.mxu0 0
        %4090 = vmatprep.subr.bf16.mxu0 0
        %4091 = vmatpush1.bf16.msra.mxu0 0
        %4092 = vmatprep.subr.bf16.mxu0 %v3990
        %4093 = vmatpush1.bf16.msra.mxu0 %v3988
        %4094 = vmatprep.subr.bf16.mxu0 0
        %4095 = vmatpush2.bf16.msra.mxu0 0
        %4096 = vmatprep.subr.bf16.mxu0 0
        %4097 = vmatpush2.bf16.msra.mxu0 0
        %4098 = vmatprep.subr.bf16.mxu0 0
        %4099 = vmatpush2.bf16.msra.mxu0 0
        %4100 = vmatprep.subr.bf16.mxu0 0
        %4101 = vmatpush2.bf16.msra.mxu0 0
        %4102 = vmatprep.subr.bf16.mxu0 0
        %4103 = vmatpush2.bf16.msra.mxu0 0
        %4104 = vmatprep.subr.bf16.mxu0 0
        %4105 = vmatpush2.bf16.msra.mxu0 0
        %4106 = vmatprep.subr.bf16.mxu0 0
        %4107 = vmatpush2.bf16.msra.mxu0 0
        %4108 = vmatprep.subr.bf16.mxu0 0
        %4109 = vmatpush2.bf16.msra.mxu0 0
        %4110 = vmatprep.mubr.bf16.mxu0 0
        %4111 = vmatmul.mubr.bf16.gmra.mxu0 %v3977
        %v4112 = vpop.f32.mrf.mxu0
        %v4113 = vadd.f32 0.0, %v4112
        %v4114 = vpop.f32.mrf.mxu0
        %v4115 = vadd.f32 0.0, %v4114
        %v4116 = vpop.f32.mrf.mxu0
        %v4117 = vpop.f32.mrf.mxu0
        %4118 = vdwg.mxu0
        %4119 = vmatprep.subr.bf16.mxu0 0
        %4120 = vmatpush1.bf16.msra.mxu0 0
        %4121 = vmatprep.subr.bf16.mxu0 0
        %4122 = vmatpush1.bf16.msra.mxu0 0
        %4123 = vmatprep.subr.bf16.mxu0 0
        %4124 = vmatpush1.bf16.msra.mxu0 0
        %4125 = vmatprep.subr.bf16.mxu0 0
        %4126 = vmatpush1.bf16.msra.mxu0 0
        %4127 = vmatprep.subr.bf16.mxu0 0
        %4128 = vmatpush1.bf16.msra.mxu0 0
        %4129 = vmatprep.subr.bf16.mxu0 0
        %4130 = vmatpush1.bf16.msra.mxu0 0
        %4131 = vmatprep.subr.bf16.mxu0 0
        %4132 = vmatpush1.bf16.msra.mxu0 0
        %4133 = vmatprep.subr.bf16.mxu0 %v3994
        %4134 = vmatpush1.bf16.msra.mxu0 %v3992
        %4135 = vmatprep.subr.bf16.mxu0 0
        %4136 = vmatpush2.bf16.msra.mxu0 0
        %4137 = vmatprep.subr.bf16.mxu0 0
        %4138 = vmatpush2.bf16.msra.mxu0 0
        %4139 = vmatprep.subr.bf16.mxu0 0
        %4140 = vmatpush2.bf16.msra.mxu0 0
        %4141 = vmatprep.subr.bf16.mxu0 0
        %4142 = vmatpush2.bf16.msra.mxu0 0
        %4143 = vmatprep.subr.bf16.mxu0 0
        %4144 = vmatpush2.bf16.msra.mxu0 0
        %4145 = vmatprep.subr.bf16.mxu0 0
        %4146 = vmatpush2.bf16.msra.mxu0 0
        %4147 = vmatprep.subr.bf16.mxu0 0
        %4148 = vmatpush2.bf16.msra.mxu0 0
        %4149 = vmatprep.subr.bf16.mxu0 0
        %4150 = vmatpush2.bf16.msra.mxu0 0
        %4151 = vmatprep.mubr.bf16.mxu0 0
        %4152 = vmatmul.mubr.bf16.gmra.mxu0 %v3977
        %v4153 = vpop.f32.mrf.mxu0
        %v4154 = vadd.f32 0.0, %v4153
        %v4155 = vpop.f32.mrf.mxu0
        %v4156 = vadd.f32 0.0, %v4155
        %v4157 = vpop.f32.mrf.mxu0
        %v4158 = vpop.f32.mrf.mxu0
        %4159 = vdwg.mxu0
        %v4161 = vsel %vm3975, %v3524, 0
        %v4163 = vsel %vm3979, %v3474, 0
        %v4165 = vsel %vm3979, %v3481, 0
        %v4167 = vsel %vm3979, %v3488, 0
        %v4169 = vsel %vm3979, %v3495, 0
        %v4171 = vsel %vm3979, %v3502, 0
        %v4173 = vsel %vm3979, %v3509, 0
        %v4175 = vsel %vm3979, %v3516, 0
        %v4177 = vsel %vm3979, %v3523, 0
        %4179 = vmatprep.subr.bf16.mxu0 0
        %4180 = vmatpush1.bf16.msra.mxu0 0
        %4181 = vmatprep.subr.bf16.mxu0 0
        %4182 = vmatpush1.bf16.msra.mxu0 0
        %4183 = vmatprep.subr.bf16.mxu0 0
        %4184 = vmatpush1.bf16.msra.mxu0 0
        %4185 = vmatprep.subr.bf16.mxu0 0
        %4186 = vmatpush1.bf16.msra.mxu0 0
        %4187 = vmatprep.subr.bf16.mxu0 0
        %4188 = vmatpush1.bf16.msra.mxu0 0
        %4189 = vmatprep.subr.bf16.mxu0 0
        %4190 = vmatpush1.bf16.msra.mxu0 0
        %4191 = vmatprep.subr.bf16.mxu0 0
        %4192 = vmatpush1.bf16.msra.mxu0 0
        %4193 = vmatprep.subr.bf16.mxu0 %v4165
        %4194 = vmatpush1.bf16.msra.mxu0 %v4163
        %4195 = vmatprep.subr.bf16.mxu0 0
        %4196 = vmatpush2.bf16.msra.mxu0 0
        %4197 = vmatprep.subr.bf16.mxu0 0
        %4198 = vmatpush2.bf16.msra.mxu0 0
        %4199 = vmatprep.subr.bf16.mxu0 0
        %4200 = vmatpush2.bf16.msra.mxu0 0
        %4201 = vmatprep.subr.bf16.mxu0 0
        %4202 = vmatpush2.bf16.msra.mxu0 0
        %4203 = vmatprep.subr.bf16.mxu0 0
        %4204 = vmatpush2.bf16.msra.mxu0 0
        %4205 = vmatprep.subr.bf16.mxu0 0
        %4206 = vmatpush2.bf16.msra.mxu0 0
        %4207 = vmatprep.subr.bf16.mxu0 0
        %4208 = vmatpush2.bf16.msra.mxu0 0
        %4209 = vmatprep.subr.bf16.mxu0 0
        %4210 = vmatpush2.bf16.msra.mxu0 0
        %4211 = vmatprep.mubr.bf16.mxu0 0
        %4212 = vmatmul.mubr.bf16.gmra.mxu0 %v4161
        %v4213 = vpop.f32.mrf.mxu0
        %v4214 = vadd.f32 %v4031, %v4213
        %v4215 = vpop.f32.mrf.mxu0
        %v4216 = vadd.f32 %v4033, %v4215
        %v4217 = vpop.f32.mrf.mxu0
        %v4218 = vpop.f32.mrf.mxu0
        %4219 = vdwg.mxu0
        %4220 = vmatprep.subr.bf16.mxu0 0
        %4221 = vmatpush1.bf16.msra.mxu0 0
        %4222 = vmatprep.subr.bf16.mxu0 0
        %4223 = vmatpush1.bf16.msra.mxu0 0
        %4224 = vmatprep.subr.bf16.mxu0 0
        %4225 = vmatpush1.bf16.msra.mxu0 0
        %4226 = vmatprep.subr.bf16.mxu0 0
        %4227 = vmatpush1.bf16.msra.mxu0 0
        %4228 = vmatprep.subr.bf16.mxu0 0
        %4229 = vmatpush1.bf16.msra.mxu0 0
        %4230 = vmatprep.subr.bf16.mxu0 0
        %4231 = vmatpush1.bf16.msra.mxu0 0
        %4232 = vmatprep.subr.bf16.mxu0 0
        %4233 = vmatpush1.bf16.msra.mxu0 0
        %4234 = vmatprep.subr.bf16.mxu0 %v4169
        %4235 = vmatpush1.bf16.msra.mxu0 %v4167
        %4236 = vmatprep.subr.bf16.mxu0 0
        %4237 = vmatpush2.bf16.msra.mxu0 0
        %4238 = vmatprep.subr.bf16.mxu0 0
        %4239 = vmatpush2.bf16.msra.mxu0 0
        %4240 = vmatprep.subr.bf16.mxu0 0
        %4241 = vmatpush2.bf16.msra.mxu0 0
        %4242 = vmatprep.subr.bf16.mxu0 0
        %4243 = vmatpush2.bf16.msra.mxu0 0
        %4244 = vmatprep.subr.bf16.mxu0 0
        %4245 = vmatpush2.bf16.msra.mxu0 0
        %4246 = vmatprep.subr.bf16.mxu0 0
        %4247 = vmatpush2.bf16.msra.mxu0 0
        %4248 = vmatprep.subr.bf16.mxu0 0
        %4249 = vmatpush2.bf16.msra.mxu0 0
        %4250 = vmatprep.subr.bf16.mxu0 0
        %4251 = vmatpush2.bf16.msra.mxu0 0
        %4252 = vmatprep.mubr.bf16.mxu0 0
        %4253 = vmatmul.mubr.bf16.gmra.mxu0 %v4161
        %v4254 = vpop.f32.mrf.mxu0
        %v4255 = vadd.f32 %v4072, %v4254
        %v4256 = vpop.f32.mrf.mxu0
        %v4257 = vadd.f32 %v4074, %v4256
        %v4258 = vpop.f32.mrf.mxu0
        %v4259 = vpop.f32.mrf.mxu0
        %4260 = vdwg.mxu0
        %4261 = vmatprep.subr.bf16.mxu0 0
        %4262 = vmatpush1.bf16.msra.mxu0 0
        %4263 = vmatprep.subr.bf16.mxu0 0
        %4264 = vmatpush1.bf16.msra.mxu0 0
        %4265 = vmatprep.subr.bf16.mxu0 0
        %4266 = vmatpush1.bf16.msra.mxu0 0
        %4267 = vmatprep.subr.bf16.mxu0 0
        %4268 = vmatpush1.bf16.msra.mxu0 0
        %4269 = vmatprep.subr.bf16.mxu0 0
        %4270 = vmatpush1.bf16.msra.mxu0 0
        %4271 = vmatprep.subr.bf16.mxu0 0
        %4272 = vmatpush1.bf16.msra.mxu0 0
        %4273 = vmatprep.subr.bf16.mxu0 0
        %4274 = vmatpush1.bf16.msra.mxu0 0
        %4275 = vmatprep.subr.bf16.mxu0 %v4173
        %4276 = vmatpush1.bf16.msra.mxu0 %v4171
        %4277 = vmatprep.subr.bf16.mxu0 0
        %4278 = vmatpush2.bf16.msra.mxu0 0
        %4279 = vmatprep.subr.bf16.mxu0 0
        %4280 = vmatpush2.bf16.msra.mxu0 0
        %4281 = vmatprep.subr.bf16.mxu0 0
        %4282 = vmatpush2.bf16.msra.mxu0 0
        %4283 = vmatprep.subr.bf16.mxu0 0
        %4284 = vmatpush2.bf16.msra.mxu0 0
        %4285 = vmatprep.subr.bf16.mxu0 0
        %4286 = vmatpush2.bf16.msra.mxu0 0
        %4287 = vmatprep.subr.bf16.mxu0 0
        %4288 = vmatpush2.bf16.msra.mxu0 0
        %4289 = vmatprep.subr.bf16.mxu0 0
        %4290 = vmatpush2.bf16.msra.mxu0 0
        %4291 = vmatprep.subr.bf16.mxu0 0
        %4292 = vmatpush2.bf16.msra.mxu0 0
        %4293 = vmatprep.mubr.bf16.mxu0 0
        %4294 = vmatmul.mubr.bf16.gmra.mxu0 %v4161
        %v4295 = vpop.f32.mrf.mxu0
        %v4296 = vadd.f32 %v4113, %v4295
        %v4297 = vpop.f32.mrf.mxu0
        %v4298 = vadd.f32 %v4115, %v4297
        %v4299 = vpop.f32.mrf.mxu0
        %v4300 = vpop.f32.mrf.mxu0
        %4301 = vdwg.mxu0
        %4302 = vmatprep.subr.bf16.mxu0 0
        %4303 = vmatpush1.bf16.msra.mxu0 0
        %4304 = vmatprep.subr.bf16.mxu0 0
        %4305 = vmatpush1.bf16.msra.mxu0 0
        %4306 = vmatprep.subr.bf16.mxu0 0
        %4307 = vmatpush1.bf16.msra.mxu0 0
        %4308 = vmatprep.subr.bf16.mxu0 0
        %4309 = vmatpush1.bf16.msra.mxu0 0
        %4310 = vmatprep.subr.bf16.mxu0 0
        %4311 = vmatpush1.bf16.msra.mxu0 0
        %4312 = vmatprep.subr.bf16.mxu0 0
        %4313 = vmatpush1.bf16.msra.mxu0 0
        %4314 = vmatprep.subr.bf16.mxu0 0
        %4315 = vmatpush1.bf16.msra.mxu0 0
        %4316 = vmatprep.subr.bf16.mxu0 %v4177
        %4317 = vmatpush1.bf16.msra.mxu0 %v4175
        %4318 = vmatprep.subr.bf16.mxu0 0
        %4319 = vmatpush2.bf16.msra.mxu0 0
        %4320 = vmatprep.subr.bf16.mxu0 0
        %4321 = vmatpush2.bf16.msra.mxu0 0
        %4322 = vmatprep.subr.bf16.mxu0 0
        %4323 = vmatpush2.bf16.msra.mxu0 0
        %4324 = vmatprep.subr.bf16.mxu0 0
        %4325 = vmatpush2.bf16.msra.mxu0 0
        %4326 = vmatprep.subr.bf16.mxu0 0
        %4327 = vmatpush2.bf16.msra.mxu0 0
        %4328 = vmatprep.subr.bf16.mxu0 0
        %4329 = vmatpush2.bf16.msra.mxu0 0
        %4330 = vmatprep.subr.bf16.mxu0 0
        %4331 = vmatpush2.bf16.msra.mxu0 0
        %4332 = vmatprep.subr.bf16.mxu0 0
        %4333 = vmatpush2.bf16.msra.mxu0 0
        %4334 = vmatprep.mubr.bf16.mxu0 0
        %4335 = vmatmul.mubr.bf16.gmra.mxu0 %v4161
        %v4336 = vpop.f32.mrf.mxu0
        %v4337 = vadd.f32 %v4154, %v4336
        %v4338 = vpop.f32.mrf.mxu0
        %v4339 = vadd.f32 %v4156, %v4338
        %v4340 = vpop.f32.mrf.mxu0
        %v4341 = vpop.f32.mrf.mxu0
        %4342 = vdwg.mxu0
        %4343 = vrot.lane.b32.xlu0 %v3079, 126
        %v4344 = vpop.permute.xlu0 %4343
        %4345 = vrot.lane.b32.xlu0 %v3080, 126
        %v4346 = vpop.permute.xlu0 %4345
        %4347 = vrot.lane.b32.xlu0 %v3082, 126
        %v4348 = vpop.permute.xlu0 %4347
        %4349 = vrot.lane.b32.xlu0 %v3083, 126
        %v4350 = vpop.permute.xlu0 %4349
        %4351 = vrot.lane.b32.xlu0 %v3085, 126
        %v4352 = vpop.permute.xlu0 %4351
        %4353 = vrot.lane.b32.xlu0 %v3086, 126
        %v4354 = vpop.permute.xlu0 %4353
        %4355 = vrot.lane.b32.xlu0 %v3088, 126
        %v4356 = vpop.permute.xlu0 %4355
        %4357 = vrot.lane.b32.xlu0 %v3089, 126
        %v4358 = vpop.permute.xlu0 %4357
        %v4361 = vpack.i.b16 %v4348, %v4344
        %v4363 = vshrl.u32 %v4344, 16
        %v4364 = vshrl.u32 %v4348, 16
        %v4365 = vpack.i.b16 %v4364, %v4363
        %v4369 = vpack.i.b16 %v4356, %v4352
        %v4371 = vshrl.u32 %v4352, 16
        %v4372 = vshrl.u32 %v4356, 16
        %v4373 = vpack.i.b16 %v4372, %v4371
        %v4377 = vpack.i.b16 %v4350, %v4346
        %v4379 = vshrl.u32 %v4346, 16
        %v4380 = vshrl.u32 %v4350, 16
        %v4381 = vpack.i.b16 %v4380, %v4379
        %v4385 = vpack.i.b16 %v4358, %v4354
        %v4387 = vshrl.u32 %v4354, 16
        %v4388 = vshrl.u32 %v4358, 16
        %v4389 = vpack.i.b16 %v4388, %v4387
        %v4391 = vcombine.high %v4361, %v3108
        %v4393 = vunpack.c.l.s4 1983009808
        %v4394 = vunpack.c.0.s8 %v4393
        %v4395 = vlaneseq
        %v4396 = vshrl.u32 %v4395, 7
        %v4397 = vsub.s32 %v4394, %v4396
        %v4398 = vrot.slane %v4361, %v4397
        %v4400 = vunpack.c.l.s4 1983009808
        %v4401 = vunpack.c.0.s8 %v4400
        %v4402 = vlaneseq
        %v4403 = vshrl.u32 %v4402, 7
        %v4404 = vsub.s32 %v4401, %v4403
        %v4405 = vrot.slane %v4391, %v4404
        %v4406 = vcombine.high %v4369, %v3108
        %v4408 = vunpack.c.l.s4 1983009808
        %v4409 = vunpack.c.0.s8 %v4408
        %v4410 = vlaneseq
        %v4411 = vshrl.u32 %v4410, 7
        %v4412 = vsub.s32 %v4409, %v4411
        %v4413 = vrot.slane %v4369, %v4412
        %v4415 = vunpack.c.l.s4 1983009808
        %v4416 = vunpack.c.0.s8 %v4415
        %v4417 = vlaneseq
        %v4418 = vshrl.u32 %v4417, 7
        %v4419 = vsub.s32 %v4416, %v4418
        %v4420 = vrot.slane %v4406, %v4419
        %v4421 = vcombine.low %v4398, %v4413
        %v4422 = vcombine.high %v4398, %v4413
        %v4424 = vunpack.c.l.s4 1934713408
        %v4425 = vunpack.c.0.s8 %v4424
        %v4426 = vlaneseq
        %v4427 = vshrl.u32 %v4426, 7
        %v4428 = vsub.s32 %v4425, %v4427
        %v4429 = vrot.slane %v4421, %v4428
        %v4431 = vunpack.c.l.s4 1934713408
        %v4432 = vunpack.c.0.s8 %v4431
        %v4433 = vlaneseq
        %v4434 = vshrl.u32 %v4433, 7
        %v4435 = vsub.s32 %v4432, %v4434
        %v4436 = vrot.slane %v4422, %v4435
        %v4437 = vcombine.low %v4405, %v4420
        %v4438 = vcombine.high %v4405, %v4420
        %v4440 = vunpack.c.l.s4 1934713408
        %v4441 = vunpack.c.0.s8 %v4440
        %v4442 = vlaneseq
        %v4443 = vshrl.u32 %v4442, 7
        %v4444 = vsub.s32 %v4441, %v4443
        %v4445 = vrot.slane %v4437, %v4444
        %v4447 = vunpack.c.l.s4 1934713408
        %v4448 = vunpack.c.0.s8 %v4447
        %v4449 = vlaneseq
        %v4450 = vshrl.u32 %v4449, 7
        %v4451 = vsub.s32 %v4448, %v4450
        %v4452 = vrot.slane %v4438, %v4451
        %v4453 = vcombine.high %v4429, 0
        %v4454 = vcombine.high %v4436, 0
        %v4455 = vcombine.high %v4445, 0
        %v4456 = vcombine.high %v4452, 0
        %v4457 = vcombine.high %v4365, %v3111
        %v4459 = vunpack.c.l.s4 1983009808
        %v4460 = vunpack.c.0.s8 %v4459
        %v4461 = vlaneseq
        %v4462 = vshrl.u32 %v4461, 7
        %v4463 = vsub.s32 %v4460, %v4462
        %v4464 = vrot.slane %v4365, %v4463
        %v4466 = vunpack.c.l.s4 1983009808
        %v4467 = vunpack.c.0.s8 %v4466
        %v4468 = vlaneseq
        %v4469 = vshrl.u32 %v4468, 7
        %v4470 = vsub.s32 %v4467, %v4469
        %v4471 = vrot.slane %v4457, %v4470
        %v4472 = vcombine.high %v4373, %v3111
        %v4474 = vunpack.c.l.s4 1983009808
        %v4475 = vunpack.c.0.s8 %v4474
        %v4476 = vlaneseq
        %v4477 = vshrl.u32 %v4476, 7
        %v4478 = vsub.s32 %v4475, %v4477
        %v4479 = vrot.slane %v4373, %v4478
        %v4481 = vunpack.c.l.s4 1983009808
        %v4482 = vunpack.c.0.s8 %v4481
        %v4483 = vlaneseq
        %v4484 = vshrl.u32 %v4483, 7
        %v4485 = vsub.s32 %v4482, %v4484
        %v4486 = vrot.slane %v4472, %v4485
        %v4487 = vcombine.low %v4464, %v4479
        %v4488 = vcombine.high %v4464, %v4479
        %v4490 = vunpack.c.l.s4 1934713408
        %v4491 = vunpack.c.0.s8 %v4490
        %v4492 = vlaneseq
        %v4493 = vshrl.u32 %v4492, 7
        %v4494 = vsub.s32 %v4491, %v4493
        %v4495 = vrot.slane %v4487, %v4494
        %v4497 = vunpack.c.l.s4 1934713408
        %v4498 = vunpack.c.0.s8 %v4497
        %v4499 = vlaneseq
        %v4500 = vshrl.u32 %v4499, 7
        %v4501 = vsub.s32 %v4498, %v4500
        %v4502 = vrot.slane %v4488, %v4501
        %v4503 = vcombine.low %v4471, %v4486
        %v4504 = vcombine.high %v4471, %v4486
        %v4506 = vunpack.c.l.s4 1934713408
        %v4507 = vunpack.c.0.s8 %v4506
        %v4508 = vlaneseq
        %v4509 = vshrl.u32 %v4508, 7
        %v4510 = vsub.s32 %v4507, %v4509
        %v4511 = vrot.slane %v4503, %v4510
        %v4513 = vunpack.c.l.s4 1934713408
        %v4514 = vunpack.c.0.s8 %v4513
        %v4515 = vlaneseq
        %v4516 = vshrl.u32 %v4515, 7
        %v4517 = vsub.s32 %v4514, %v4516
        %v4518 = vrot.slane %v4504, %v4517
        %v4519 = vcombine.high %v4495, 0
        %v4520 = vcombine.high %v4502, 0
        %v4521 = vcombine.high %v4511, 0
        %v4522 = vcombine.high %v4518, 0
        %v4523 = vcombine.high %v4377, %v3108
        %v4525 = vunpack.c.l.s4 1983009808
        %v4526 = vunpack.c.0.s8 %v4525
        %v4527 = vlaneseq
        %v4528 = vshrl.u32 %v4527, 7
        %v4529 = vsub.s32 %v4526, %v4528
        %v4530 = vrot.slane %v4377, %v4529
        %v4532 = vunpack.c.l.s4 1983009808
        %v4533 = vunpack.c.0.s8 %v4532
        %v4534 = vlaneseq
        %v4535 = vshrl.u32 %v4534, 7
        %v4536 = vsub.s32 %v4533, %v4535
        %v4537 = vrot.slane %v4523, %v4536
        %v4538 = vcombine.high %v4385, %v3108
        %v4540 = vunpack.c.l.s4 1983009808
        %v4541 = vunpack.c.0.s8 %v4540
        %v4542 = vlaneseq
        %v4543 = vshrl.u32 %v4542, 7
        %v4544 = vsub.s32 %v4541, %v4543
        %v4545 = vrot.slane %v4385, %v4544
        %v4547 = vunpack.c.l.s4 1983009808
        %v4548 = vunpack.c.0.s8 %v4547
        %v4549 = vlaneseq
        %v4550 = vshrl.u32 %v4549, 7
        %v4551 = vsub.s32 %v4548, %v4550
        %v4552 = vrot.slane %v4538, %v4551
        %v4553 = vcombine.low %v4530, %v4545
        %v4554 = vcombine.high %v4530, %v4545
        %v4556 = vunpack.c.l.s4 1934713408
        %v4557 = vunpack.c.0.s8 %v4556
        %v4558 = vlaneseq
        %v4559 = vshrl.u32 %v4558, 7
        %v4560 = vsub.s32 %v4557, %v4559
        %v4561 = vrot.slane %v4553, %v4560
        %v4563 = vunpack.c.l.s4 1934713408
        %v4564 = vunpack.c.0.s8 %v4563
        %v4565 = vlaneseq
        %v4566 = vshrl.u32 %v4565, 7
        %v4567 = vsub.s32 %v4564, %v4566
        %v4568 = vrot.slane %v4554, %v4567
        %v4569 = vcombine.low %v4537, %v4552
        %v4570 = vcombine.high %v4537, %v4552
        %v4572 = vunpack.c.l.s4 1934713408
        %v4573 = vunpack.c.0.s8 %v4572
        %v4574 = vlaneseq
        %v4575 = vshrl.u32 %v4574, 7
        %v4576 = vsub.s32 %v4573, %v4575
        %v4577 = vrot.slane %v4569, %v4576
        %v4579 = vunpack.c.l.s4 1934713408
        %v4580 = vunpack.c.0.s8 %v4579
        %v4581 = vlaneseq
        %v4582 = vshrl.u32 %v4581, 7
        %v4583 = vsub.s32 %v4580, %v4582
        %v4584 = vrot.slane %v4570, %v4583
        %v4585 = vcombine.high %v4561, 0
        %v4586 = vcombine.high %v4568, 0
        %v4587 = vcombine.high %v4577, 0
        %v4588 = vcombine.high %v4584, 0
        %v4589 = vcombine.high %v4381, %v3111
        %v4591 = vunpack.c.l.s4 1983009808
        %v4592 = vunpack.c.0.s8 %v4591
        %v4593 = vlaneseq
        %v4594 = vshrl.u32 %v4593, 7
        %v4595 = vsub.s32 %v4592, %v4594
        %v4596 = vrot.slane %v4381, %v4595
        %v4598 = vunpack.c.l.s4 1983009808
        %v4599 = vunpack.c.0.s8 %v4598
        %v4600 = vlaneseq
        %v4601 = vshrl.u32 %v4600, 7
        %v4602 = vsub.s32 %v4599, %v4601
        %v4603 = vrot.slane %v4589, %v4602
        %v4604 = vcombine.high %v4389, %v3111
        %v4606 = vunpack.c.l.s4 1983009808
        %v4607 = vunpack.c.0.s8 %v4606
        %v4608 = vlaneseq
        %v4609 = vshrl.u32 %v4608, 7
        %v4610 = vsub.s32 %v4607, %v4609
        %v4611 = vrot.slane %v4389, %v4610
        %v4613 = vunpack.c.l.s4 1983009808
        %v4614 = vunpack.c.0.s8 %v4613
        %v4615 = vlaneseq
        %v4616 = vshrl.u32 %v4615, 7
        %v4617 = vsub.s32 %v4614, %v4616
        %v4618 = vrot.slane %v4604, %v4617
        %v4619 = vcombine.low %v4596, %v4611
        %v4620 = vcombine.high %v4596, %v4611
        %v4622 = vunpack.c.l.s4 1934713408
        %v4623 = vunpack.c.0.s8 %v4622
        %v4624 = vlaneseq
        %v4625 = vshrl.u32 %v4624, 7
        %v4626 = vsub.s32 %v4623, %v4625
        %v4627 = vrot.slane %v4619, %v4626
        %v4629 = vunpack.c.l.s4 1934713408
        %v4630 = vunpack.c.0.s8 %v4629
        %v4631 = vlaneseq
        %v4632 = vshrl.u32 %v4631, 7
        %v4633 = vsub.s32 %v4630, %v4632
        %v4634 = vrot.slane %v4620, %v4633
        %v4635 = vcombine.low %v4603, %v4618
        %v4636 = vcombine.high %v4603, %v4618
        %v4638 = vunpack.c.l.s4 1934713408
        %v4639 = vunpack.c.0.s8 %v4638
        %v4640 = vlaneseq
        %v4641 = vshrl.u32 %v4640, 7
        %v4642 = vsub.s32 %v4639, %v4641
        %v4643 = vrot.slane %v4635, %v4642
        %v4645 = vunpack.c.l.s4 1934713408
        %v4646 = vunpack.c.0.s8 %v4645
        %v4647 = vlaneseq
        %v4648 = vshrl.u32 %v4647, 7
        %v4649 = vsub.s32 %v4646, %v4648
        %v4650 = vrot.slane %v4636, %v4649
        %v4651 = vcombine.high %v4627, 0
        %v4652 = vcombine.high %v4634, 0
        %v4653 = vcombine.high %v4643, 0
        %v4654 = vcombine.high %v4650, 0
        %4656 = vrot.lane.b32.xlu0 %v4495, 32
        %v4657 = vpop.permute.xlu0 %4656
        %4659 = vrot.lane.b32.xlu0 %v4453, 64
        %v4660 = vpop.permute.xlu0 %4659
        %4662 = vrot.lane.b32.xlu0 %v4519, 96
        %v4663 = vpop.permute.xlu0 %4662
        %4665 = vrot.lane.b32.xlu0 %v4502, 32
        %v4666 = vpop.permute.xlu0 %4665
        %4668 = vrot.lane.b32.xlu0 %v4454, 64
        %v4669 = vpop.permute.xlu0 %4668
        %4671 = vrot.lane.b32.xlu0 %v4520, 96
        %v4672 = vpop.permute.xlu0 %4671
        %4674 = vrot.lane.b32.xlu0 %v4511, 32
        %v4675 = vpop.permute.xlu0 %4674
        %4677 = vrot.lane.b32.xlu0 %v4455, 64
        %v4678 = vpop.permute.xlu0 %4677
        %4680 = vrot.lane.b32.xlu0 %v4521, 96
        %v4681 = vpop.permute.xlu0 %4680
        %4683 = vrot.lane.b32.xlu0 %v4518, 32
        %v4684 = vpop.permute.xlu0 %4683
        %4686 = vrot.lane.b32.xlu0 %v4456, 64
        %v4687 = vpop.permute.xlu0 %4686
        %4689 = vrot.lane.b32.xlu0 %v4522, 96
        %v4690 = vpop.permute.xlu0 %4689
        %4692 = vrot.lane.b32.xlu0 %v4627, 32
        %v4693 = vpop.permute.xlu0 %4692
        %4695 = vrot.lane.b32.xlu0 %v4585, 64
        %v4696 = vpop.permute.xlu0 %4695
        %4698 = vrot.lane.b32.xlu0 %v4651, 96
        %v4699 = vpop.permute.xlu0 %4698
        %4701 = vrot.lane.b32.xlu0 %v4634, 32
        %v4702 = vpop.permute.xlu0 %4701
        %4704 = vrot.lane.b32.xlu0 %v4586, 64
        %v4705 = vpop.permute.xlu0 %4704
        %4707 = vrot.lane.b32.xlu0 %v4652, 96
        %v4708 = vpop.permute.xlu0 %4707
        %4710 = vrot.lane.b32.xlu0 %v4643, 32
        %v4711 = vpop.permute.xlu0 %4710
        %4713 = vrot.lane.b32.xlu0 %v4587, 64
        %v4714 = vpop.permute.xlu0 %4713
        %4716 = vrot.lane.b32.xlu0 %v4653, 96
        %v4717 = vpop.permute.xlu0 %4716
        %4719 = vrot.lane.b32.xlu0 %v4650, 32
        %v4720 = vpop.permute.xlu0 %4719
        %4722 = vrot.lane.b32.xlu0 %v4588, 64
        %v4723 = vpop.permute.xlu0 %4722
        %4725 = vrot.lane.b32.xlu0 %v4654, 96
        %v4726 = vpop.permute.xlu0 %4725
        %v4729 = vsel %vm3465, %v4429, %v4657
        %v4731 = vsel %vm3469, %v4729, %v4660
        %v4733 = vsel %vm3472, %v4731, %v4663
        %v4736 = vsel %vm3465, %v4436, %v4666
        %v4738 = vsel %vm3469, %v4736, %v4669
        %v4740 = vsel %vm3472, %v4738, %v4672
        %v4743 = vsel %vm3465, %v4445, %v4675
        %v4745 = vsel %vm3469, %v4743, %v4678
        %v4747 = vsel %vm3472, %v4745, %v4681
        %v4750 = vsel %vm3465, %v4452, %v4684
        %v4752 = vsel %vm3469, %v4750, %v4687
        %v4754 = vsel %vm3472, %v4752, %v4690
        %v4757 = vsel %vm3465, %v4561, %v4693
        %v4759 = vsel %vm3469, %v4757, %v4696
        %v4761 = vsel %vm3472, %v4759, %v4699
        %v4764 = vsel %vm3465, %v4568, %v4702
        %v4766 = vsel %vm3469, %v4764, %v4705
        %v4768 = vsel %vm3472, %v4766, %v4708
        %v4771 = vsel %vm3465, %v4577, %v4711
        %v4773 = vsel %vm3469, %v4771, %v4714
        %v4775 = vsel %vm3472, %v4773, %v4717
        %v4778 = vsel %vm3465, %v4584, %v4720
        %v4780 = vsel %vm3469, %v4778, %v4723
        %v4782 = vsel %vm3472, %v4780, %v4726
        %s4783 = scalar_lea.vmem %s2, 8
        %v4784 = vld [vmem:[%s4783] sm:$0xf]
        %v4786 = vsel %vm3975, %v4784, 0
        %v4788 = vsel %vm3979, %v4733, 0
        %v4790 = vsel %vm3979, %v4740, 0
        %v4792 = vsel %vm3979, %v4747, 0
        %v4794 = vsel %vm3979, %v4754, 0
        %v4796 = vsel %vm3979, %v4761, 0
        %v4798 = vsel %vm3979, %v4768, 0
        %v4800 = vsel %vm3979, %v4775, 0
        %v4802 = vsel %vm3979, %v4782, 0
        %4804 = vmatprep.subr.bf16.mxu0 0
        %4805 = vmatpush1.bf16.msra.mxu0 0
        %4806 = vmatprep.subr.bf16.mxu0 0
        %4807 = vmatpush1.bf16.msra.mxu0 0
        %4808 = vmatprep.subr.bf16.mxu0 0
        %4809 = vmatpush1.bf16.msra.mxu0 0
        %4810 = vmatprep.subr.bf16.mxu0 0
        %4811 = vmatpush1.bf16.msra.mxu0 0
        %4812 = vmatprep.subr.bf16.mxu0 0
        %4813 = vmatpush1.bf16.msra.mxu0 0
        %4814 = vmatprep.subr.bf16.mxu0 0
        %4815 = vmatpush1.bf16.msra.mxu0 0
        %4816 = vmatprep.subr.bf16.mxu0 0
        %4817 = vmatpush1.bf16.msra.mxu0 0
        %4818 = vmatprep.subr.bf16.mxu0 %v4790
        %4819 = vmatpush1.bf16.msra.mxu0 %v4788
        %4820 = vmatprep.subr.bf16.mxu0 0
        %4821 = vmatpush2.bf16.msra.mxu0 0
        %4822 = vmatprep.subr.bf16.mxu0 0
        %4823 = vmatpush2.bf16.msra.mxu0 0
        %4824 = vmatprep.subr.bf16.mxu0 0
        %4825 = vmatpush2.bf16.msra.mxu0 0
        %4826 = vmatprep.subr.bf16.mxu0 0
        %4827 = vmatpush2.bf16.msra.mxu0 0
        %4828 = vmatprep.subr.bf16.mxu0 0
        %4829 = vmatpush2.bf16.msra.mxu0 0
        %4830 = vmatprep.subr.bf16.mxu0 0
        %4831 = vmatpush2.bf16.msra.mxu0 0
        %4832 = vmatprep.subr.bf16.mxu0 0
        %4833 = vmatpush2.bf16.msra.mxu0 0
        %4834 = vmatprep.subr.bf16.mxu0 0
        %4835 = vmatpush2.bf16.msra.mxu0 0
        %4836 = vmatprep.mubr.bf16.mxu0 0
        %4837 = vmatmul.mubr.bf16.gmra.mxu0 %v4786
        %v4838 = vpop.f32.mrf.mxu0
        %v4839 = vadd.f32 0.0, %v4838
        %v4840 = vpop.f32.mrf.mxu0
        %v4841 = vadd.f32 0.0, %v4840
        %v4842 = vpop.f32.mrf.mxu0
        %v4843 = vpop.f32.mrf.mxu0
        %4844 = vdwg.mxu0
        %4845 = vmatprep.subr.bf16.mxu0 0
        %4846 = vmatpush1.bf16.msra.mxu0 0
        %4847 = vmatprep.subr.bf16.mxu0 0
        %4848 = vmatpush1.bf16.msra.mxu0 0
        %4849 = vmatprep.subr.bf16.mxu0 0
        %4850 = vmatpush1.bf16.msra.mxu0 0
        %4851 = vmatprep.subr.bf16.mxu0 0
        %4852 = vmatpush1.bf16.msra.mxu0 0
        %4853 = vmatprep.subr.bf16.mxu0 0
        %4854 = vmatpush1.bf16.msra.mxu0 0
        %4855 = vmatprep.subr.bf16.mxu0 0
        %4856 = vmatpush1.bf16.msra.mxu0 0
        %4857 = vmatprep.subr.bf16.mxu0 0
        %4858 = vmatpush1.bf16.msra.mxu0 0
        %4859 = vmatprep.subr.bf16.mxu0 %v4794
        %4860 = vmatpush1.bf16.msra.mxu0 %v4792
        %4861 = vmatprep.subr.bf16.mxu0 0
        %4862 = vmatpush2.bf16.msra.mxu0 0
        %4863 = vmatprep.subr.bf16.mxu0 0
        %4864 = vmatpush2.bf16.msra.mxu0 0
        %4865 = vmatprep.subr.bf16.mxu0 0
        %4866 = vmatpush2.bf16.msra.mxu0 0
        %4867 = vmatprep.subr.bf16.mxu0 0
        %4868 = vmatpush2.bf16.msra.mxu0 0
        %4869 = vmatprep.subr.bf16.mxu0 0
        %4870 = vmatpush2.bf16.msra.mxu0 0
        %4871 = vmatprep.subr.bf16.mxu0 0
        %4872 = vmatpush2.bf16.msra.mxu0 0
        %4873 = vmatprep.subr.bf16.mxu0 0
        %4874 = vmatpush2.bf16.msra.mxu0 0
        %4875 = vmatprep.subr.bf16.mxu0 0
        %4876 = vmatpush2.bf16.msra.mxu0 0
        %4877 = vmatprep.mubr.bf16.mxu0 0
        %4878 = vmatmul.mubr.bf16.gmra.mxu0 %v4786
        %v4879 = vpop.f32.mrf.mxu0
        %v4880 = vadd.f32 0.0, %v4879
        %v4881 = vpop.f32.mrf.mxu0
        %v4882 = vadd.f32 0.0, %v4881
        %v4883 = vpop.f32.mrf.mxu0
        %v4884 = vpop.f32.mrf.mxu0
        %4885 = vdwg.mxu0
        %4886 = vmatprep.subr.bf16.mxu0 0
        %4887 = vmatpush1.bf16.msra.mxu0 0
        %4888 = vmatprep.subr.bf16.mxu0 0
        %4889 = vmatpush1.bf16.msra.mxu0 0
        %4890 = vmatprep.subr.bf16.mxu0 0
        %4891 = vmatpush1.bf16.msra.mxu0 0
        %4892 = vmatprep.subr.bf16.mxu0 0
        %4893 = vmatpush1.bf16.msra.mxu0 0
        %4894 = vmatprep.subr.bf16.mxu0 0
        %4895 = vmatpush1.bf16.msra.mxu0 0
        %4896 = vmatprep.subr.bf16.mxu0 0
        %4897 = vmatpush1.bf16.msra.mxu0 0
        %4898 = vmatprep.subr.bf16.mxu0 0
        %4899 = vmatpush1.bf16.msra.mxu0 0
        %4900 = vmatprep.subr.bf16.mxu0 %v4798
        %4901 = vmatpush1.bf16.msra.mxu0 %v4796
        %4902 = vmatprep.subr.bf16.mxu0 0
        %4903 = vmatpush2.bf16.msra.mxu0 0
        %4904 = vmatprep.subr.bf16.mxu0 0
        %4905 = vmatpush2.bf16.msra.mxu0 0
        %4906 = vmatprep.subr.bf16.mxu0 0
        %4907 = vmatpush2.bf16.msra.mxu0 0
        %4908 = vmatprep.subr.bf16.mxu0 0
        %4909 = vmatpush2.bf16.msra.mxu0 0
        %4910 = vmatprep.subr.bf16.mxu0 0
        %4911 = vmatpush2.bf16.msra.mxu0 0
        %4912 = vmatprep.subr.bf16.mxu0 0
        %4913 = vmatpush2.bf16.msra.mxu0 0
        %4914 = vmatprep.subr.bf16.mxu0 0
        %4915 = vmatpush2.bf16.msra.mxu0 0
        %4916 = vmatprep.subr.bf16.mxu0 0
        %4917 = vmatpush2.bf16.msra.mxu0 0
        %4918 = vmatprep.mubr.bf16.mxu0 0
        %4919 = vmatmul.mubr.bf16.gmra.mxu0 %v4786
        %v4920 = vpop.f32.mrf.mxu0
        %v4921 = vadd.f32 0.0, %v4920
        %v4922 = vpop.f32.mrf.mxu0
        %v4923 = vadd.f32 0.0, %v4922
        %v4924 = vpop.f32.mrf.mxu0
        %v4925 = vpop.f32.mrf.mxu0
        %4926 = vdwg.mxu0
        %4927 = vmatprep.subr.bf16.mxu0 0
        %4928 = vmatpush1.bf16.msra.mxu0 0
        %4929 = vmatprep.subr.bf16.mxu0 0
        %4930 = vmatpush1.bf16.msra.mxu0 0
        %4931 = vmatprep.subr.bf16.mxu0 0
        %4932 = vmatpush1.bf16.msra.mxu0 0
        %4933 = vmatprep.subr.bf16.mxu0 0
        %4934 = vmatpush1.bf16.msra.mxu0 0
        %4935 = vmatprep.subr.bf16.mxu0 0
        %4936 = vmatpush1.bf16.msra.mxu0 0
        %4937 = vmatprep.subr.bf16.mxu0 0
        %4938 = vmatpush1.bf16.msra.mxu0 0
        %4939 = vmatprep.subr.bf16.mxu0 0
        %4940 = vmatpush1.bf16.msra.mxu0 0
        %4941 = vmatprep.subr.bf16.mxu0 %v4802
        %4942 = vmatpush1.bf16.msra.mxu0 %v4800
        %4943 = vmatprep.subr.bf16.mxu0 0
        %4944 = vmatpush2.bf16.msra.mxu0 0
        %4945 = vmatprep.subr.bf16.mxu0 0
        %4946 = vmatpush2.bf16.msra.mxu0 0
        %4947 = vmatprep.subr.bf16.mxu0 0
        %4948 = vmatpush2.bf16.msra.mxu0 0
        %4949 = vmatprep.subr.bf16.mxu0 0
        %4950 = vmatpush2.bf16.msra.mxu0 0
        %4951 = vmatprep.subr.bf16.mxu0 0
        %4952 = vmatpush2.bf16.msra.mxu0 0
        %4953 = vmatprep.subr.bf16.mxu0 0
        %4954 = vmatpush2.bf16.msra.mxu0 0
        %4955 = vmatprep.subr.bf16.mxu0 0
        %4956 = vmatpush2.bf16.msra.mxu0 0
        %4957 = vmatprep.subr.bf16.mxu0 0
        %4958 = vmatpush2.bf16.msra.mxu0 0
        %4959 = vmatprep.mubr.bf16.mxu0 0
        %4960 = vmatmul.mubr.bf16.gmra.mxu0 %v4786
        %v4961 = vpop.f32.mrf.mxu0
        %v4962 = vadd.f32 0.0, %v4961
        %v4963 = vpop.f32.mrf.mxu0
        %v4964 = vadd.f32 0.0, %v4963
        %v4965 = vpop.f32.mrf.mxu0
        %v4966 = vpop.f32.mrf.mxu0
        %4967 = vdwg.mxu0
        %v4968 = vadd.f32 %v4214, %v4839
        %v4969 = vadd.f32 %v4216, %v4841
        %v4970 = vadd.f32 %v4255, %v4880
        %v4971 = vadd.f32 %v4257, %v4882
        %v4972 = vadd.f32 %v4296, %v4921
        %v4973 = vadd.f32 %v4298, %v4923
        %v4974 = vadd.f32 %v4337, %v4962
        %v4975 = vadd.f32 %v4339, %v4964
        %vm4976 = vsmask.f32 7424
        %v4978 = vshll.u32 %v3079, 16
        %v4980 = vrot.slane %v4978, 1
        %v4981 = vor.u32 %v3095, %v4980
        %v4982 = vshll.u32 %v3080, 16
        %v4984 = vrot.slane %v4982, 1
        %v4985 = vsel %vm4976, %v4981, %v4984
        %v4987 = vor.u32 %v3117, %v4984
        %v4989 = vshll.u32 %v3081, 16
        %v4991 = vrot.slane %v4989, 1
        %v4992 = vsel %vm4976, %v4987, %v4991
        %v4994 = vshll.u32 %v3082, 16
        %v4996 = vrot.slane %v4994, 1
        %v4997 = vor.u32 %v3096, %v4996
        %v4998 = vshll.u32 %v3083, 16
        %v5000 = vrot.slane %v4998, 1
        %v5001 = vsel %vm4976, %v4997, %v5000
        %v5003 = vor.u32 %v3118, %v5000
        %v5005 = vshll.u32 %v3084, 16
        %v5007 = vrot.slane %v5005, 1
        %v5008 = vsel %vm4976, %v5003, %v5007
        %v5010 = vshll.u32 %v3085, 16
        %v5012 = vrot.slane %v5010, 1
        %v5013 = vor.u32 %v3103, %v5012
        %v5014 = vshll.u32 %v3086, 16
        %v5016 = vrot.slane %v5014, 1
        %v5017 = vsel %vm4976, %v5013, %v5016
        %v5019 = vor.u32 %v3125, %v5016
        %v5021 = vshll.u32 %v3087, 16
        %v5023 = vrot.slane %v5021, 1
        %v5024 = vsel %vm4976, %v5019, %v5023
        %v5026 = vshll.u32 %v3088, 16
        %v5028 = vrot.slane %v5026, 1
        %v5029 = vor.u32 %v3104, %v5028
        %v5030 = vshll.u32 %v3089, 16
        %v5032 = vrot.slane %v5030, 1
        %v5033 = vsel %vm4976, %v5029, %v5032
        %v5035 = vor.u32 %v3126, %v5032
        %v5037 = vshll.u32 %v3090, 16
        %v5039 = vrot.slane %v5037, 1
        %v5040 = vsel %vm4976, %v5035, %v5039
        %v5043 = vpack.i.b16 %v5001, %v4985
        %v5045 = vshrl.u32 %v4985, 16
        %v5046 = vshrl.u32 %v5001, 16
        %v5047 = vpack.i.b16 %v5046, %v5045
        %v5051 = vpack.i.b16 %v5033, %v5017
        %v5053 = vshrl.u32 %v5017, 16
        %v5054 = vshrl.u32 %v5033, 16
        %v5055 = vpack.i.b16 %v5054, %v5053
        %v5059 = vpack.i.b16 %v5008, %v4992
        %v5061 = vshrl.u32 %v4992, 16
        %v5062 = vshrl.u32 %v5008, 16
        %v5063 = vpack.i.b16 %v5062, %v5061
        %v5067 = vpack.i.b16 %v5040, %v5024
        %v5069 = vshrl.u32 %v5024, 16
        %v5070 = vshrl.u32 %v5040, 16
        %v5071 = vpack.i.b16 %v5070, %v5069
        %v5073 = vcombine.high %v5043, %v3108
        %v5075 = vunpack.c.l.s4 1983009808
        %v5076 = vunpack.c.0.s8 %v5075
        %v5077 = vlaneseq
        %v5078 = vshrl.u32 %v5077, 7
        %v5079 = vsub.s32 %v5076, %v5078
        %v5080 = vrot.slane %v5043, %v5079
        %v5082 = vunpack.c.l.s4 1983009808
        %v5083 = vunpack.c.0.s8 %v5082
        %v5084 = vlaneseq
        %v5085 = vshrl.u32 %v5084, 7
        %v5086 = vsub.s32 %v5083, %v5085
        %v5087 = vrot.slane %v5073, %v5086
        %v5088 = vcombine.high %v5051, %v3108
        %v5090 = vunpack.c.l.s4 1983009808
        %v5091 = vunpack.c.0.s8 %v5090
        %v5092 = vlaneseq
        %v5093 = vshrl.u32 %v5092, 7
        %v5094 = vsub.s32 %v5091, %v5093
        %v5095 = vrot.slane %v5051, %v5094
        %v5097 = vunpack.c.l.s4 1983009808
        %v5098 = vunpack.c.0.s8 %v5097
        %v5099 = vlaneseq
        %v5100 = vshrl.u32 %v5099, 7
        %v5101 = vsub.s32 %v5098, %v5100
        %v5102 = vrot.slane %v5088, %v5101
        %v5103 = vcombine.low %v5080, %v5095
        %v5104 = vcombine.high %v5080, %v5095
        %v5106 = vunpack.c.l.s4 1934713408
        %v5107 = vunpack.c.0.s8 %v5106
        %v5108 = vlaneseq
        %v5109 = vshrl.u32 %v5108, 7
        %v5110 = vsub.s32 %v5107, %v5109
        %v5111 = vrot.slane %v5103, %v5110
        %v5113 = vunpack.c.l.s4 1934713408
        %v5114 = vunpack.c.0.s8 %v5113
        %v5115 = vlaneseq
        %v5116 = vshrl.u32 %v5115, 7
        %v5117 = vsub.s32 %v5114, %v5116
        %v5118 = vrot.slane %v5104, %v5117
        %v5119 = vcombine.low %v5087, %v5102
        %v5120 = vcombine.high %v5087, %v5102
        %v5122 = vunpack.c.l.s4 1934713408
        %v5123 = vunpack.c.0.s8 %v5122
        %v5124 = vlaneseq
        %v5125 = vshrl.u32 %v5124, 7
        %v5126 = vsub.s32 %v5123, %v5125
        %v5127 = vrot.slane %v5119, %v5126
        %v5129 = vunpack.c.l.s4 1934713408
        %v5130 = vunpack.c.0.s8 %v5129
        %v5131 = vlaneseq
        %v5132 = vshrl.u32 %v5131, 7
        %v5133 = vsub.s32 %v5130, %v5132
        %v5134 = vrot.slane %v5120, %v5133
        %v5135 = vcombine.high %v5111, 0
        %v5136 = vcombine.high %v5118, 0
        %v5137 = vcombine.high %v5127, 0
        %v5138 = vcombine.high %v5134, 0
        %v5139 = vcombine.high %v5047, %v3111
        %v5141 = vunpack.c.l.s4 1983009808
        %v5142 = vunpack.c.0.s8 %v5141
        %v5143 = vlaneseq
        %v5144 = vshrl.u32 %v5143, 7
        %v5145 = vsub.s32 %v5142, %v5144
        %v5146 = vrot.slane %v5047, %v5145
        %v5148 = vunpack.c.l.s4 1983009808
        %v5149 = vunpack.c.0.s8 %v5148
        %v5150 = vlaneseq
        %v5151 = vshrl.u32 %v5150, 7
        %v5152 = vsub.s32 %v5149, %v5151
        %v5153 = vrot.slane %v5139, %v5152
        %v5154 = vcombine.high %v5055, %v3111
        %v5156 = vunpack.c.l.s4 1983009808
        %v5157 = vunpack.c.0.s8 %v5156
        %v5158 = vlaneseq
        %v5159 = vshrl.u32 %v5158, 7
        %v5160 = vsub.s32 %v5157, %v5159
        %v5161 = vrot.slane %v5055, %v5160
        %v5163 = vunpack.c.l.s4 1983009808
        %v5164 = vunpack.c.0.s8 %v5163
        %v5165 = vlaneseq
        %v5166 = vshrl.u32 %v5165, 7
        %v5167 = vsub.s32 %v5164, %v5166
        %v5168 = vrot.slane %v5154, %v5167
        %v5169 = vcombine.low %v5146, %v5161
        %v5170 = vcombine.high %v5146, %v5161
        %v5172 = vunpack.c.l.s4 1934713408
        %v5173 = vunpack.c.0.s8 %v5172
        %v5174 = vlaneseq
        %v5175 = vshrl.u32 %v5174, 7
        %v5176 = vsub.s32 %v5173, %v5175
        %v5177 = vrot.slane %v5169, %v5176
        %v5179 = vunpack.c.l.s4 1934713408
        %v5180 = vunpack.c.0.s8 %v5179
        %v5181 = vlaneseq
        %v5182 = vshrl.u32 %v5181, 7
        %v5183 = vsub.s32 %v5180, %v5182
        %v5184 = vrot.slane %v5170, %v5183
        %v5185 = vcombine.low %v5153, %v5168
        %v5186 = vcombine.high %v5153, %v5168
        %v5188 = vunpack.c.l.s4 1934713408
        %v5189 = vunpack.c.0.s8 %v5188
        %v5190 = vlaneseq
        %v5191 = vshrl.u32 %v5190, 7
        %v5192 = vsub.s32 %v5189, %v5191
        %v5193 = vrot.slane %v5185, %v5192
        %v5195 = vunpack.c.l.s4 1934713408
        %v5196 = vunpack.c.0.s8 %v5195
        %v5197 = vlaneseq
        %v5198 = vshrl.u32 %v5197, 7
        %v5199 = vsub.s32 %v5196, %v5198
        %v5200 = vrot.slane %v5186, %v5199
        %v5201 = vcombine.high %v5177, 0
        %v5202 = vcombine.high %v5184, 0
        %v5203 = vcombine.high %v5193, 0
        %v5204 = vcombine.high %v5200, 0
        %v5205 = vcombine.high %v5059, %v3108
        %v5207 = vunpack.c.l.s4 1983009808
        %v5208 = vunpack.c.0.s8 %v5207
        %v5209 = vlaneseq
        %v5210 = vshrl.u32 %v5209, 7
        %v5211 = vsub.s32 %v5208, %v5210
        %v5212 = vrot.slane %v5059, %v5211
        %v5214 = vunpack.c.l.s4 1983009808
        %v5215 = vunpack.c.0.s8 %v5214
        %v5216 = vlaneseq
        %v5217 = vshrl.u32 %v5216, 7
        %v5218 = vsub.s32 %v5215, %v5217
        %v5219 = vrot.slane %v5205, %v5218
        %v5220 = vcombine.high %v5067, %v3108
        %v5222 = vunpack.c.l.s4 1983009808
        %v5223 = vunpack.c.0.s8 %v5222
        %v5224 = vlaneseq
        %v5225 = vshrl.u32 %v5224, 7
        %v5226 = vsub.s32 %v5223, %v5225
        %v5227 = vrot.slane %v5067, %v5226
        %v5229 = vunpack.c.l.s4 1983009808
        %v5230 = vunpack.c.0.s8 %v5229
        %v5231 = vlaneseq
        %v5232 = vshrl.u32 %v5231, 7
        %v5233 = vsub.s32 %v5230, %v5232
        %v5234 = vrot.slane %v5220, %v5233
        %v5235 = vcombine.low %v5212, %v5227
        %v5236 = vcombine.high %v5212, %v5227
        %v5238 = vunpack.c.l.s4 1934713408
        %v5239 = vunpack.c.0.s8 %v5238
        %v5240 = vlaneseq
        %v5241 = vshrl.u32 %v5240, 7
        %v5242 = vsub.s32 %v5239, %v5241
        %v5243 = vrot.slane %v5235, %v5242
        %v5245 = vunpack.c.l.s4 1934713408
        %v5246 = vunpack.c.0.s8 %v5245
        %v5247 = vlaneseq
        %v5248 = vshrl.u32 %v5247, 7
        %v5249 = vsub.s32 %v5246, %v5248
        %v5250 = vrot.slane %v5236, %v5249
        %v5251 = vcombine.low %v5219, %v5234
        %v5252 = vcombine.high %v5219, %v5234
        %v5254 = vunpack.c.l.s4 1934713408
        %v5255 = vunpack.c.0.s8 %v5254
        %v5256 = vlaneseq
        %v5257 = vshrl.u32 %v5256, 7
        %v5258 = vsub.s32 %v5255, %v5257
        %v5259 = vrot.slane %v5251, %v5258
        %v5261 = vunpack.c.l.s4 1934713408
        %v5262 = vunpack.c.0.s8 %v5261
        %v5263 = vlaneseq
        %v5264 = vshrl.u32 %v5263, 7
        %v5265 = vsub.s32 %v5262, %v5264
        %v5266 = vrot.slane %v5252, %v5265
        %v5267 = vcombine.high %v5243, 0
        %v5268 = vcombine.high %v5250, 0
        %v5269 = vcombine.high %v5259, 0
        %v5270 = vcombine.high %v5266, 0
        %v5271 = vcombine.high %v5063, %v3111
        %v5273 = vunpack.c.l.s4 1983009808
        %v5274 = vunpack.c.0.s8 %v5273
        %v5275 = vlaneseq
        %v5276 = vshrl.u32 %v5275, 7
        %v5277 = vsub.s32 %v5274, %v5276
        %v5278 = vrot.slane %v5063, %v5277
        %v5280 = vunpack.c.l.s4 1983009808
        %v5281 = vunpack.c.0.s8 %v5280
        %v5282 = vlaneseq
        %v5283 = vshrl.u32 %v5282, 7
        %v5284 = vsub.s32 %v5281, %v5283
        %v5285 = vrot.slane %v5271, %v5284
        %v5286 = vcombine.high %v5071, %v3111
        %v5288 = vunpack.c.l.s4 1983009808
        %v5289 = vunpack.c.0.s8 %v5288
        %v5290 = vlaneseq
        %v5291 = vshrl.u32 %v5290, 7
        %v5292 = vsub.s32 %v5289, %v5291
        %v5293 = vrot.slane %v5071, %v5292
        %v5295 = vunpack.c.l.s4 1983009808
        %v5296 = vunpack.c.0.s8 %v5295
        %v5297 = vlaneseq
        %v5298 = vshrl.u32 %v5297, 7
        %v5299 = vsub.s32 %v5296, %v5298
        %v5300 = vrot.slane %v5286, %v5299
        %v5301 = vcombine.low %v5278, %v5293
        %v5302 = vcombine.high %v5278, %v5293
        %v5304 = vunpack.c.l.s4 1934713408
        %v5305 = vunpack.c.0.s8 %v5304
        %v5306 = vlaneseq
        %v5307 = vshrl.u32 %v5306, 7
        %v5308 = vsub.s32 %v5305, %v5307
        %v5309 = vrot.slane %v5301, %v5308
        %v5311 = vunpack.c.l.s4 1934713408
        %v5312 = vunpack.c.0.s8 %v5311
        %v5313 = vlaneseq
        %v5314 = vshrl.u32 %v5313, 7
        %v5315 = vsub.s32 %v5312, %v5314
        %v5316 = vrot.slane %v5302, %v5315
        %v5317 = vcombine.low %v5285, %v5300
        %v5318 = vcombine.high %v5285, %v5300
        %v5320 = vunpack.c.l.s4 1934713408
        %v5321 = vunpack.c.0.s8 %v5320
        %v5322 = vlaneseq
        %v5323 = vshrl.u32 %v5322, 7
        %v5324 = vsub.s32 %v5321, %v5323
        %v5325 = vrot.slane %v5317, %v5324
        %v5327 = vunpack.c.l.s4 1934713408
        %v5328 = vunpack.c.0.s8 %v5327
        %v5329 = vlaneseq
        %v5330 = vshrl.u32 %v5329, 7
        %v5331 = vsub.s32 %v5328, %v5330
        %v5332 = vrot.slane %v5318, %v5331
        %v5333 = vcombine.high %v5309, 0
        %v5334 = vcombine.high %v5316, 0
        %v5335 = vcombine.high %v5325, 0
        %v5336 = vcombine.high %v5332, 0
        %5338 = vrot.lane.b32.xlu0 %v5177, 32
        %v5339 = vpop.permute.xlu0 %5338
        %5341 = vrot.lane.b32.xlu0 %v5135, 64
        %v5342 = vpop.permute.xlu0 %5341
        %5344 = vrot.lane.b32.xlu0 %v5201, 96
        %v5345 = vpop.permute.xlu0 %5344
        %5347 = vrot.lane.b32.xlu0 %v5184, 32
        %v5348 = vpop.permute.xlu0 %5347
        %5350 = vrot.lane.b32.xlu0 %v5136, 64
        %v5351 = vpop.permute.xlu0 %5350
        %5353 = vrot.lane.b32.xlu0 %v5202, 96
        %v5354 = vpop.permute.xlu0 %5353
        %5356 = vrot.lane.b32.xlu0 %v5193, 32
        %v5357 = vpop.permute.xlu0 %5356
        %5359 = vrot.lane.b32.xlu0 %v5137, 64
        %v5360 = vpop.permute.xlu0 %5359
        %5362 = vrot.lane.b32.xlu0 %v5203, 96
        %v5363 = vpop.permute.xlu0 %5362
        %5365 = vrot.lane.b32.xlu0 %v5200, 32
        %v5366 = vpop.permute.xlu0 %5365
        %5368 = vrot.lane.b32.xlu0 %v5138, 64
        %v5369 = vpop.permute.xlu0 %5368
        %5371 = vrot.lane.b32.xlu0 %v5204, 96
        %v5372 = vpop.permute.xlu0 %5371
        %5374 = vrot.lane.b32.xlu0 %v5309, 32
        %v5375 = vpop.permute.xlu0 %5374
        %5377 = vrot.lane.b32.xlu0 %v5267, 64
        %v5378 = vpop.permute.xlu0 %5377
        %5380 = vrot.lane.b32.xlu0 %v5333, 96
        %v5381 = vpop.permute.xlu0 %5380
        %5383 = vrot.lane.b32.xlu0 %v5316, 32
        %v5384 = vpop.permute.xlu0 %5383
        %5386 = vrot.lane.b32.xlu0 %v5268, 64
        %v5387 = vpop.permute.xlu0 %5386
        %5389 = vrot.lane.b32.xlu0 %v5334, 96
        %v5390 = vpop.permute.xlu0 %5389
        %5392 = vrot.lane.b32.xlu0 %v5325, 32
        %v5393 = vpop.permute.xlu0 %5392
        %5395 = vrot.lane.b32.xlu0 %v5269, 64
        %v5396 = vpop.permute.xlu0 %5395
        %5398 = vrot.lane.b32.xlu0 %v5335, 96
        %v5399 = vpop.permute.xlu0 %5398
        %5401 = vrot.lane.b32.xlu0 %v5332, 32
        %v5402 = vpop.permute.xlu0 %5401
        %5404 = vrot.lane.b32.xlu0 %v5270, 64
        %v5405 = vpop.permute.xlu0 %5404
        %5407 = vrot.lane.b32.xlu0 %v5336, 96
        %v5408 = vpop.permute.xlu0 %5407
        %v5411 = vsel %vm3465, %v5111, %v5339
        %v5413 = vsel %vm3469, %v5411, %v5342
        %v5415 = vsel %vm3472, %v5413, %v5345
        %v5418 = vsel %vm3465, %v5118, %v5348
        %v5420 = vsel %vm3469, %v5418, %v5351
        %v5422 = vsel %vm3472, %v5420, %v5354
        %v5425 = vsel %vm3465, %v5127, %v5357
        %v5427 = vsel %vm3469, %v5425, %v5360
        %v5429 = vsel %vm3472, %v5427, %v5363
        %v5432 = vsel %vm3465, %v5134, %v5366
        %v5434 = vsel %vm3469, %v5432, %v5369
        %v5436 = vsel %vm3472, %v5434, %v5372
        %v5439 = vsel %vm3465, %v5243, %v5375
        %v5441 = vsel %vm3469, %v5439, %v5378
        %v5443 = vsel %vm3472, %v5441, %v5381
        %v5446 = vsel %vm3465, %v5250, %v5384
        %v5448 = vsel %vm3469, %v5446, %v5387
        %v5450 = vsel %vm3472, %v5448, %v5390
        %v5453 = vsel %vm3465, %v5259, %v5393
        %v5455 = vsel %vm3469, %v5453, %v5396
        %v5457 = vsel %vm3472, %v5455, %v5399
        %v5460 = vsel %vm3465, %v5266, %v5402
        %v5462 = vsel %vm3469, %v5460, %v5405
        %v5464 = vsel %vm3472, %v5462, %v5408
        %s5465 = scalar_lea.vmem %s2, 12
        %v5466 = vld [vmem:[%s5465] sm:$0xf]
        %v5468 = vsel %vm3975, %v5466, 0
        %v5470 = vsel %vm3979, %v5415, 0
        %v5472 = vsel %vm3979, %v5422, 0
        %v5474 = vsel %vm3979, %v5429, 0
        %v5476 = vsel %vm3979, %v5436, 0
        %v5478 = vsel %vm3979, %v5443, 0
        %v5480 = vsel %vm3979, %v5450, 0
        %v5482 = vsel %vm3979, %v5457, 0
        %v5484 = vsel %vm3979, %v5464, 0
        %5486 = vmatprep.subr.bf16.mxu0 0
        %5487 = vmatpush1.bf16.msra.mxu0 0
        %5488 = vmatprep.subr.bf16.mxu0 0
        %5489 = vmatpush1.bf16.msra.mxu0 0
        %5490 = vmatprep.subr.bf16.mxu0 0
        %5491 = vmatpush1.bf16.msra.mxu0 0
        %5492 = vmatprep.subr.bf16.mxu0 0
        %5493 = vmatpush1.bf16.msra.mxu0 0
        %5494 = vmatprep.subr.bf16.mxu0 0
        %5495 = vmatpush1.bf16.msra.mxu0 0
        %5496 = vmatprep.subr.bf16.mxu0 0
        %5497 = vmatpush1.bf16.msra.mxu0 0
        %5498 = vmatprep.subr.bf16.mxu0 0
        %5499 = vmatpush1.bf16.msra.mxu0 0
        %5500 = vmatprep.subr.bf16.mxu0 %v5472
        %5501 = vmatpush1.bf16.msra.mxu0 %v5470
        %5502 = vmatprep.subr.bf16.mxu0 0
        %5503 = vmatpush2.bf16.msra.mxu0 0
        %5504 = vmatprep.subr.bf16.mxu0 0
        %5505 = vmatpush2.bf16.msra.mxu0 0
        %5506 = vmatprep.subr.bf16.mxu0 0
        %5507 = vmatpush2.bf16.msra.mxu0 0
        %5508 = vmatprep.subr.bf16.mxu0 0
        %5509 = vmatpush2.bf16.msra.mxu0 0
        %5510 = vmatprep.subr.bf16.mxu0 0
        %5511 = vmatpush2.bf16.msra.mxu0 0
        %5512 = vmatprep.subr.bf16.mxu0 0
        %5513 = vmatpush2.bf16.msra.mxu0 0
        %5514 = vmatprep.subr.bf16.mxu0 0
        %5515 = vmatpush2.bf16.msra.mxu0 0
        %5516 = vmatprep.subr.bf16.mxu0 0
        %5517 = vmatpush2.bf16.msra.mxu0 0
        %5518 = vmatprep.mubr.bf16.mxu0 0
        %5519 = vmatmul.mubr.bf16.gmra.mxu0 %v5468
        %v5520 = vpop.f32.mrf.mxu0
        %v5521 = vadd.f32 0.0, %v5520
        %v5522 = vpop.f32.mrf.mxu0
        %v5523 = vadd.f32 0.0, %v5522
        %v5524 = vpop.f32.mrf.mxu0
        %v5525 = vpop.f32.mrf.mxu0
        %5526 = vdwg.mxu0
        %5527 = vmatprep.subr.bf16.mxu0 0
        %5528 = vmatpush1.bf16.msra.mxu0 0
        %5529 = vmatprep.subr.bf16.mxu0 0
        %5530 = vmatpush1.bf16.msra.mxu0 0
        %5531 = vmatprep.subr.bf16.mxu0 0
        %5532 = vmatpush1.bf16.msra.mxu0 0
        %5533 = vmatprep.subr.bf16.mxu0 0
        %5534 = vmatpush1.bf16.msra.mxu0 0
        %5535 = vmatprep.subr.bf16.mxu0 0
        %5536 = vmatpush1.bf16.msra.mxu0 0
        %5537 = vmatprep.subr.bf16.mxu0 0
        %5538 = vmatpush1.bf16.msra.mxu0 0
        %5539 = vmatprep.subr.bf16.mxu0 0
        %5540 = vmatpush1.bf16.msra.mxu0 0
        %5541 = vmatprep.subr.bf16.mxu0 %v5476
        %5542 = vmatpush1.bf16.msra.mxu0 %v5474
        %5543 = vmatprep.subr.bf16.mxu0 0
        %5544 = vmatpush2.bf16.msra.mxu0 0
        %5545 = vmatprep.subr.bf16.mxu0 0
        %5546 = vmatpush2.bf16.msra.mxu0 0
        %5547 = vmatprep.subr.bf16.mxu0 0
        %5548 = vmatpush2.bf16.msra.mxu0 0
        %5549 = vmatprep.subr.bf16.mxu0 0
        %5550 = vmatpush2.bf16.msra.mxu0 0
        %5551 = vmatprep.subr.bf16.mxu0 0
        %5552 = vmatpush2.bf16.msra.mxu0 0
        %5553 = vmatprep.subr.bf16.mxu0 0
        %5554 = vmatpush2.bf16.msra.mxu0 0
        %5555 = vmatprep.subr.bf16.mxu0 0
        %5556 = vmatpush2.bf16.msra.mxu0 0
        %5557 = vmatprep.subr.bf16.mxu0 0
        %5558 = vmatpush2.bf16.msra.mxu0 0
        %5559 = vmatprep.mubr.bf16.mxu0 0
        %5560 = vmatmul.mubr.bf16.gmra.mxu0 %v5468
        %v5561 = vpop.f32.mrf.mxu0
        %v5562 = vadd.f32 0.0, %v5561
        %v5563 = vpop.f32.mrf.mxu0
        %v5564 = vadd.f32 0.0, %v5563
        %v5565 = vpop.f32.mrf.mxu0
        %v5566 = vpop.f32.mrf.mxu0
        %5567 = vdwg.mxu0
        %5568 = vmatprep.subr.bf16.mxu0 0
        %5569 = vmatpush1.bf16.msra.mxu0 0
        %5570 = vmatprep.subr.bf16.mxu0 0
        %5571 = vmatpush1.bf16.msra.mxu0 0
        %5572 = vmatprep.subr.bf16.mxu0 0
        %5573 = vmatpush1.bf16.msra.mxu0 0
        %5574 = vmatprep.subr.bf16.mxu0 0
        %5575 = vmatpush1.bf16.msra.mxu0 0
        %5576 = vmatprep.subr.bf16.mxu0 0
        %5577 = vmatpush1.bf16.msra.mxu0 0
        %5578 = vmatprep.subr.bf16.mxu0 0
        %5579 = vmatpush1.bf16.msra.mxu0 0
        %5580 = vmatprep.subr.bf16.mxu0 0
        %5581 = vmatpush1.bf16.msra.mxu0 0
        %5582 = vmatprep.subr.bf16.mxu0 %v5480
        %5583 = vmatpush1.bf16.msra.mxu0 %v5478
        %5584 = vmatprep.subr.bf16.mxu0 0
        %5585 = vmatpush2.bf16.msra.mxu0 0
        %5586 = vmatprep.subr.bf16.mxu0 0
        %5587 = vmatpush2.bf16.msra.mxu0 0
        %5588 = vmatprep.subr.bf16.mxu0 0
        %5589 = vmatpush2.bf16.msra.mxu0 0
        %5590 = vmatprep.subr.bf16.mxu0 0
        %5591 = vmatpush2.bf16.msra.mxu0 0
        %5592 = vmatprep.subr.bf16.mxu0 0
        %5593 = vmatpush2.bf16.msra.mxu0 0
        %5594 = vmatprep.subr.bf16.mxu0 0
        %5595 = vmatpush2.bf16.msra.mxu0 0
        %5596 = vmatprep.subr.bf16.mxu0 0
        %5597 = vmatpush2.bf16.msra.mxu0 0
        %5598 = vmatprep.subr.bf16.mxu0 0
        %5599 = vmatpush2.bf16.msra.mxu0 0
        %5600 = vmatprep.mubr.bf16.mxu0 0
        %5601 = vmatmul.mubr.bf16.gmra.mxu0 %v5468
        %v5602 = vpop.f32.mrf.mxu0
        %v5603 = vadd.f32 0.0, %v5602
        %v5604 = vpop.f32.mrf.mxu0
        %v5605 = vadd.f32 0.0, %v5604
        %v5606 = vpop.f32.mrf.mxu0
        %v5607 = vpop.f32.mrf.mxu0
        %5608 = vdwg.mxu0
        %5609 = vmatprep.subr.bf16.mxu0 0
        %5610 = vmatpush1.bf16.msra.mxu0 0
        %5611 = vmatprep.subr.bf16.mxu0 0
        %5612 = vmatpush1.bf16.msra.mxu0 0
        %5613 = vmatprep.subr.bf16.mxu0 0
        %5614 = vmatpush1.bf16.msra.mxu0 0
        %5615 = vmatprep.subr.bf16.mxu0 0
        %5616 = vmatpush1.bf16.msra.mxu0 0
        %5617 = vmatprep.subr.bf16.mxu0 0
        %5618 = vmatpush1.bf16.msra.mxu0 0
        %5619 = vmatprep.subr.bf16.mxu0 0
        %5620 = vmatpush1.bf16.msra.mxu0 0
        %5621 = vmatprep.subr.bf16.mxu0 0
        %5622 = vmatpush1.bf16.msra.mxu0 0
        %5623 = vmatprep.subr.bf16.mxu0 %v5484
        %5624 = vmatpush1.bf16.msra.mxu0 %v5482
        %5625 = vmatprep.subr.bf16.mxu0 0
        %5626 = vmatpush2.bf16.msra.mxu0 0
        %5627 = vmatprep.subr.bf16.mxu0 0
        %5628 = vmatpush2.bf16.msra.mxu0 0
        %5629 = vmatprep.subr.bf16.mxu0 0
        %5630 = vmatpush2.bf16.msra.mxu0 0
        %5631 = vmatprep.subr.bf16.mxu0 0
        %5632 = vmatpush2.bf16.msra.mxu0 0
        %5633 = vmatprep.subr.bf16.mxu0 0
        %5634 = vmatpush2.bf16.msra.mxu0 0
        %5635 = vmatprep.subr.bf16.mxu0 0
        %5636 = vmatpush2.bf16.msra.mxu0 0
        %5637 = vmatprep.subr.bf16.mxu0 0
        %5638 = vmatpush2.bf16.msra.mxu0 0
        %5639 = vmatprep.subr.bf16.mxu0 0
        %5640 = vmatpush2.bf16.msra.mxu0 0
        %5641 = vmatprep.mubr.bf16.mxu0 0
        %5642 = vmatmul.mubr.bf16.gmra.mxu0 %v5468
        %v5643 = vpop.f32.mrf.mxu0
        %v5644 = vadd.f32 0.0, %v5643
        %v5645 = vpop.f32.mrf.mxu0
        %v5646 = vadd.f32 0.0, %v5645
        %v5647 = vpop.f32.mrf.mxu0
        %v5648 = vpop.f32.mrf.mxu0
        %5649 = vdwg.mxu0
        %v5650 = vadd.f32 %v4968, %v5521
        %v5651 = vadd.f32 %v4969, %v5523
        %v5652 = vadd.f32 %v4970, %v5562
        %v5653 = vadd.f32 %v4971, %v5564
        %v5654 = vadd.f32 %v4972, %v5603
        %v5655 = vadd.f32 %v4973, %v5605
        %v5656 = vadd.f32 %v4974, %v5644
        %v5657 = vadd.f32 %v4975, %v5646
        %5658 = vrot.lane.b32.xlu0 %v4985, 127
        %v5659 = vpop.permute.xlu0 %5658
        %5660 = vrot.lane.b32.xlu0 %v4992, 127
        %v5661 = vpop.permute.xlu0 %5660
        %5662 = vrot.lane.b32.xlu0 %v5001, 127
        %v5663 = vpop.permute.xlu0 %5662
        %5664 = vrot.lane.b32.xlu0 %v5008, 127
        %v5665 = vpop.permute.xlu0 %5664
        %5666 = vrot.lane.b32.xlu0 %v5017, 127
        %v5667 = vpop.permute.xlu0 %5666
        %5668 = vrot.lane.b32.xlu0 %v5024, 127
        %v5669 = vpop.permute.xlu0 %5668
        %5670 = vrot.lane.b32.xlu0 %v5033, 127
        %v5671 = vpop.permute.xlu0 %5670
        %5672 = vrot.lane.b32.xlu0 %v5040, 127
        %v5673 = vpop.permute.xlu0 %5672
        %v5676 = vpack.i.b16 %v5663, %v5659
        %v5678 = vshrl.u32 %v5659, 16
        %v5679 = vshrl.u32 %v5663, 16
        %v5680 = vpack.i.b16 %v5679, %v5678
        %v5684 = vpack.i.b16 %v5671, %v5667
        %v5686 = vshrl.u32 %v5667, 16
        %v5687 = vshrl.u32 %v5671, 16
        %v5688 = vpack.i.b16 %v5687, %v5686
        %v5692 = vpack.i.b16 %v5665, %v5661
        %v5694 = vshrl.u32 %v5661, 16
        %v5695 = vshrl.u32 %v5665, 16
        %v5696 = vpack.i.b16 %v5695, %v5694
        %v5700 = vpack.i.b16 %v5673, %v5669
        %v5702 = vshrl.u32 %v5669, 16
        %v5703 = vshrl.u32 %v5673, 16
        %v5704 = vpack.i.b16 %v5703, %v5702
        %v5706 = vcombine.high %v5676, %v3108
        %v5708 = vunpack.c.l.s4 1983009808
        %v5709 = vunpack.c.0.s8 %v5708
        %v5710 = vlaneseq
        %v5711 = vshrl.u32 %v5710, 7
        %v5712 = vsub.s32 %v5709, %v5711
        %v5713 = vrot.slane %v5676, %v5712
        %v5715 = vunpack.c.l.s4 1983009808
        %v5716 = vunpack.c.0.s8 %v5715
        %v5717 = vlaneseq
        %v5718 = vshrl.u32 %v5717, 7
        %v5719 = vsub.s32 %v5716, %v5718
        %v5720 = vrot.slane %v5706, %v5719
        %v5721 = vcombine.high %v5684, %v3108
        %v5723 = vunpack.c.l.s4 1983009808
        %v5724 = vunpack.c.0.s8 %v5723
        %v5725 = vlaneseq
        %v5726 = vshrl.u32 %v5725, 7
        %v5727 = vsub.s32 %v5724, %v5726
        %v5728 = vrot.slane %v5684, %v5727
        %v5730 = vunpack.c.l.s4 1983009808
        %v5731 = vunpack.c.0.s8 %v5730
        %v5732 = vlaneseq
        %v5733 = vshrl.u32 %v5732, 7
        %v5734 = vsub.s32 %v5731, %v5733
        %v5735 = vrot.slane %v5721, %v5734
        %v5736 = vcombine.low %v5713, %v5728
        %v5737 = vcombine.high %v5713, %v5728
        %v5739 = vunpack.c.l.s4 1934713408
        %v5740 = vunpack.c.0.s8 %v5739
        %v5741 = vlaneseq
        %v5742 = vshrl.u32 %v5741, 7
        %v5743 = vsub.s32 %v5740, %v5742
        %v5744 = vrot.slane %v5736, %v5743
        %v5746 = vunpack.c.l.s4 1934713408
        %v5747 = vunpack.c.0.s8 %v5746
        %v5748 = vlaneseq
        %v5749 = vshrl.u32 %v5748, 7
        %v5750 = vsub.s32 %v5747, %v5749
        %v5751 = vrot.slane %v5737, %v5750
        %v5752 = vcombine.low %v5720, %v5735
        %v5753 = vcombine.high %v5720, %v5735
        %v5755 = vunpack.c.l.s4 1934713408
        %v5756 = vunpack.c.0.s8 %v5755
        %v5757 = vlaneseq
        %v5758 = vshrl.u32 %v5757, 7
        %v5759 = vsub.s32 %v5756, %v5758
        %v5760 = vrot.slane %v5752, %v5759
        %v5762 = vunpack.c.l.s4 1934713408
        %v5763 = vunpack.c.0.s8 %v5762
        %v5764 = vlaneseq
        %v5765 = vshrl.u32 %v5764, 7
        %v5766 = vsub.s32 %v5763, %v5765
        %v5767 = vrot.slane %v5753, %v5766
        %v5768 = vcombine.high %v5744, 0
        %v5769 = vcombine.high %v5751, 0
        %v5770 = vcombine.high %v5760, 0
        %v5771 = vcombine.high %v5767, 0
        %v5772 = vcombine.high %v5680, %v3111
        %v5774 = vunpack.c.l.s4 1983009808
        %v5775 = vunpack.c.0.s8 %v5774
        %v5776 = vlaneseq
        %v5777 = vshrl.u32 %v5776, 7
        %v5778 = vsub.s32 %v5775, %v5777
        %v5779 = vrot.slane %v5680, %v5778
        %v5781 = vunpack.c.l.s4 1983009808
        %v5782 = vunpack.c.0.s8 %v5781
        %v5783 = vlaneseq
        %v5784 = vshrl.u32 %v5783, 7
        %v5785 = vsub.s32 %v5782, %v5784
        %v5786 = vrot.slane %v5772, %v5785
        %v5787 = vcombine.high %v5688, %v3111
        %v5789 = vunpack.c.l.s4 1983009808
        %v5790 = vunpack.c.0.s8 %v5789
        %v5791 = vlaneseq
        %v5792 = vshrl.u32 %v5791, 7
        %v5793 = vsub.s32 %v5790, %v5792
        %v5794 = vrot.slane %v5688, %v5793
        %v5796 = vunpack.c.l.s4 1983009808
        %v5797 = vunpack.c.0.s8 %v5796
        %v5798 = vlaneseq
        %v5799 = vshrl.u32 %v5798, 7
        %v5800 = vsub.s32 %v5797, %v5799
        %v5801 = vrot.slane %v5787, %v5800
        %v5802 = vcombine.low %v5779, %v5794
        %v5803 = vcombine.high %v5779, %v5794
        %v5805 = vunpack.c.l.s4 1934713408
        %v5806 = vunpack.c.0.s8 %v5805
        %v5807 = vlaneseq
        %v5808 = vshrl.u32 %v5807, 7
        %v5809 = vsub.s32 %v5806, %v5808
        %v5810 = vrot.slane %v5802, %v5809
        %v5812 = vunpack.c.l.s4 1934713408
        %v5813 = vunpack.c.0.s8 %v5812
        %v5814 = vlaneseq
        %v5815 = vshrl.u32 %v5814, 7
        %v5816 = vsub.s32 %v5813, %v5815
        %v5817 = vrot.slane %v5803, %v5816
        %v5818 = vcombine.low %v5786, %v5801
        %v5819 = vcombine.high %v5786, %v5801
        %v5821 = vunpack.c.l.s4 1934713408
        %v5822 = vunpack.c.0.s8 %v5821
        %v5823 = vlaneseq
        %v5824 = vshrl.u32 %v5823, 7
        %v5825 = vsub.s32 %v5822, %v5824
        %v5826 = vrot.slane %v5818, %v5825
        %v5828 = vunpack.c.l.s4 1934713408
        %v5829 = vunpack.c.0.s8 %v5828
        %v5830 = vlaneseq
        %v5831 = vshrl.u32 %v5830, 7
        %v5832 = vsub.s32 %v5829, %v5831
        %v5833 = vrot.slane %v5819, %v5832
        %v5834 = vcombine.high %v5810, 0
        %v5835 = vcombine.high %v5817, 0
        %v5836 = vcombine.high %v5826, 0
        %v5837 = vcombine.high %v5833, 0
        %v5838 = vcombine.high %v5692, %v3108
        %v5840 = vunpack.c.l.s4 1983009808
        %v5841 = vunpack.c.0.s8 %v5840
        %v5842 = vlaneseq
        %v5843 = vshrl.u32 %v5842, 7
        %v5844 = vsub.s32 %v5841, %v5843
        %v5845 = vrot.slane %v5692, %v5844
        %v5847 = vunpack.c.l.s4 1983009808
        %v5848 = vunpack.c.0.s8 %v5847
        %v5849 = vlaneseq
        %v5850 = vshrl.u32 %v5849, 7
        %v5851 = vsub.s32 %v5848, %v5850
        %v5852 = vrot.slane %v5838, %v5851
        %v5853 = vcombine.high %v5700, %v3108
        %v5855 = vunpack.c.l.s4 1983009808
        %v5856 = vunpack.c.0.s8 %v5855
        %v5857 = vlaneseq
        %v5858 = vshrl.u32 %v5857, 7
        %v5859 = vsub.s32 %v5856, %v5858
        %v5860 = vrot.slane %v5700, %v5859
        %v5862 = vunpack.c.l.s4 1983009808
        %v5863 = vunpack.c.0.s8 %v5862
        %v5864 = vlaneseq
        %v5865 = vshrl.u32 %v5864, 7
        %v5866 = vsub.s32 %v5863, %v5865
        %v5867 = vrot.slane %v5853, %v5866
        %v5868 = vcombine.low %v5845, %v5860
        %v5869 = vcombine.high %v5845, %v5860
        %v5871 = vunpack.c.l.s4 1934713408
        %v5872 = vunpack.c.0.s8 %v5871
        %v5873 = vlaneseq
        %v5874 = vshrl.u32 %v5873, 7
        %v5875 = vsub.s32 %v5872, %v5874
        %v5876 = vrot.slane %v5868, %v5875
        %v5878 = vunpack.c.l.s4 1934713408
        %v5879 = vunpack.c.0.s8 %v5878
        %v5880 = vlaneseq
        %v5881 = vshrl.u32 %v5880, 7
        %v5882 = vsub.s32 %v5879, %v5881
        %v5883 = vrot.slane %v5869, %v5882
        %v5884 = vcombine.low %v5852, %v5867
        %v5885 = vcombine.high %v5852, %v5867
        %v5887 = vunpack.c.l.s4 1934713408
        %v5888 = vunpack.c.0.s8 %v5887
        %v5889 = vlaneseq
        %v5890 = vshrl.u32 %v5889, 7
        %v5891 = vsub.s32 %v5888, %v5890
        %v5892 = vrot.slane %v5884, %v5891
        %v5894 = vunpack.c.l.s4 1934713408
        %v5895 = vunpack.c.0.s8 %v5894
        %v5896 = vlaneseq
        %v5897 = vshrl.u32 %v5896, 7
        %v5898 = vsub.s32 %v5895, %v5897
        %v5899 = vrot.slane %v5885, %v5898
        %v5900 = vcombine.high %v5876, 0
        %v5901 = vcombine.high %v5883, 0
        %v5902 = vcombine.high %v5892, 0
        %v5903 = vcombine.high %v5899, 0
        %v5904 = vcombine.high %v5696, %v3111
        %v5906 = vunpack.c.l.s4 1983009808
        %v5907 = vunpack.c.0.s8 %v5906
        %v5908 = vlaneseq
        %v5909 = vshrl.u32 %v5908, 7
        %v5910 = vsub.s32 %v5907, %v5909
        %v5911 = vrot.slane %v5696, %v5910
        %v5913 = vunpack.c.l.s4 1983009808
        %v5914 = vunpack.c.0.s8 %v5913
        %v5915 = vlaneseq
        %v5916 = vshrl.u32 %v5915, 7
        %v5917 = vsub.s32 %v5914, %v5916
        %v5918 = vrot.slane %v5904, %v5917
        %v5919 = vcombine.high %v5704, %v3111
        %v5921 = vunpack.c.l.s4 1983009808
        %v5922 = vunpack.c.0.s8 %v5921
        %v5923 = vlaneseq
        %v5924 = vshrl.u32 %v5923, 7
        %v5925 = vsub.s32 %v5922, %v5924
        %v5926 = vrot.slane %v5704, %v5925
        %v5928 = vunpack.c.l.s4 1983009808
        %v5929 = vunpack.c.0.s8 %v5928
        %v5930 = vlaneseq
        %v5931 = vshrl.u32 %v5930, 7
        %v5932 = vsub.s32 %v5929, %v5931
        %v5933 = vrot.slane %v5919, %v5932
        %v5934 = vcombine.low %v5911, %v5926
        %v5935 = vcombine.high %v5911, %v5926
        %v5937 = vunpack.c.l.s4 1934713408
        %v5938 = vunpack.c.0.s8 %v5937
        %v5939 = vlaneseq
        %v5940 = vshrl.u32 %v5939, 7
        %v5941 = vsub.s32 %v5938, %v5940
        %v5942 = vrot.slane %v5934, %v5941
        %v5944 = vunpack.c.l.s4 1934713408
        %v5945 = vunpack.c.0.s8 %v5944
        %v5946 = vlaneseq
        %v5947 = vshrl.u32 %v5946, 7
        %v5948 = vsub.s32 %v5945, %v5947
        %v5949 = vrot.slane %v5935, %v5948
        %v5950 = vcombine.low %v5918, %v5933
        %v5951 = vcombine.high %v5918, %v5933
        %v5953 = vunpack.c.l.s4 1934713408
        %v5954 = vunpack.c.0.s8 %v5953
        %v5955 = vlaneseq
        %v5956 = vshrl.u32 %v5955, 7
        %v5957 = vsub.s32 %v5954, %v5956
        %v5958 = vrot.slane %v5950, %v5957
        %v5960 = vunpack.c.l.s4 1934713408
        %v5961 = vunpack.c.0.s8 %v5960
        %v5962 = vlaneseq
        %v5963 = vshrl.u32 %v5962, 7
        %v5964 = vsub.s32 %v5961, %v5963
        %v5965 = vrot.slane %v5951, %v5964
        %v5966 = vcombine.high %v5942, 0
        %v5967 = vcombine.high %v5949, 0
        %v5968 = vcombine.high %v5958, 0
        %v5969 = vcombine.high %v5965, 0
        %5971 = vrot.lane.b32.xlu0 %v5810, 32
        %v5972 = vpop.permute.xlu0 %5971
        %5974 = vrot.lane.b32.xlu0 %v5768, 64
        %v5975 = vpop.permute.xlu0 %5974
        %5977 = vrot.lane.b32.xlu0 %v5834, 96
        %v5978 = vpop.permute.xlu0 %5977
        %5980 = vrot.lane.b32.xlu0 %v5817, 32
        %v5981 = vpop.permute.xlu0 %5980
        %5983 = vrot.lane.b32.xlu0 %v5769, 64
        %v5984 = vpop.permute.xlu0 %5983
        %5986 = vrot.lane.b32.xlu0 %v5835, 96
        %v5987 = vpop.permute.xlu0 %5986
        %5989 = vrot.lane.b32.xlu0 %v5826, 32
        %v5990 = vpop.permute.xlu0 %5989
        %5992 = vrot.lane.b32.xlu0 %v5770, 64
        %v5993 = vpop.permute.xlu0 %5992
        %5995 = vrot.lane.b32.xlu0 %v5836, 96
        %v5996 = vpop.permute.xlu0 %5995
        %5998 = vrot.lane.b32.xlu0 %v5833, 32
        %v5999 = vpop.permute.xlu0 %5998
        %6001 = vrot.lane.b32.xlu0 %v5771, 64
        %v6002 = vpop.permute.xlu0 %6001
        %6004 = vrot.lane.b32.xlu0 %v5837, 96
        %v6005 = vpop.permute.xlu0 %6004
        %6007 = vrot.lane.b32.xlu0 %v5942, 32
        %v6008 = vpop.permute.xlu0 %6007
        %6010 = vrot.lane.b32.xlu0 %v5900, 64
        %v6011 = vpop.permute.xlu0 %6010
        %6013 = vrot.lane.b32.xlu0 %v5966, 96
        %v6014 = vpop.permute.xlu0 %6013
        %6016 = vrot.lane.b32.xlu0 %v5949, 32
        %v6017 = vpop.permute.xlu0 %6016
        %6019 = vrot.lane.b32.xlu0 %v5901, 64
        %v6020 = vpop.permute.xlu0 %6019
        %6022 = vrot.lane.b32.xlu0 %v5967, 96
        %v6023 = vpop.permute.xlu0 %6022
        %6025 = vrot.lane.b32.xlu0 %v5958, 32
        %v6026 = vpop.permute.xlu0 %6025
        %6028 = vrot.lane.b32.xlu0 %v5902, 64
        %v6029 = vpop.permute.xlu0 %6028
        %6031 = vrot.lane.b32.xlu0 %v5968, 96
        %v6032 = vpop.permute.xlu0 %6031
        %6034 = vrot.lane.b32.xlu0 %v5965, 32
        %v6035 = vpop.permute.xlu0 %6034
        %6037 = vrot.lane.b32.xlu0 %v5903, 64
        %v6038 = vpop.permute.xlu0 %6037
        %6040 = vrot.lane.b32.xlu0 %v5969, 96
        %v6041 = vpop.permute.xlu0 %6040
        %v6044 = vsel %vm3465, %v5744, %v5972
        %v6046 = vsel %vm3469, %v6044, %v5975
        %v6048 = vsel %vm3472, %v6046, %v5978
        %v6051 = vsel %vm3465, %v5751, %v5981
        %v6053 = vsel %vm3469, %v6051, %v5984
        %v6055 = vsel %vm3472, %v6053, %v5987
        %v6058 = vsel %vm3465, %v5760, %v5990
        %v6060 = vsel %vm3469, %v6058, %v5993
        %v6062 = vsel %vm3472, %v6060, %v5996
        %v6065 = vsel %vm3465, %v5767, %v5999
        %v6067 = vsel %vm3469, %v6065, %v6002
        %v6069 = vsel %vm3472, %v6067, %v6005
        %v6072 = vsel %vm3465, %v5876, %v6008
        %v6074 = vsel %vm3469, %v6072, %v6011
        %v6076 = vsel %vm3472, %v6074, %v6014
        %v6079 = vsel %vm3465, %v5883, %v6017
        %v6081 = vsel %vm3469, %v6079, %v6020
        %v6083 = vsel %vm3472, %v6081, %v6023
        %v6086 = vsel %vm3465, %v5892, %v6026
        %v6088 = vsel %vm3469, %v6086, %v6029
        %v6090 = vsel %vm3472, %v6088, %v6032
        %v6093 = vsel %vm3465, %v5899, %v6035
        %v6095 = vsel %vm3469, %v6093, %v6038
        %v6097 = vsel %vm3472, %v6095, %v6041
        %s6098 = scalar_lea.vmem %s2, 16
        %v6099 = vld [vmem:[%s6098] sm:$0xf]
        %v6101 = vsel %vm3975, %v6099, 0
        %v6103 = vsel %vm3979, %v6048, 0
        %v6105 = vsel %vm3979, %v6055, 0
        %v6107 = vsel %vm3979, %v6062, 0
        %v6109 = vsel %vm3979, %v6069, 0
        %v6111 = vsel %vm3979, %v6076, 0
        %v6113 = vsel %vm3979, %v6083, 0
        %v6115 = vsel %vm3979, %v6090, 0
        %v6117 = vsel %vm3979, %v6097, 0
        %6119 = vmatprep.subr.bf16.mxu0 0
        %6120 = vmatpush1.bf16.msra.mxu0 0
        %6121 = vmatprep.subr.bf16.mxu0 0
        %6122 = vmatpush1.bf16.msra.mxu0 0
        %6123 = vmatprep.subr.bf16.mxu0 0
        %6124 = vmatpush1.bf16.msra.mxu0 0
        %6125 = vmatprep.subr.bf16.mxu0 0
        %6126 = vmatpush1.bf16.msra.mxu0 0
        %6127 = vmatprep.subr.bf16.mxu0 0
        %6128 = vmatpush1.bf16.msra.mxu0 0
        %6129 = vmatprep.subr.bf16.mxu0 0
        %6130 = vmatpush1.bf16.msra.mxu0 0
        %6131 = vmatprep.subr.bf16.mxu0 0
        %6132 = vmatpush1.bf16.msra.mxu0 0
        %6133 = vmatprep.subr.bf16.mxu0 %v6105
        %6134 = vmatpush1.bf16.msra.mxu0 %v6103
        %6135 = vmatprep.subr.bf16.mxu0 0
        %6136 = vmatpush2.bf16.msra.mxu0 0
        %6137 = vmatprep.subr.bf16.mxu0 0
        %6138 = vmatpush2.bf16.msra.mxu0 0
        %6139 = vmatprep.subr.bf16.mxu0 0
        %6140 = vmatpush2.bf16.msra.mxu0 0
        %6141 = vmatprep.subr.bf16.mxu0 0
        %6142 = vmatpush2.bf16.msra.mxu0 0
        %6143 = vmatprep.subr.bf16.mxu0 0
        %6144 = vmatpush2.bf16.msra.mxu0 0
        %6145 = vmatprep.subr.bf16.mxu0 0
        %6146 = vmatpush2.bf16.msra.mxu0 0
        %6147 = vmatprep.subr.bf16.mxu0 0
        %6148 = vmatpush2.bf16.msra.mxu0 0
        %6149 = vmatprep.subr.bf16.mxu0 0
        %6150 = vmatpush2.bf16.msra.mxu0 0
        %6151 = vmatprep.mubr.bf16.mxu0 0
        %6152 = vmatmul.mubr.bf16.gmra.mxu0 %v6101
        %v6153 = vpop.f32.mrf.mxu0
        %v6154 = vadd.f32 0.0, %v6153
        %v6155 = vpop.f32.mrf.mxu0
        %v6156 = vadd.f32 0.0, %v6155
        %v6157 = vpop.f32.mrf.mxu0
        %v6158 = vpop.f32.mrf.mxu0
        %6159 = vdwg.mxu0
        %6160 = vmatprep.subr.bf16.mxu0 0
        %6161 = vmatpush1.bf16.msra.mxu0 0
        %6162 = vmatprep.subr.bf16.mxu0 0
        %6163 = vmatpush1.bf16.msra.mxu0 0
        %6164 = vmatprep.subr.bf16.mxu0 0
        %6165 = vmatpush1.bf16.msra.mxu0 0
        %6166 = vmatprep.subr.bf16.mxu0 0
        %6167 = vmatpush1.bf16.msra.mxu0 0
        %6168 = vmatprep.subr.bf16.mxu0 0
        %6169 = vmatpush1.bf16.msra.mxu0 0
        %6170 = vmatprep.subr.bf16.mxu0 0
        %6171 = vmatpush1.bf16.msra.mxu0 0
        %6172 = vmatprep.subr.bf16.mxu0 0
        %6173 = vmatpush1.bf16.msra.mxu0 0
        %6174 = vmatprep.subr.bf16.mxu0 %v6109
        %6175 = vmatpush1.bf16.msra.mxu0 %v6107
        %6176 = vmatprep.subr.bf16.mxu0 0
        %6177 = vmatpush2.bf16.msra.mxu0 0
        %6178 = vmatprep.subr.bf16.mxu0 0
        %6179 = vmatpush2.bf16.msra.mxu0 0
        %6180 = vmatprep.subr.bf16.mxu0 0
        %6181 = vmatpush2.bf16.msra.mxu0 0
        %6182 = vmatprep.subr.bf16.mxu0 0
        %6183 = vmatpush2.bf16.msra.mxu0 0
        %6184 = vmatprep.subr.bf16.mxu0 0
        %6185 = vmatpush2.bf16.msra.mxu0 0
        %6186 = vmatprep.subr.bf16.mxu0 0
        %6187 = vmatpush2.bf16.msra.mxu0 0
        %6188 = vmatprep.subr.bf16.mxu0 0
        %6189 = vmatpush2.bf16.msra.mxu0 0
        %6190 = vmatprep.subr.bf16.mxu0 0
        %6191 = vmatpush2.bf16.msra.mxu0 0
        %6192 = vmatprep.mubr.bf16.mxu0 0
        %6193 = vmatmul.mubr.bf16.gmra.mxu0 %v6101
        %v6194 = vpop.f32.mrf.mxu0
        %v6195 = vadd.f32 0.0, %v6194
        %v6196 = vpop.f32.mrf.mxu0
        %v6197 = vadd.f32 0.0, %v6196
        %v6198 = vpop.f32.mrf.mxu0
        %v6199 = vpop.f32.mrf.mxu0
        %6200 = vdwg.mxu0
        %6201 = vmatprep.subr.bf16.mxu0 0
        %6202 = vmatpush1.bf16.msra.mxu0 0
        %6203 = vmatprep.subr.bf16.mxu0 0
        %6204 = vmatpush1.bf16.msra.mxu0 0
        %6205 = vmatprep.subr.bf16.mxu0 0
        %6206 = vmatpush1.bf16.msra.mxu0 0
        %6207 = vmatprep.subr.bf16.mxu0 0
        %6208 = vmatpush1.bf16.msra.mxu0 0
        %6209 = vmatprep.subr.bf16.mxu0 0
        %6210 = vmatpush1.bf16.msra.mxu0 0
        %6211 = vmatprep.subr.bf16.mxu0 0
        %6212 = vmatpush1.bf16.msra.mxu0 0
        %6213 = vmatprep.subr.bf16.mxu0 0
        %6214 = vmatpush1.bf16.msra.mxu0 0
        %6215 = vmatprep.subr.bf16.mxu0 %v6113
        %6216 = vmatpush1.bf16.msra.mxu0 %v6111
        %6217 = vmatprep.subr.bf16.mxu0 0
        %6218 = vmatpush2.bf16.msra.mxu0 0
        %6219 = vmatprep.subr.bf16.mxu0 0
        %6220 = vmatpush2.bf16.msra.mxu0 0
        %6221 = vmatprep.subr.bf16.mxu0 0
        %6222 = vmatpush2.bf16.msra.mxu0 0
        %6223 = vmatprep.subr.bf16.mxu0 0
        %6224 = vmatpush2.bf16.msra.mxu0 0
        %6225 = vmatprep.subr.bf16.mxu0 0
        %6226 = vmatpush2.bf16.msra.mxu0 0
        %6227 = vmatprep.subr.bf16.mxu0 0
        %6228 = vmatpush2.bf16.msra.mxu0 0
        %6229 = vmatprep.subr.bf16.mxu0 0
        %6230 = vmatpush2.bf16.msra.mxu0 0
        %6231 = vmatprep.subr.bf16.mxu0 0
        %6232 = vmatpush2.bf16.msra.mxu0 0
        %6233 = vmatprep.mubr.bf16.mxu0 0
        %6234 = vmatmul.mubr.bf16.gmra.mxu0 %v6101
        %v6235 = vpop.f32.mrf.mxu0
        %v6236 = vadd.f32 0.0, %v6235
        %v6237 = vpop.f32.mrf.mxu0
        %v6238 = vadd.f32 0.0, %v6237
        %v6239 = vpop.f32.mrf.mxu0
        %v6240 = vpop.f32.mrf.mxu0
        %6241 = vdwg.mxu0
        %6242 = vmatprep.subr.bf16.mxu0 0
        %6243 = vmatpush1.bf16.msra.mxu0 0
        %6244 = vmatprep.subr.bf16.mxu0 0
        %6245 = vmatpush1.bf16.msra.mxu0 0
        %6246 = vmatprep.subr.bf16.mxu0 0
        %6247 = vmatpush1.bf16.msra.mxu0 0
        %6248 = vmatprep.subr.bf16.mxu0 0
        %6249 = vmatpush1.bf16.msra.mxu0 0
        %6250 = vmatprep.subr.bf16.mxu0 0
        %6251 = vmatpush1.bf16.msra.mxu0 0
        %6252 = vmatprep.subr.bf16.mxu0 0
        %6253 = vmatpush1.bf16.msra.mxu0 0
        %6254 = vmatprep.subr.bf16.mxu0 0
        %6255 = vmatpush1.bf16.msra.mxu0 0
        %6256 = vmatprep.subr.bf16.mxu0 %v6117
        %6257 = vmatpush1.bf16.msra.mxu0 %v6115
        %6258 = vmatprep.subr.bf16.mxu0 0
        %6259 = vmatpush2.bf16.msra.mxu0 0
        %6260 = vmatprep.subr.bf16.mxu0 0
        %6261 = vmatpush2.bf16.msra.mxu0 0
        %6262 = vmatprep.subr.bf16.mxu0 0
        %6263 = vmatpush2.bf16.msra.mxu0 0
        %6264 = vmatprep.subr.bf16.mxu0 0
        %6265 = vmatpush2.bf16.msra.mxu0 0
        %6266 = vmatprep.subr.bf16.mxu0 0
        %6267 = vmatpush2.bf16.msra.mxu0 0
        %6268 = vmatprep.subr.bf16.mxu0 0
        %6269 = vmatpush2.bf16.msra.mxu0 0
        %6270 = vmatprep.subr.bf16.mxu0 0
        %6271 = vmatpush2.bf16.msra.mxu0 0
        %6272 = vmatprep.subr.bf16.mxu0 0
        %6273 = vmatpush2.bf16.msra.mxu0 0
        %6274 = vmatprep.mubr.bf16.mxu0 0
        %6275 = vmatmul.mubr.bf16.gmra.mxu0 %v6101
        %v6276 = vpop.f32.mrf.mxu0
        %v6277 = vadd.f32 0.0, %v6276
        %v6278 = vpop.f32.mrf.mxu0
        %v6279 = vadd.f32 0.0, %v6278
        %v6280 = vpop.f32.mrf.mxu0
        %v6281 = vpop.f32.mrf.mxu0
        %6282 = vdwg.mxu0
        %v6283 = vadd.f32 %v5650, %v6154
        %v6284 = vadd.f32 %v5651, %v6156
        %v6285 = vadd.f32 %v5652, %v6195
        %v6286 = vadd.f32 %v5653, %v6197
        %v6287 = vadd.f32 %v5654, %v6236
        %v6288 = vadd.f32 %v5655, %v6238
        %v6289 = vadd.f32 %v5656, %v6277
        %v6290 = vadd.f32 %v5657, %v6279
        %6291 = vrot.lane.b32.xlu0 %v4985, 126
        %v6292 = vpop.permute.xlu0 %6291
        %6293 = vrot.lane.b32.xlu0 %v4992, 126
        %v6294 = vpop.permute.xlu0 %6293
        %6295 = vrot.lane.b32.xlu0 %v5001, 126
        %v6296 = vpop.permute.xlu0 %6295
        %6297 = vrot.lane.b32.xlu0 %v5008, 126
        %v6298 = vpop.permute.xlu0 %6297
        %6299 = vrot.lane.b32.xlu0 %v5017, 126
        %v6300 = vpop.permute.xlu0 %6299
        %6301 = vrot.lane.b32.xlu0 %v5024, 126
        %v6302 = vpop.permute.xlu0 %6301
        %6303 = vrot.lane.b32.xlu0 %v5033, 126
        %v6304 = vpop.permute.xlu0 %6303
        %6305 = vrot.lane.b32.xlu0 %v5040, 126
        %v6306 = vpop.permute.xlu0 %6305
        %v6309 = vpack.i.b16 %v6296, %v6292
        %v6311 = vshrl.u32 %v6292, 16
        %v6312 = vshrl.u32 %v6296, 16
        %v6313 = vpack.i.b16 %v6312, %v6311
        %v6317 = vpack.i.b16 %v6304, %v6300
        %v6319 = vshrl.u32 %v6300, 16
        %v6320 = vshrl.u32 %v6304, 16
        %v6321 = vpack.i.b16 %v6320, %v6319
        %v6325 = vpack.i.b16 %v6298, %v6294
        %v6327 = vshrl.u32 %v6294, 16
        %v6328 = vshrl.u32 %v6298, 16
        %v6329 = vpack.i.b16 %v6328, %v6327
        %v6333 = vpack.i.b16 %v6306, %v6302
        %v6335 = vshrl.u32 %v6302, 16
        %v6336 = vshrl.u32 %v6306, 16
        %v6337 = vpack.i.b16 %v6336, %v6335
        %v6339 = vcombine.high %v6309, %v3108
        %v6341 = vunpack.c.l.s4 1983009808
        %v6342 = vunpack.c.0.s8 %v6341
        %v6343 = vlaneseq
        %v6344 = vshrl.u32 %v6343, 7
        %v6345 = vsub.s32 %v6342, %v6344
        %v6346 = vrot.slane %v6309, %v6345
        %v6348 = vunpack.c.l.s4 1983009808
        %v6349 = vunpack.c.0.s8 %v6348
        %v6350 = vlaneseq
        %v6351 = vshrl.u32 %v6350, 7
        %v6352 = vsub.s32 %v6349, %v6351
        %v6353 = vrot.slane %v6339, %v6352
        %v6354 = vcombine.high %v6317, %v3108
        %v6356 = vunpack.c.l.s4 1983009808
        %v6357 = vunpack.c.0.s8 %v6356
        %v6358 = vlaneseq
        %v6359 = vshrl.u32 %v6358, 7
        %v6360 = vsub.s32 %v6357, %v6359
        %v6361 = vrot.slane %v6317, %v6360
        %v6363 = vunpack.c.l.s4 1983009808
        %v6364 = vunpack.c.0.s8 %v6363
        %v6365 = vlaneseq
        %v6366 = vshrl.u32 %v6365, 7
        %v6367 = vsub.s32 %v6364, %v6366
        %v6368 = vrot.slane %v6354, %v6367
        %v6369 = vcombine.low %v6346, %v6361
        %v6370 = vcombine.high %v6346, %v6361
        %v6372 = vunpack.c.l.s4 1934713408
        %v6373 = vunpack.c.0.s8 %v6372
        %v6374 = vlaneseq
        %v6375 = vshrl.u32 %v6374, 7
        %v6376 = vsub.s32 %v6373, %v6375
        %v6377 = vrot.slane %v6369, %v6376
        %v6379 = vunpack.c.l.s4 1934713408
        %v6380 = vunpack.c.0.s8 %v6379
        %v6381 = vlaneseq
        %v6382 = vshrl.u32 %v6381, 7
        %v6383 = vsub.s32 %v6380, %v6382
        %v6384 = vrot.slane %v6370, %v6383
        %v6385 = vcombine.low %v6353, %v6368
        %v6386 = vcombine.high %v6353, %v6368
        %v6388 = vunpack.c.l.s4 1934713408
        %v6389 = vunpack.c.0.s8 %v6388
        %v6390 = vlaneseq
        %v6391 = vshrl.u32 %v6390, 7
        %v6392 = vsub.s32 %v6389, %v6391
        %v6393 = vrot.slane %v6385, %v6392
        %v6395 = vunpack.c.l.s4 1934713408
        %v6396 = vunpack.c.0.s8 %v6395
        %v6397 = vlaneseq
        %v6398 = vshrl.u32 %v6397, 7
        %v6399 = vsub.s32 %v6396, %v6398
        %v6400 = vrot.slane %v6386, %v6399
        %v6401 = vcombine.high %v6377, 0
        %v6402 = vcombine.high %v6384, 0
        %v6403 = vcombine.high %v6393, 0
        %v6404 = vcombine.high %v6400, 0
        %v6405 = vcombine.high %v6313, %v3111
        %v6407 = vunpack.c.l.s4 1983009808
        %v6408 = vunpack.c.0.s8 %v6407
        %v6409 = vlaneseq
        %v6410 = vshrl.u32 %v6409, 7
        %v6411 = vsub.s32 %v6408, %v6410
        %v6412 = vrot.slane %v6313, %v6411
        %v6414 = vunpack.c.l.s4 1983009808
        %v6415 = vunpack.c.0.s8 %v6414
        %v6416 = vlaneseq
        %v6417 = vshrl.u32 %v6416, 7
        %v6418 = vsub.s32 %v6415, %v6417
        %v6419 = vrot.slane %v6405, %v6418
        %v6420 = vcombine.high %v6321, %v3111
        %v6422 = vunpack.c.l.s4 1983009808
        %v6423 = vunpack.c.0.s8 %v6422
        %v6424 = vlaneseq
        %v6425 = vshrl.u32 %v6424, 7
        %v6426 = vsub.s32 %v6423, %v6425
        %v6427 = vrot.slane %v6321, %v6426
        %v6429 = vunpack.c.l.s4 1983009808
        %v6430 = vunpack.c.0.s8 %v6429
        %v6431 = vlaneseq
        %v6432 = vshrl.u32 %v6431, 7
        %v6433 = vsub.s32 %v6430, %v6432
        %v6434 = vrot.slane %v6420, %v6433
        %v6435 = vcombine.low %v6412, %v6427
        %v6436 = vcombine.high %v6412, %v6427
        %v6438 = vunpack.c.l.s4 1934713408
        %v6439 = vunpack.c.0.s8 %v6438
        %v6440 = vlaneseq
        %v6441 = vshrl.u32 %v6440, 7
        %v6442 = vsub.s32 %v6439, %v6441
        %v6443 = vrot.slane %v6435, %v6442
        %v6445 = vunpack.c.l.s4 1934713408
        %v6446 = vunpack.c.0.s8 %v6445
        %v6447 = vlaneseq
        %v6448 = vshrl.u32 %v6447, 7
        %v6449 = vsub.s32 %v6446, %v6448
        %v6450 = vrot.slane %v6436, %v6449
        %v6451 = vcombine.low %v6419, %v6434
        %v6452 = vcombine.high %v6419, %v6434
        %v6454 = vunpack.c.l.s4 1934713408
        %v6455 = vunpack.c.0.s8 %v6454
        %v6456 = vlaneseq
        %v6457 = vshrl.u32 %v6456, 7
        %v6458 = vsub.s32 %v6455, %v6457
        %v6459 = vrot.slane %v6451, %v6458
        %v6461 = vunpack.c.l.s4 1934713408
        %v6462 = vunpack.c.0.s8 %v6461
        %v6463 = vlaneseq
        %v6464 = vshrl.u32 %v6463, 7
        %v6465 = vsub.s32 %v6462, %v6464
        %v6466 = vrot.slane %v6452, %v6465
        %v6467 = vcombine.high %v6443, 0
        %v6468 = vcombine.high %v6450, 0
        %v6469 = vcombine.high %v6459, 0
        %v6470 = vcombine.high %v6466, 0
        %v6471 = vcombine.high %v6325, %v3108
        %v6473 = vunpack.c.l.s4 1983009808
        %v6474 = vunpack.c.0.s8 %v6473
        %v6475 = vlaneseq
        %v6476 = vshrl.u32 %v6475, 7
        %v6477 = vsub.s32 %v6474, %v6476
        %v6478 = vrot.slane %v6325, %v6477
        %v6480 = vunpack.c.l.s4 1983009808
        %v6481 = vunpack.c.0.s8 %v6480
        %v6482 = vlaneseq
        %v6483 = vshrl.u32 %v6482, 7
        %v6484 = vsub.s32 %v6481, %v6483
        %v6485 = vrot.slane %v6471, %v6484
        %v6486 = vcombine.high %v6333, %v3108
        %v6488 = vunpack.c.l.s4 1983009808
        %v6489 = vunpack.c.0.s8 %v6488
        %v6490 = vlaneseq
        %v6491 = vshrl.u32 %v6490, 7
        %v6492 = vsub.s32 %v6489, %v6491
        %v6493 = vrot.slane %v6333, %v6492
        %v6495 = vunpack.c.l.s4 1983009808
        %v6496 = vunpack.c.0.s8 %v6495
        %v6497 = vlaneseq
        %v6498 = vshrl.u32 %v6497, 7
        %v6499 = vsub.s32 %v6496, %v6498
        %v6500 = vrot.slane %v6486, %v6499
        %v6501 = vcombine.low %v6478, %v6493
        %v6502 = vcombine.high %v6478, %v6493
        %v6504 = vunpack.c.l.s4 1934713408
        %v6505 = vunpack.c.0.s8 %v6504
        %v6506 = vlaneseq
        %v6507 = vshrl.u32 %v6506, 7
        %v6508 = vsub.s32 %v6505, %v6507
        %v6509 = vrot.slane %v6501, %v6508
        %v6511 = vunpack.c.l.s4 1934713408
        %v6512 = vunpack.c.0.s8 %v6511
        %v6513 = vlaneseq
        %v6514 = vshrl.u32 %v6513, 7
        %v6515 = vsub.s32 %v6512, %v6514
        %v6516 = vrot.slane %v6502, %v6515
        %v6517 = vcombine.low %v6485, %v6500
        %v6518 = vcombine.high %v6485, %v6500
        %v6520 = vunpack.c.l.s4 1934713408
        %v6521 = vunpack.c.0.s8 %v6520
        %v6522 = vlaneseq
        %v6523 = vshrl.u32 %v6522, 7
        %v6524 = vsub.s32 %v6521, %v6523
        %v6525 = vrot.slane %v6517, %v6524
        %v6527 = vunpack.c.l.s4 1934713408
        %v6528 = vunpack.c.0.s8 %v6527
        %v6529 = vlaneseq
        %v6530 = vshrl.u32 %v6529, 7
        %v6531 = vsub.s32 %v6528, %v6530
        %v6532 = vrot.slane %v6518, %v6531
        %v6533 = vcombine.high %v6509, 0
        %v6534 = vcombine.high %v6516, 0
        %v6535 = vcombine.high %v6525, 0
        %v6536 = vcombine.high %v6532, 0
        %v6537 = vcombine.high %v6329, %v3111
        %v6539 = vunpack.c.l.s4 1983009808
        %v6540 = vunpack.c.0.s8 %v6539
        %v6541 = vlaneseq
        %v6542 = vshrl.u32 %v6541, 7
        %v6543 = vsub.s32 %v6540, %v6542
        %v6544 = vrot.slane %v6329, %v6543
        %v6546 = vunpack.c.l.s4 1983009808
        %v6547 = vunpack.c.0.s8 %v6546
        %v6548 = vlaneseq
        %v6549 = vshrl.u32 %v6548, 7
        %v6550 = vsub.s32 %v6547, %v6549
        %v6551 = vrot.slane %v6537, %v6550
        %v6552 = vcombine.high %v6337, %v3111
        %v6554 = vunpack.c.l.s4 1983009808
        %v6555 = vunpack.c.0.s8 %v6554
        %v6556 = vlaneseq
        %v6557 = vshrl.u32 %v6556, 7
        %v6558 = vsub.s32 %v6555, %v6557
        %v6559 = vrot.slane %v6337, %v6558
        %v6561 = vunpack.c.l.s4 1983009808
        %v6562 = vunpack.c.0.s8 %v6561
        %v6563 = vlaneseq
        %v6564 = vshrl.u32 %v6563, 7
        %v6565 = vsub.s32 %v6562, %v6564
        %v6566 = vrot.slane %v6552, %v6565
        %v6567 = vcombine.low %v6544, %v6559
        %v6568 = vcombine.high %v6544, %v6559
        %v6570 = vunpack.c.l.s4 1934713408
        %v6571 = vunpack.c.0.s8 %v6570
        %v6572 = vlaneseq
        %v6573 = vshrl.u32 %v6572, 7
        %v6574 = vsub.s32 %v6571, %v6573
        %v6575 = vrot.slane %v6567, %v6574
        %v6577 = vunpack.c.l.s4 1934713408
        %v6578 = vunpack.c.0.s8 %v6577
        %v6579 = vlaneseq
        %v6580 = vshrl.u32 %v6579, 7
        %v6581 = vsub.s32 %v6578, %v6580
        %v6582 = vrot.slane %v6568, %v6581
        %v6583 = vcombine.low %v6551, %v6566
        %v6584 = vcombine.high %v6551, %v6566
        %v6586 = vunpack.c.l.s4 1934713408
        %v6587 = vunpack.c.0.s8 %v6586
        %v6588 = vlaneseq
        %v6589 = vshrl.u32 %v6588, 7
        %v6590 = vsub.s32 %v6587, %v6589
        %v6591 = vrot.slane %v6583, %v6590
        %v6593 = vunpack.c.l.s4 1934713408
        %v6594 = vunpack.c.0.s8 %v6593
        %v6595 = vlaneseq
        %v6596 = vshrl.u32 %v6595, 7
        %v6597 = vsub.s32 %v6594, %v6596
        %v6598 = vrot.slane %v6584, %v6597
        %v6599 = vcombine.high %v6575, 0
        %v6600 = vcombine.high %v6582, 0
        %v6601 = vcombine.high %v6591, 0
        %v6602 = vcombine.high %v6598, 0
        %6604 = vrot.lane.b32.xlu0 %v6443, 32
        %v6605 = vpop.permute.xlu0 %6604
        %6607 = vrot.lane.b32.xlu0 %v6401, 64
        %v6608 = vpop.permute.xlu0 %6607
        %6610 = vrot.lane.b32.xlu0 %v6467, 96
        %v6611 = vpop.permute.xlu0 %6610
        %6613 = vrot.lane.b32.xlu0 %v6450, 32
        %v6614 = vpop.permute.xlu0 %6613
        %6616 = vrot.lane.b32.xlu0 %v6402, 64
        %v6617 = vpop.permute.xlu0 %6616
        %6619 = vrot.lane.b32.xlu0 %v6468, 96
        %v6620 = vpop.permute.xlu0 %6619
        %6622 = vrot.lane.b32.xlu0 %v6459, 32
        %v6623 = vpop.permute.xlu0 %6622
        %6625 = vrot.lane.b32.xlu0 %v6403, 64
        %v6626 = vpop.permute.xlu0 %6625
        %6628 = vrot.lane.b32.xlu0 %v6469, 96
        %v6629 = vpop.permute.xlu0 %6628
        %6631 = vrot.lane.b32.xlu0 %v6466, 32
        %v6632 = vpop.permute.xlu0 %6631
        %6634 = vrot.lane.b32.xlu0 %v6404, 64
        %v6635 = vpop.permute.xlu0 %6634
        %6637 = vrot.lane.b32.xlu0 %v6470, 96
        %v6638 = vpop.permute.xlu0 %6637
        %6640 = vrot.lane.b32.xlu0 %v6575, 32
        %v6641 = vpop.permute.xlu0 %6640
        %6643 = vrot.lane.b32.xlu0 %v6533, 64
        %v6644 = vpop.permute.xlu0 %6643
        %6646 = vrot.lane.b32.xlu0 %v6599, 96
        %v6647 = vpop.permute.xlu0 %6646
        %6649 = vrot.lane.b32.xlu0 %v6582, 32
        %v6650 = vpop.permute.xlu0 %6649
        %6652 = vrot.lane.b32.xlu0 %v6534, 64
        %v6653 = vpop.permute.xlu0 %6652
        %6655 = vrot.lane.b32.xlu0 %v6600, 96
        %v6656 = vpop.permute.xlu0 %6655
        %6658 = vrot.lane.b32.xlu0 %v6591, 32
        %v6659 = vpop.permute.xlu0 %6658
        %6661 = vrot.lane.b32.xlu0 %v6535, 64
        %v6662 = vpop.permute.xlu0 %6661
        %6664 = vrot.lane.b32.xlu0 %v6601, 96
        %v6665 = vpop.permute.xlu0 %6664
        %6667 = vrot.lane.b32.xlu0 %v6598, 32
        %v6668 = vpop.permute.xlu0 %6667
        %6670 = vrot.lane.b32.xlu0 %v6536, 64
        %v6671 = vpop.permute.xlu0 %6670
        %6673 = vrot.lane.b32.xlu0 %v6602, 96
        %v6674 = vpop.permute.xlu0 %6673
        %v6677 = vsel %vm3465, %v6377, %v6605
        %v6679 = vsel %vm3469, %v6677, %v6608
        %v6681 = vsel %vm3472, %v6679, %v6611
        %v6684 = vsel %vm3465, %v6384, %v6614
        %v6686 = vsel %vm3469, %v6684, %v6617
        %v6688 = vsel %vm3472, %v6686, %v6620
        %v6691 = vsel %vm3465, %v6393, %v6623
        %v6693 = vsel %vm3469, %v6691, %v6626
        %v6695 = vsel %vm3472, %v6693, %v6629
        %v6698 = vsel %vm3465, %v6400, %v6632
        %v6700 = vsel %vm3469, %v6698, %v6635
        %v6702 = vsel %vm3472, %v6700, %v6638
        %v6705 = vsel %vm3465, %v6509, %v6641
        %v6707 = vsel %vm3469, %v6705, %v6644
        %v6709 = vsel %vm3472, %v6707, %v6647
        %v6712 = vsel %vm3465, %v6516, %v6650
        %v6714 = vsel %vm3469, %v6712, %v6653
        %v6716 = vsel %vm3472, %v6714, %v6656
        %v6719 = vsel %vm3465, %v6525, %v6659
        %v6721 = vsel %vm3469, %v6719, %v6662
        %v6723 = vsel %vm3472, %v6721, %v6665
        %v6726 = vsel %vm3465, %v6532, %v6668
        %v6728 = vsel %vm3469, %v6726, %v6671
        %v6730 = vsel %vm3472, %v6728, %v6674
        %s6731 = scalar_lea.vmem %s2, 20
        %v6732 = vld [vmem:[%s6731] sm:$0xf]
        %v6734 = vsel %vm3975, %v6732, 0
        %v6736 = vsel %vm3979, %v6681, 0
        %v6738 = vsel %vm3979, %v6688, 0
        %v6740 = vsel %vm3979, %v6695, 0
        %v6742 = vsel %vm3979, %v6702, 0
        %v6744 = vsel %vm3979, %v6709, 0
        %v6746 = vsel %vm3979, %v6716, 0
        %v6748 = vsel %vm3979, %v6723, 0
        %v6750 = vsel %vm3979, %v6730, 0
        %6752 = vmatprep.subr.bf16.mxu0 0
        %6753 = vmatpush1.bf16.msra.mxu0 0
        %6754 = vmatprep.subr.bf16.mxu0 0
        %6755 = vmatpush1.bf16.msra.mxu0 0
        %6756 = vmatprep.subr.bf16.mxu0 0
        %6757 = vmatpush1.bf16.msra.mxu0 0
        %6758 = vmatprep.subr.bf16.mxu0 0
        %6759 = vmatpush1.bf16.msra.mxu0 0
        %6760 = vmatprep.subr.bf16.mxu0 0
        %6761 = vmatpush1.bf16.msra.mxu0 0
        %6762 = vmatprep.subr.bf16.mxu0 0
        %6763 = vmatpush1.bf16.msra.mxu0 0
        %6764 = vmatprep.subr.bf16.mxu0 0
        %6765 = vmatpush1.bf16.msra.mxu0 0
        %6766 = vmatprep.subr.bf16.mxu0 %v6738
        %6767 = vmatpush1.bf16.msra.mxu0 %v6736
        %6768 = vmatprep.subr.bf16.mxu0 0
        %6769 = vmatpush2.bf16.msra.mxu0 0
        %6770 = vmatprep.subr.bf16.mxu0 0
        %6771 = vmatpush2.bf16.msra.mxu0 0
        %6772 = vmatprep.subr.bf16.mxu0 0
        %6773 = vmatpush2.bf16.msra.mxu0 0
        %6774 = vmatprep.subr.bf16.mxu0 0
        %6775 = vmatpush2.bf16.msra.mxu0 0
        %6776 = vmatprep.subr.bf16.mxu0 0
        %6777 = vmatpush2.bf16.msra.mxu0 0
        %6778 = vmatprep.subr.bf16.mxu0 0
        %6779 = vmatpush2.bf16.msra.mxu0 0
        %6780 = vmatprep.subr.bf16.mxu0 0
        %6781 = vmatpush2.bf16.msra.mxu0 0
        %6782 = vmatprep.subr.bf16.mxu0 0
        %6783 = vmatpush2.bf16.msra.mxu0 0
        %6784 = vmatprep.mubr.bf16.mxu0 0
        %6785 = vmatmul.mubr.bf16.gmra.mxu0 %v6734
        %v6786 = vpop.f32.mrf.mxu0
        %v6787 = vadd.f32 0.0, %v6786
        %v6788 = vpop.f32.mrf.mxu0
        %v6789 = vadd.f32 0.0, %v6788
        %v6790 = vpop.f32.mrf.mxu0
        %v6791 = vpop.f32.mrf.mxu0
        %6792 = vdwg.mxu0
        %6793 = vmatprep.subr.bf16.mxu0 0
        %6794 = vmatpush1.bf16.msra.mxu0 0
        %6795 = vmatprep.subr.bf16.mxu0 0
        %6796 = vmatpush1.bf16.msra.mxu0 0
        %6797 = vmatprep.subr.bf16.mxu0 0
        %6798 = vmatpush1.bf16.msra.mxu0 0
        %6799 = vmatprep.subr.bf16.mxu0 0
        %6800 = vmatpush1.bf16.msra.mxu0 0
        %6801 = vmatprep.subr.bf16.mxu0 0
        %6802 = vmatpush1.bf16.msra.mxu0 0
        %6803 = vmatprep.subr.bf16.mxu0 0
        %6804 = vmatpush1.bf16.msra.mxu0 0
        %6805 = vmatprep.subr.bf16.mxu0 0
        %6806 = vmatpush1.bf16.msra.mxu0 0
        %6807 = vmatprep.subr.bf16.mxu0 %v6742
        %6808 = vmatpush1.bf16.msra.mxu0 %v6740
        %6809 = vmatprep.subr.bf16.mxu0 0
        %6810 = vmatpush2.bf16.msra.mxu0 0
        %6811 = vmatprep.subr.bf16.mxu0 0
        %6812 = vmatpush2.bf16.msra.mxu0 0
        %6813 = vmatprep.subr.bf16.mxu0 0
        %6814 = vmatpush2.bf16.msra.mxu0 0
        %6815 = vmatprep.subr.bf16.mxu0 0
        %6816 = vmatpush2.bf16.msra.mxu0 0
        %6817 = vmatprep.subr.bf16.mxu0 0
        %6818 = vmatpush2.bf16.msra.mxu0 0
        %6819 = vmatprep.subr.bf16.mxu0 0
        %6820 = vmatpush2.bf16.msra.mxu0 0
        %6821 = vmatprep.subr.bf16.mxu0 0
        %6822 = vmatpush2.bf16.msra.mxu0 0
        %6823 = vmatprep.subr.bf16.mxu0 0
        %6824 = vmatpush2.bf16.msra.mxu0 0
        %6825 = vmatprep.mubr.bf16.mxu0 0
        %6826 = vmatmul.mubr.bf16.gmra.mxu0 %v6734
        %v6827 = vpop.f32.mrf.mxu0
        %v6828 = vadd.f32 0.0, %v6827
        %v6829 = vpop.f32.mrf.mxu0
        %v6830 = vadd.f32 0.0, %v6829
        %v6831 = vpop.f32.mrf.mxu0
        %v6832 = vpop.f32.mrf.mxu0
        %6833 = vdwg.mxu0
        %6834 = vmatprep.subr.bf16.mxu0 0
        %6835 = vmatpush1.bf16.msra.mxu0 0
        %6836 = vmatprep.subr.bf16.mxu0 0
        %6837 = vmatpush1.bf16.msra.mxu0 0
        %6838 = vmatprep.subr.bf16.mxu0 0
        %6839 = vmatpush1.bf16.msra.mxu0 0
        %6840 = vmatprep.subr.bf16.mxu0 0
        %6841 = vmatpush1.bf16.msra.mxu0 0
        %6842 = vmatprep.subr.bf16.mxu0 0
        %6843 = vmatpush1.bf16.msra.mxu0 0
        %6844 = vmatprep.subr.bf16.mxu0 0
        %6845 = vmatpush1.bf16.msra.mxu0 0
        %6846 = vmatprep.subr.bf16.mxu0 0
        %6847 = vmatpush1.bf16.msra.mxu0 0
        %6848 = vmatprep.subr.bf16.mxu0 %v6746
        %6849 = vmatpush1.bf16.msra.mxu0 %v6744
        %6850 = vmatprep.subr.bf16.mxu0 0
        %6851 = vmatpush2.bf16.msra.mxu0 0
        %6852 = vmatprep.subr.bf16.mxu0 0
        %6853 = vmatpush2.bf16.msra.mxu0 0
        %6854 = vmatprep.subr.bf16.mxu0 0
        %6855 = vmatpush2.bf16.msra.mxu0 0
        %6856 = vmatprep.subr.bf16.mxu0 0
        %6857 = vmatpush2.bf16.msra.mxu0 0
        %6858 = vmatprep.subr.bf16.mxu0 0
        %6859 = vmatpush2.bf16.msra.mxu0 0
        %6860 = vmatprep.subr.bf16.mxu0 0
        %6861 = vmatpush2.bf16.msra.mxu0 0
        %6862 = vmatprep.subr.bf16.mxu0 0
        %6863 = vmatpush2.bf16.msra.mxu0 0
        %6864 = vmatprep.subr.bf16.mxu0 0
        %6865 = vmatpush2.bf16.msra.mxu0 0
        %6866 = vmatprep.mubr.bf16.mxu0 0
        %6867 = vmatmul.mubr.bf16.gmra.mxu0 %v6734
        %v6868 = vpop.f32.mrf.mxu0
        %v6869 = vadd.f32 0.0, %v6868
        %v6870 = vpop.f32.mrf.mxu0
        %v6871 = vadd.f32 0.0, %v6870
        %v6872 = vpop.f32.mrf.mxu0
        %v6873 = vpop.f32.mrf.mxu0
        %6874 = vdwg.mxu0
        %6875 = vmatprep.subr.bf16.mxu0 0
        %6876 = vmatpush1.bf16.msra.mxu0 0
        %6877 = vmatprep.subr.bf16.mxu0 0
        %6878 = vmatpush1.bf16.msra.mxu0 0
        %6879 = vmatprep.subr.bf16.mxu0 0
        %6880 = vmatpush1.bf16.msra.mxu0 0
        %6881 = vmatprep.subr.bf16.mxu0 0
        %6882 = vmatpush1.bf16.msra.mxu0 0
        %6883 = vmatprep.subr.bf16.mxu0 0
        %6884 = vmatpush1.bf16.msra.mxu0 0
        %6885 = vmatprep.subr.bf16.mxu0 0
        %6886 = vmatpush1.bf16.msra.mxu0 0
        %6887 = vmatprep.subr.bf16.mxu0 0
        %6888 = vmatpush1.bf16.msra.mxu0 0
        %6889 = vmatprep.subr.bf16.mxu0 %v6750
        %6890 = vmatpush1.bf16.msra.mxu0 %v6748
        %6891 = vmatprep.subr.bf16.mxu0 0
        %6892 = vmatpush2.bf16.msra.mxu0 0
        %6893 = vmatprep.subr.bf16.mxu0 0
        %6894 = vmatpush2.bf16.msra.mxu0 0
        %6895 = vmatprep.subr.bf16.mxu0 0
        %6896 = vmatpush2.bf16.msra.mxu0 0
        %6897 = vmatprep.subr.bf16.mxu0 0
        %6898 = vmatpush2.bf16.msra.mxu0 0
        %6899 = vmatprep.subr.bf16.mxu0 0
        %6900 = vmatpush2.bf16.msra.mxu0 0
        %6901 = vmatprep.subr.bf16.mxu0 0
        %6902 = vmatpush2.bf16.msra.mxu0 0
        %6903 = vmatprep.subr.bf16.mxu0 0
        %6904 = vmatpush2.bf16.msra.mxu0 0
        %6905 = vmatprep.subr.bf16.mxu0 0
        %6906 = vmatpush2.bf16.msra.mxu0 0
        %6907 = vmatprep.mubr.bf16.mxu0 0
        %6908 = vmatmul.mubr.bf16.gmra.mxu0 %v6734
        %v6909 = vpop.f32.mrf.mxu0
        %v6910 = vadd.f32 0.0, %v6909
        %v6911 = vpop.f32.mrf.mxu0
        %v6912 = vadd.f32 0.0, %v6911
        %v6913 = vpop.f32.mrf.mxu0
        %v6914 = vpop.f32.mrf.mxu0
        %6915 = vdwg.mxu0
        %v6916 = vadd.f32 %v6283, %v6787
        %v6917 = vadd.f32 %v6284, %v6789
        %v6918 = vadd.f32 %v6285, %v6828
        %v6919 = vadd.f32 %v6286, %v6830
        %v6920 = vadd.f32 %v6287, %v6869
        %v6921 = vadd.f32 %v6288, %v6871
        %v6922 = vadd.f32 %v6289, %v6910
        %v6923 = vadd.f32 %v6290, %v6912
        %vm6928 = vcmask 1046528
        %v6929 = vrot.slane %v3079, 1
        %v6930 = vrot.slane %v3080, 1
        %v6931 = vsel %vm6928, %v6929, %v6930
        %v6932 = vrot.slane %v3081, 1
        %v6933 = vsel %vm6928, %v6930, %v6932
        %v6934 = vrot.slane %v3082, 1
        %v6935 = vrot.slane %v3083, 1
        %v6936 = vsel %vm6928, %v6934, %v6935
        %v6937 = vrot.slane %v3084, 1
        %v6938 = vsel %vm6928, %v6935, %v6937
        %v6939 = vrot.slane %v3085, 1
        %v6940 = vrot.slane %v3086, 1
        %v6941 = vsel %vm6928, %v6939, %v6940
        %v6942 = vrot.slane %v3087, 1
        %v6943 = vsel %vm6928, %v6940, %v6942
        %v6944 = vrot.slane %v3088, 1
        %v6945 = vrot.slane %v3089, 1
        %v6946 = vsel %vm6928, %v6944, %v6945
        %v6947 = vrot.slane %v3090, 1
        %v6948 = vsel %vm6928, %v6945, %v6947
        %v6951 = vpack.i.b16 %v6936, %v6931
        %v6953 = vshrl.u32 %v6931, 16
        %v6954 = vshrl.u32 %v6936, 16
        %v6955 = vpack.i.b16 %v6954, %v6953
        %v6959 = vpack.i.b16 %v6946, %v6941
        %v6961 = vshrl.u32 %v6941, 16
        %v6962 = vshrl.u32 %v6946, 16
        %v6963 = vpack.i.b16 %v6962, %v6961
        %v6967 = vpack.i.b16 %v6938, %v6933
        %v6969 = vshrl.u32 %v6933, 16
        %v6970 = vshrl.u32 %v6938, 16
        %v6971 = vpack.i.b16 %v6970, %v6969
        %v6975 = vpack.i.b16 %v6948, %v6943
        %v6977 = vshrl.u32 %v6943, 16
        %v6978 = vshrl.u32 %v6948, 16
        %v6979 = vpack.i.b16 %v6978, %v6977
        %v6981 = vcombine.high %v6951, %v3108
        %v6983 = vunpack.c.l.s4 1983009808
        %v6984 = vunpack.c.0.s8 %v6983
        %v6985 = vlaneseq
        %v6986 = vshrl.u32 %v6985, 7
        %v6987 = vsub.s32 %v6984, %v6986
        %v6988 = vrot.slane %v6951, %v6987
        %v6990 = vunpack.c.l.s4 1983009808
        %v6991 = vunpack.c.0.s8 %v6990
        %v6992 = vlaneseq
        %v6993 = vshrl.u32 %v6992, 7
        %v6994 = vsub.s32 %v6991, %v6993
        %v6995 = vrot.slane %v6981, %v6994
        %v6996 = vcombine.high %v6959, %v3108
        %v6998 = vunpack.c.l.s4 1983009808
        %v6999 = vunpack.c.0.s8 %v6998
        %v7000 = vlaneseq
        %v7001 = vshrl.u32 %v7000, 7
        %v7002 = vsub.s32 %v6999, %v7001
        %v7003 = vrot.slane %v6959, %v7002
        %v7005 = vunpack.c.l.s4 1983009808
        %v7006 = vunpack.c.0.s8 %v7005
        %v7007 = vlaneseq
        %v7008 = vshrl.u32 %v7007, 7
        %v7009 = vsub.s32 %v7006, %v7008
        %v7010 = vrot.slane %v6996, %v7009
        %v7011 = vcombine.low %v6988, %v7003
        %v7012 = vcombine.high %v6988, %v7003
        %v7014 = vunpack.c.l.s4 1934713408
        %v7015 = vunpack.c.0.s8 %v7014
        %v7016 = vlaneseq
        %v7017 = vshrl.u32 %v7016, 7
        %v7018 = vsub.s32 %v7015, %v7017
        %v7019 = vrot.slane %v7011, %v7018
        %v7021 = vunpack.c.l.s4 1934713408
        %v7022 = vunpack.c.0.s8 %v7021
        %v7023 = vlaneseq
        %v7024 = vshrl.u32 %v7023, 7
        %v7025 = vsub.s32 %v7022, %v7024
        %v7026 = vrot.slane %v7012, %v7025
        %v7027 = vcombine.low %v6995, %v7010
        %v7028 = vcombine.high %v6995, %v7010
        %v7030 = vunpack.c.l.s4 1934713408
        %v7031 = vunpack.c.0.s8 %v7030
        %v7032 = vlaneseq
        %v7033 = vshrl.u32 %v7032, 7
        %v7034 = vsub.s32 %v7031, %v7033
        %v7035 = vrot.slane %v7027, %v7034
        %v7037 = vunpack.c.l.s4 1934713408
        %v7038 = vunpack.c.0.s8 %v7037
        %v7039 = vlaneseq
        %v7040 = vshrl.u32 %v7039, 7
        %v7041 = vsub.s32 %v7038, %v7040
        %v7042 = vrot.slane %v7028, %v7041
        %v7043 = vcombine.high %v7019, 0
        %v7044 = vcombine.high %v7026, 0
        %v7045 = vcombine.high %v7035, 0
        %v7046 = vcombine.high %v7042, 0
        %v7047 = vcombine.high %v6955, %v3111
        %v7049 = vunpack.c.l.s4 1983009808
        %v7050 = vunpack.c.0.s8 %v7049
        %v7051 = vlaneseq
        %v7052 = vshrl.u32 %v7051, 7
        %v7053 = vsub.s32 %v7050, %v7052
        %v7054 = vrot.slane %v6955, %v7053
        %v7056 = vunpack.c.l.s4 1983009808
        %v7057 = vunpack.c.0.s8 %v7056
        %v7058 = vlaneseq
        %v7059 = vshrl.u32 %v7058, 7
        %v7060 = vsub.s32 %v7057, %v7059
        %v7061 = vrot.slane %v7047, %v7060
        %v7062 = vcombine.high %v6963, %v3111
        %v7064 = vunpack.c.l.s4 1983009808
        %v7065 = vunpack.c.0.s8 %v7064
        %v7066 = vlaneseq
        %v7067 = vshrl.u32 %v7066, 7
        %v7068 = vsub.s32 %v7065, %v7067
        %v7069 = vrot.slane %v6963, %v7068
        %v7071 = vunpack.c.l.s4 1983009808
        %v7072 = vunpack.c.0.s8 %v7071
        %v7073 = vlaneseq
        %v7074 = vshrl.u32 %v7073, 7
        %v7075 = vsub.s32 %v7072, %v7074
        %v7076 = vrot.slane %v7062, %v7075
        %v7077 = vcombine.low %v7054, %v7069
        %v7078 = vcombine.high %v7054, %v7069
        %v7080 = vunpack.c.l.s4 1934713408
        %v7081 = vunpack.c.0.s8 %v7080
        %v7082 = vlaneseq
        %v7083 = vshrl.u32 %v7082, 7
        %v7084 = vsub.s32 %v7081, %v7083
        %v7085 = vrot.slane %v7077, %v7084
        %v7087 = vunpack.c.l.s4 1934713408
        %v7088 = vunpack.c.0.s8 %v7087
        %v7089 = vlaneseq
        %v7090 = vshrl.u32 %v7089, 7
        %v7091 = vsub.s32 %v7088, %v7090
        %v7092 = vrot.slane %v7078, %v7091
        %v7093 = vcombine.low %v7061, %v7076
        %v7094 = vcombine.high %v7061, %v7076
        %v7096 = vunpack.c.l.s4 1934713408
        %v7097 = vunpack.c.0.s8 %v7096
        %v7098 = vlaneseq
        %v7099 = vshrl.u32 %v7098, 7
        %v7100 = vsub.s32 %v7097, %v7099
        %v7101 = vrot.slane %v7093, %v7100
        %v7103 = vunpack.c.l.s4 1934713408
        %v7104 = vunpack.c.0.s8 %v7103
        %v7105 = vlaneseq
        %v7106 = vshrl.u32 %v7105, 7
        %v7107 = vsub.s32 %v7104, %v7106
        %v7108 = vrot.slane %v7094, %v7107
        %v7109 = vcombine.high %v7085, 0
        %v7110 = vcombine.high %v7092, 0
        %v7111 = vcombine.high %v7101, 0
        %v7112 = vcombine.high %v7108, 0
        %v7113 = vcombine.high %v6967, %v3108
        %v7115 = vunpack.c.l.s4 1983009808
        %v7116 = vunpack.c.0.s8 %v7115
        %v7117 = vlaneseq
        %v7118 = vshrl.u32 %v7117, 7
        %v7119 = vsub.s32 %v7116, %v7118
        %v7120 = vrot.slane %v6967, %v7119
        %v7122 = vunpack.c.l.s4 1983009808
        %v7123 = vunpack.c.0.s8 %v7122
        %v7124 = vlaneseq
        %v7125 = vshrl.u32 %v7124, 7
        %v7126 = vsub.s32 %v7123, %v7125
        %v7127 = vrot.slane %v7113, %v7126
        %v7128 = vcombine.high %v6975, %v3108
        %v7130 = vunpack.c.l.s4 1983009808
        %v7131 = vunpack.c.0.s8 %v7130
        %v7132 = vlaneseq
        %v7133 = vshrl.u32 %v7132, 7
        %v7134 = vsub.s32 %v7131, %v7133
        %v7135 = vrot.slane %v6975, %v7134
        %v7137 = vunpack.c.l.s4 1983009808
        %v7138 = vunpack.c.0.s8 %v7137
        %v7139 = vlaneseq
        %v7140 = vshrl.u32 %v7139, 7
        %v7141 = vsub.s32 %v7138, %v7140
        %v7142 = vrot.slane %v7128, %v7141
        %v7143 = vcombine.low %v7120, %v7135
        %v7144 = vcombine.high %v7120, %v7135
        %v7146 = vunpack.c.l.s4 1934713408
        %v7147 = vunpack.c.0.s8 %v7146
        %v7148 = vlaneseq
        %v7149 = vshrl.u32 %v7148, 7
        %v7150 = vsub.s32 %v7147, %v7149
        %v7151 = vrot.slane %v7143, %v7150
        %v7153 = vunpack.c.l.s4 1934713408
        %v7154 = vunpack.c.0.s8 %v7153
        %v7155 = vlaneseq
        %v7156 = vshrl.u32 %v7155, 7
        %v7157 = vsub.s32 %v7154, %v7156
        %v7158 = vrot.slane %v7144, %v7157
        %v7159 = vcombine.low %v7127, %v7142
        %v7160 = vcombine.high %v7127, %v7142
        %v7162 = vunpack.c.l.s4 1934713408
        %v7163 = vunpack.c.0.s8 %v7162
        %v7164 = vlaneseq
        %v7165 = vshrl.u32 %v7164, 7
        %v7166 = vsub.s32 %v7163, %v7165
        %v7167 = vrot.slane %v7159, %v7166
        %v7169 = vunpack.c.l.s4 1934713408
        %v7170 = vunpack.c.0.s8 %v7169
        %v7171 = vlaneseq
        %v7172 = vshrl.u32 %v7171, 7
        %v7173 = vsub.s32 %v7170, %v7172
        %v7174 = vrot.slane %v7160, %v7173
        %v7175 = vcombine.high %v7151, 0
        %v7176 = vcombine.high %v7158, 0
        %v7177 = vcombine.high %v7167, 0
        %v7178 = vcombine.high %v7174, 0
        %v7179 = vcombine.high %v6971, %v3111
        %v7181 = vunpack.c.l.s4 1983009808
        %v7182 = vunpack.c.0.s8 %v7181
        %v7183 = vlaneseq
        %v7184 = vshrl.u32 %v7183, 7
        %v7185 = vsub.s32 %v7182, %v7184
        %v7186 = vrot.slane %v6971, %v7185
        %v7188 = vunpack.c.l.s4 1983009808
        %v7189 = vunpack.c.0.s8 %v7188
        %v7190 = vlaneseq
        %v7191 = vshrl.u32 %v7190, 7
        %v7192 = vsub.s32 %v7189, %v7191
        %v7193 = vrot.slane %v7179, %v7192
        %v7194 = vcombine.high %v6979, %v3111
        %v7196 = vunpack.c.l.s4 1983009808
        %v7197 = vunpack.c.0.s8 %v7196
        %v7198 = vlaneseq
        %v7199 = vshrl.u32 %v7198, 7
        %v7200 = vsub.s32 %v7197, %v7199
        %v7201 = vrot.slane %v6979, %v7200
        %v7203 = vunpack.c.l.s4 1983009808
        %v7204 = vunpack.c.0.s8 %v7203
        %v7205 = vlaneseq
        %v7206 = vshrl.u32 %v7205, 7
        %v7207 = vsub.s32 %v7204, %v7206
        %v7208 = vrot.slane %v7194, %v7207
        %v7209 = vcombine.low %v7186, %v7201
        %v7210 = vcombine.high %v7186, %v7201
        %v7212 = vunpack.c.l.s4 1934713408
        %v7213 = vunpack.c.0.s8 %v7212
        %v7214 = vlaneseq
        %v7215 = vshrl.u32 %v7214, 7
        %v7216 = vsub.s32 %v7213, %v7215
        %v7217 = vrot.slane %v7209, %v7216
        %v7219 = vunpack.c.l.s4 1934713408
        %v7220 = vunpack.c.0.s8 %v7219
        %v7221 = vlaneseq
        %v7222 = vshrl.u32 %v7221, 7
        %v7223 = vsub.s32 %v7220, %v7222
        %v7224 = vrot.slane %v7210, %v7223
        %v7225 = vcombine.low %v7193, %v7208
        %v7226 = vcombine.high %v7193, %v7208
        %v7228 = vunpack.c.l.s4 1934713408
        %v7229 = vunpack.c.0.s8 %v7228
        %v7230 = vlaneseq
        %v7231 = vshrl.u32 %v7230, 7
        %v7232 = vsub.s32 %v7229, %v7231
        %v7233 = vrot.slane %v7225, %v7232
        %v7235 = vunpack.c.l.s4 1934713408
        %v7236 = vunpack.c.0.s8 %v7235
        %v7237 = vlaneseq
        %v7238 = vshrl.u32 %v7237, 7
        %v7239 = vsub.s32 %v7236, %v7238
        %v7240 = vrot.slane %v7226, %v7239
        %v7241 = vcombine.high %v7217, 0
        %v7242 = vcombine.high %v7224, 0
        %v7243 = vcombine.high %v7233, 0
        %v7244 = vcombine.high %v7240, 0
        %7246 = vrot.lane.b32.xlu0 %v7085, 32
        %v7247 = vpop.permute.xlu0 %7246
        %7249 = vrot.lane.b32.xlu0 %v7043, 64
        %v7250 = vpop.permute.xlu0 %7249
        %7252 = vrot.lane.b32.xlu0 %v7109, 96
        %v7253 = vpop.permute.xlu0 %7252
        %7255 = vrot.lane.b32.xlu0 %v7092, 32
        %v7256 = vpop.permute.xlu0 %7255
        %7258 = vrot.lane.b32.xlu0 %v7044, 64
        %v7259 = vpop.permute.xlu0 %7258
        %7261 = vrot.lane.b32.xlu0 %v7110, 96
        %v7262 = vpop.permute.xlu0 %7261
        %7264 = vrot.lane.b32.xlu0 %v7101, 32
        %v7265 = vpop.permute.xlu0 %7264
        %7267 = vrot.lane.b32.xlu0 %v7045, 64
        %v7268 = vpop.permute.xlu0 %7267
        %7270 = vrot.lane.b32.xlu0 %v7111, 96
        %v7271 = vpop.permute.xlu0 %7270
        %7273 = vrot.lane.b32.xlu0 %v7108, 32
        %v7274 = vpop.permute.xlu0 %7273
        %7276 = vrot.lane.b32.xlu0 %v7046, 64
        %v7277 = vpop.permute.xlu0 %7276
        %7279 = vrot.lane.b32.xlu0 %v7112, 96
        %v7280 = vpop.permute.xlu0 %7279
        %7282 = vrot.lane.b32.xlu0 %v7217, 32
        %v7283 = vpop.permute.xlu0 %7282
        %7285 = vrot.lane.b32.xlu0 %v7175, 64
        %v7286 = vpop.permute.xlu0 %7285
        %7288 = vrot.lane.b32.xlu0 %v7241, 96
        %v7289 = vpop.permute.xlu0 %7288
        %7291 = vrot.lane.b32.xlu0 %v7224, 32
        %v7292 = vpop.permute.xlu0 %7291
        %7294 = vrot.lane.b32.xlu0 %v7176, 64
        %v7295 = vpop.permute.xlu0 %7294
        %7297 = vrot.lane.b32.xlu0 %v7242, 96
        %v7298 = vpop.permute.xlu0 %7297
        %7300 = vrot.lane.b32.xlu0 %v7233, 32
        %v7301 = vpop.permute.xlu0 %7300
        %7303 = vrot.lane.b32.xlu0 %v7177, 64
        %v7304 = vpop.permute.xlu0 %7303
        %7306 = vrot.lane.b32.xlu0 %v7243, 96
        %v7307 = vpop.permute.xlu0 %7306
        %7309 = vrot.lane.b32.xlu0 %v7240, 32
        %v7310 = vpop.permute.xlu0 %7309
        %7312 = vrot.lane.b32.xlu0 %v7178, 64
        %v7313 = vpop.permute.xlu0 %7312
        %7315 = vrot.lane.b32.xlu0 %v7244, 96
        %v7316 = vpop.permute.xlu0 %7315
        %v7319 = vsel %vm3465, %v7019, %v7247
        %v7321 = vsel %vm3469, %v7319, %v7250
        %v7323 = vsel %vm3472, %v7321, %v7253
        %v7326 = vsel %vm3465, %v7026, %v7256
        %v7328 = vsel %vm3469, %v7326, %v7259
        %v7330 = vsel %vm3472, %v7328, %v7262
        %v7333 = vsel %vm3465, %v7035, %v7265
        %v7335 = vsel %vm3469, %v7333, %v7268
        %v7337 = vsel %vm3472, %v7335, %v7271
        %v7340 = vsel %vm3465, %v7042, %v7274
        %v7342 = vsel %vm3469, %v7340, %v7277
        %v7344 = vsel %vm3472, %v7342, %v7280
        %v7347 = vsel %vm3465, %v7151, %v7283
        %v7349 = vsel %vm3469, %v7347, %v7286
        %v7351 = vsel %vm3472, %v7349, %v7289
        %v7354 = vsel %vm3465, %v7158, %v7292
        %v7356 = vsel %vm3469, %v7354, %v7295
        %v7358 = vsel %vm3472, %v7356, %v7298
        %v7361 = vsel %vm3465, %v7167, %v7301
        %v7363 = vsel %vm3469, %v7361, %v7304
        %v7365 = vsel %vm3472, %v7363, %v7307
        %v7368 = vsel %vm3465, %v7174, %v7310
        %v7370 = vsel %vm3469, %v7368, %v7313
        %v7372 = vsel %vm3472, %v7370, %v7316
        %s7373 = scalar_lea.vmem %s2, 24
        %v7374 = vld [vmem:[%s7373] sm:$0xf]
        %v7376 = vsel %vm3975, %v7374, 0
        %v7378 = vsel %vm3979, %v7323, 0
        %v7380 = vsel %vm3979, %v7330, 0
        %v7382 = vsel %vm3979, %v7337, 0
        %v7384 = vsel %vm3979, %v7344, 0
        %v7386 = vsel %vm3979, %v7351, 0
        %v7388 = vsel %vm3979, %v7358, 0
        %v7390 = vsel %vm3979, %v7365, 0
        %v7392 = vsel %vm3979, %v7372, 0
        %7394 = vmatprep.subr.bf16.mxu0 0
        %7395 = vmatpush1.bf16.msra.mxu0 0
        %7396 = vmatprep.subr.bf16.mxu0 0
        %7397 = vmatpush1.bf16.msra.mxu0 0
        %7398 = vmatprep.subr.bf16.mxu0 0
        %7399 = vmatpush1.bf16.msra.mxu0 0
        %7400 = vmatprep.subr.bf16.mxu0 0
        %7401 = vmatpush1.bf16.msra.mxu0 0
        %7402 = vmatprep.subr.bf16.mxu0 0
        %7403 = vmatpush1.bf16.msra.mxu0 0
        %7404 = vmatprep.subr.bf16.mxu0 0
        %7405 = vmatpush1.bf16.msra.mxu0 0
        %7406 = vmatprep.subr.bf16.mxu0 0
        %7407 = vmatpush1.bf16.msra.mxu0 0
        %7408 = vmatprep.subr.bf16.mxu0 %v7380
        %7409 = vmatpush1.bf16.msra.mxu0 %v7378
        %7410 = vmatprep.subr.bf16.mxu0 0
        %7411 = vmatpush2.bf16.msra.mxu0 0
        %7412 = vmatprep.subr.bf16.mxu0 0
        %7413 = vmatpush2.bf16.msra.mxu0 0
        %7414 = vmatprep.subr.bf16.mxu0 0
        %7415 = vmatpush2.bf16.msra.mxu0 0
        %7416 = vmatprep.subr.bf16.mxu0 0
        %7417 = vmatpush2.bf16.msra.mxu0 0
        %7418 = vmatprep.subr.bf16.mxu0 0
        %7419 = vmatpush2.bf16.msra.mxu0 0
        %7420 = vmatprep.subr.bf16.mxu0 0
        %7421 = vmatpush2.bf16.msra.mxu0 0
        %7422 = vmatprep.subr.bf16.mxu0 0
        %7423 = vmatpush2.bf16.msra.mxu0 0
        %7424 = vmatprep.subr.bf16.mxu0 0
        %7425 = vmatpush2.bf16.msra.mxu0 0
        %7426 = vmatprep.mubr.bf16.mxu0 0
        %7427 = vmatmul.mubr.bf16.gmra.mxu0 %v7376
        %v7428 = vpop.f32.mrf.mxu0
        %v7429 = vadd.f32 0.0, %v7428
        %v7430 = vpop.f32.mrf.mxu0
        %v7431 = vadd.f32 0.0, %v7430
        %v7432 = vpop.f32.mrf.mxu0
        %v7433 = vpop.f32.mrf.mxu0
        %7434 = vdwg.mxu0
        %7435 = vmatprep.subr.bf16.mxu0 0
        %7436 = vmatpush1.bf16.msra.mxu0 0
        %7437 = vmatprep.subr.bf16.mxu0 0
        %7438 = vmatpush1.bf16.msra.mxu0 0
        %7439 = vmatprep.subr.bf16.mxu0 0
        %7440 = vmatpush1.bf16.msra.mxu0 0
        %7441 = vmatprep.subr.bf16.mxu0 0
        %7442 = vmatpush1.bf16.msra.mxu0 0
        %7443 = vmatprep.subr.bf16.mxu0 0
        %7444 = vmatpush1.bf16.msra.mxu0 0
        %7445 = vmatprep.subr.bf16.mxu0 0
        %7446 = vmatpush1.bf16.msra.mxu0 0
        %7447 = vmatprep.subr.bf16.mxu0 0
        %7448 = vmatpush1.bf16.msra.mxu0 0
        %7449 = vmatprep.subr.bf16.mxu0 %v7384
        %7450 = vmatpush1.bf16.msra.mxu0 %v7382
        %7451 = vmatprep.subr.bf16.mxu0 0
        %7452 = vmatpush2.bf16.msra.mxu0 0
        %7453 = vmatprep.subr.bf16.mxu0 0
        %7454 = vmatpush2.bf16.msra.mxu0 0
        %7455 = vmatprep.subr.bf16.mxu0 0
        %7456 = vmatpush2.bf16.msra.mxu0 0
        %7457 = vmatprep.subr.bf16.mxu0 0
        %7458 = vmatpush2.bf16.msra.mxu0 0
        %7459 = vmatprep.subr.bf16.mxu0 0
        %7460 = vmatpush2.bf16.msra.mxu0 0
        %7461 = vmatprep.subr.bf16.mxu0 0
        %7462 = vmatpush2.bf16.msra.mxu0 0
        %7463 = vmatprep.subr.bf16.mxu0 0
        %7464 = vmatpush2.bf16.msra.mxu0 0
        %7465 = vmatprep.subr.bf16.mxu0 0
        %7466 = vmatpush2.bf16.msra.mxu0 0
        %7467 = vmatprep.mubr.bf16.mxu0 0
        %7468 = vmatmul.mubr.bf16.gmra.mxu0 %v7376
        %v7469 = vpop.f32.mrf.mxu0
        %v7470 = vadd.f32 0.0, %v7469
        %v7471 = vpop.f32.mrf.mxu0
        %v7472 = vadd.f32 0.0, %v7471
        %v7473 = vpop.f32.mrf.mxu0
        %v7474 = vpop.f32.mrf.mxu0
        %7475 = vdwg.mxu0
        %7476 = vmatprep.subr.bf16.mxu0 0
        %7477 = vmatpush1.bf16.msra.mxu0 0
        %7478 = vmatprep.subr.bf16.mxu0 0
        %7479 = vmatpush1.bf16.msra.mxu0 0
        %7480 = vmatprep.subr.bf16.mxu0 0
        %7481 = vmatpush1.bf16.msra.mxu0 0
        %7482 = vmatprep.subr.bf16.mxu0 0
        %7483 = vmatpush1.bf16.msra.mxu0 0
        %7484 = vmatprep.subr.bf16.mxu0 0
        %7485 = vmatpush1.bf16.msra.mxu0 0
        %7486 = vmatprep.subr.bf16.mxu0 0
        %7487 = vmatpush1.bf16.msra.mxu0 0
        %7488 = vmatprep.subr.bf16.mxu0 0
        %7489 = vmatpush1.bf16.msra.mxu0 0
        %7490 = vmatprep.subr.bf16.mxu0 %v7388
        %7491 = vmatpush1.bf16.msra.mxu0 %v7386
        %7492 = vmatprep.subr.bf16.mxu0 0
        %7493 = vmatpush2.bf16.msra.mxu0 0
        %7494 = vmatprep.subr.bf16.mxu0 0
        %7495 = vmatpush2.bf16.msra.mxu0 0
        %7496 = vmatprep.subr.bf16.mxu0 0
        %7497 = vmatpush2.bf16.msra.mxu0 0
        %7498 = vmatprep.subr.bf16.mxu0 0
        %7499 = vmatpush2.bf16.msra.mxu0 0
        %7500 = vmatprep.subr.bf16.mxu0 0
        %7501 = vmatpush2.bf16.msra.mxu0 0
        %7502 = vmatprep.subr.bf16.mxu0 0
        %7503 = vmatpush2.bf16.msra.mxu0 0
        %7504 = vmatprep.subr.bf16.mxu0 0
        %7505 = vmatpush2.bf16.msra.mxu0 0
        %7506 = vmatprep.subr.bf16.mxu0 0
        %7507 = vmatpush2.bf16.msra.mxu0 0
        %7508 = vmatprep.mubr.bf16.mxu0 0
        %7509 = vmatmul.mubr.bf16.gmra.mxu0 %v7376
        %v7510 = vpop.f32.mrf.mxu0
        %v7511 = vadd.f32 0.0, %v7510
        %v7512 = vpop.f32.mrf.mxu0
        %v7513 = vadd.f32 0.0, %v7512
        %v7514 = vpop.f32.mrf.mxu0
        %v7515 = vpop.f32.mrf.mxu0
        %7516 = vdwg.mxu0
        %7517 = vmatprep.subr.bf16.mxu0 0
        %7518 = vmatpush1.bf16.msra.mxu0 0
        %7519 = vmatprep.subr.bf16.mxu0 0
        %7520 = vmatpush1.bf16.msra.mxu0 0
        %7521 = vmatprep.subr.bf16.mxu0 0
        %7522 = vmatpush1.bf16.msra.mxu0 0
        %7523 = vmatprep.subr.bf16.mxu0 0
        %7524 = vmatpush1.bf16.msra.mxu0 0
        %7525 = vmatprep.subr.bf16.mxu0 0
        %7526 = vmatpush1.bf16.msra.mxu0 0
        %7527 = vmatprep.subr.bf16.mxu0 0
        %7528 = vmatpush1.bf16.msra.mxu0 0
        %7529 = vmatprep.subr.bf16.mxu0 0
        %7530 = vmatpush1.bf16.msra.mxu0 0
        %7531 = vmatprep.subr.bf16.mxu0 %v7392
        %7532 = vmatpush1.bf16.msra.mxu0 %v7390
        %7533 = vmatprep.subr.bf16.mxu0 0
        %7534 = vmatpush2.bf16.msra.mxu0 0
        %7535 = vmatprep.subr.bf16.mxu0 0
        %7536 = vmatpush2.bf16.msra.mxu0 0
        %7537 = vmatprep.subr.bf16.mxu0 0
        %7538 = vmatpush2.bf16.msra.mxu0 0
        %7539 = vmatprep.subr.bf16.mxu0 0
        %7540 = vmatpush2.bf16.msra.mxu0 0
        %7541 = vmatprep.subr.bf16.mxu0 0
        %7542 = vmatpush2.bf16.msra.mxu0 0
        %7543 = vmatprep.subr.bf16.mxu0 0
        %7544 = vmatpush2.bf16.msra.mxu0 0
        %7545 = vmatprep.subr.bf16.mxu0 0
        %7546 = vmatpush2.bf16.msra.mxu0 0
        %7547 = vmatprep.subr.bf16.mxu0 0
        %7548 = vmatpush2.bf16.msra.mxu0 0
        %7549 = vmatprep.mubr.bf16.mxu0 0
        %7550 = vmatmul.mubr.bf16.gmra.mxu0 %v7376
        %v7551 = vpop.f32.mrf.mxu0
        %v7552 = vadd.f32 0.0, %v7551
        %v7553 = vpop.f32.mrf.mxu0
        %v7554 = vadd.f32 0.0, %v7553
        %v7555 = vpop.f32.mrf.mxu0
        %v7556 = vpop.f32.mrf.mxu0
        %7557 = vdwg.mxu0
        %v7558 = vadd.f32 %v6916, %v7429
        %v7559 = vadd.f32 %v6917, %v7431
        %v7560 = vadd.f32 %v6918, %v7470
        %v7561 = vadd.f32 %v6919, %v7472
        %v7562 = vadd.f32 %v6920, %v7511
        %v7563 = vadd.f32 %v6921, %v7513
        %v7564 = vadd.f32 %v6922, %v7552
        %v7565 = vadd.f32 %v6923, %v7554
        %7566 = vrot.lane.b32.xlu0 %v6931, 127
        %v7567 = vpop.permute.xlu0 %7566
        %7568 = vrot.lane.b32.xlu0 %v6933, 127
        %v7569 = vpop.permute.xlu0 %7568
        %7570 = vrot.lane.b32.xlu0 %v6936, 127
        %v7571 = vpop.permute.xlu0 %7570
        %7572 = vrot.lane.b32.xlu0 %v6938, 127
        %v7573 = vpop.permute.xlu0 %7572
        %7574 = vrot.lane.b32.xlu0 %v6941, 127
        %v7575 = vpop.permute.xlu0 %7574
        %7576 = vrot.lane.b32.xlu0 %v6943, 127
        %v7577 = vpop.permute.xlu0 %7576
        %7578 = vrot.lane.b32.xlu0 %v6946, 127
        %v7579 = vpop.permute.xlu0 %7578
        %7580 = vrot.lane.b32.xlu0 %v6948, 127
        %v7581 = vpop.permute.xlu0 %7580
        %v7584 = vpack.i.b16 %v7571, %v7567
        %v7586 = vshrl.u32 %v7567, 16
        %v7587 = vshrl.u32 %v7571, 16
        %v7588 = vpack.i.b16 %v7587, %v7586
        %v7592 = vpack.i.b16 %v7579, %v7575
        %v7594 = vshrl.u32 %v7575, 16
        %v7595 = vshrl.u32 %v7579, 16
        %v7596 = vpack.i.b16 %v7595, %v7594
        %v7600 = vpack.i.b16 %v7573, %v7569
        %v7602 = vshrl.u32 %v7569, 16
        %v7603 = vshrl.u32 %v7573, 16
        %v7604 = vpack.i.b16 %v7603, %v7602
        %v7608 = vpack.i.b16 %v7581, %v7577
        %v7610 = vshrl.u32 %v7577, 16
        %v7611 = vshrl.u32 %v7581, 16
        %v7612 = vpack.i.b16 %v7611, %v7610
        %v7614 = vcombine.high %v7584, %v3108
        %v7616 = vunpack.c.l.s4 1983009808
        %v7617 = vunpack.c.0.s8 %v7616
        %v7618 = vlaneseq
        %v7619 = vshrl.u32 %v7618, 7
        %v7620 = vsub.s32 %v7617, %v7619
        %v7621 = vrot.slane %v7584, %v7620
        %v7623 = vunpack.c.l.s4 1983009808
        %v7624 = vunpack.c.0.s8 %v7623
        %v7625 = vlaneseq
        %v7626 = vshrl.u32 %v7625, 7
        %v7627 = vsub.s32 %v7624, %v7626
        %v7628 = vrot.slane %v7614, %v7627
        %v7629 = vcombine.high %v7592, %v3108
        %v7631 = vunpack.c.l.s4 1983009808
        %v7632 = vunpack.c.0.s8 %v7631
        %v7633 = vlaneseq
        %v7634 = vshrl.u32 %v7633, 7
        %v7635 = vsub.s32 %v7632, %v7634
        %v7636 = vrot.slane %v7592, %v7635
        %v7638 = vunpack.c.l.s4 1983009808
        %v7639 = vunpack.c.0.s8 %v7638
        %v7640 = vlaneseq
        %v7641 = vshrl.u32 %v7640, 7
        %v7642 = vsub.s32 %v7639, %v7641
        %v7643 = vrot.slane %v7629, %v7642
        %v7644 = vcombine.low %v7621, %v7636
        %v7645 = vcombine.high %v7621, %v7636
        %v7647 = vunpack.c.l.s4 1934713408
        %v7648 = vunpack.c.0.s8 %v7647
        %v7649 = vlaneseq
        %v7650 = vshrl.u32 %v7649, 7
        %v7651 = vsub.s32 %v7648, %v7650
        %v7652 = vrot.slane %v7644, %v7651
        %v7654 = vunpack.c.l.s4 1934713408
        %v7655 = vunpack.c.0.s8 %v7654
        %v7656 = vlaneseq
        %v7657 = vshrl.u32 %v7656, 7
        %v7658 = vsub.s32 %v7655, %v7657
        %v7659 = vrot.slane %v7645, %v7658
        %v7660 = vcombine.low %v7628, %v7643
        %v7661 = vcombine.high %v7628, %v7643
        %v7663 = vunpack.c.l.s4 1934713408
        %v7664 = vunpack.c.0.s8 %v7663
        %v7665 = vlaneseq
        %v7666 = vshrl.u32 %v7665, 7
        %v7667 = vsub.s32 %v7664, %v7666
        %v7668 = vrot.slane %v7660, %v7667
        %v7670 = vunpack.c.l.s4 1934713408
        %v7671 = vunpack.c.0.s8 %v7670
        %v7672 = vlaneseq
        %v7673 = vshrl.u32 %v7672, 7
        %v7674 = vsub.s32 %v7671, %v7673
        %v7675 = vrot.slane %v7661, %v7674
        %v7676 = vcombine.high %v7652, 0
        %v7677 = vcombine.high %v7659, 0
        %v7678 = vcombine.high %v7668, 0
        %v7679 = vcombine.high %v7675, 0
        %v7680 = vcombine.high %v7588, %v3111
        %v7682 = vunpack.c.l.s4 1983009808
        %v7683 = vunpack.c.0.s8 %v7682
        %v7684 = vlaneseq
        %v7685 = vshrl.u32 %v7684, 7
        %v7686 = vsub.s32 %v7683, %v7685
        %v7687 = vrot.slane %v7588, %v7686
        %v7689 = vunpack.c.l.s4 1983009808
        %v7690 = vunpack.c.0.s8 %v7689
        %v7691 = vlaneseq
        %v7692 = vshrl.u32 %v7691, 7
        %v7693 = vsub.s32 %v7690, %v7692
        %v7694 = vrot.slane %v7680, %v7693
        %v7695 = vcombine.high %v7596, %v3111
        %v7697 = vunpack.c.l.s4 1983009808
        %v7698 = vunpack.c.0.s8 %v7697
        %v7699 = vlaneseq
        %v7700 = vshrl.u32 %v7699, 7
        %v7701 = vsub.s32 %v7698, %v7700
        %v7702 = vrot.slane %v7596, %v7701
        %v7704 = vunpack.c.l.s4 1983009808
        %v7705 = vunpack.c.0.s8 %v7704
        %v7706 = vlaneseq
        %v7707 = vshrl.u32 %v7706, 7
        %v7708 = vsub.s32 %v7705, %v7707
        %v7709 = vrot.slane %v7695, %v7708
        %v7710 = vcombine.low %v7687, %v7702
        %v7711 = vcombine.high %v7687, %v7702
        %v7713 = vunpack.c.l.s4 1934713408
        %v7714 = vunpack.c.0.s8 %v7713
        %v7715 = vlaneseq
        %v7716 = vshrl.u32 %v7715, 7
        %v7717 = vsub.s32 %v7714, %v7716
        %v7718 = vrot.slane %v7710, %v7717
        %v7720 = vunpack.c.l.s4 1934713408
        %v7721 = vunpack.c.0.s8 %v7720
        %v7722 = vlaneseq
        %v7723 = vshrl.u32 %v7722, 7
        %v7724 = vsub.s32 %v7721, %v7723
        %v7725 = vrot.slane %v7711, %v7724
        %v7726 = vcombine.low %v7694, %v7709
        %v7727 = vcombine.high %v7694, %v7709
        %v7729 = vunpack.c.l.s4 1934713408
        %v7730 = vunpack.c.0.s8 %v7729
        %v7731 = vlaneseq
        %v7732 = vshrl.u32 %v7731, 7
        %v7733 = vsub.s32 %v7730, %v7732
        %v7734 = vrot.slane %v7726, %v7733
        %v7736 = vunpack.c.l.s4 1934713408
        %v7737 = vunpack.c.0.s8 %v7736
        %v7738 = vlaneseq
        %v7739 = vshrl.u32 %v7738, 7
        %v7740 = vsub.s32 %v7737, %v7739
        %v7741 = vrot.slane %v7727, %v7740
        %v7742 = vcombine.high %v7718, 0
        %v7743 = vcombine.high %v7725, 0
        %v7744 = vcombine.high %v7734, 0
        %v7745 = vcombine.high %v7741, 0
        %v7746 = vcombine.high %v7600, %v3108
        %v7748 = vunpack.c.l.s4 1983009808
        %v7749 = vunpack.c.0.s8 %v7748
        %v7750 = vlaneseq
        %v7751 = vshrl.u32 %v7750, 7
        %v7752 = vsub.s32 %v7749, %v7751
        %v7753 = vrot.slane %v7600, %v7752
        %v7755 = vunpack.c.l.s4 1983009808
        %v7756 = vunpack.c.0.s8 %v7755
        %v7757 = vlaneseq
        %v7758 = vshrl.u32 %v7757, 7
        %v7759 = vsub.s32 %v7756, %v7758
        %v7760 = vrot.slane %v7746, %v7759
        %v7761 = vcombine.high %v7608, %v3108
        %v7763 = vunpack.c.l.s4 1983009808
        %v7764 = vunpack.c.0.s8 %v7763
        %v7765 = vlaneseq
        %v7766 = vshrl.u32 %v7765, 7
        %v7767 = vsub.s32 %v7764, %v7766
        %v7768 = vrot.slane %v7608, %v7767
        %v7770 = vunpack.c.l.s4 1983009808
        %v7771 = vunpack.c.0.s8 %v7770
        %v7772 = vlaneseq
        %v7773 = vshrl.u32 %v7772, 7
        %v7774 = vsub.s32 %v7771, %v7773
        %v7775 = vrot.slane %v7761, %v7774
        %v7776 = vcombine.low %v7753, %v7768
        %v7777 = vcombine.high %v7753, %v7768
        %v7779 = vunpack.c.l.s4 1934713408
        %v7780 = vunpack.c.0.s8 %v7779
        %v7781 = vlaneseq
        %v7782 = vshrl.u32 %v7781, 7
        %v7783 = vsub.s32 %v7780, %v7782
        %v7784 = vrot.slane %v7776, %v7783
        %v7786 = vunpack.c.l.s4 1934713408
        %v7787 = vunpack.c.0.s8 %v7786
        %v7788 = vlaneseq
        %v7789 = vshrl.u32 %v7788, 7
        %v7790 = vsub.s32 %v7787, %v7789
        %v7791 = vrot.slane %v7777, %v7790
        %v7792 = vcombine.low %v7760, %v7775
        %v7793 = vcombine.high %v7760, %v7775
        %v7795 = vunpack.c.l.s4 1934713408
        %v7796 = vunpack.c.0.s8 %v7795
        %v7797 = vlaneseq
        %v7798 = vshrl.u32 %v7797, 7
        %v7799 = vsub.s32 %v7796, %v7798
        %v7800 = vrot.slane %v7792, %v7799
        %v7802 = vunpack.c.l.s4 1934713408
        %v7803 = vunpack.c.0.s8 %v7802
        %v7804 = vlaneseq
        %v7805 = vshrl.u32 %v7804, 7
        %v7806 = vsub.s32 %v7803, %v7805
        %v7807 = vrot.slane %v7793, %v7806
        %v7808 = vcombine.high %v7784, 0
        %v7809 = vcombine.high %v7791, 0
        %v7810 = vcombine.high %v7800, 0
        %v7811 = vcombine.high %v7807, 0
        %v7812 = vcombine.high %v7604, %v3111
        %v7814 = vunpack.c.l.s4 1983009808
        %v7815 = vunpack.c.0.s8 %v7814
        %v7816 = vlaneseq
        %v7817 = vshrl.u32 %v7816, 7
        %v7818 = vsub.s32 %v7815, %v7817
        %v7819 = vrot.slane %v7604, %v7818
        %v7821 = vunpack.c.l.s4 1983009808
        %v7822 = vunpack.c.0.s8 %v7821
        %v7823 = vlaneseq
        %v7824 = vshrl.u32 %v7823, 7
        %v7825 = vsub.s32 %v7822, %v7824
        %v7826 = vrot.slane %v7812, %v7825
        %v7827 = vcombine.high %v7612, %v3111
        %v7829 = vunpack.c.l.s4 1983009808
        %v7830 = vunpack.c.0.s8 %v7829
        %v7831 = vlaneseq
        %v7832 = vshrl.u32 %v7831, 7
        %v7833 = vsub.s32 %v7830, %v7832
        %v7834 = vrot.slane %v7612, %v7833
        %v7836 = vunpack.c.l.s4 1983009808
        %v7837 = vunpack.c.0.s8 %v7836
        %v7838 = vlaneseq
        %v7839 = vshrl.u32 %v7838, 7
        %v7840 = vsub.s32 %v7837, %v7839
        %v7841 = vrot.slane %v7827, %v7840
        %v7842 = vcombine.low %v7819, %v7834
        %v7843 = vcombine.high %v7819, %v7834
        %v7845 = vunpack.c.l.s4 1934713408
        %v7846 = vunpack.c.0.s8 %v7845
        %v7847 = vlaneseq
        %v7848 = vshrl.u32 %v7847, 7
        %v7849 = vsub.s32 %v7846, %v7848
        %v7850 = vrot.slane %v7842, %v7849
        %v7852 = vunpack.c.l.s4 1934713408
        %v7853 = vunpack.c.0.s8 %v7852
        %v7854 = vlaneseq
        %v7855 = vshrl.u32 %v7854, 7
        %v7856 = vsub.s32 %v7853, %v7855
        %v7857 = vrot.slane %v7843, %v7856
        %v7858 = vcombine.low %v7826, %v7841
        %v7859 = vcombine.high %v7826, %v7841
        %v7861 = vunpack.c.l.s4 1934713408
        %v7862 = vunpack.c.0.s8 %v7861
        %v7863 = vlaneseq
        %v7864 = vshrl.u32 %v7863, 7
        %v7865 = vsub.s32 %v7862, %v7864
        %v7866 = vrot.slane %v7858, %v7865
        %v7868 = vunpack.c.l.s4 1934713408
        %v7869 = vunpack.c.0.s8 %v7868
        %v7870 = vlaneseq
        %v7871 = vshrl.u32 %v7870, 7
        %v7872 = vsub.s32 %v7869, %v7871
        %v7873 = vrot.slane %v7859, %v7872
        %v7874 = vcombine.high %v7850, 0
        %v7875 = vcombine.high %v7857, 0
        %v7876 = vcombine.high %v7866, 0
        %v7877 = vcombine.high %v7873, 0
        %7879 = vrot.lane.b32.xlu0 %v7718, 32
        %v7880 = vpop.permute.xlu0 %7879
        %7882 = vrot.lane.b32.xlu0 %v7676, 64
        %v7883 = vpop.permute.xlu0 %7882
        %7885 = vrot.lane.b32.xlu0 %v7742, 96
        %v7886 = vpop.permute.xlu0 %7885
        %7888 = vrot.lane.b32.xlu0 %v7725, 32
        %v7889 = vpop.permute.xlu0 %7888
        %7891 = vrot.lane.b32.xlu0 %v7677, 64
        %v7892 = vpop.permute.xlu0 %7891
        %7894 = vrot.lane.b32.xlu0 %v7743, 96
        %v7895 = vpop.permute.xlu0 %7894
        %7897 = vrot.lane.b32.xlu0 %v7734, 32
        %v7898 = vpop.permute.xlu0 %7897
        %7900 = vrot.lane.b32.xlu0 %v7678, 64
        %v7901 = vpop.permute.xlu0 %7900
        %7903 = vrot.lane.b32.xlu0 %v7744, 96
        %v7904 = vpop.permute.xlu0 %7903
        %7906 = vrot.lane.b32.xlu0 %v7741, 32
        %v7907 = vpop.permute.xlu0 %7906
        %7909 = vrot.lane.b32.xlu0 %v7679, 64
        %v7910 = vpop.permute.xlu0 %7909
        %7912 = vrot.lane.b32.xlu0 %v7745, 96
        %v7913 = vpop.permute.xlu0 %7912
        %7915 = vrot.lane.b32.xlu0 %v7850, 32
        %v7916 = vpop.permute.xlu0 %7915
        %7918 = vrot.lane.b32.xlu0 %v7808, 64
        %v7919 = vpop.permute.xlu0 %7918
        %7921 = vrot.lane.b32.xlu0 %v7874, 96
        %v7922 = vpop.permute.xlu0 %7921
        %7924 = vrot.lane.b32.xlu0 %v7857, 32
        %v7925 = vpop.permute.xlu0 %7924
        %7927 = vrot.lane.b32.xlu0 %v7809, 64
        %v7928 = vpop.permute.xlu0 %7927
        %7930 = vrot.lane.b32.xlu0 %v7875, 96
        %v7931 = vpop.permute.xlu0 %7930
        %7933 = vrot.lane.b32.xlu0 %v7866, 32
        %v7934 = vpop.permute.xlu0 %7933
        %7936 = vrot.lane.b32.xlu0 %v7810, 64
        %v7937 = vpop.permute.xlu0 %7936
        %7939 = vrot.lane.b32.xlu0 %v7876, 96
        %v7940 = vpop.permute.xlu0 %7939
        %7942 = vrot.lane.b32.xlu0 %v7873, 32
        %v7943 = vpop.permute.xlu0 %7942
        %7945 = vrot.lane.b32.xlu0 %v7811, 64
        %v7946 = vpop.permute.xlu0 %7945
        %7948 = vrot.lane.b32.xlu0 %v7877, 96
        %v7949 = vpop.permute.xlu0 %7948
        %v7952 = vsel %vm3465, %v7652, %v7880
        %v7954 = vsel %vm3469, %v7952, %v7883
        %v7956 = vsel %vm3472, %v7954, %v7886
        %v7959 = vsel %vm3465, %v7659, %v7889
        %v7961 = vsel %vm3469, %v7959, %v7892
        %v7963 = vsel %vm3472, %v7961, %v7895
        %v7966 = vsel %vm3465, %v7668, %v7898
        %v7968 = vsel %vm3469, %v7966, %v7901
        %v7970 = vsel %vm3472, %v7968, %v7904
        %v7973 = vsel %vm3465, %v7675, %v7907
        %v7975 = vsel %vm3469, %v7973, %v7910
        %v7977 = vsel %vm3472, %v7975, %v7913
        %v7980 = vsel %vm3465, %v7784, %v7916
        %v7982 = vsel %vm3469, %v7980, %v7919
        %v7984 = vsel %vm3472, %v7982, %v7922
        %v7987 = vsel %vm3465, %v7791, %v7925
        %v7989 = vsel %vm3469, %v7987, %v7928
        %v7991 = vsel %vm3472, %v7989, %v7931
        %v7994 = vsel %vm3465, %v7800, %v7934
        %v7996 = vsel %vm3469, %v7994, %v7937
        %v7998 = vsel %vm3472, %v7996, %v7940
        %v8001 = vsel %vm3465, %v7807, %v7943
        %v8003 = vsel %vm3469, %v8001, %v7946
        %v8005 = vsel %vm3472, %v8003, %v7949
        %s8006 = scalar_lea.vmem %s2, 28
        %v8007 = vld [vmem:[%s8006] sm:$0xf]
        %v8009 = vsel %vm3975, %v8007, 0
        %v8011 = vsel %vm3979, %v7956, 0
        %v8013 = vsel %vm3979, %v7963, 0
        %v8015 = vsel %vm3979, %v7970, 0
        %v8017 = vsel %vm3979, %v7977, 0
        %v8019 = vsel %vm3979, %v7984, 0
        %v8021 = vsel %vm3979, %v7991, 0
        %v8023 = vsel %vm3979, %v7998, 0
        %v8025 = vsel %vm3979, %v8005, 0
        %8027 = vmatprep.subr.bf16.mxu0 0
        %8028 = vmatpush1.bf16.msra.mxu0 0
        %8029 = vmatprep.subr.bf16.mxu0 0
        %8030 = vmatpush1.bf16.msra.mxu0 0
        %8031 = vmatprep.subr.bf16.mxu0 0
        %8032 = vmatpush1.bf16.msra.mxu0 0
        %8033 = vmatprep.subr.bf16.mxu0 0
        %8034 = vmatpush1.bf16.msra.mxu0 0
        %8035 = vmatprep.subr.bf16.mxu0 0
        %8036 = vmatpush1.bf16.msra.mxu0 0
        %8037 = vmatprep.subr.bf16.mxu0 0
        %8038 = vmatpush1.bf16.msra.mxu0 0
        %8039 = vmatprep.subr.bf16.mxu0 0
        %8040 = vmatpush1.bf16.msra.mxu0 0
        %8041 = vmatprep.subr.bf16.mxu0 %v8013
        %8042 = vmatpush1.bf16.msra.mxu0 %v8011
        %8043 = vmatprep.subr.bf16.mxu0 0
        %8044 = vmatpush2.bf16.msra.mxu0 0
        %8045 = vmatprep.subr.bf16.mxu0 0
        %8046 = vmatpush2.bf16.msra.mxu0 0
        %8047 = vmatprep.subr.bf16.mxu0 0
        %8048 = vmatpush2.bf16.msra.mxu0 0
        %8049 = vmatprep.subr.bf16.mxu0 0
        %8050 = vmatpush2.bf16.msra.mxu0 0
        %8051 = vmatprep.subr.bf16.mxu0 0
        %8052 = vmatpush2.bf16.msra.mxu0 0
        %8053 = vmatprep.subr.bf16.mxu0 0
        %8054 = vmatpush2.bf16.msra.mxu0 0
        %8055 = vmatprep.subr.bf16.mxu0 0
        %8056 = vmatpush2.bf16.msra.mxu0 0
        %8057 = vmatprep.subr.bf16.mxu0 0
        %8058 = vmatpush2.bf16.msra.mxu0 0
        %8059 = vmatprep.mubr.bf16.mxu0 0
        %8060 = vmatmul.mubr.bf16.gmra.mxu0 %v8009
        %v8061 = vpop.f32.mrf.mxu0
        %v8062 = vadd.f32 0.0, %v8061
        %v8063 = vpop.f32.mrf.mxu0
        %v8064 = vadd.f32 0.0, %v8063
        %v8065 = vpop.f32.mrf.mxu0
        %v8066 = vpop.f32.mrf.mxu0
        %8067 = vdwg.mxu0
        %8068 = vmatprep.subr.bf16.mxu0 0
        %8069 = vmatpush1.bf16.msra.mxu0 0
        %8070 = vmatprep.subr.bf16.mxu0 0
        %8071 = vmatpush1.bf16.msra.mxu0 0
        %8072 = vmatprep.subr.bf16.mxu0 0
        %8073 = vmatpush1.bf16.msra.mxu0 0
        %8074 = vmatprep.subr.bf16.mxu0 0
        %8075 = vmatpush1.bf16.msra.mxu0 0
        %8076 = vmatprep.subr.bf16.mxu0 0
        %8077 = vmatpush1.bf16.msra.mxu0 0
        %8078 = vmatprep.subr.bf16.mxu0 0
        %8079 = vmatpush1.bf16.msra.mxu0 0
        %8080 = vmatprep.subr.bf16.mxu0 0
        %8081 = vmatpush1.bf16.msra.mxu0 0
        %8082 = vmatprep.subr.bf16.mxu0 %v8017
        %8083 = vmatpush1.bf16.msra.mxu0 %v8015
        %8084 = vmatprep.subr.bf16.mxu0 0
        %8085 = vmatpush2.bf16.msra.mxu0 0
        %8086 = vmatprep.subr.bf16.mxu0 0
        %8087 = vmatpush2.bf16.msra.mxu0 0
        %8088 = vmatprep.subr.bf16.mxu0 0
        %8089 = vmatpush2.bf16.msra.mxu0 0
        %8090 = vmatprep.subr.bf16.mxu0 0
        %8091 = vmatpush2.bf16.msra.mxu0 0
        %8092 = vmatprep.subr.bf16.mxu0 0
        %8093 = vmatpush2.bf16.msra.mxu0 0
        %8094 = vmatprep.subr.bf16.mxu0 0
        %8095 = vmatpush2.bf16.msra.mxu0 0
        %8096 = vmatprep.subr.bf16.mxu0 0
        %8097 = vmatpush2.bf16.msra.mxu0 0
        %8098 = vmatprep.subr.bf16.mxu0 0
        %8099 = vmatpush2.bf16.msra.mxu0 0
        %8100 = vmatprep.mubr.bf16.mxu0 0
        %8101 = vmatmul.mubr.bf16.gmra.mxu0 %v8009
        %v8102 = vpop.f32.mrf.mxu0
        %v8103 = vadd.f32 0.0, %v8102
        %v8104 = vpop.f32.mrf.mxu0
        %v8105 = vadd.f32 0.0, %v8104
        %v8106 = vpop.f32.mrf.mxu0
        %v8107 = vpop.f32.mrf.mxu0
        %8108 = vdwg.mxu0
        %8109 = vmatprep.subr.bf16.mxu0 0
        %8110 = vmatpush1.bf16.msra.mxu0 0
        %8111 = vmatprep.subr.bf16.mxu0 0
        %8112 = vmatpush1.bf16.msra.mxu0 0
        %8113 = vmatprep.subr.bf16.mxu0 0
        %8114 = vmatpush1.bf16.msra.mxu0 0
        %8115 = vmatprep.subr.bf16.mxu0 0
        %8116 = vmatpush1.bf16.msra.mxu0 0
        %8117 = vmatprep.subr.bf16.mxu0 0
        %8118 = vmatpush1.bf16.msra.mxu0 0
        %8119 = vmatprep.subr.bf16.mxu0 0
        %8120 = vmatpush1.bf16.msra.mxu0 0
        %8121 = vmatprep.subr.bf16.mxu0 0
        %8122 = vmatpush1.bf16.msra.mxu0 0
        %8123 = vmatprep.subr.bf16.mxu0 %v8021
        %8124 = vmatpush1.bf16.msra.mxu0 %v8019
        %8125 = vmatprep.subr.bf16.mxu0 0
        %8126 = vmatpush2.bf16.msra.mxu0 0
        %8127 = vmatprep.subr.bf16.mxu0 0
        %8128 = vmatpush2.bf16.msra.mxu0 0
        %8129 = vmatprep.subr.bf16.mxu0 0
        %8130 = vmatpush2.bf16.msra.mxu0 0
        %8131 = vmatprep.subr.bf16.mxu0 0
        %8132 = vmatpush2.bf16.msra.mxu0 0
        %8133 = vmatprep.subr.bf16.mxu0 0
        %8134 = vmatpush2.bf16.msra.mxu0 0
        %8135 = vmatprep.subr.bf16.mxu0 0
        %8136 = vmatpush2.bf16.msra.mxu0 0
        %8137 = vmatprep.subr.bf16.mxu0 0
        %8138 = vmatpush2.bf16.msra.mxu0 0
        %8139 = vmatprep.subr.bf16.mxu0 0
        %8140 = vmatpush2.bf16.msra.mxu0 0
        %8141 = vmatprep.mubr.bf16.mxu0 0
        %8142 = vmatmul.mubr.bf16.gmra.mxu0 %v8009
        %v8143 = vpop.f32.mrf.mxu0
        %v8144 = vadd.f32 0.0, %v8143
        %v8145 = vpop.f32.mrf.mxu0
        %v8146 = vadd.f32 0.0, %v8145
        %v8147 = vpop.f32.mrf.mxu0
        %v8148 = vpop.f32.mrf.mxu0
        %8149 = vdwg.mxu0
        %8150 = vmatprep.subr.bf16.mxu0 0
        %8151 = vmatpush1.bf16.msra.mxu0 0
        %8152 = vmatprep.subr.bf16.mxu0 0
        %8153 = vmatpush1.bf16.msra.mxu0 0
        %8154 = vmatprep.subr.bf16.mxu0 0
        %8155 = vmatpush1.bf16.msra.mxu0 0
        %8156 = vmatprep.subr.bf16.mxu0 0
        %8157 = vmatpush1.bf16.msra.mxu0 0
        %8158 = vmatprep.subr.bf16.mxu0 0
        %8159 = vmatpush1.bf16.msra.mxu0 0
        %8160 = vmatprep.subr.bf16.mxu0 0
        %8161 = vmatpush1.bf16.msra.mxu0 0
        %8162 = vmatprep.subr.bf16.mxu0 0
        %8163 = vmatpush1.bf16.msra.mxu0 0
        %8164 = vmatprep.subr.bf16.mxu0 %v8025
        %8165 = vmatpush1.bf16.msra.mxu0 %v8023
        %8166 = vmatprep.subr.bf16.mxu0 0
        %8167 = vmatpush2.bf16.msra.mxu0 0
        %8168 = vmatprep.subr.bf16.mxu0 0
        %8169 = vmatpush2.bf16.msra.mxu0 0
        %8170 = vmatprep.subr.bf16.mxu0 0
        %8171 = vmatpush2.bf16.msra.mxu0 0
        %8172 = vmatprep.subr.bf16.mxu0 0
        %8173 = vmatpush2.bf16.msra.mxu0 0
        %8174 = vmatprep.subr.bf16.mxu0 0
        %8175 = vmatpush2.bf16.msra.mxu0 0
        %8176 = vmatprep.subr.bf16.mxu0 0
        %8177 = vmatpush2.bf16.msra.mxu0 0
        %8178 = vmatprep.subr.bf16.mxu0 0
        %8179 = vmatpush2.bf16.msra.mxu0 0
        %8180 = vmatprep.subr.bf16.mxu0 0
        %8181 = vmatpush2.bf16.msra.mxu0 0
        %8182 = vmatprep.mubr.bf16.mxu0 0
        %8183 = vmatmul.mubr.bf16.gmra.mxu0 %v8009
        %v8184 = vpop.f32.mrf.mxu0
        %v8185 = vadd.f32 0.0, %v8184
        %v8186 = vpop.f32.mrf.mxu0
        %v8187 = vadd.f32 0.0, %v8186
        %v8188 = vpop.f32.mrf.mxu0
        %v8189 = vpop.f32.mrf.mxu0
        %8190 = vdwg.mxu0
        %v8191 = vadd.f32 %v7558, %v8062
        %v8192 = vadd.f32 %v7559, %v8064
        %v8193 = vadd.f32 %v7560, %v8103
        %v8194 = vadd.f32 %v7561, %v8105
        %v8195 = vadd.f32 %v7562, %v8144
        %v8196 = vadd.f32 %v7563, %v8146
        %v8197 = vadd.f32 %v7564, %v8185
        %v8198 = vadd.f32 %v7565, %v8187
        %8199 = vrot.lane.b32.xlu0 %v6931, 126
        %v8200 = vpop.permute.xlu0 %8199
        %8201 = vrot.lane.b32.xlu0 %v6933, 126
        %v8202 = vpop.permute.xlu0 %8201
        %8203 = vrot.lane.b32.xlu0 %v6936, 126
        %v8204 = vpop.permute.xlu0 %8203
        %8205 = vrot.lane.b32.xlu0 %v6938, 126
        %v8206 = vpop.permute.xlu0 %8205
        %8207 = vrot.lane.b32.xlu0 %v6941, 126
        %v8208 = vpop.permute.xlu0 %8207
        %8209 = vrot.lane.b32.xlu0 %v6943, 126
        %v8210 = vpop.permute.xlu0 %8209
        %8211 = vrot.lane.b32.xlu0 %v6946, 126
        %v8212 = vpop.permute.xlu0 %8211
        %8213 = vrot.lane.b32.xlu0 %v6948, 126
        %v8214 = vpop.permute.xlu0 %8213
        %v8217 = vpack.i.b16 %v8204, %v8200
        %v8219 = vshrl.u32 %v8200, 16
        %v8220 = vshrl.u32 %v8204, 16
        %v8221 = vpack.i.b16 %v8220, %v8219
        %v8225 = vpack.i.b16 %v8212, %v8208
        %v8227 = vshrl.u32 %v8208, 16
        %v8228 = vshrl.u32 %v8212, 16
        %v8229 = vpack.i.b16 %v8228, %v8227
        %v8233 = vpack.i.b16 %v8206, %v8202
        %v8235 = vshrl.u32 %v8202, 16
        %v8236 = vshrl.u32 %v8206, 16
        %v8237 = vpack.i.b16 %v8236, %v8235
        %v8241 = vpack.i.b16 %v8214, %v8210
        %v8243 = vshrl.u32 %v8210, 16
        %v8244 = vshrl.u32 %v8214, 16
        %v8245 = vpack.i.b16 %v8244, %v8243
        %v8247 = vcombine.high %v8217, %v3108
        %v8249 = vunpack.c.l.s4 1983009808
        %v8250 = vunpack.c.0.s8 %v8249
        %v8251 = vlaneseq
        %v8252 = vshrl.u32 %v8251, 7
        %v8253 = vsub.s32 %v8250, %v8252
        %v8254 = vrot.slane %v8217, %v8253
        %v8256 = vunpack.c.l.s4 1983009808
        %v8257 = vunpack.c.0.s8 %v8256
        %v8258 = vlaneseq
        %v8259 = vshrl.u32 %v8258, 7
        %v8260 = vsub.s32 %v8257, %v8259
        %v8261 = vrot.slane %v8247, %v8260
        %v8262 = vcombine.high %v8225, %v3108
        %v8264 = vunpack.c.l.s4 1983009808
        %v8265 = vunpack.c.0.s8 %v8264
        %v8266 = vlaneseq
        %v8267 = vshrl.u32 %v8266, 7
        %v8268 = vsub.s32 %v8265, %v8267
        %v8269 = vrot.slane %v8225, %v8268
        %v8271 = vunpack.c.l.s4 1983009808
        %v8272 = vunpack.c.0.s8 %v8271
        %v8273 = vlaneseq
        %v8274 = vshrl.u32 %v8273, 7
        %v8275 = vsub.s32 %v8272, %v8274
        %v8276 = vrot.slane %v8262, %v8275
        %v8277 = vcombine.low %v8254, %v8269
        %v8278 = vcombine.high %v8254, %v8269
        %v8280 = vunpack.c.l.s4 1934713408
        %v8281 = vunpack.c.0.s8 %v8280
        %v8282 = vlaneseq
        %v8283 = vshrl.u32 %v8282, 7
        %v8284 = vsub.s32 %v8281, %v8283
        %v8285 = vrot.slane %v8277, %v8284
        %v8287 = vunpack.c.l.s4 1934713408
        %v8288 = vunpack.c.0.s8 %v8287
        %v8289 = vlaneseq
        %v8290 = vshrl.u32 %v8289, 7
        %v8291 = vsub.s32 %v8288, %v8290
        %v8292 = vrot.slane %v8278, %v8291
        %v8293 = vcombine.low %v8261, %v8276
        %v8294 = vcombine.high %v8261, %v8276
        %v8296 = vunpack.c.l.s4 1934713408
        %v8297 = vunpack.c.0.s8 %v8296
        %v8298 = vlaneseq
        %v8299 = vshrl.u32 %v8298, 7
        %v8300 = vsub.s32 %v8297, %v8299
        %v8301 = vrot.slane %v8293, %v8300
        %v8303 = vunpack.c.l.s4 1934713408
        %v8304 = vunpack.c.0.s8 %v8303
        %v8305 = vlaneseq
        %v8306 = vshrl.u32 %v8305, 7
        %v8307 = vsub.s32 %v8304, %v8306
        %v8308 = vrot.slane %v8294, %v8307
        %v8309 = vcombine.high %v8285, 0
        %v8310 = vcombine.high %v8292, 0
        %v8311 = vcombine.high %v8301, 0
        %v8312 = vcombine.high %v8308, 0
        %v8313 = vcombine.high %v8221, %v3111
        %v8315 = vunpack.c.l.s4 1983009808
        %v8316 = vunpack.c.0.s8 %v8315
        %v8317 = vlaneseq
        %v8318 = vshrl.u32 %v8317, 7
        %v8319 = vsub.s32 %v8316, %v8318
        %v8320 = vrot.slane %v8221, %v8319
        %v8322 = vunpack.c.l.s4 1983009808
        %v8323 = vunpack.c.0.s8 %v8322
        %v8324 = vlaneseq
        %v8325 = vshrl.u32 %v8324, 7
        %v8326 = vsub.s32 %v8323, %v8325
        %v8327 = vrot.slane %v8313, %v8326
        %v8328 = vcombine.high %v8229, %v3111
        %v8330 = vunpack.c.l.s4 1983009808
        %v8331 = vunpack.c.0.s8 %v8330
        %v8332 = vlaneseq
        %v8333 = vshrl.u32 %v8332, 7
        %v8334 = vsub.s32 %v8331, %v8333
        %v8335 = vrot.slane %v8229, %v8334
        %v8337 = vunpack.c.l.s4 1983009808
        %v8338 = vunpack.c.0.s8 %v8337
        %v8339 = vlaneseq
        %v8340 = vshrl.u32 %v8339, 7
        %v8341 = vsub.s32 %v8338, %v8340
        %v8342 = vrot.slane %v8328, %v8341
        %v8343 = vcombine.low %v8320, %v8335
        %v8344 = vcombine.high %v8320, %v8335
        %v8346 = vunpack.c.l.s4 1934713408
        %v8347 = vunpack.c.0.s8 %v8346
        %v8348 = vlaneseq
        %v8349 = vshrl.u32 %v8348, 7
        %v8350 = vsub.s32 %v8347, %v8349
        %v8351 = vrot.slane %v8343, %v8350
        %v8353 = vunpack.c.l.s4 1934713408
        %v8354 = vunpack.c.0.s8 %v8353
        %v8355 = vlaneseq
        %v8356 = vshrl.u32 %v8355, 7
        %v8357 = vsub.s32 %v8354, %v8356
        %v8358 = vrot.slane %v8344, %v8357
        %v8359 = vcombine.low %v8327, %v8342
        %v8360 = vcombine.high %v8327, %v8342
        %v8362 = vunpack.c.l.s4 1934713408
        %v8363 = vunpack.c.0.s8 %v8362
        %v8364 = vlaneseq
        %v8365 = vshrl.u32 %v8364, 7
        %v8366 = vsub.s32 %v8363, %v8365
        %v8367 = vrot.slane %v8359, %v8366
        %v8369 = vunpack.c.l.s4 1934713408
        %v8370 = vunpack.c.0.s8 %v8369
        %v8371 = vlaneseq
        %v8372 = vshrl.u32 %v8371, 7
        %v8373 = vsub.s32 %v8370, %v8372
        %v8374 = vrot.slane %v8360, %v8373
        %v8375 = vcombine.high %v8351, 0
        %v8376 = vcombine.high %v8358, 0
        %v8377 = vcombine.high %v8367, 0
        %v8378 = vcombine.high %v8374, 0
        %v8379 = vcombine.high %v8233, %v3108
        %v8381 = vunpack.c.l.s4 1983009808
        %v8382 = vunpack.c.0.s8 %v8381
        %v8383 = vlaneseq
        %v8384 = vshrl.u32 %v8383, 7
        %v8385 = vsub.s32 %v8382, %v8384
        %v8386 = vrot.slane %v8233, %v8385
        %v8388 = vunpack.c.l.s4 1983009808
        %v8389 = vunpack.c.0.s8 %v8388
        %v8390 = vlaneseq
        %v8391 = vshrl.u32 %v8390, 7
        %v8392 = vsub.s32 %v8389, %v8391
        %v8393 = vrot.slane %v8379, %v8392
        %v8394 = vcombine.high %v8241, %v3108
        %v8396 = vunpack.c.l.s4 1983009808
        %v8397 = vunpack.c.0.s8 %v8396
        %v8398 = vlaneseq
        %v8399 = vshrl.u32 %v8398, 7
        %v8400 = vsub.s32 %v8397, %v8399
        %v8401 = vrot.slane %v8241, %v8400
        %v8403 = vunpack.c.l.s4 1983009808
        %v8404 = vunpack.c.0.s8 %v8403
        %v8405 = vlaneseq
        %v8406 = vshrl.u32 %v8405, 7
        %v8407 = vsub.s32 %v8404, %v8406
        %v8408 = vrot.slane %v8394, %v8407
        %v8409 = vcombine.low %v8386, %v8401
        %v8410 = vcombine.high %v8386, %v8401
        %v8412 = vunpack.c.l.s4 1934713408
        %v8413 = vunpack.c.0.s8 %v8412
        %v8414 = vlaneseq
        %v8415 = vshrl.u32 %v8414, 7
        %v8416 = vsub.s32 %v8413, %v8415
        %v8417 = vrot.slane %v8409, %v8416
        %v8419 = vunpack.c.l.s4 1934713408
        %v8420 = vunpack.c.0.s8 %v8419
        %v8421 = vlaneseq
        %v8422 = vshrl.u32 %v8421, 7
        %v8423 = vsub.s32 %v8420, %v8422
        %v8424 = vrot.slane %v8410, %v8423
        %v8425 = vcombine.low %v8393, %v8408
        %v8426 = vcombine.high %v8393, %v8408
        %v8428 = vunpack.c.l.s4 1934713408
        %v8429 = vunpack.c.0.s8 %v8428
        %v8430 = vlaneseq
        %v8431 = vshrl.u32 %v8430, 7
        %v8432 = vsub.s32 %v8429, %v8431
        %v8433 = vrot.slane %v8425, %v8432
        %v8435 = vunpack.c.l.s4 1934713408
        %v8436 = vunpack.c.0.s8 %v8435
        %v8437 = vlaneseq
        %v8438 = vshrl.u32 %v8437, 7
        %v8439 = vsub.s32 %v8436, %v8438
        %v8440 = vrot.slane %v8426, %v8439
        %v8441 = vcombine.high %v8417, 0
        %v8442 = vcombine.high %v8424, 0
        %v8443 = vcombine.high %v8433, 0
        %v8444 = vcombine.high %v8440, 0
        %v8445 = vcombine.high %v8237, %v3111
        %v8447 = vunpack.c.l.s4 1983009808
        %v8448 = vunpack.c.0.s8 %v8447
        %v8449 = vlaneseq
        %v8450 = vshrl.u32 %v8449, 7
        %v8451 = vsub.s32 %v8448, %v8450
        %v8452 = vrot.slane %v8237, %v8451
        %v8454 = vunpack.c.l.s4 1983009808
        %v8455 = vunpack.c.0.s8 %v8454
        %v8456 = vlaneseq
        %v8457 = vshrl.u32 %v8456, 7
        %v8458 = vsub.s32 %v8455, %v8457
        %v8459 = vrot.slane %v8445, %v8458
        %v8460 = vcombine.high %v8245, %v3111
        %v8462 = vunpack.c.l.s4 1983009808
        %v8463 = vunpack.c.0.s8 %v8462
        %v8464 = vlaneseq
        %v8465 = vshrl.u32 %v8464, 7
        %v8466 = vsub.s32 %v8463, %v8465
        %v8467 = vrot.slane %v8245, %v8466
        %v8469 = vunpack.c.l.s4 1983009808
        %v8470 = vunpack.c.0.s8 %v8469
        %v8471 = vlaneseq
        %v8472 = vshrl.u32 %v8471, 7
        %v8473 = vsub.s32 %v8470, %v8472
        %v8474 = vrot.slane %v8460, %v8473
        %v8475 = vcombine.low %v8452, %v8467
        %v8476 = vcombine.high %v8452, %v8467
        %v8478 = vunpack.c.l.s4 1934713408
        %v8479 = vunpack.c.0.s8 %v8478
        %v8480 = vlaneseq
        %v8481 = vshrl.u32 %v8480, 7
        %v8482 = vsub.s32 %v8479, %v8481
        %v8483 = vrot.slane %v8475, %v8482
        %v8485 = vunpack.c.l.s4 1934713408
        %v8486 = vunpack.c.0.s8 %v8485
        %v8487 = vlaneseq
        %v8488 = vshrl.u32 %v8487, 7
        %v8489 = vsub.s32 %v8486, %v8488
        %v8490 = vrot.slane %v8476, %v8489
        %v8491 = vcombine.low %v8459, %v8474
        %v8492 = vcombine.high %v8459, %v8474
        %v8494 = vunpack.c.l.s4 1934713408
        %v8495 = vunpack.c.0.s8 %v8494
        %v8496 = vlaneseq
        %v8497 = vshrl.u32 %v8496, 7
        %v8498 = vsub.s32 %v8495, %v8497
        %v8499 = vrot.slane %v8491, %v8498
        %v8501 = vunpack.c.l.s4 1934713408
        %v8502 = vunpack.c.0.s8 %v8501
        %v8503 = vlaneseq
        %v8504 = vshrl.u32 %v8503, 7
        %v8505 = vsub.s32 %v8502, %v8504
        %v8506 = vrot.slane %v8492, %v8505
        %v8507 = vcombine.high %v8483, 0
        %v8508 = vcombine.high %v8490, 0
        %v8509 = vcombine.high %v8499, 0
        %v8510 = vcombine.high %v8506, 0
        %8512 = vrot.lane.b32.xlu0 %v8351, 32
        %v8513 = vpop.permute.xlu0 %8512
        %8515 = vrot.lane.b32.xlu0 %v8309, 64
        %v8516 = vpop.permute.xlu0 %8515
        %8518 = vrot.lane.b32.xlu0 %v8375, 96
        %v8519 = vpop.permute.xlu0 %8518
        %8521 = vrot.lane.b32.xlu0 %v8358, 32
        %v8522 = vpop.permute.xlu0 %8521
        %8524 = vrot.lane.b32.xlu0 %v8310, 64
        %v8525 = vpop.permute.xlu0 %8524
        %8527 = vrot.lane.b32.xlu0 %v8376, 96
        %v8528 = vpop.permute.xlu0 %8527
        %8530 = vrot.lane.b32.xlu0 %v8367, 32
        %v8531 = vpop.permute.xlu0 %8530
        %8533 = vrot.lane.b32.xlu0 %v8311, 64
        %v8534 = vpop.permute.xlu0 %8533
        %8536 = vrot.lane.b32.xlu0 %v8377, 96
        %v8537 = vpop.permute.xlu0 %8536
        %8539 = vrot.lane.b32.xlu0 %v8374, 32
        %v8540 = vpop.permute.xlu0 %8539
        %8542 = vrot.lane.b32.xlu0 %v8312, 64
        %v8543 = vpop.permute.xlu0 %8542
        %8545 = vrot.lane.b32.xlu0 %v8378, 96
        %v8546 = vpop.permute.xlu0 %8545
        %8548 = vrot.lane.b32.xlu0 %v8483, 32
        %v8549 = vpop.permute.xlu0 %8548
        %8551 = vrot.lane.b32.xlu0 %v8441, 64
        %v8552 = vpop.permute.xlu0 %8551
        %8554 = vrot.lane.b32.xlu0 %v8507, 96
        %v8555 = vpop.permute.xlu0 %8554
        %8557 = vrot.lane.b32.xlu0 %v8490, 32
        %v8558 = vpop.permute.xlu0 %8557
        %8560 = vrot.lane.b32.xlu0 %v8442, 64
        %v8561 = vpop.permute.xlu0 %8560
        %8563 = vrot.lane.b32.xlu0 %v8508, 96
        %v8564 = vpop.permute.xlu0 %8563
        %8566 = vrot.lane.b32.xlu0 %v8499, 32
        %v8567 = vpop.permute.xlu0 %8566
        %8569 = vrot.lane.b32.xlu0 %v8443, 64
        %v8570 = vpop.permute.xlu0 %8569
        %8572 = vrot.lane.b32.xlu0 %v8509, 96
        %v8573 = vpop.permute.xlu0 %8572
        %8575 = vrot.lane.b32.xlu0 %v8506, 32
        %v8576 = vpop.permute.xlu0 %8575
        %8578 = vrot.lane.b32.xlu0 %v8444, 64
        %v8579 = vpop.permute.xlu0 %8578
        %8581 = vrot.lane.b32.xlu0 %v8510, 96
        %v8582 = vpop.permute.xlu0 %8581
        %v8585 = vsel %vm3465, %v8285, %v8513
        %v8587 = vsel %vm3469, %v8585, %v8516
        %v8589 = vsel %vm3472, %v8587, %v8519
        %v8592 = vsel %vm3465, %v8292, %v8522
        %v8594 = vsel %vm3469, %v8592, %v8525
        %v8596 = vsel %vm3472, %v8594, %v8528
        %v8599 = vsel %vm3465, %v8301, %v8531
        %v8601 = vsel %vm3469, %v8599, %v8534
        %v8603 = vsel %vm3472, %v8601, %v8537
        %v8606 = vsel %vm3465, %v8308, %v8540
        %v8608 = vsel %vm3469, %v8606, %v8543
        %v8610 = vsel %vm3472, %v8608, %v8546
        %v8613 = vsel %vm3465, %v8417, %v8549
        %v8615 = vsel %vm3469, %v8613, %v8552
        %v8617 = vsel %vm3472, %v8615, %v8555
        %v8620 = vsel %vm3465, %v8424, %v8558
        %v8622 = vsel %vm3469, %v8620, %v8561
        %v8624 = vsel %vm3472, %v8622, %v8564
        %v8627 = vsel %vm3465, %v8433, %v8567
        %v8629 = vsel %vm3469, %v8627, %v8570
        %v8631 = vsel %vm3472, %v8629, %v8573
        %v8634 = vsel %vm3465, %v8440, %v8576
        %v8636 = vsel %vm3469, %v8634, %v8579
        %v8638 = vsel %vm3472, %v8636, %v8582
        %s8639 = scalar_lea.vmem %s2, 32
        %v8640 = vld [vmem:[%s8639] sm:$0xf]
        %v8642 = vsel %vm3975, %v8640, 0
        %v8644 = vsel %vm3979, %v8589, 0
        %v8646 = vsel %vm3979, %v8596, 0
        %v8648 = vsel %vm3979, %v8603, 0
        %v8650 = vsel %vm3979, %v8610, 0
        %v8652 = vsel %vm3979, %v8617, 0
        %v8654 = vsel %vm3979, %v8624, 0
        %v8656 = vsel %vm3979, %v8631, 0
        %v8658 = vsel %vm3979, %v8638, 0
        %8660 = vmatprep.subr.bf16.mxu0 0
        %8661 = vmatpush1.bf16.msra.mxu0 0
        %8662 = vmatprep.subr.bf16.mxu0 0
        %8663 = vmatpush1.bf16.msra.mxu0 0
        %8664 = vmatprep.subr.bf16.mxu0 0
        %8665 = vmatpush1.bf16.msra.mxu0 0
        %8666 = vmatprep.subr.bf16.mxu0 0
        %8667 = vmatpush1.bf16.msra.mxu0 0
        %8668 = vmatprep.subr.bf16.mxu0 0
        %8669 = vmatpush1.bf16.msra.mxu0 0
        %8670 = vmatprep.subr.bf16.mxu0 0
        %8671 = vmatpush1.bf16.msra.mxu0 0
        %8672 = vmatprep.subr.bf16.mxu0 0
        %8673 = vmatpush1.bf16.msra.mxu0 0
        %8674 = vmatprep.subr.bf16.mxu0 %v8646
        %8675 = vmatpush1.bf16.msra.mxu0 %v8644
        %8676 = vmatprep.subr.bf16.mxu0 0
        %8677 = vmatpush2.bf16.msra.mxu0 0
        %8678 = vmatprep.subr.bf16.mxu0 0
        %8679 = vmatpush2.bf16.msra.mxu0 0
        %8680 = vmatprep.subr.bf16.mxu0 0
        %8681 = vmatpush2.bf16.msra.mxu0 0
        %8682 = vmatprep.subr.bf16.mxu0 0
        %8683 = vmatpush2.bf16.msra.mxu0 0
        %8684 = vmatprep.subr.bf16.mxu0 0
        %8685 = vmatpush2.bf16.msra.mxu0 0
        %8686 = vmatprep.subr.bf16.mxu0 0
        %8687 = vmatpush2.bf16.msra.mxu0 0
        %8688 = vmatprep.subr.bf16.mxu0 0
        %8689 = vmatpush2.bf16.msra.mxu0 0
        %8690 = vmatprep.subr.bf16.mxu0 0
        %8691 = vmatpush2.bf16.msra.mxu0 0
        %8692 = vmatprep.mubr.bf16.mxu0 0
        %8693 = vmatmul.mubr.bf16.gmra.mxu0 %v8642
        %v8694 = vpop.f32.mrf.mxu0
        %v8695 = vadd.f32 0.0, %v8694
        %v8696 = vpop.f32.mrf.mxu0
        %v8697 = vadd.f32 0.0, %v8696
        %v8698 = vpop.f32.mrf.mxu0
        %v8699 = vpop.f32.mrf.mxu0
        %8700 = vdwg.mxu0
        %8701 = vmatprep.subr.bf16.mxu0 0
        %8702 = vmatpush1.bf16.msra.mxu0 0
        %8703 = vmatprep.subr.bf16.mxu0 0
        %8704 = vmatpush1.bf16.msra.mxu0 0
        %8705 = vmatprep.subr.bf16.mxu0 0
        %8706 = vmatpush1.bf16.msra.mxu0 0
        %8707 = vmatprep.subr.bf16.mxu0 0
        %8708 = vmatpush1.bf16.msra.mxu0 0
        %8709 = vmatprep.subr.bf16.mxu0 0
        %8710 = vmatpush1.bf16.msra.mxu0 0
        %8711 = vmatprep.subr.bf16.mxu0 0
        %8712 = vmatpush1.bf16.msra.mxu0 0
        %8713 = vmatprep.subr.bf16.mxu0 0
        %8714 = vmatpush1.bf16.msra.mxu0 0
        %8715 = vmatprep.subr.bf16.mxu0 %v8650
        %8716 = vmatpush1.bf16.msra.mxu0 %v8648
        %8717 = vmatprep.subr.bf16.mxu0 0
        %8718 = vmatpush2.bf16.msra.mxu0 0
        %8719 = vmatprep.subr.bf16.mxu0 0
        %8720 = vmatpush2.bf16.msra.mxu0 0
        %8721 = vmatprep.subr.bf16.mxu0 0
        %8722 = vmatpush2.bf16.msra.mxu0 0
        %8723 = vmatprep.subr.bf16.mxu0 0
        %8724 = vmatpush2.bf16.msra.mxu0 0
        %8725 = vmatprep.subr.bf16.mxu0 0
        %8726 = vmatpush2.bf16.msra.mxu0 0
        %8727 = vmatprep.subr.bf16.mxu0 0
        %8728 = vmatpush2.bf16.msra.mxu0 0
        %8729 = vmatprep.subr.bf16.mxu0 0
        %8730 = vmatpush2.bf16.msra.mxu0 0
        %8731 = vmatprep.subr.bf16.mxu0 0
        %8732 = vmatpush2.bf16.msra.mxu0 0
        %8733 = vmatprep.mubr.bf16.mxu0 0
        %8734 = vmatmul.mubr.bf16.gmra.mxu0 %v8642
        %v8735 = vpop.f32.mrf.mxu0
        %v8736 = vadd.f32 0.0, %v8735
        %v8737 = vpop.f32.mrf.mxu0
        %v8738 = vadd.f32 0.0, %v8737
        %v8739 = vpop.f32.mrf.mxu0
        %v8740 = vpop.f32.mrf.mxu0
        %8741 = vdwg.mxu0
        %8742 = vmatprep.subr.bf16.mxu0 0
        %8743 = vmatpush1.bf16.msra.mxu0 0
        %8744 = vmatprep.subr.bf16.mxu0 0
        %8745 = vmatpush1.bf16.msra.mxu0 0
        %8746 = vmatprep.subr.bf16.mxu0 0
        %8747 = vmatpush1.bf16.msra.mxu0 0
        %8748 = vmatprep.subr.bf16.mxu0 0
        %8749 = vmatpush1.bf16.msra.mxu0 0
        %8750 = vmatprep.subr.bf16.mxu0 0
        %8751 = vmatpush1.bf16.msra.mxu0 0
        %8752 = vmatprep.subr.bf16.mxu0 0
        %8753 = vmatpush1.bf16.msra.mxu0 0
        %8754 = vmatprep.subr.bf16.mxu0 0
        %8755 = vmatpush1.bf16.msra.mxu0 0
        %8756 = vmatprep.subr.bf16.mxu0 %v8654
        %8757 = vmatpush1.bf16.msra.mxu0 %v8652
        %8758 = vmatprep.subr.bf16.mxu0 0
        %8759 = vmatpush2.bf16.msra.mxu0 0
        %8760 = vmatprep.subr.bf16.mxu0 0
        %8761 = vmatpush2.bf16.msra.mxu0 0
        %8762 = vmatprep.subr.bf16.mxu0 0
        %8763 = vmatpush2.bf16.msra.mxu0 0
        %8764 = vmatprep.subr.bf16.mxu0 0
        %8765 = vmatpush2.bf16.msra.mxu0 0
        %8766 = vmatprep.subr.bf16.mxu0 0
        %8767 = vmatpush2.bf16.msra.mxu0 0
        %8768 = vmatprep.subr.bf16.mxu0 0
        %8769 = vmatpush2.bf16.msra.mxu0 0
        %8770 = vmatprep.subr.bf16.mxu0 0
        %8771 = vmatpush2.bf16.msra.mxu0 0
        %8772 = vmatprep.subr.bf16.mxu0 0
        %8773 = vmatpush2.bf16.msra.mxu0 0
        %8774 = vmatprep.mubr.bf16.mxu0 0
        %8775 = vmatmul.mubr.bf16.gmra.mxu0 %v8642
        %v8776 = vpop.f32.mrf.mxu0
        %v8777 = vadd.f32 0.0, %v8776
        %v8778 = vpop.f32.mrf.mxu0
        %v8779 = vadd.f32 0.0, %v8778
        %v8780 = vpop.f32.mrf.mxu0
        %v8781 = vpop.f32.mrf.mxu0
        %8782 = vdwg.mxu0
        %8783 = vmatprep.subr.bf16.mxu0 0
        %8784 = vmatpush1.bf16.msra.mxu0 0
        %8785 = vmatprep.subr.bf16.mxu0 0
        %8786 = vmatpush1.bf16.msra.mxu0 0
        %8787 = vmatprep.subr.bf16.mxu0 0
        %8788 = vmatpush1.bf16.msra.mxu0 0
        %8789 = vmatprep.subr.bf16.mxu0 0
        %8790 = vmatpush1.bf16.msra.mxu0 0
        %8791 = vmatprep.subr.bf16.mxu0 0
        %8792 = vmatpush1.bf16.msra.mxu0 0
        %8793 = vmatprep.subr.bf16.mxu0 0
        %8794 = vmatpush1.bf16.msra.mxu0 0
        %8795 = vmatprep.subr.bf16.mxu0 0
        %8796 = vmatpush1.bf16.msra.mxu0 0
        %8797 = vmatprep.subr.bf16.mxu0 %v8658
        %8798 = vmatpush1.bf16.msra.mxu0 %v8656
        %8799 = vmatprep.subr.bf16.mxu0 0
        %8800 = vmatpush2.bf16.msra.mxu0 0
        %8801 = vmatprep.subr.bf16.mxu0 0
        %8802 = vmatpush2.bf16.msra.mxu0 0
        %8803 = vmatprep.subr.bf16.mxu0 0
        %8804 = vmatpush2.bf16.msra.mxu0 0
        %8805 = vmatprep.subr.bf16.mxu0 0
        %8806 = vmatpush2.bf16.msra.mxu0 0
        %8807 = vmatprep.subr.bf16.mxu0 0
        %8808 = vmatpush2.bf16.msra.mxu0 0
        %8809 = vmatprep.subr.bf16.mxu0 0
        %8810 = vmatpush2.bf16.msra.mxu0 0
        %8811 = vmatprep.subr.bf16.mxu0 0
        %8812 = vmatpush2.bf16.msra.mxu0 0
        %8813 = vmatprep.subr.bf16.mxu0 0
        %8814 = vmatpush2.bf16.msra.mxu0 0
        %8815 = vmatprep.mubr.bf16.mxu0 0
        %8816 = vmatmul.mubr.bf16.gmra.mxu0 %v8642
        %v8817 = vpop.f32.mrf.mxu0
        %v8818 = vadd.f32 0.0, %v8817
        %v8819 = vpop.f32.mrf.mxu0
        %v8820 = vadd.f32 0.0, %v8819
        %v8821 = vpop.f32.mrf.mxu0
        %v8822 = vpop.f32.mrf.mxu0
        %8823 = vdwg.mxu0
        %v8824 = vadd.f32 %v8191, %v8695
        %v8825 = vadd.f32 %v8192, %v8697
        %v8826 = vadd.f32 %v8193, %v8736
        %v8827 = vadd.f32 %v8194, %v8738
        %v8828 = vadd.f32 %v8195, %v8777
        %v8829 = vadd.f32 %v8196, %v8779
        %v8830 = vadd.f32 %v8197, %v8818
        %v8831 = vadd.f32 %v8198, %v8820
        %v8832 = vld [vmem:[%s3] sm:$0xff]
        %8834 = vset.pattern.permute.xlu0 0
        %8835 = vperm.xlu0 %8834, %v8832
        %v8836 = vpop.permute.xlu0 %8835
        %v8838 = vadd.f32 %v8824, %v8836
        %v8839 = vadd.f32 %v8825, %v8836
        %v8840 = vadd.f32 %v8826, %v8836
        %v8841 = vadd.f32 %v8827, %v8836
        %v8842 = vadd.f32 %v8828, %v8836
        %v8843 = vadd.f32 %v8829, %v8836
        %v8844 = vadd.f32 %v8830, %v8836
        %v8845 = vadd.f32 %v8831, %v8836
        %8846 = vst [vmem:[%s204] sm:$0xff] %v8838
        %8847 = vst [vmem:[%s204 + $0x8] sm:$0xff] %v8839
        %8848 = vst [vmem:[%s204 + $0x10] sm:$0xff] %v8840
        %8849 = vst [vmem:[%s204 + $0x18] sm:$0xff] %v8841
        %8850 = vst [vmem:[%s204 + $0x20] sm:$0xff] %v8842
        %8851 = vst [vmem:[%s204 + $0x28] sm:$0xff] %v8843
        %8852 = vst [vmem:[%s204 + $0x30] sm:$0xff] %v8844
        %8853 = vst [vmem:[%s204 + $0x38] sm:$0xff] %v8845
        %s8854 = sand.u32 %s129, 1
        %s8855 = scalar_lea.sflag [#allocation3], %s8854
        %s8856 = sand.u32 %s129, 1
        %s8857 = smul.addr %s8856, 64
        %s8858 = scalar_lea.vmem [#allocation2], %s8857
        // Predicated region
        $region37: #{tpu_custom_call.1} parent=35 // pred_check
          %p8859 = pneg %p139
        $region38: #{tpu_custom_call.1} parent=35 // pred_check_branch
          %8861 = sbr.rel (%p8859) target = $region40
        $region39: #{tpu_custom_call.1} parent=35 // pred_region
          %s8862 = smul.u32 8, %s23
          %s8864 = ssub.s32 1024, 1024
          %8865 = vsyncadd %s8855, %s8864
          %s8866 = smul.addr %s22, 8
          %s8867 = sadd.s32 %s8862, %s8866
          %s8868 = smul.addr %s8867, 128
          %s8869 = scalar_lea.hbm %s4, %s8868
          %s8871 = sshll.u32 %s8858, 4
          %s8872 = int_to_ptr.vmem [resolvable:$true] %s8871
          %8874 = dma.vmem_to_hbm [thread:$0]  %s8872, 1024, %s8869, %s8855
        $region40: #{tpu_custom_call.1} parent=35 // pred_fallthru
          _
      $region36: #{tpu_custom_call.1} parent=5 // pred_fallthru
        _
      %p8875 = scmp.le.s32.totalorder 2, %s13
      // Predicated region
      $region41: #{tpu_custom_call.1} parent=5 // pred_check
        %p8876 = pneg %p8875
      $region42: #{tpu_custom_call.1} parent=5 // pred_check_branch
        %8878 = sbr.rel (%p8876) target = $region44
      $region43: #{tpu_custom_call.1} parent=5 // pred_region
        %s8879 = ssub.s32 %s13, 2
        // Predicated region
        $region45: #{tpu_custom_call.1} parent=43 // pred_check
          %p8880 = pneg %p145
        $region46: #{tpu_custom_call.1} parent=43 // pred_check_branch
          %8882 = sbr.rel (%p8880) target = $region48
        $region47: #{tpu_custom_call.1} parent=43 // pred_region
          %s8883 = sand.u32 %s130, 1
          %s8884 = scalar_lea.sflag [#allocation3], %s8883
          %s8885 = sand.u32 %s130, 1
          %s8886 = smul.addr %s8885, 64
          %s8887 = scalar_lea.vmem [#allocation2], %s8886
          %8888 = dma.done %s8884, 1024
        $region48: #{tpu_custom_call.1} parent=43 // pred_fallthru
          _
      $region44: #{tpu_custom_call.1} parent=5 // pred_fallthru
        _
    $region6: #{tpu_custom_call.1} parent=1 // loop_footer
      %s17 = sadd.s32 1, %s13
    $region7: #{tpu_custom_call.1} parent=1 // loop_footer_branch
      %12 = sbr.rel target = $region3
    $region8: #{tpu_custom_call.1} parent=1 // loop_exit
      _
    %8889 = vsyncpa [#allocation3], 1
    %s8890 = scalar_lea.sflag [#allocation3], 1
    %8891 = vsyncpa %s8890, 1

</llo_original>
